<compile_context>
chip_gen: v6e
topology: v6e:2x2x1
jax: 0.10.0
libtpu: 0.0.40
codegen_flags: <defaults>
</compile_context>

<pallas_src>
import numpy as np

import jax
import jax.numpy as jnp
from jax.experimental import pallas as pl
from jax.experimental.pallas import tpu as pltpu

_NUM_CLASSES = 10
_HALF = 512        # per-parity output column width of the conv kernels

_COMPILER_PARAMS = pltpu.CompilerParams(
    dimension_semantics=("parallel",),
    vmem_limit_bytes=48 * 1024 * 1024,
)


# ---------------------------------------------------------------------------
# Tile choosers
# ---------------------------------------------------------------------------

def _round_up(x, m):
    return -(-x // m) * m


def _pick_rows(m, tm_max):
    """Row tile for the fc layer: 8-aligned, >=2 grid steps when possible."""
    if m <= 8:
        return m, m                           # single full block (legal)
    m_pad = _round_up(m, 8)
    tm = min(tm_max, m_pad)
    if tm == m_pad and m_pad >= 16:           # force >=2 steps (v7x megacore)
        tm = _round_up(m_pad // 2, 8)
    m_pad = _round_up(m_pad, tm)
    return tm, m_pad


def _pick_batch_tile(b, tb_max=32):
    """Images per conv grid step; keeps grid >= 2 whenever b >= 2."""
    tb = 1
    while tb * 2 <= tb_max and b % (tb * 2) == 0 and b // (tb * 2) >= 2:
        tb *= 2
    return tb


# ---------------------------------------------------------------------------
# Pallas kernels
# ---------------------------------------------------------------------------

def _conv_pool_kernel(xe_ref, xo_ref, g_ref, b_ref, o_ref):
    """Fused 3x3 conv (banded matmuls) + bias + ReLU + 2x2 max-pool.

    xe_ref/xo_ref: (R, Kc)   even / odd padded input rows (R = TB*rows/parity)
    g_ref:         (3, Kc, 2*_HALF)  banded weights per dy; columns are
                   [even output cols | odd output cols], each _HALF wide
    b_ref:         (1, _HALF)        bias tiled over pooled output columns
    o_ref:         (R, _HALF)        pooled activations
    """
    f32 = jnp.float32
    xe = xe_ref[...]
    xo = xo_ref[...]
    kc = xe.shape[1]
    zrow = jnp.zeros((1, kc), xe.dtype)
    sxe = jnp.concatenate([xe[1:, :], zrow], axis=0)   # rows shifted up by one
    sxo = jnp.concatenate([xo[1:, :], zrow], axis=0)
    g0 = g_ref[0]
    g1 = g_ref[1]
    g2 = g_ref[2]
    # conv rows h = 2i (A) and h = 2i+1 (B); dy taps are the row parities
    acc_a = (jnp.dot(xe, g0, preferred_element_type=f32)
             + jnp.dot(xo, g1, preferred_element_type=f32)
             + jnp.dot(sxe, g2, preferred_element_type=f32))
    acc_b = (jnp.dot(xo, g0, preferred_element_type=f32)
             + jnp.dot(sxe, g1, preferred_element_type=f32)
             + jnp.dot(sxo, g2, preferred_element_type=f32))
    m = jnp.maximum(acc_a, acc_b)                       # max-pool over h pair
    m = jnp.maximum(m[:, :_HALF], m[:, _HALF:])         # max-pool over w pair
    m = jnp.maximum(m + b_ref[...].astype(f32), 0.0)    # bias + ReLU (monotone)
    o_ref[...] = m.astype(o_ref.dtype)


def _fc_kernel(x_ref, w1_ref, b1_ref, w2_ref, b2_ref, o_ref):
    """Fused Linear(+ReLU)+Linear; fc2 output padded to 128 lanes."""
    f32 = jnp.float32
    h = jnp.dot(x_ref[...], w1_ref[...], preferred_element_type=f32)
    h = jnp.maximum(h + b1_ref[...].astype(f32), 0.0)
    o = jnp.dot(h, w2_ref[...], preferred_element_type=f32)
    o_ref[...] = (o + b2_ref[...].astype(f32)).astype(o_ref.dtype)


# ---------------------------------------------------------------------------
# pallas_call wrappers
# ---------------------------------------------------------------------------

def _conv_pool(xe, xo, g, bias_w, *, out_dtype, tb, rpi):
    rows, kc = xe.shape
    b = rows // rpi
    blk = tb * rpi
    return pl.pallas_call(
        _conv_pool_kernel,
        out_shape=jax.ShapeDtypeStruct((rows, _HALF), out_dtype),
        grid=(b // tb,),
        in_specs=[
            pl.BlockSpec((blk, kc), lambda i: (i, 0)),      # even rows, streamed
            pl.BlockSpec((blk, kc), lambda i: (i, 0)),      # odd rows, streamed
            pl.BlockSpec(g.shape, lambda i: (0, 0, 0)),     # banded weights, resident
            pl.BlockSpec((1, _HALF), lambda i: (0, 0)),     # bias, resident
        ],
        out_specs=pl.BlockSpec((blk, _HALF), lambda i: (i, 0)),
        compiler_params=_COMPILER_PARAMS,
    )(xe, xo, g, bias_w)


def _fc_fused(x, w1, b1, w2, b2, *, tm_max=512):
    m, k = x.shape
    tm, m_pad = _pick_rows(m, tm_max)
    if m_pad != m:
        x = jnp.pad(x, ((0, m_pad - m), (0, 0)))
    out = pl.pallas_call(
        _fc_kernel,
        out_shape=jax.ShapeDtypeStruct((m_pad, 128), jnp.float32),
        grid=(m_pad // tm,),
        in_specs=[
            pl.BlockSpec((tm, k), lambda i: (i, 0)),        # activations, streamed
            pl.BlockSpec(w1.shape, lambda i: (0, 0)),       # fc1 weights, resident
            pl.BlockSpec((1, 128), lambda i: (0, 0)),
            pl.BlockSpec((128, 128), lambda i: (0, 0)),     # fc2 weights, resident
            pl.BlockSpec((1, 128), lambda i: (0, 0)),
        ],
        out_specs=pl.BlockSpec((tm, 128), lambda i: (i, 0)),
        compiler_params=_COMPILER_PARAMS,
    )(x, w1, b1.reshape(1, -1), w2, b2.reshape(1, -1))
    return out[:m] if m_pad != m else out


# ---------------------------------------------------------------------------
# CNN forward (wrapper glue is small pad / parity-split / reshape only)
# ---------------------------------------------------------------------------

@jax.jit
def cnn_forward(x_nchw, params):
    B = x_nchw.shape[0]
    f32, bf16 = jnp.float32, jnp.bfloat16
    tb = _pick_batch_tile(B)

    # ---- conv1 (f32 MXU): pad H to 32 / W to 30, parity-split rows --------
    x = x_nchw.reshape(B, 28, 28).astype(f32)            # Cin == 1
    xp = jnp.pad(x, ((0, 0), (1, 3), (1, 1)))            # (B, 32, 30)
    xe1 = xp[:, 0::2, :].reshape(B * 16, 30)
    xo1 = xp[:, 1::2, :].reshape(B * 16, 30)
    y1 = _conv_pool(xe1, xo1, params["g1"], params["b1w"],
                    out_dtype=bf16, tb=tb, rpi=16)        # (B*16, 512)

    # ---- conv1 -> conv2 glue: compact, re-pad, parity split ---------------
    y1 = y1.reshape(B, 16, _HALF)[:, :14, :448].reshape(B, 14, 14, 32)
    y1 = jnp.pad(y1, ((0, 0), (1, 1), (1, 1), (0, 0)))    # (B, 16, 16, 32)
    xe2 = y1[:, 0::2].reshape(B * 8, 512)
    xo2 = y1[:, 1::2].reshape(B * 8, 512)
    y2 = _conv_pool(xe2, xo2, params["g2"], params["b2w"],
                    out_dtype=bf16, tb=tb, rpi=8)         # (B*8, 512)

    # ---- fc1 + fc2 fused ---------------------------------------------------
    feat = y2.reshape(B, 8 * _HALF)                       # wide flatten; zero fc1 rows
    logits = _fc_fused(feat, params["wfc1w"], params["bfc1"],
                       params["wfc2p"], params["bfc2p"])  # (B, 128) f32
    return logits[:, :_NUM_CLASSES]


# ---------------------------------------------------------------------------
# Parameter init / prep
# ---------------------------------------------------------------------------

def init_params():
    """Random params.  Conv weights are HWIO (3,3,Cin,Cout); fc weights are
    (in_features, out_features) with rows in torch's NCHW flatten order.
    NOTE: real PyTorch checkpoints store Conv2d weights as OIHW (use
    w.transpose(2,3,1,0)) and Linear weights as (out,in) (use w.T)."""
    key = jax.random.PRNGKey(0)
    ks = jax.random.split(key, 8)
    f32 = jnp.float32
    return {
        "w1": 0.1 * jax.random.normal(ks[0], (3, 3, 1, 32), f32),
        "b1": 0.01 * jax.random.normal(ks[1], (32,), f32),
        "w2": 0.1 * jax.random.normal(ks[2], (3, 3, 32, 64), f32),
        "b2": 0.01 * jax.random.normal(ks[3], (64,), f32),
        "wfc1": 0.02 * jax.random.normal(ks[4], (64 * 7 * 7, 128), f32),
        "bfc1": 0.01 * jax.random.normal(ks[5], (128,), f32),
        "wfc2": 0.02 * jax.random.normal(ks[6], (128, _NUM_CLASSES), f32),
        "bfc2": 0.01 * jax.random.normal(ks[7], (_NUM_CLASSES,), f32),
    }


def _banded_conv_weights(w_hwio, padded_w, out_w):
    """Banded matrix per dy: rows = padded_W*Cin, cols = [even w | odd w]."""
    kh, kw, cin, cout = w_hwio.shape
    jmax = out_w // 2
    g = np.zeros((kh, padded_w * cin, 2 * _HALF), np.float32)
    for dy in range(kh):
        for par in range(2):                       # output col parity
            for j in range(jmax):
                w_pos = 2 * j + par
                for dx in range(kw):
                    wx = w_pos + dx                # padded input column block
                    g[dy, wx * cin:(wx + 1) * cin,
                      par * _HALF + j * cout: par * _HALF + (j + 1) * cout] = \
                        w_hwio[dy, dx]
    return g


def _tiled_bias(b, jmax):
    cout = b.shape[0]
    out = np.zeros((1, _HALF), np.float32)
    for j in range(jmax):
        out[0, j * cout:(j + 1) * cout] = b
    return out


def prepare_params(p):
    """One-time re-layout to matmul-ready banded / wide / padded weights."""
    bf16 = jnp.bfloat16
    g1 = _banded_conv_weights(np.asarray(p["w1"]), padded_w=30, out_w=28)
    g2 = _banded_conv_weights(np.asarray(p["w2"]), padded_w=16, out_w=14)
    b1w = _tiled_bias(np.asarray(p["b1"]), jmax=14)
    b2w = _tiled_bias(np.asarray(p["b2"]), jmax=7)
    # fc1: torch rows are (c, i, j); scatter into conv2's wide (i, j, c) layout
    wfc1 = np.asarray(p["wfc1"]).reshape(64, 7, 7, 128).transpose(1, 2, 0, 3)
    wide = np.zeros((8, 8, 64, 128), np.float32)
    wide[:7, :7] = wfc1                               # zero rows mask garbage
    wfc1w = wide.reshape(8 * _HALF, 128)
    # fc2: pad to 128 output lanes (lane-dense store), slice to 10 in wrapper
    wfc2p = np.zeros((128, 128), np.float32)
    wfc2p[:, :_NUM_CLASSES] = np.asarray(p["wfc2"])
    bfc2p = np.zeros((128,), np.float32)
    bfc2p[:_NUM_CLASSES] = np.asarray(p["bfc2"])
    return {
        "g1": jnp.asarray(g1, jnp.float32),           # conv1 kept f32 (input fidelity)
        "b1w": jnp.asarray(b1w, jnp.float32),
        "g2": jnp.asarray(g2, bf16),
        "b2w": jnp.asarray(b2w, jnp.float32),
        "wfc1w": jnp.asarray(wfc1w, bf16),
        "bfc1": jnp.asarray(p["bfc1"], jnp.float32),
        "wfc2p": jnp.asarray(wfc2p, jnp.float32),
        "bfc2p": jnp.asarray(bfc2p, jnp.float32),
    }


# ---------------------------------------------------------------------------
# Pure-JAX reference (f32) for validation
# ---------------------------------------------------------------------------

def _reference_forward(x_nchw, raw):
    x = jnp.transpose(x_nchw, (0, 2, 3, 1))

    def conv_block(x, w_hwio, b):
        y = jax.lax.conv_general_dilated(
            x, w_hwio, window_strides=(1, 1), padding=((1, 1), (1, 1)),
            dimension_numbers=("NHWC", "HWIO", "NHWC"))
        y = jax.nn.relu(y + b)
        return jax.lax.reduce_window(y, -jnp.inf, jax.lax.max,
                                     (1, 2, 2, 1), (1, 2, 2, 1), "VALID")

    y = conv_block(x, raw["w1"], raw["b1"])
    y = conv_block(y, raw["w2"], raw["b2"])
    y = jnp.transpose(y, (0, 3, 1, 2)).reshape(x.shape[0], -1)  # torch flatten
    y = jax.nn.relu(y @ raw["wfc1"] + raw["bfc1"])
    return y @ raw["wfc2"] + raw["bfc2"]


if __name__ == "__main__":
    raw = init_params()
    params = prepare_params(raw)
    # FC layer (64*7*7) implies 28x28 single-channel inputs (MNIST-like).
    x = jax.random.normal(jax.random.PRNGKey(0), (2, 1, 28, 28), jnp.float32)
    out = jax.block_until_ready(cnn_forward(x, params))
    assert out.shape == (2, _NUM_CLASSES) and out.dtype == jnp.float32
    assert bool(jnp.all(jnp.isfinite(out)))
    ref = _reference_forward(x, raw)
    err = float(jnp.max(jnp.abs(out - ref)))
    assert err < 3e-2, f"max abs error vs f32 reference: {err}"
    print("KERNEL_OK")
</pallas_src>

<mosaic_0001>
module attributes {stable_mosaic.version = 11 : i64} {
  func.func @_conv_pool_kernel(%arg0: i32, %arg1: memref<16x30xf32, #tpu.memory_space<vmem>>, %arg2: memref<16x30xf32, #tpu.memory_space<vmem>>, %arg3: memref<3x30x1024xf32, #tpu.memory_space<vmem>>, %arg4: memref<1x512xf32, #tpu.memory_space<vmem>>, %arg5: memref<16x512xbf16, #tpu.memory_space<vmem>>) attributes {dimension_semantics = [#tpu.dimension_semantics<parallel>], iteration_bounds = array<i64: 2>, scalar_prefetch = 0 : i64, scratch_operands = 0 : i64, tpu.core_type = #tpu.core_type<tc>, window_params = [{transform_indices = @transform_0, window_bounds = array<i64: 16, 30>}, {transform_indices = @transform_1, window_bounds = array<i64: 16, 30>}, {pipeline_mode = #tpu.pipeline_mode<synchronous>, transform_indices = @transform_2, window_bounds = array<i64: 3, 30, 1024>}, {pipeline_mode = #tpu.pipeline_mode<synchronous>, transform_indices = @transform_3, window_bounds = array<i64: 1, 512>}, {transform_indices = @transform_4, window_bounds = array<i64: 16, 512>}]} {
    %c0 = arith.constant 0 : index
    %c0_0 = arith.constant 0 : index
    %0 = vector.load %arg1[%c0, %c0_0] : memref<16x30xf32, #tpu.memory_space<vmem>>, vector<16x30xf32>
    %c0_1 = arith.constant 0 : index
    %c0_2 = arith.constant 0 : index
    %1 = vector.load %arg2[%c0_1, %c0_2] : memref<16x30xf32, #tpu.memory_space<vmem>>, vector<16x30xf32>
    %cst = arith.constant 0.000000e+00 : f32
    %2 = vector.broadcast %cst : f32 to vector<1x30xf32>
    %3 = vector.extract_strided_slice %0 {offsets = [1, 0], sizes = [15, 30], strides = [1, 1]} : vector<16x30xf32> to vector<15x30xf32>
    %4 = tpu.concatenate %3, %2 in 0 : vector<15x30xf32>, vector<1x30xf32> -> vector<16x30xf32>
    %5 = vector.extract_strided_slice %1 {offsets = [1, 0], sizes = [15, 30], strides = [1, 1]} : vector<16x30xf32> to vector<15x30xf32>
    %6 = tpu.concatenate %5, %2 in 0 : vector<15x30xf32>, vector<1x30xf32> -> vector<16x30xf32>
    %c0_3 = arith.constant 0 : index
    %c0_4 = arith.constant 0 : index
    %c0_5 = arith.constant 0 : index
    %7 = vector.load %arg3[%c0_3, %c0_4, %c0_5] : memref<3x30x1024xf32, #tpu.memory_space<vmem>>, vector<1x30x1024xf32>
    %8 = vector.shape_cast %7 : vector<1x30x1024xf32> to vector<30x1024xf32>
    %c1 = arith.constant 1 : index
    %c0_6 = arith.constant 0 : index
    %c0_7 = arith.constant 0 : index
    %9 = vector.load %arg3[%c1, %c0_6, %c0_7] : memref<3x30x1024xf32, #tpu.memory_space<vmem>>, vector<1x30x1024xf32>
    %10 = vector.shape_cast %9 : vector<1x30x1024xf32> to vector<30x1024xf32>
    %c2 = arith.constant 2 : index
    %c0_8 = arith.constant 0 : index
    %c0_9 = arith.constant 0 : index
    %11 = vector.load %arg3[%c2, %c0_8, %c0_9] : memref<3x30x1024xf32, #tpu.memory_space<vmem>>, vector<1x30x1024xf32>
    %12 = vector.shape_cast %11 : vector<1x30x1024xf32> to vector<30x1024xf32>
    %cst_10 = arith.constant dense<0.000000e+00> : vector<16x1024xf32>
    %13 = tpu.matmul %0, %8, %cst_10 {dimension_numbers = #tpu.dot_dimension_numbers<[1], [0], [0], [1], [0, 0, 1, 1], [], []>} : vector<16x30xf32>, vector<30x1024xf32>, vector<16x1024xf32> -> vector<16x1024xf32>
    %cst_11 = arith.constant dense<0.000000e+00> : vector<16x1024xf32>
    %14 = tpu.matmul %1, %10, %cst_11 {dimension_numbers = #tpu.dot_dimension_numbers<[1], [0], [0], [1], [0, 0, 1, 1], [], []>} : vector<16x30xf32>, vector<30x1024xf32>, vector<16x1024xf32> -> vector<16x1024xf32>
    %15 = arith.addf %13, %14 : vector<16x1024xf32>
    %cst_12 = arith.constant dense<0.000000e+00> : vector<16x1024xf32>
    %16 = tpu.matmul %4, %12, %cst_12 {dimension_numbers = #tpu.dot_dimension_numbers<[1], [0], [0], [1], [0, 0, 1, 1], [], []>} : vector<16x30xf32>, vector<30x1024xf32>, vector<16x1024xf32> -> vector<16x1024xf32>
    %17 = arith.addf %15, %16 : vector<16x1024xf32>
    %cst_13 = arith.constant dense<0.000000e+00> : vector<16x1024xf32>
    %18 = tpu.matmul %1, %8, %cst_13 {dimension_numbers = #tpu.dot_dimension_numbers<[1], [0], [0], [1], [0, 0, 1, 1], [], []>} : vector<16x30xf32>, vector<30x1024xf32>, vector<16x1024xf32> -> vector<16x1024xf32>
    %cst_14 = arith.constant dense<0.000000e+00> : vector<16x1024xf32>
    %19 = tpu.matmul %4, %10, %cst_14 {dimension_numbers = #tpu.dot_dimension_numbers<[1], [0], [0], [1], [0, 0, 1, 1], [], []>} : vector<16x30xf32>, vector<30x1024xf32>, vector<16x1024xf32> -> vector<16x1024xf32>
    %20 = arith.addf %18, %19 : vector<16x1024xf32>
    %cst_15 = arith.constant dense<0.000000e+00> : vector<16x1024xf32>
    %21 = tpu.matmul %6, %12, %cst_15 {dimension_numbers = #tpu.dot_dimension_numbers<[1], [0], [0], [1], [0, 0, 1, 1], [], []>} : vector<16x30xf32>, vector<30x1024xf32>, vector<16x1024xf32> -> vector<16x1024xf32>
    %22 = arith.addf %20, %21 : vector<16x1024xf32>
    %23 = arith.maximumf %17, %22 : vector<16x1024xf32>
    %24 = vector.extract_strided_slice %23 {offsets = [0, 0], sizes = [16, 512], strides = [1, 1]} : vector<16x1024xf32> to vector<16x512xf32>
    %25 = vector.extract_strided_slice %23 {offsets = [0, 512], sizes = [16, 512], strides = [1, 1]} : vector<16x1024xf32> to vector<16x512xf32>
    %26 = arith.maximumf %24, %25 : vector<16x512xf32>
    %c0_16 = arith.constant 0 : index
    %c0_17 = arith.constant 0 : index
    %27 = vector.load %arg4[%c0_16, %c0_17] : memref<1x512xf32, #tpu.memory_space<vmem>>, vector<1x512xf32>
    %28 = vector.broadcast %27 : vector<1x512xf32> to vector<16x512xf32>
    %29 = arith.addf %26, %28 : vector<16x512xf32>
    %cst_18 = arith.constant 0.000000e+00 : f32
    %30 = vector.broadcast %cst_18 : f32 to vector<16x512xf32>
    %31 = arith.maximumf %29, %30 : vector<16x512xf32>
    %32 = arith.truncf %31 : vector<16x512xf32> to vector<16x512xbf16>
    %c0_19 = arith.constant 0 : index
    %c0_20 = arith.constant 0 : index
    %33 = vector.load %arg5[%c0_19, %c0_20] : memref<16x512xbf16, #tpu.memory_space<vmem>>, vector<16x512xbf16>
    tpu.vector_store %arg5[%c0_19, %c0_20], %32 {strides = array<i32>} : memref<16x512xbf16, #tpu.memory_space<vmem>>, vector<16x512xbf16>,
    return
  }
  func.func @transform_0(%arg0: i32) -> (i32, i32) {
    %c0_i32 = arith.constant 0 : i32
    %c0_i32_0 = arith.constant 0 : i32
    return %arg0, %c0_i32 : i32, i32
  }
  func.func @transform_1(%arg0: i32) -> (i32, i32) {
    %c0_i32 = arith.constant 0 : i32
    %c0_i32_0 = arith.constant 0 : i32
    return %arg0, %c0_i32 : i32, i32
  }
  func.func @transform_2(%arg0: i32) -> (i32, i32, i32) {
    %c0_i32 = arith.constant 0 : i32
    %c0_i32_0 = arith.constant 0 : i32
    %c0_i32_1 = arith.constant 0 : i32
    %c0_i32_2 = arith.constant 0 : i32
    return %c0_i32, %c0_i32_0, %c0_i32_1 : i32, i32, i32
  }
  func.func @transform_3(%arg0: i32) -> (i32, i32) {
    %c0_i32 = arith.constant 0 : i32
    %c0_i32_0 = arith.constant 0 : i32
    %c0_i32_1 = arith.constant 0 : i32
    return %c0_i32, %c0_i32_0 : i32, i32
  }
  func.func @transform_4(%arg0: i32) -> (i32, i32) {
    %c0_i32 = arith.constant 0 : i32
    %c0_i32_0 = arith.constant 0 : i32
    return %arg0, %c0_i32 : i32, i32
  }
}

module attributes {stable_mosaic.version = 11 : i64} {
  func.func @_conv_pool_kernel(%arg0: i32, %arg1: memref<8x512xbf16, #tpu.memory_space<vmem>>, %arg2: memref<8x512xbf16, #tpu.memory_space<vmem>>, %arg3: memref<3x512x1024xbf16, #tpu.memory_space<vmem>>, %arg4: memref<1x512xf32, #tpu.memory_space<vmem>>, %arg5: memref<8x512xbf16, #tpu.memory_space<vmem>>) attributes {dimension_semantics = [#tpu.dimension_semantics<parallel>], iteration_bounds = array<i64: 2>, scalar_prefetch = 0 : i64, scratch_operands = 0 : i64, tpu.core_type = #tpu.core_type<tc>, window_params = [{transform_indices = @transform_0, window_bounds = array<i64: 8, 512>}, {transform_indices = @transform_1, window_bounds = array<i64: 8, 512>}, {pipeline_mode = #tpu.pipeline_mode<synchronous>, transform_indices = @transform_2, window_bounds = array<i64: 3, 512, 1024>}, {pipeline_mode = #tpu.pipeline_mode<synchronous>, transform_indices = @transform_3, window_bounds = array<i64: 1, 512>}, {transform_indices = @transform_4, window_bounds = array<i64: 8, 512>}]} {
    %c0 = arith.constant 0 : index
    %c0_0 = arith.constant 0 : index
    %0 = vector.load %arg1[%c0, %c0_0] : memref<8x512xbf16, #tpu.memory_space<vmem>>, vector<8x512xbf16>
    %c0_1 = arith.constant 0 : index
    %c0_2 = arith.constant 0 : index
    %1 = vector.load %arg2[%c0_1, %c0_2] : memref<8x512xbf16, #tpu.memory_space<vmem>>, vector<8x512xbf16>
    %cst = arith.constant 0.000000e+00 : bf16
    %2 = vector.broadcast %cst : bf16 to vector<1x512xbf16>
    %3 = vector.extract_strided_slice %0 {offsets = [1, 0], sizes = [7, 512], strides = [1, 1]} : vector<8x512xbf16> to vector<7x512xbf16>
    %4 = tpu.concatenate %3, %2 in 0 : vector<7x512xbf16>, vector<1x512xbf16> -> vector<8x512xbf16>
    %5 = vector.extract_strided_slice %1 {offsets = [1, 0], sizes = [7, 512], strides = [1, 1]} : vector<8x512xbf16> to vector<7x512xbf16>
    %6 = tpu.concatenate %5, %2 in 0 : vector<7x512xbf16>, vector<1x512xbf16> -> vector<8x512xbf16>
    %c0_3 = arith.constant 0 : index
    %c0_4 = arith.constant 0 : index
    %c0_5 = arith.constant 0 : index
    %7 = vector.load %arg3[%c0_3, %c0_4, %c0_5] : memref<3x512x1024xbf16, #tpu.memory_space<vmem>>, vector<1x512x1024xbf16>
    %8 = vector.shape_cast %7 : vector<1x512x1024xbf16> to vector<512x1024xbf16>
    %c1 = arith.constant 1 : index
    %c0_6 = arith.constant 0 : index
    %c0_7 = arith.constant 0 : index
    %9 = vector.load %arg3[%c1, %c0_6, %c0_7] : memref<3x512x1024xbf16, #tpu.memory_space<vmem>>, vector<1x512x1024xbf16>
    %10 = vector.shape_cast %9 : vector<1x512x1024xbf16> to vector<512x1024xbf16>
    %c2 = arith.constant 2 : index
    %c0_8 = arith.constant 0 : index
    %c0_9 = arith.constant 0 : index
    %11 = vector.load %arg3[%c2, %c0_8, %c0_9] : memref<3x512x1024xbf16, #tpu.memory_space<vmem>>, vector<1x512x1024xbf16>
    %12 = vector.shape_cast %11 : vector<1x512x1024xbf16> to vector<512x1024xbf16>
    %cst_10 = arith.constant dense<0.000000e+00> : vector<8x1024xf32>
    %13 = tpu.matmul %0, %8, %cst_10 {dimension_numbers = #tpu.dot_dimension_numbers<[1], [0], [0], [1], [0, 0, 1, 1], [], []>} : vector<8x512xbf16>, vector<512x1024xbf16>, vector<8x1024xf32> -> vector<8x1024xf32>
    %cst_11 = arith.constant dense<0.000000e+00> : vector<8x1024xf32>
    %14 = tpu.matmul %1, %10, %cst_11 {dimension_numbers = #tpu.dot_dimension_numbers<[1], [0], [0], [1], [0, 0, 1, 1], [], []>} : vector<8x512xbf16>, vector<512x1024xbf16>, vector<8x1024xf32> -> vector<8x1024xf32>
    %15 = arith.addf %13, %14 : vector<8x1024xf32>
    %cst_12 = arith.constant dense<0.000000e+00> : vector<8x1024xf32>
    %16 = tpu.matmul %4, %12, %cst_12 {dimension_numbers = #tpu.dot_dimension_numbers<[1], [0], [0], [1], [0, 0, 1, 1], [], []>} : vector<8x512xbf16>, vector<512x1024xbf16>, vector<8x1024xf32> -> vector<8x1024xf32>
    %17 = arith.addf %15, %16 : vector<8x1024xf32>
    %cst_13 = arith.constant dense<0.000000e+00> : vector<8x1024xf32>
    %18 = tpu.matmul %1, %8, %cst_13 {dimension_numbers = #tpu.dot_dimension_numbers<[1], [0], [0], [1], [0, 0, 1, 1], [], []>} : vector<8x512xbf16>, vector<512x1024xbf16>, vector<8x1024xf32> -> vector<8x1024xf32>
    %cst_14 = arith.constant dense<0.000000e+00> : vector<8x1024xf32>
    %19 = tpu.matmul %4, %10, %cst_14 {dimension_numbers = #tpu.dot_dimension_numbers<[1], [0], [0], [1], [0, 0, 1, 1], [], []>} : vector<8x512xbf16>, vector<512x1024xbf16>, vector<8x1024xf32> -> vector<8x1024xf32>
    %20 = arith.addf %18, %19 : vector<8x1024xf32>
    %cst_15 = arith.constant dense<0.000000e+00> : vector<8x1024xf32>
    %21 = tpu.matmul %6, %12, %cst_15 {dimension_numbers = #tpu.dot_dimension_numbers<[1], [0], [0], [1], [0, 0, 1, 1], [], []>} : vector<8x512xbf16>, vector<512x1024xbf16>, vector<8x1024xf32> -> vector<8x1024xf32>
    %22 = arith.addf %20, %21 : vector<8x1024xf32>
    %23 = arith.maximumf %17, %22 : vector<8x1024xf32>
    %24 = vector.extract_strided_slice %23 {offsets = [0, 0], sizes = [8, 512], strides = [1, 1]} : vector<8x1024xf32> to vector<8x512xf32>
    %25 = vector.extract_strided_slice %23 {offsets = [0, 512], sizes = [8, 512], strides = [1, 1]} : vector<8x1024xf32> to vector<8x512xf32>
    %26 = arith.maximumf %24, %25 : vector<8x512xf32>
    %c0_16 = arith.constant 0 : index
    %c0_17 = arith.constant 0 : index
    %27 = vector.load %arg4[%c0_16, %c0_17] : memref<1x512xf32, #tpu.memory_space<vmem>>, vector<1x512xf32>
    %28 = vector.broadcast %27 : vector<1x512xf32> to vector<8x512xf32>
    %29 = arith.addf %26, %28 : vector<8x512xf32>
    %cst_18 = arith.constant 0.000000e+00 : f32
    %30 = vector.broadcast %cst_18 : f32 to vector<8x512xf32>
    %31 = arith.maximumf %29, %30 : vector<8x512xf32>
    %32 = arith.truncf %31 : vector<8x512xf32> to vector<8x512xbf16>
    %c0_19 = arith.constant 0 : index
    %c0_20 = arith.constant 0 : index
    %33 = vector.load %arg5[%c0_19, %c0_20] : memref<8x512xbf16, #tpu.memory_space<vmem>>, vector<8x512xbf16>
    tpu.vector_store %arg5[%c0_19, %c0_20], %32 {strides = array<i32>} : memref<8x512xbf16, #tpu.memory_space<vmem>>, vector<8x512xbf16>,
    return
  }
  func.func @transform_0(%arg0: i32) -> (i32, i32) {
    %c0_i32 = arith.constant 0 : i32
    %c0_i32_0 = arith.constant 0 : i32
    return %arg0, %c0_i32 : i32, i32
  }
  func.func @transform_1(%arg0: i32) -> (i32, i32) {
    %c0_i32 = arith.constant 0 : i32
    %c0_i32_0 = arith.constant 0 : i32
    return %arg0, %c0_i32 : i32, i32
  }
  func.func @transform_2(%arg0: i32) -> (i32, i32, i32) {
    %c0_i32 = arith.constant 0 : i32
    %c0_i32_0 = arith.constant 0 : i32
    %c0_i32_1 = arith.constant 0 : i32
    %c0_i32_2 = arith.constant 0 : i32
    return %c0_i32, %c0_i32_0, %c0_i32_1 : i32, i32, i32
  }
  func.func @transform_3(%arg0: i32) -> (i32, i32) {
    %c0_i32 = arith.constant 0 : i32
    %c0_i32_0 = arith.constant 0 : i32
    %c0_i32_1 = arith.constant 0 : i32
    return %c0_i32, %c0_i32_0 : i32, i32
  }
  func.func @transform_4(%arg0: i32) -> (i32, i32) {
    %c0_i32 = arith.constant 0 : i32
    %c0_i32_0 = arith.constant 0 : i32
    return %arg0, %c0_i32 : i32, i32
  }
}

module attributes {stable_mosaic.version = 11 : i64} {
  func.func @_fc_kernel(%arg0: i32, %arg1: memref<2x4096xbf16, #tpu.memory_space<vmem>>, %arg2: memref<4096x128xbf16, #tpu.memory_space<vmem>>, %arg3: memref<1x128xf32, #tpu.memory_space<vmem>>, %arg4: memref<128x128xf32, #tpu.memory_space<vmem>>, %arg5: memref<1x128xf32, #tpu.memory_space<vmem>>, %arg6: memref<2x128xf32, #tpu.memory_space<vmem>>) attributes {dimension_semantics = [#tpu.dimension_semantics<parallel>], iteration_bounds = array<i64: 1>, scalar_prefetch = 0 : i64, scratch_operands = 0 : i64, tpu.core_type = #tpu.core_type<tc>, window_params = [{transform_indices = @transform_0, window_bounds = array<i64: 2, 4096>}, {pipeline_mode = #tpu.pipeline_mode<synchronous>, transform_indices = @transform_1, window_bounds = array<i64: 4096, 128>}, {pipeline_mode = #tpu.pipeline_mode<synchronous>, transform_indices = @transform_2, window_bounds = array<i64: 1, 128>}, {pipeline_mode = #tpu.pipeline_mode<synchronous>, transform_indices = @transform_3, window_bounds = array<i64: 128, 128>}, {pipeline_mode = #tpu.pipeline_mode<synchronous>, transform_indices = @transform_4, window_bounds = array<i64: 1, 128>}, {transform_indices = @transform_5, window_bounds = array<i64: 2, 128>}]} {
    %c0 = arith.constant 0 : index
    %c0_0 = arith.constant 0 : index
    %0 = vector.load %arg1[%c0, %c0_0] : memref<2x4096xbf16, #tpu.memory_space<vmem>>, vector<2x4096xbf16>
    %c0_1 = arith.constant 0 : index
    %c0_2 = arith.constant 0 : index
    %1 = vector.load %arg2[%c0_1, %c0_2] : memref<4096x128xbf16, #tpu.memory_space<vmem>>, vector<4096x128xbf16>
    %cst = arith.constant dense<0.000000e+00> : vector<2x128xf32>
    %2 = tpu.matmul %0, %1, %cst {dimension_numbers = #tpu.dot_dimension_numbers<[1], [0], [0], [1], [0, 0, 1, 1], [], []>} : vector<2x4096xbf16>, vector<4096x128xbf16>, vector<2x128xf32> -> vector<2x128xf32>
    %c0_3 = arith.constant 0 : index
    %c0_4 = arith.constant 0 : index
    %3 = vector.load %arg3[%c0_3, %c0_4] : memref<1x128xf32, #tpu.memory_space<vmem>>, vector<1x128xf32>
    %4 = vector.broadcast %3 : vector<1x128xf32> to vector<2x128xf32>
    %5 = arith.addf %2, %4 : vector<2x128xf32>
    %cst_5 = arith.constant 0.000000e+00 : f32
    %6 = vector.broadcast %cst_5 : f32 to vector<2x128xf32>
    %7 = arith.maximumf %5, %6 : vector<2x128xf32>
    %c0_6 = arith.constant 0 : index
    %c0_7 = arith.constant 0 : index
    %8 = vector.load %arg4[%c0_6, %c0_7] : memref<128x128xf32, #tpu.memory_space<vmem>>, vector<128x128xf32>
    %cst_8 = arith.constant dense<0.000000e+00> : vector<2x128xf32>
    %9 = tpu.matmul %7, %8, %cst_8 {dimension_numbers = #tpu.dot_dimension_numbers<[1], [0], [0], [1], [0, 0, 1, 1], [], []>} : vector<2x128xf32>, vector<128x128xf32>, vector<2x128xf32> -> vector<2x128xf32>
    %c0_9 = arith.constant 0 : index
    %c0_10 = arith.constant 0 : index
    %10 = vector.load %arg5[%c0_9, %c0_10] : memref<1x128xf32, #tpu.memory_space<vmem>>, vector<1x128xf32>
    %11 = vector.broadcast %10 : vector<1x128xf32> to vector<2x128xf32>
    %12 = arith.addf %9, %11 : vector<2x128xf32>
    %c0_11 = arith.constant 0 : index
    %c0_12 = arith.constant 0 : index
    %13 = vector.load %arg6[%c0_11, %c0_12] : memref<2x128xf32, #tpu.memory_space<vmem>>, vector<2x128xf32>
    tpu.vector_store %arg6[%c0_11, %c0_12], %12 {strides = array<i32>} : memref<2x128xf32, #tpu.memory_space<vmem>>, vector<2x128xf32>,
    return
  }
  func.func @transform_0(%arg0: i32) -> (i32, i32) {
    %c0_i32 = arith.constant 0 : i32
    %c0_i32_0 = arith.constant 0 : i32
    return %arg0, %c0_i32 : i32, i32
  }
  func.func @transform_1(%arg0: i32) -> (i32, i32) {
    %c0_i32 = arith.constant 0 : i32
    %c0_i32_0 = arith.constant 0 : i32
    %c0_i32_1 = arith.constant 0 : i32
    return %c0_i32, %c0_i32_0 : i32, i32
  }
  func.func @transform_2(%arg0: i32) -> (i32, i32) {
    %c0_i32 = arith.constant 0 : i32
    %c0_i32_0 = arith.constant 0 : i32
    %c0_i32_1 = arith.constant 0 : i32
    return %c0_i32, %c0_i32_0 : i32, i32
  }
  func.func @transform_3(%arg0: i32) -> (i32, i32) {
    %c0_i32 = arith.constant 0 : i32
    %c0_i32_0 = arith.constant 0 : i32
    %c0_i32_1 = arith.constant 0 : i32
    return %c0_i32, %c0_i32_0 : i32, i32
  }
  func.func @transform_4(%arg0: i32) -> (i32, i32) {
    %c0_i32 = arith.constant 0 : i32
    %c0_i32_0 = arith.constant 0 : i32
    %c0_i32_1 = arith.constant 0 : i32
    return %c0_i32, %c0_i32_0 : i32, i32
  }
  func.func @transform_5(%arg0: i32) -> (i32, i32) {
    %c0_i32 = arith.constant 0 : i32
    %c0_i32_0 = arith.constant 0 : i32
    return %arg0, %c0_i32 : i32, i32
  }
}

</mosaic_0001>

<llo_original>
// kernel: cnn_forward.3
$region0: #{cnn_forward.3}
  #allocation0 [shape = 'u32[]', space=smem, size = 0x4, offset = 0x4, fixed_abs, tag = 'smem constant byte address 0x4 - core index']
  #allocation1 [shape = 'u32[144,128]{1,0:T(1,128)}', space=vmem, size = 0x12000, scoped, tag = 'internal scratch']
  %s0 = inlined_call_operand.vmem [shape: f32[32,30], index: 0, kind: input, shape index: {}]
  %s1 = inlined_call_operand.vmem [shape: f32[32,30], index: 1, kind: input, shape index: {}]
  %s2 = inlined_call_operand.hbm [shape: f32[3,30,1024], index: 2, kind: input, shape index: {}]
  %s3 = inlined_call_operand.hbm [shape: f32[1,512], index: 3, kind: input, shape index: {}]
  %s4 = inlined_call_operand.vmem [shape: bf16[32,512], index: 4, kind: output, shape index: {}]
  %s5 = sld [smem:[#allocation0]]
  $region57: #{cnn_forward.3} parent=0
    _
  %s7 = ssub.s32 1, %s5
  %s8 = scalar_select 0, %s7, %s5
  $region1: #{cnn_forward.3} parent=0
    #allocation2 [shape = 'u8[393216]{0}', space=vmem, size = 0x60000, scoped, tag = 'input window, operand 2, single buffered']
    #allocation3 [shape = 's32[2]{0}', space=sflag, size = 0x8, scoped, tag = 'scoped memory for cnn_forward.3']
    #allocation4 [shape = 'u8[2048]{0}', space=vmem, size = 0x800, scoped, tag = 'input window, operand 3, single buffered']
    #allocation5 [shape = 's32[1]{0}', space=sflag, size = 0x4, scoped, tag = 'scoped memory for cnn_forward.3']
    %9 = vsyncpa [#allocation3], 0
    %10 = vsyncpa [#allocation5], 0
    loop: start=0, step=1, limit=4
    $region2: #{cnn_forward.3} parent=1 // loop_pre_header
      _
    $region3: #{cnn_forward.3} parent=1 // loop_header
      %s12 = sphi 0, %s16
      %p13 = scmp.ge.s32.totalorder %s12, 4
      %s22 = sphi 0, %s24
      %s25 = sphi 0, %s22
      %s26 = sphi 0, %s25
      %s42 = sphi 0, %s26
      %s48 = sphi 0, %s50
      %s51 = sphi 0, %s48
      %s52 = sphi 0, %s51
      %s68 = sphi 0, %s52
      %s72 = sphi 0, %s72
      %s74 = sphi 0, %s72
      %s75 = sphi 0, %s74
      %s89 = sphi 0, %s75
      %s93 = sphi 0, %s93
      %s95 = sphi 0, %s93
      %s96 = sphi 0, %s95
      %s110 = sphi 0, %s96
      %s116 = sphi 0, %s118
      %s119 = sphi 0, %s116
      %s120 = sphi 0, %s119
      %s136 = sphi 0, %s120
    $region4: #{cnn_forward.3} parent=1 // loop_header_branch
      %15 = sbr.rel (%p13) target = $region8
    $region5: #{cnn_forward.3} parent=1 // loop_body
      %s17 = ssub.s32 %s12, 1
      %s18 = ssub.s32 %s12, 2
      %s19 = sadd.s32 %s12, 1
      %s20 = ssub.s32 %s12, %s19
      %p21 = scmp.eq.s32.totalorder %s20, 0
      %s23 = sadd.s32 %s22, 1
      %s24 = scalar_select %p21, %s22, %s23
      %p27 = pneg %p21
      %p28 = scmp.eq.s32.totalorder %s12, 1
      %p29 = por %p27, %p28
      %p30 = scmp.ne.s32.totalorder %s22, %s25
      %p31 = scmp.eq.s32.totalorder %s12, 0
      %p32 = por %p30, %p31
      %p33 = scmp.ne.s32.totalorder %s22, %s25
      %p34 = scmp.eq.s32.totalorder %s17, 1
      %p35 = por %p33, %p34
      %p36 = scmp.ne.s32.totalorder %s25, %s26
      %p37 = scmp.eq.s32.totalorder %s17, 0
      %p38 = por %p36, %p37
      %p39 = scmp.ne.s32.totalorder %s25, %s26
      %p40 = scmp.eq.s32.totalorder %s18, 1
      %p41 = por %p39, %p40
      %p43 = scmp.ne.s32.totalorder %s26, %s42
      %p44 = scmp.eq.s32.totalorder %s18, 0
      %p45 = por %p43, %p44
      %s46 = ssub.s32 %s12, %s19
      %p47 = scmp.eq.s32.totalorder %s46, 0
      %s49 = sadd.s32 %s48, 1
      %s50 = scalar_select %p47, %s48, %s49
      %p53 = pneg %p47
      %p54 = scmp.eq.s32.totalorder %s12, 1
      %p55 = por %p53, %p54
      %p56 = scmp.ne.s32.totalorder %s48, %s51
      %p57 = scmp.eq.s32.totalorder %s12, 0
      %p58 = por %p56, %p57
      %p59 = scmp.ne.s32.totalorder %s48, %s51
      %p60 = scmp.eq.s32.totalorder %s17, 1
      %p61 = por %p59, %p60
      %p62 = scmp.ne.s32.totalorder %s51, %s52
      %p63 = scmp.eq.s32.totalorder %s17, 0
      %p64 = por %p62, %p63
      %p65 = scmp.ne.s32.totalorder %s51, %s52
      %p66 = scmp.eq.s32.totalorder %s18, 1
      %p67 = por %p65, %p66
      %p69 = scmp.ne.s32.totalorder %s52, %s68
      %p70 = scmp.eq.s32.totalorder %s18, 0
      %p71 = por %p69, %p70
      %s73 = sadd.s32 %s72, 1
      %p76 = scmp.eq.s32.totalorder %s12, 1
      %p77 = scmp.ne.s32.totalorder %s72, %s74
      %p78 = scmp.eq.s32.totalorder %s12, 0
      %p79 = por %p77, %p78
      %p80 = scmp.ne.s32.totalorder %s72, %s74
      %p81 = scmp.eq.s32.totalorder %s17, 1
      %p82 = por %p80, %p81
      %p83 = scmp.ne.s32.totalorder %s74, %s75
      %p84 = scmp.eq.s32.totalorder %s17, 0
      %p85 = por %p83, %p84
      %p86 = scmp.ne.s32.totalorder %s74, %s75
      %p87 = scmp.eq.s32.totalorder %s18, 1
      %p88 = por %p86, %p87
      %p90 = scmp.ne.s32.totalorder %s75, %s89
      %p91 = scmp.eq.s32.totalorder %s18, 0
      %p92 = por %p90, %p91
      %s94 = sadd.s32 %s93, 1
      %p97 = scmp.eq.s32.totalorder %s12, 1
      %p98 = scmp.ne.s32.totalorder %s93, %s95
      %p99 = scmp.eq.s32.totalorder %s12, 0
      %p100 = por %p98, %p99
      %p101 = scmp.ne.s32.totalorder %s93, %s95
      %p102 = scmp.eq.s32.totalorder %s17, 1
      %p103 = por %p101, %p102
      %p104 = scmp.ne.s32.totalorder %s95, %s96
      %p105 = scmp.eq.s32.totalorder %s17, 0
      %p106 = por %p104, %p105
      %p107 = scmp.ne.s32.totalorder %s95, %s96
      %p108 = scmp.eq.s32.totalorder %s18, 1
      %p109 = por %p107, %p108
      %p111 = scmp.ne.s32.totalorder %s96, %s110
      %p112 = scmp.eq.s32.totalorder %s18, 0
      %p113 = por %p111, %p112
      %s114 = ssub.s32 %s12, %s19
      %p115 = scmp.eq.s32.totalorder %s114, 0
      %s117 = sadd.s32 %s116, 1
      %s118 = scalar_select %p115, %s116, %s117
      %p121 = pneg %p115
      %p122 = scmp.eq.s32.totalorder %s12, 1
      %p123 = por %p121, %p122
      %p124 = scmp.ne.s32.totalorder %s116, %s119
      %p125 = scmp.eq.s32.totalorder %s12, 0
      %p126 = por %p124, %p125
      %p127 = scmp.ne.s32.totalorder %s116, %s119
      %p128 = scmp.eq.s32.totalorder %s17, 1
      %p129 = por %p127, %p128
      %p130 = scmp.ne.s32.totalorder %s119, %s120
      %p131 = scmp.eq.s32.totalorder %s17, 0
      %p132 = por %p130, %p131
      %p133 = scmp.ne.s32.totalorder %s119, %s120
      %p134 = scmp.eq.s32.totalorder %s18, 1
      %p135 = por %p133, %p134
      %p137 = scmp.ne.s32.totalorder %s120, %s136
      %p138 = scmp.eq.s32.totalorder %s18, 0
      %p139 = por %p137, %p138
      %p140 = scmp.le.s32.totalorder 1, %s12
      %p141 = scmp.lt.s32.totalorder %s12, 3
      %p142 = pnand %p140, %p141
      %p143 = pneg %p142
      // Predicated region
      $region9: #{cnn_forward.3} parent=5 // pred_check
        _
      $region10: #{cnn_forward.3} parent=5 // pred_check_branch
        %145 = sbr.rel (%p142) target = $region12
      $region11: #{cnn_forward.3} parent=5 // pred_region
        %s146 = ssub.s32 %s12, 1
        // Predicated region
        $region13: #{cnn_forward.3} parent=11 // pred_check
          %p147 = pneg %p85
        $region14: #{cnn_forward.3} parent=11 // pred_check_branch
          %149 = sbr.rel (%p147) target = $region16
        $region15: #{cnn_forward.3} parent=11 // pred_region
          %s151 = ssub.s32 12288, 12288
          %152 = vsyncadd [#allocation3], %s151
          %s153 = sshll.u32 [#allocation2], 4
          %s154 = int_to_ptr.vmem [resolvable:$true] %s153
          %159 = dma.hbm_to_vmem [thread:$0]  %s2, 12288, %s154, [#allocation3], 1024, 1024, 64
        $region16: #{cnn_forward.3} parent=11 // pred_fallthru
          _
        // Predicated region
        $region17: #{cnn_forward.3} parent=11 // pred_check
          %p160 = pneg %p106
        $region18: #{cnn_forward.3} parent=11 // pred_check_branch
          %162 = sbr.rel (%p160) target = $region20
        $region19: #{cnn_forward.3} parent=11 // pred_region
          %s164 = ssub.s32 64, 64
          %165 = vsyncadd [#allocation5], %s164
          %s167 = sshll.u32 [#allocation4], 4
          %s168 = int_to_ptr.vmem [resolvable:$true] %s167
          %170 = dma.hbm_to_vmem [thread:$0]  %s3, 64, %s168, [#allocation5]
        $region20: #{cnn_forward.3} parent=11 // pred_fallthru
          _
      $region12: #{cnn_forward.3} parent=5 // pred_fallthru
        _
      %p171 = scmp.lt.s32.totalorder %s12, 2
      // Predicated region
      $region21: #{cnn_forward.3} parent=5 // pred_check
        %p172 = pneg %p171
      $region22: #{cnn_forward.3} parent=5 // pred_check_branch
        %174 = sbr.rel (%p172) target = $region24
      $region23: #{cnn_forward.3} parent=5 // pred_region
        // Predicated region
        $region25: #{cnn_forward.3} parent=23 // pred_check
          %p175 = pneg %p32
        $region26: #{cnn_forward.3} parent=23 // pred_check_branch
          %177 = sbr.rel (%p175) target = $region28
        $region27: #{cnn_forward.3} parent=23 // pred_region
          %s178 = smul.u32 2, %s12
          %p179 = scmp.lt.s32.totalorder %s178, 3
          %s180 = scalar_select %p179, %s178, 3
          %s181 = smul.addr %s180, 8
          %s182 = scalar_lea.vmem %s0, %s181
          %s183 = smul.u32 2, %s12
        $region28: #{cnn_forward.3} parent=23 // pred_fallthru
          _
        // Predicated region
        $region29: #{cnn_forward.3} parent=23 // pred_check
          %p184 = pneg %p58
        $region30: #{cnn_forward.3} parent=23 // pred_check_branch
          %186 = sbr.rel (%p184) target = $region32
        $region31: #{cnn_forward.3} parent=23 // pred_region
          %s187 = smul.u32 2, %s12
          %p188 = scmp.lt.s32.totalorder %s187, 3
          %s189 = scalar_select %p188, %s187, 3
          %s190 = smul.addr %s189, 8
          %s191 = scalar_lea.vmem %s1, %s190
          %s192 = smul.u32 2, %s12
        $region32: #{cnn_forward.3} parent=23 // pred_fallthru
          _
      $region24: #{cnn_forward.3} parent=5 // pred_fallthru
        _
      %p193 = scmp.le.s32.totalorder 1, %s12
      %p194 = scmp.lt.s32.totalorder %s12, 3
      %p195 = pnand %p193, %p194
      %p196 = pneg %p195
      // Predicated region
      $region33: #{cnn_forward.3} parent=5 // pred_check
        _
      $region34: #{cnn_forward.3} parent=5 // pred_check_branch
        %198 = sbr.rel (%p195) target = $region36
      $region35: #{cnn_forward.3} parent=5 // pred_region
        %s199 = ssub.s32 %s12, 1
        // Predicated region
        $region37: #{cnn_forward.3} parent=35 // pred_check
          %p200 = pneg %p85
        $region38: #{cnn_forward.3} parent=35 // pred_check_branch
          %202 = sbr.rel (%p200) target = $region40
        $region39: #{cnn_forward.3} parent=35 // pred_region
          %203 = dma.done [#allocation3], 12288
        $region40: #{cnn_forward.3} parent=35 // pred_fallthru
          _
        // Predicated region
        $region41: #{cnn_forward.3} parent=35 // pred_check
          %p204 = pneg %p106
        $region42: #{cnn_forward.3} parent=35 // pred_check_branch
          %206 = sbr.rel (%p204) target = $region44
        $region43: #{cnn_forward.3} parent=35 // pred_region
          %207 = dma.done [#allocation5], 64
        $region44: #{cnn_forward.3} parent=35 // pred_fallthru
          _
        %s208 = smul.u32 2, %s17
        %p209 = scmp.lt.s32.totalorder %s208, 3
        %s210 = scalar_select %p209, %s208, 3
        %s211 = smul.addr %s210, 8
        %s212 = scalar_lea.vmem %s0, %s211
        %p213 = pneg %p38
        %p214 = pneg %p35
        %s215 = smul.u32 2, %s17
        %p216 = scmp.lt.s32.totalorder %s215, 3
        %s217 = scalar_select %p216, %s215, 3
        %s218 = smul.addr %s217, 8
        %s219 = scalar_lea.vmem %s1, %s218
        %p220 = pneg %p64
        %p221 = pneg %p61
        %p222 = pneg %p85
        %p223 = pneg %p82
        %p224 = pneg %p106
        %p225 = pneg %p103
        %p226 = pneg %p132
        %p227 = pneg %p129
        %s228 = smul.u32 2, %s17
        %p229 = scmp.lt.s32.totalorder %s228, 3
        %s230 = scalar_select %p229, %s228, 3
        %s231 = smul.addr %s230, 4
        %s232 = smul.addr %s231, 4
        %s233 = scalar_lea.vmem %s4, %s232
        %s234 = smul.u32 2, %s17
        %p235 = scmp.lt.s32.totalorder %s234, 3
        %s236 = scalar_select %p235, %s234, 3
        %s237 = smul.addr %s236, 8
        %s238 = scalar_lea.vmem %s0, %s237
        %s239 = smul.u32 2, %s17
        %s240 = smul.u32 2, %s17
        %p241 = scmp.lt.s32.totalorder %s240, 3
        %s242 = scalar_select %p241, %s240, 3
        %s243 = smul.addr %s242, 8
        %s244 = scalar_lea.vmem %s1, %s243
        %s245 = smul.u32 2, %s17
        %s246 = smul.u32 2, %s17
        %p247 = scmp.lt.s32.totalorder %s246, 3
        %s248 = scalar_select %p247, %s246, 3
        %s249 = smul.addr %s248, 4
        %s250 = smul.addr %s249, 4
        %s251 = scalar_lea.vmem %s4, %s250
        %s252 = smul.u32 2, %s17
        %v253 = vld [vmem:[%s238] sm:$0xff]
        %v254 = vld [vmem:[%s238 + $0x8] sm:$0xff]
        %v255 = vld [vmem:[%s244] sm:$0xff]
        %v256 = vld [vmem:[%s244 + $0x8] sm:$0xff]
        %vm259 = vcmask 1046528
        %v260 = vrot.slane %v253, 1
        %v261 = vrot.slane %v254, 1
        %v262 = vsel %vm259, %v260, %v261
        %v264 = vsel %vm259, %v261, 0.0
        %v267 = vrot.slane %v255, 1
        %v268 = vrot.slane %v256, 1
        %v269 = vsel %vm259, %v267, %v268
        %v271 = vsel %vm259, %v268, 0.0
        %v272 = vld [vmem:[#allocation2] sm:$0xff]
        %v273 = vld [vmem:[#allocation2 + $0x8] sm:$0xff]
        %v274 = vld [vmem:[#allocation2 + $0x10] sm:$0xff]
        %v275 = vld [vmem:[#allocation2 + $0x18] sm:$0xff]
        %v276 = vld [vmem:[#allocation2 + $0x20] sm:$0xff]
        %v277 = vld [vmem:[#allocation2 + $0x28] sm:$0xff]
        %v278 = vld [vmem:[#allocation2 + $0x30] sm:$0xff]
        %v279 = vld [vmem:[#allocation2 + $0x38] sm:$0xff]
        %v280 = vld [vmem:[#allocation2 + $0x40] sm:$0xff]
        %v281 = vld [vmem:[#allocation2 + $0x48] sm:$0xff]
        %v282 = vld [vmem:[#allocation2 + $0x50] sm:$0xff]
        %v283 = vld [vmem:[#allocation2 + $0x58] sm:$0xff]
        %v284 = vld [vmem:[#allocation2 + $0x60] sm:$0xff]
        %v285 = vld [vmem:[#allocation2 + $0x68] sm:$0xff]
        %v286 = vld [vmem:[#allocation2 + $0x70] sm:$0xff]
        %v287 = vld [vmem:[#allocation2 + $0x78] sm:$0xff]
        %v288 = vld [vmem:[#allocation2 + $0x80] sm:$0xff]
        %v289 = vld [vmem:[#allocation2 + $0x88] sm:$0xff]
        %v290 = vld [vmem:[#allocation2 + $0x90] sm:$0xff]
        %v291 = vld [vmem:[#allocation2 + $0x98] sm:$0xff]
        %v292 = vld [vmem:[#allocation2 + $0xa0] sm:$0xff]
        %v293 = vld [vmem:[#allocation2 + $0xa8] sm:$0xff]
        %v294 = vld [vmem:[#allocation2 + $0xb0] sm:$0xff]
        %v295 = vld [vmem:[#allocation2 + $0xb8] sm:$0xff]
        %v296 = vld [vmem:[#allocation2 + $0xc0] sm:$0x3f]
        %v297 = vld [vmem:[#allocation2 + $0xc8] sm:$0x3f]
        %v298 = vld [vmem:[#allocation2 + $0xd0] sm:$0x3f]
        %v299 = vld [vmem:[#allocation2 + $0xd8] sm:$0x3f]
        %v300 = vld [vmem:[#allocation2 + $0xe0] sm:$0x3f]
        %v301 = vld [vmem:[#allocation2 + $0xe8] sm:$0x3f]
        %v302 = vld [vmem:[#allocation2 + $0xf0] sm:$0x3f]
        %v303 = vld [vmem:[#allocation2 + $0xf8] sm:$0x3f]
        %s304 = scalar_lea.vmem [#allocation2], 256
        %v305 = vld [vmem:[%s304] sm:$0xff]
        %v306 = vld [vmem:[%s304 + $0x8] sm:$0xff]
        %v307 = vld [vmem:[%s304 + $0x10] sm:$0xff]
        %v308 = vld [vmem:[%s304 + $0x18] sm:$0xff]
        %v309 = vld [vmem:[%s304 + $0x20] sm:$0xff]
        %v310 = vld [vmem:[%s304 + $0x28] sm:$0xff]
        %v311 = vld [vmem:[%s304 + $0x30] sm:$0xff]
        %v312 = vld [vmem:[%s304 + $0x38] sm:$0xff]
        %v313 = vld [vmem:[%s304 + $0x40] sm:$0xff]
        %v314 = vld [vmem:[%s304 + $0x48] sm:$0xff]
        %v315 = vld [vmem:[%s304 + $0x50] sm:$0xff]
        %v316 = vld [vmem:[%s304 + $0x58] sm:$0xff]
        %v317 = vld [vmem:[%s304 + $0x60] sm:$0xff]
        %v318 = vld [vmem:[%s304 + $0x68] sm:$0xff]
        %v319 = vld [vmem:[%s304 + $0x70] sm:$0xff]
        %v320 = vld [vmem:[%s304 + $0x78] sm:$0xff]
        %v321 = vld [vmem:[%s304 + $0x80] sm:$0xff]
        %v322 = vld [vmem:[%s304 + $0x88] sm:$0xff]
        %v323 = vld [vmem:[%s304 + $0x90] sm:$0xff]
        %v324 = vld [vmem:[%s304 + $0x98] sm:$0xff]
        %v325 = vld [vmem:[%s304 + $0xa0] sm:$0xff]
        %v326 = vld [vmem:[%s304 + $0xa8] sm:$0xff]
        %v327 = vld [vmem:[%s304 + $0xb0] sm:$0xff]
        %v328 = vld [vmem:[%s304 + $0xb8] sm:$0xff]
        %v329 = vld [vmem:[%s304 + $0xc0] sm:$0x3f]
        %v330 = vld [vmem:[%s304 + $0xc8] sm:$0x3f]
        %v331 = vld [vmem:[%s304 + $0xd0] sm:$0x3f]
        %v332 = vld [vmem:[%s304 + $0xd8] sm:$0x3f]
        %v333 = vld [vmem:[%s304 + $0xe0] sm:$0x3f]
        %v334 = vld [vmem:[%s304 + $0xe8] sm:$0x3f]
        %v335 = vld [vmem:[%s304 + $0xf0] sm:$0x3f]
        %v336 = vld [vmem:[%s304 + $0xf8] sm:$0x3f]
        %s337 = scalar_lea.vmem [#allocation2], 512
        %v338 = vld [vmem:[%s337] sm:$0xff]
        %v339 = vld [vmem:[%s337 + $0x8] sm:$0xff]
        %v340 = vld [vmem:[%s337 + $0x10] sm:$0xff]
        %v341 = vld [vmem:[%s337 + $0x18] sm:$0xff]
        %v342 = vld [vmem:[%s337 + $0x20] sm:$0xff]
        %v343 = vld [vmem:[%s337 + $0x28] sm:$0xff]
        %v344 = vld [vmem:[%s337 + $0x30] sm:$0xff]
        %v345 = vld [vmem:[%s337 + $0x38] sm:$0xff]
        %v346 = vld [vmem:[%s337 + $0x40] sm:$0xff]
        %v347 = vld [vmem:[%s337 + $0x48] sm:$0xff]
        %v348 = vld [vmem:[%s337 + $0x50] sm:$0xff]
        %v349 = vld [vmem:[%s337 + $0x58] sm:$0xff]
        %v350 = vld [vmem:[%s337 + $0x60] sm:$0xff]
        %v351 = vld [vmem:[%s337 + $0x68] sm:$0xff]
        %v352 = vld [vmem:[%s337 + $0x70] sm:$0xff]
        %v353 = vld [vmem:[%s337 + $0x78] sm:$0xff]
        %v354 = vld [vmem:[%s337 + $0x80] sm:$0xff]
        %v355 = vld [vmem:[%s337 + $0x88] sm:$0xff]
        %v356 = vld [vmem:[%s337 + $0x90] sm:$0xff]
        %v357 = vld [vmem:[%s337 + $0x98] sm:$0xff]
        %v358 = vld [vmem:[%s337 + $0xa0] sm:$0xff]
        %v359 = vld [vmem:[%s337 + $0xa8] sm:$0xff]
        %v360 = vld [vmem:[%s337 + $0xb0] sm:$0xff]
        %v361 = vld [vmem:[%s337 + $0xb8] sm:$0xff]
        %v362 = vld [vmem:[%s337 + $0xc0] sm:$0x3f]
        %v363 = vld [vmem:[%s337 + $0xc8] sm:$0x3f]
        %v364 = vld [vmem:[%s337 + $0xd0] sm:$0x3f]
        %v365 = vld [vmem:[%s337 + $0xd8] sm:$0x3f]
        %v366 = vld [vmem:[%s337 + $0xe0] sm:$0x3f]
        %v367 = vld [vmem:[%s337 + $0xe8] sm:$0x3f]
        %v368 = vld [vmem:[%s337 + $0xf0] sm:$0x3f]
        %v369 = vld [vmem:[%s337 + $0xf8] sm:$0x3f]
        %vm370 = vcmask 244736
        %v371 = vsel %vm370, %v255, 0
        %v373 = vsel %vm370, %v256, 0
        %vm375 = vcmask 1045504
        %v377 = vsel %vm375, %v329, 0
        %v380 = vsel %vm375, %v330, 0
        %v383 = vsel %vm375, %v331, 0
        %v386 = vsel %vm375, %v332, 0
        %v389 = vsel %vm375, %v333, 0
        %v392 = vsel %vm375, %v334, 0
        %v395 = vsel %vm375, %v335, 0
        %v398 = vsel %vm375, %v336, 0
        %400 = vmatprep.subr.mxu0 0.0
        %401 = vmatpush1.msra.mxu0 0.0
        %402 = vmatprep.subr.mxu0 0.0
        %403 = vmatpush1.msra.mxu0 0.0
        %404 = vmatprep.subr.mxu0 0.0
        %405 = vmatpush1.msra.mxu0 0.0
        %406 = vmatprep.subr.mxu0 0.0
        %407 = vmatpush1.msra.mxu0 0.0
        %408 = vmatprep.subr.mxu0 0.0
        %409 = vmatpush1.msra.mxu0 0.0
        %410 = vmatprep.subr.mxu0 0.0
        %411 = vmatpush1.msra.mxu0 0.0
        %412 = vmatprep.subr.mxu0 0.0
        %413 = vmatpush1.msra.mxu0 0.0
        %414 = vmatprep.subr.mxu0 0.0
        %415 = vmatpush1.msra.mxu0 0.0
        %416 = vmatprep.subr.mxu0 0.0
        %417 = vmatpush1.msra.mxu0 0.0
        %418 = vmatprep.subr.mxu0 0.0
        %419 = vmatpush1.msra.mxu0 0.0
        %420 = vmatprep.subr.mxu0 0.0
        %421 = vmatpush1.msra.mxu0 0.0
        %422 = vmatprep.subr.mxu0 0.0
        %423 = vmatpush1.msra.mxu0 0.0
        %424 = vmatprep.subr.mxu0 %v380
        %425 = vmatpush1.msra.mxu0 %v377
        %426 = vmatprep.subr.mxu0 %v322
        %427 = vmatpush1.msra.mxu0 %v321
        %428 = vmatprep.subr.mxu0 %v314
        %429 = vmatpush1.msra.mxu0 %v313
        %430 = vmatprep.subr.mxu0 %v306
        %431 = vmatpush1.msra.mxu0 %v305
        %432 = vmatprep.subr.mxu0 0.0
        %433 = vmatpush2.msra.mxu0 0.0
        %434 = vmatprep.subr.mxu0 0.0
        %435 = vmatpush2.msra.mxu0 0.0
        %436 = vmatprep.subr.mxu0 0.0
        %437 = vmatpush2.msra.mxu0 0.0
        %438 = vmatprep.subr.mxu0 0.0
        %439 = vmatpush2.msra.mxu0 0.0
        %440 = vmatprep.subr.mxu0 0.0
        %441 = vmatpush2.msra.mxu0 0.0
        %442 = vmatprep.subr.mxu0 0.0
        %443 = vmatpush2.msra.mxu0 0.0
        %444 = vmatprep.subr.mxu0 0.0
        %445 = vmatpush2.msra.mxu0 0.0
        %446 = vmatprep.subr.mxu0 0.0
        %447 = vmatpush2.msra.mxu0 0.0
        %448 = vmatprep.subr.mxu0 0.0
        %449 = vmatpush2.msra.mxu0 0.0
        %450 = vmatprep.subr.mxu0 0.0
        %451 = vmatpush2.msra.mxu0 0.0
        %452 = vmatprep.subr.mxu0 0.0
        %453 = vmatpush2.msra.mxu0 0.0
        %454 = vmatprep.subr.mxu0 0.0
        %455 = vmatpush2.msra.mxu0 0.0
        %456 = vmatprep.subr.mxu0 0.0
        %457 = vmatpush2.msra.mxu0 0.0
        %458 = vmatprep.subr.mxu0 0.0
        %459 = vmatpush2.msra.mxu0 0.0
        %460 = vmatprep.subr.mxu0 0.0
        %461 = vmatpush2.msra.mxu0 0.0
        %462 = vmatprep.subr.mxu0 0.0
        %463 = vmatpush2.msra.mxu0 0.0
        %464 = vmatprep.mubr.f32.mxu0 0.0
        %465 = vmatmul.mubr.f32.gmra.mxu0 %v371
        %v466 = vpop.f32.mrf.mxu0
        %v467 = vadd.f32 0.0, %v466
        %v468 = vpop.f32.mrf.mxu0
        %v469 = vadd.f32 0.0, %v468
        %470 = vmatprep.mubr.f32.mxu0 0.0
        %471 = vmatmul.mubr.f32.gmra.mxu0 %v373
        %v472 = vpop.f32.mrf.mxu0
        %v473 = vadd.f32 0.0, %v472
        %v474 = vpop.f32.mrf.mxu0
        %v475 = vadd.f32 0.0, %v474
        %476 = vdwg.mxu0
        %477 = vmatprep.subr.mxu0 0.0
        %478 = vmatpush1.msra.mxu0 0.0
        %479 = vmatprep.subr.mxu0 0.0
        %480 = vmatpush1.msra.mxu0 0.0
        %481 = vmatprep.subr.mxu0 0.0
        %482 = vmatpush1.msra.mxu0 0.0
        %483 = vmatprep.subr.mxu0 0.0
        %484 = vmatpush1.msra.mxu0 0.0
        %485 = vmatprep.subr.mxu0 0.0
        %486 = vmatpush1.msra.mxu0 0.0
        %487 = vmatprep.subr.mxu0 0.0
        %488 = vmatpush1.msra.mxu0 0.0
        %489 = vmatprep.subr.mxu0 0.0
        %490 = vmatpush1.msra.mxu0 0.0
        %491 = vmatprep.subr.mxu0 0.0
        %492 = vmatpush1.msra.mxu0 0.0
        %493 = vmatprep.subr.mxu0 0.0
        %494 = vmatpush1.msra.mxu0 0.0
        %495 = vmatprep.subr.mxu0 0.0
        %496 = vmatpush1.msra.mxu0 0.0
        %497 = vmatprep.subr.mxu0 0.0
        %498 = vmatpush1.msra.mxu0 0.0
        %499 = vmatprep.subr.mxu0 0.0
        %500 = vmatpush1.msra.mxu0 0.0
        %501 = vmatprep.subr.mxu0 %v386
        %502 = vmatpush1.msra.mxu0 %v383
        %503 = vmatprep.subr.mxu0 %v324
        %504 = vmatpush1.msra.mxu0 %v323
        %505 = vmatprep.subr.mxu0 %v316
        %506 = vmatpush1.msra.mxu0 %v315
        %507 = vmatprep.subr.mxu0 %v308
        %508 = vmatpush1.msra.mxu0 %v307
        %509 = vmatprep.subr.mxu0 0.0
        %510 = vmatpush2.msra.mxu0 0.0
        %511 = vmatprep.subr.mxu0 0.0
        %512 = vmatpush2.msra.mxu0 0.0
        %513 = vmatprep.subr.mxu0 0.0
        %514 = vmatpush2.msra.mxu0 0.0
        %515 = vmatprep.subr.mxu0 0.0
        %516 = vmatpush2.msra.mxu0 0.0
        %517 = vmatprep.subr.mxu0 0.0
        %518 = vmatpush2.msra.mxu0 0.0
        %519 = vmatprep.subr.mxu0 0.0
        %520 = vmatpush2.msra.mxu0 0.0
        %521 = vmatprep.subr.mxu0 0.0
        %522 = vmatpush2.msra.mxu0 0.0
        %523 = vmatprep.subr.mxu0 0.0
        %524 = vmatpush2.msra.mxu0 0.0
        %525 = vmatprep.subr.mxu0 0.0
        %526 = vmatpush2.msra.mxu0 0.0
        %527 = vmatprep.subr.mxu0 0.0
        %528 = vmatpush2.msra.mxu0 0.0
        %529 = vmatprep.subr.mxu0 0.0
        %530 = vmatpush2.msra.mxu0 0.0
        %531 = vmatprep.subr.mxu0 0.0
        %532 = vmatpush2.msra.mxu0 0.0
        %533 = vmatprep.subr.mxu0 0.0
        %534 = vmatpush2.msra.mxu0 0.0
        %535 = vmatprep.subr.mxu0 0.0
        %536 = vmatpush2.msra.mxu0 0.0
        %537 = vmatprep.subr.mxu0 0.0
        %538 = vmatpush2.msra.mxu0 0.0
        %539 = vmatprep.subr.mxu0 0.0
        %540 = vmatpush2.msra.mxu0 0.0
        %541 = vmatprep.mubr.f32.mxu0 0.0
        %542 = vmatmul.mubr.f32.gmra.mxu0 %v371
        %v543 = vpop.f32.mrf.mxu0
        %v544 = vadd.f32 0.0, %v543
        %v545 = vpop.f32.mrf.mxu0
        %v546 = vadd.f32 0.0, %v545
        %547 = vmatprep.mubr.f32.mxu0 0.0
        %548 = vmatmul.mubr.f32.gmra.mxu0 %v373
        %v549 = vpop.f32.mrf.mxu0
        %v550 = vadd.f32 0.0, %v549
        %v551 = vpop.f32.mrf.mxu0
        %v552 = vadd.f32 0.0, %v551
        %553 = vdwg.mxu0
        %554 = vmatprep.subr.mxu0 0.0
        %555 = vmatpush1.msra.mxu0 0.0
        %556 = vmatprep.subr.mxu0 0.0
        %557 = vmatpush1.msra.mxu0 0.0
        %558 = vmatprep.subr.mxu0 0.0
        %559 = vmatpush1.msra.mxu0 0.0
        %560 = vmatprep.subr.mxu0 0.0
        %561 = vmatpush1.msra.mxu0 0.0
        %562 = vmatprep.subr.mxu0 0.0
        %563 = vmatpush1.msra.mxu0 0.0
        %564 = vmatprep.subr.mxu0 0.0
        %565 = vmatpush1.msra.mxu0 0.0
        %566 = vmatprep.subr.mxu0 0.0
        %567 = vmatpush1.msra.mxu0 0.0
        %568 = vmatprep.subr.mxu0 0.0
        %569 = vmatpush1.msra.mxu0 0.0
        %570 = vmatprep.subr.mxu0 0.0
        %571 = vmatpush1.msra.mxu0 0.0
        %572 = vmatprep.subr.mxu0 0.0
        %573 = vmatpush1.msra.mxu0 0.0
        %574 = vmatprep.subr.mxu0 0.0
        %575 = vmatpush1.msra.mxu0 0.0
        %576 = vmatprep.subr.mxu0 0.0
        %577 = vmatpush1.msra.mxu0 0.0
        %578 = vmatprep.subr.mxu0 %v392
        %579 = vmatpush1.msra.mxu0 %v389
        %580 = vmatprep.subr.mxu0 %v326
        %581 = vmatpush1.msra.mxu0 %v325
        %582 = vmatprep.subr.mxu0 %v318
        %583 = vmatpush1.msra.mxu0 %v317
        %584 = vmatprep.subr.mxu0 %v310
        %585 = vmatpush1.msra.mxu0 %v309
        %586 = vmatprep.subr.mxu0 0.0
        %587 = vmatpush2.msra.mxu0 0.0
        %588 = vmatprep.subr.mxu0 0.0
        %589 = vmatpush2.msra.mxu0 0.0
        %590 = vmatprep.subr.mxu0 0.0
        %591 = vmatpush2.msra.mxu0 0.0
        %592 = vmatprep.subr.mxu0 0.0
        %593 = vmatpush2.msra.mxu0 0.0
        %594 = vmatprep.subr.mxu0 0.0
        %595 = vmatpush2.msra.mxu0 0.0
        %596 = vmatprep.subr.mxu0 0.0
        %597 = vmatpush2.msra.mxu0 0.0
        %598 = vmatprep.subr.mxu0 0.0
        %599 = vmatpush2.msra.mxu0 0.0
        %600 = vmatprep.subr.mxu0 0.0
        %601 = vmatpush2.msra.mxu0 0.0
        %602 = vmatprep.subr.mxu0 0.0
        %603 = vmatpush2.msra.mxu0 0.0
        %604 = vmatprep.subr.mxu0 0.0
        %605 = vmatpush2.msra.mxu0 0.0
        %606 = vmatprep.subr.mxu0 0.0
        %607 = vmatpush2.msra.mxu0 0.0
        %608 = vmatprep.subr.mxu0 0.0
        %609 = vmatpush2.msra.mxu0 0.0
        %610 = vmatprep.subr.mxu0 0.0
        %611 = vmatpush2.msra.mxu0 0.0
        %612 = vmatprep.subr.mxu0 0.0
        %613 = vmatpush2.msra.mxu0 0.0
        %614 = vmatprep.subr.mxu0 0.0
        %615 = vmatpush2.msra.mxu0 0.0
        %616 = vmatprep.subr.mxu0 0.0
        %617 = vmatpush2.msra.mxu0 0.0
        %618 = vmatprep.mubr.f32.mxu0 0.0
        %619 = vmatmul.mubr.f32.gmra.mxu0 %v371
        %v620 = vpop.f32.mrf.mxu0
        %v621 = vadd.f32 0.0, %v620
        %v622 = vpop.f32.mrf.mxu0
        %v623 = vadd.f32 0.0, %v622
        %624 = vmatprep.mubr.f32.mxu0 0.0
        %625 = vmatmul.mubr.f32.gmra.mxu0 %v373
        %v626 = vpop.f32.mrf.mxu0
        %v627 = vadd.f32 0.0, %v626
        %v628 = vpop.f32.mrf.mxu0
        %v629 = vadd.f32 0.0, %v628
        %630 = vdwg.mxu0
        %631 = vmatprep.subr.mxu0 0.0
        %632 = vmatpush1.msra.mxu0 0.0
        %633 = vmatprep.subr.mxu0 0.0
        %634 = vmatpush1.msra.mxu0 0.0
        %635 = vmatprep.subr.mxu0 0.0
        %636 = vmatpush1.msra.mxu0 0.0
        %637 = vmatprep.subr.mxu0 0.0
        %638 = vmatpush1.msra.mxu0 0.0
        %639 = vmatprep.subr.mxu0 0.0
        %640 = vmatpush1.msra.mxu0 0.0
        %641 = vmatprep.subr.mxu0 0.0
        %642 = vmatpush1.msra.mxu0 0.0
        %643 = vmatprep.subr.mxu0 0.0
        %644 = vmatpush1.msra.mxu0 0.0
        %645 = vmatprep.subr.mxu0 0.0
        %646 = vmatpush1.msra.mxu0 0.0
        %647 = vmatprep.subr.mxu0 0.0
        %648 = vmatpush1.msra.mxu0 0.0
        %649 = vmatprep.subr.mxu0 0.0
        %650 = vmatpush1.msra.mxu0 0.0
        %651 = vmatprep.subr.mxu0 0.0
        %652 = vmatpush1.msra.mxu0 0.0
        %653 = vmatprep.subr.mxu0 0.0
        %654 = vmatpush1.msra.mxu0 0.0
        %655 = vmatprep.subr.mxu0 %v398
        %656 = vmatpush1.msra.mxu0 %v395
        %657 = vmatprep.subr.mxu0 %v328
        %658 = vmatpush1.msra.mxu0 %v327
        %659 = vmatprep.subr.mxu0 %v320
        %660 = vmatpush1.msra.mxu0 %v319
        %661 = vmatprep.subr.mxu0 %v312
        %662 = vmatpush1.msra.mxu0 %v311
        %663 = vmatprep.subr.mxu0 0.0
        %664 = vmatpush2.msra.mxu0 0.0
        %665 = vmatprep.subr.mxu0 0.0
        %666 = vmatpush2.msra.mxu0 0.0
        %667 = vmatprep.subr.mxu0 0.0
        %668 = vmatpush2.msra.mxu0 0.0
        %669 = vmatprep.subr.mxu0 0.0
        %670 = vmatpush2.msra.mxu0 0.0
        %671 = vmatprep.subr.mxu0 0.0
        %672 = vmatpush2.msra.mxu0 0.0
        %673 = vmatprep.subr.mxu0 0.0
        %674 = vmatpush2.msra.mxu0 0.0
        %675 = vmatprep.subr.mxu0 0.0
        %676 = vmatpush2.msra.mxu0 0.0
        %677 = vmatprep.subr.mxu0 0.0
        %678 = vmatpush2.msra.mxu0 0.0
        %679 = vmatprep.subr.mxu0 0.0
        %680 = vmatpush2.msra.mxu0 0.0
        %681 = vmatprep.subr.mxu0 0.0
        %682 = vmatpush2.msra.mxu0 0.0
        %683 = vmatprep.subr.mxu0 0.0
        %684 = vmatpush2.msra.mxu0 0.0
        %685 = vmatprep.subr.mxu0 0.0
        %686 = vmatpush2.msra.mxu0 0.0
        %687 = vmatprep.subr.mxu0 0.0
        %688 = vmatpush2.msra.mxu0 0.0
        %689 = vmatprep.subr.mxu0 0.0
        %690 = vmatpush2.msra.mxu0 0.0
        %691 = vmatprep.subr.mxu0 0.0
        %692 = vmatpush2.msra.mxu0 0.0
        %693 = vmatprep.subr.mxu0 0.0
        %694 = vmatpush2.msra.mxu0 0.0
        %695 = vmatprep.mubr.f32.mxu0 0.0
        %696 = vmatmul.mubr.f32.gmra.mxu0 %v371
        %v697 = vpop.f32.mrf.mxu0
        %v698 = vadd.f32 0.0, %v697
        %v699 = vpop.f32.mrf.mxu0
        %v700 = vadd.f32 0.0, %v699
        %701 = vmatprep.mubr.f32.mxu0 0.0
        %702 = vmatmul.mubr.f32.gmra.mxu0 %v373
        %v703 = vpop.f32.mrf.mxu0
        %v704 = vadd.f32 0.0, %v703
        %v705 = vpop.f32.mrf.mxu0
        %v706 = vadd.f32 0.0, %v705
        %707 = vdwg.mxu0
        %v708 = vsel %vm370, %v253, 0
        %v710 = vsel %vm370, %v254, 0
        %v713 = vsel %vm375, %v296, 0
        %v716 = vsel %vm375, %v297, 0
        %v719 = vsel %vm375, %v298, 0
        %v722 = vsel %vm375, %v299, 0
        %v725 = vsel %vm375, %v300, 0
        %v728 = vsel %vm375, %v301, 0
        %v731 = vsel %vm375, %v302, 0
        %v734 = vsel %vm375, %v303, 0
        %736 = vmatprep.subr.mxu0 0.0
        %737 = vmatpush1.msra.mxu0 0.0
        %738 = vmatprep.subr.mxu0 0.0
        %739 = vmatpush1.msra.mxu0 0.0
        %740 = vmatprep.subr.mxu0 0.0
        %741 = vmatpush1.msra.mxu0 0.0
        %742 = vmatprep.subr.mxu0 0.0
        %743 = vmatpush1.msra.mxu0 0.0
        %744 = vmatprep.subr.mxu0 0.0
        %745 = vmatpush1.msra.mxu0 0.0
        %746 = vmatprep.subr.mxu0 0.0
        %747 = vmatpush1.msra.mxu0 0.0
        %748 = vmatprep.subr.mxu0 0.0
        %749 = vmatpush1.msra.mxu0 0.0
        %750 = vmatprep.subr.mxu0 0.0
        %751 = vmatpush1.msra.mxu0 0.0
        %752 = vmatprep.subr.mxu0 0.0
        %753 = vmatpush1.msra.mxu0 0.0
        %754 = vmatprep.subr.mxu0 0.0
        %755 = vmatpush1.msra.mxu0 0.0
        %756 = vmatprep.subr.mxu0 0.0
        %757 = vmatpush1.msra.mxu0 0.0
        %758 = vmatprep.subr.mxu0 0.0
        %759 = vmatpush1.msra.mxu0 0.0
        %760 = vmatprep.subr.mxu0 %v716
        %761 = vmatpush1.msra.mxu0 %v713
        %762 = vmatprep.subr.mxu0 %v289
        %763 = vmatpush1.msra.mxu0 %v288
        %764 = vmatprep.subr.mxu0 %v281
        %765 = vmatpush1.msra.mxu0 %v280
        %766 = vmatprep.subr.mxu0 %v273
        %767 = vmatpush1.msra.mxu0 %v272
        %768 = vmatprep.subr.mxu0 0.0
        %769 = vmatpush2.msra.mxu0 0.0
        %770 = vmatprep.subr.mxu0 0.0
        %771 = vmatpush2.msra.mxu0 0.0
        %772 = vmatprep.subr.mxu0 0.0
        %773 = vmatpush2.msra.mxu0 0.0
        %774 = vmatprep.subr.mxu0 0.0
        %775 = vmatpush2.msra.mxu0 0.0
        %776 = vmatprep.subr.mxu0 0.0
        %777 = vmatpush2.msra.mxu0 0.0
        %778 = vmatprep.subr.mxu0 0.0
        %779 = vmatpush2.msra.mxu0 0.0
        %780 = vmatprep.subr.mxu0 0.0
        %781 = vmatpush2.msra.mxu0 0.0
        %782 = vmatprep.subr.mxu0 0.0
        %783 = vmatpush2.msra.mxu0 0.0
        %784 = vmatprep.subr.mxu0 0.0
        %785 = vmatpush2.msra.mxu0 0.0
        %786 = vmatprep.subr.mxu0 0.0
        %787 = vmatpush2.msra.mxu0 0.0
        %788 = vmatprep.subr.mxu0 0.0
        %789 = vmatpush2.msra.mxu0 0.0
        %790 = vmatprep.subr.mxu0 0.0
        %791 = vmatpush2.msra.mxu0 0.0
        %792 = vmatprep.subr.mxu0 0.0
        %793 = vmatpush2.msra.mxu0 0.0
        %794 = vmatprep.subr.mxu0 0.0
        %795 = vmatpush2.msra.mxu0 0.0
        %796 = vmatprep.subr.mxu0 0.0
        %797 = vmatpush2.msra.mxu0 0.0
        %798 = vmatprep.subr.mxu0 0.0
        %799 = vmatpush2.msra.mxu0 0.0
        %800 = vmatprep.mubr.f32.mxu0 0.0
        %801 = vmatmul.mubr.f32.gmra.mxu0 %v708
        %v802 = vpop.f32.mrf.mxu0
        %v803 = vadd.f32 %v467, %v802
        %v804 = vpop.f32.mrf.mxu0
        %v805 = vadd.f32 %v469, %v804
        %806 = vmatprep.mubr.f32.mxu0 0.0
        %807 = vmatmul.mubr.f32.gmra.mxu0 %v710
        %v808 = vpop.f32.mrf.mxu0
        %v809 = vadd.f32 %v473, %v808
        %v810 = vpop.f32.mrf.mxu0
        %v811 = vadd.f32 %v475, %v810
        %812 = vdwg.mxu0
        %813 = vmatprep.subr.mxu0 0.0
        %814 = vmatpush1.msra.mxu0 0.0
        %815 = vmatprep.subr.mxu0 0.0
        %816 = vmatpush1.msra.mxu0 0.0
        %817 = vmatprep.subr.mxu0 0.0
        %818 = vmatpush1.msra.mxu0 0.0
        %819 = vmatprep.subr.mxu0 0.0
        %820 = vmatpush1.msra.mxu0 0.0
        %821 = vmatprep.subr.mxu0 0.0
        %822 = vmatpush1.msra.mxu0 0.0
        %823 = vmatprep.subr.mxu0 0.0
        %824 = vmatpush1.msra.mxu0 0.0
        %825 = vmatprep.subr.mxu0 0.0
        %826 = vmatpush1.msra.mxu0 0.0
        %827 = vmatprep.subr.mxu0 0.0
        %828 = vmatpush1.msra.mxu0 0.0
        %829 = vmatprep.subr.mxu0 0.0
        %830 = vmatpush1.msra.mxu0 0.0
        %831 = vmatprep.subr.mxu0 0.0
        %832 = vmatpush1.msra.mxu0 0.0
        %833 = vmatprep.subr.mxu0 0.0
        %834 = vmatpush1.msra.mxu0 0.0
        %835 = vmatprep.subr.mxu0 0.0
        %836 = vmatpush1.msra.mxu0 0.0
        %837 = vmatprep.subr.mxu0 %v722
        %838 = vmatpush1.msra.mxu0 %v719
        %839 = vmatprep.subr.mxu0 %v291
        %840 = vmatpush1.msra.mxu0 %v290
        %841 = vmatprep.subr.mxu0 %v283
        %842 = vmatpush1.msra.mxu0 %v282
        %843 = vmatprep.subr.mxu0 %v275
        %844 = vmatpush1.msra.mxu0 %v274
        %845 = vmatprep.subr.mxu0 0.0
        %846 = vmatpush2.msra.mxu0 0.0
        %847 = vmatprep.subr.mxu0 0.0
        %848 = vmatpush2.msra.mxu0 0.0
        %849 = vmatprep.subr.mxu0 0.0
        %850 = vmatpush2.msra.mxu0 0.0
        %851 = vmatprep.subr.mxu0 0.0
        %852 = vmatpush2.msra.mxu0 0.0
        %853 = vmatprep.subr.mxu0 0.0
        %854 = vmatpush2.msra.mxu0 0.0
        %855 = vmatprep.subr.mxu0 0.0
        %856 = vmatpush2.msra.mxu0 0.0
        %857 = vmatprep.subr.mxu0 0.0
        %858 = vmatpush2.msra.mxu0 0.0
        %859 = vmatprep.subr.mxu0 0.0
        %860 = vmatpush2.msra.mxu0 0.0
        %861 = vmatprep.subr.mxu0 0.0
        %862 = vmatpush2.msra.mxu0 0.0
        %863 = vmatprep.subr.mxu0 0.0
        %864 = vmatpush2.msra.mxu0 0.0
        %865 = vmatprep.subr.mxu0 0.0
        %866 = vmatpush2.msra.mxu0 0.0
        %867 = vmatprep.subr.mxu0 0.0
        %868 = vmatpush2.msra.mxu0 0.0
        %869 = vmatprep.subr.mxu0 0.0
        %870 = vmatpush2.msra.mxu0 0.0
        %871 = vmatprep.subr.mxu0 0.0
        %872 = vmatpush2.msra.mxu0 0.0
        %873 = vmatprep.subr.mxu0 0.0
        %874 = vmatpush2.msra.mxu0 0.0
        %875 = vmatprep.subr.mxu0 0.0
        %876 = vmatpush2.msra.mxu0 0.0
        %877 = vmatprep.mubr.f32.mxu0 0.0
        %878 = vmatmul.mubr.f32.gmra.mxu0 %v708
        %v879 = vpop.f32.mrf.mxu0
        %v880 = vadd.f32 %v544, %v879
        %v881 = vpop.f32.mrf.mxu0
        %v882 = vadd.f32 %v546, %v881
        %883 = vmatprep.mubr.f32.mxu0 0.0
        %884 = vmatmul.mubr.f32.gmra.mxu0 %v710
        %v885 = vpop.f32.mrf.mxu0
        %v886 = vadd.f32 %v550, %v885
        %v887 = vpop.f32.mrf.mxu0
        %v888 = vadd.f32 %v552, %v887
        %889 = vdwg.mxu0
        %890 = vmatprep.subr.mxu0 0.0
        %891 = vmatpush1.msra.mxu0 0.0
        %892 = vmatprep.subr.mxu0 0.0
        %893 = vmatpush1.msra.mxu0 0.0
        %894 = vmatprep.subr.mxu0 0.0
        %895 = vmatpush1.msra.mxu0 0.0
        %896 = vmatprep.subr.mxu0 0.0
        %897 = vmatpush1.msra.mxu0 0.0
        %898 = vmatprep.subr.mxu0 0.0
        %899 = vmatpush1.msra.mxu0 0.0
        %900 = vmatprep.subr.mxu0 0.0
        %901 = vmatpush1.msra.mxu0 0.0
        %902 = vmatprep.subr.mxu0 0.0
        %903 = vmatpush1.msra.mxu0 0.0
        %904 = vmatprep.subr.mxu0 0.0
        %905 = vmatpush1.msra.mxu0 0.0
        %906 = vmatprep.subr.mxu0 0.0
        %907 = vmatpush1.msra.mxu0 0.0
        %908 = vmatprep.subr.mxu0 0.0
        %909 = vmatpush1.msra.mxu0 0.0
        %910 = vmatprep.subr.mxu0 0.0
        %911 = vmatpush1.msra.mxu0 0.0
        %912 = vmatprep.subr.mxu0 0.0
        %913 = vmatpush1.msra.mxu0 0.0
        %914 = vmatprep.subr.mxu0 %v728
        %915 = vmatpush1.msra.mxu0 %v725
        %916 = vmatprep.subr.mxu0 %v293
        %917 = vmatpush1.msra.mxu0 %v292
        %918 = vmatprep.subr.mxu0 %v285
        %919 = vmatpush1.msra.mxu0 %v284
        %920 = vmatprep.subr.mxu0 %v277
        %921 = vmatpush1.msra.mxu0 %v276
        %922 = vmatprep.subr.mxu0 0.0
        %923 = vmatpush2.msra.mxu0 0.0
        %924 = vmatprep.subr.mxu0 0.0
        %925 = vmatpush2.msra.mxu0 0.0
        %926 = vmatprep.subr.mxu0 0.0
        %927 = vmatpush2.msra.mxu0 0.0
        %928 = vmatprep.subr.mxu0 0.0
        %929 = vmatpush2.msra.mxu0 0.0
        %930 = vmatprep.subr.mxu0 0.0
        %931 = vmatpush2.msra.mxu0 0.0
        %932 = vmatprep.subr.mxu0 0.0
        %933 = vmatpush2.msra.mxu0 0.0
        %934 = vmatprep.subr.mxu0 0.0
        %935 = vmatpush2.msra.mxu0 0.0
        %936 = vmatprep.subr.mxu0 0.0
        %937 = vmatpush2.msra.mxu0 0.0
        %938 = vmatprep.subr.mxu0 0.0
        %939 = vmatpush2.msra.mxu0 0.0
        %940 = vmatprep.subr.mxu0 0.0
        %941 = vmatpush2.msra.mxu0 0.0
        %942 = vmatprep.subr.mxu0 0.0
        %943 = vmatpush2.msra.mxu0 0.0
        %944 = vmatprep.subr.mxu0 0.0
        %945 = vmatpush2.msra.mxu0 0.0
        %946 = vmatprep.subr.mxu0 0.0
        %947 = vmatpush2.msra.mxu0 0.0
        %948 = vmatprep.subr.mxu0 0.0
        %949 = vmatpush2.msra.mxu0 0.0
        %950 = vmatprep.subr.mxu0 0.0
        %951 = vmatpush2.msra.mxu0 0.0
        %952 = vmatprep.subr.mxu0 0.0
        %953 = vmatpush2.msra.mxu0 0.0
        %954 = vmatprep.mubr.f32.mxu0 0.0
        %955 = vmatmul.mubr.f32.gmra.mxu0 %v708
        %v956 = vpop.f32.mrf.mxu0
        %v957 = vadd.f32 %v621, %v956
        %v958 = vpop.f32.mrf.mxu0
        %v959 = vadd.f32 %v623, %v958
        %960 = vmatprep.mubr.f32.mxu0 0.0
        %961 = vmatmul.mubr.f32.gmra.mxu0 %v710
        %v962 = vpop.f32.mrf.mxu0
        %v963 = vadd.f32 %v627, %v962
        %v964 = vpop.f32.mrf.mxu0
        %v965 = vadd.f32 %v629, %v964
        %966 = vdwg.mxu0
        %967 = vmatprep.subr.mxu0 0.0
        %968 = vmatpush1.msra.mxu0 0.0
        %969 = vmatprep.subr.mxu0 0.0
        %970 = vmatpush1.msra.mxu0 0.0
        %971 = vmatprep.subr.mxu0 0.0
        %972 = vmatpush1.msra.mxu0 0.0
        %973 = vmatprep.subr.mxu0 0.0
        %974 = vmatpush1.msra.mxu0 0.0
        %975 = vmatprep.subr.mxu0 0.0
        %976 = vmatpush1.msra.mxu0 0.0
        %977 = vmatprep.subr.mxu0 0.0
        %978 = vmatpush1.msra.mxu0 0.0
        %979 = vmatprep.subr.mxu0 0.0
        %980 = vmatpush1.msra.mxu0 0.0
        %981 = vmatprep.subr.mxu0 0.0
        %982 = vmatpush1.msra.mxu0 0.0
        %983 = vmatprep.subr.mxu0 0.0
        %984 = vmatpush1.msra.mxu0 0.0
        %985 = vmatprep.subr.mxu0 0.0
        %986 = vmatpush1.msra.mxu0 0.0
        %987 = vmatprep.subr.mxu0 0.0
        %988 = vmatpush1.msra.mxu0 0.0
        %989 = vmatprep.subr.mxu0 0.0
        %990 = vmatpush1.msra.mxu0 0.0
        %991 = vmatprep.subr.mxu0 %v734
        %992 = vmatpush1.msra.mxu0 %v731
        %993 = vmatprep.subr.mxu0 %v295
        %994 = vmatpush1.msra.mxu0 %v294
        %995 = vmatprep.subr.mxu0 %v287
        %996 = vmatpush1.msra.mxu0 %v286
        %997 = vmatprep.subr.mxu0 %v279
        %998 = vmatpush1.msra.mxu0 %v278
        %999 = vmatprep.subr.mxu0 0.0
        %1000 = vmatpush2.msra.mxu0 0.0
        %1001 = vmatprep.subr.mxu0 0.0
        %1002 = vmatpush2.msra.mxu0 0.0
        %1003 = vmatprep.subr.mxu0 0.0
        %1004 = vmatpush2.msra.mxu0 0.0
        %1005 = vmatprep.subr.mxu0 0.0
        %1006 = vmatpush2.msra.mxu0 0.0
        %1007 = vmatprep.subr.mxu0 0.0
        %1008 = vmatpush2.msra.mxu0 0.0
        %1009 = vmatprep.subr.mxu0 0.0
        %1010 = vmatpush2.msra.mxu0 0.0
        %1011 = vmatprep.subr.mxu0 0.0
        %1012 = vmatpush2.msra.mxu0 0.0
        %1013 = vmatprep.subr.mxu0 0.0
        %1014 = vmatpush2.msra.mxu0 0.0
        %1015 = vmatprep.subr.mxu0 0.0
        %1016 = vmatpush2.msra.mxu0 0.0
        %1017 = vmatprep.subr.mxu0 0.0
        %1018 = vmatpush2.msra.mxu0 0.0
        %1019 = vmatprep.subr.mxu0 0.0
        %1020 = vmatpush2.msra.mxu0 0.0
        %1021 = vmatprep.subr.mxu0 0.0
        %1022 = vmatpush2.msra.mxu0 0.0
        %1023 = vmatprep.subr.mxu0 0.0
        %1024 = vmatpush2.msra.mxu0 0.0
        %1025 = vmatprep.subr.mxu0 0.0
        %1026 = vmatpush2.msra.mxu0 0.0
        %1027 = vmatprep.subr.mxu0 0.0
        %1028 = vmatpush2.msra.mxu0 0.0
        %1029 = vmatprep.subr.mxu0 0.0
        %1030 = vmatpush2.msra.mxu0 0.0
        %1031 = vmatprep.mubr.f32.mxu0 0.0
        %1032 = vmatmul.mubr.f32.gmra.mxu0 %v708
        %v1033 = vpop.f32.mrf.mxu0
        %v1034 = vadd.f32 %v698, %v1033
        %v1035 = vpop.f32.mrf.mxu0
        %v1036 = vadd.f32 %v700, %v1035
        %1037 = vmatprep.mubr.f32.mxu0 0.0
        %1038 = vmatmul.mubr.f32.gmra.mxu0 %v710
        %v1039 = vpop.f32.mrf.mxu0
        %v1040 = vadd.f32 %v704, %v1039
        %v1041 = vpop.f32.mrf.mxu0
        %v1042 = vadd.f32 %v706, %v1041
        %1043 = vdwg.mxu0
        %v1044 = vsel %vm370, %v262, 0
        %v1047 = vsel %vm370, %v264, 0
        %v1050 = vsel %vm375, %v362, 0
        %v1053 = vsel %vm375, %v363, 0
        %v1056 = vsel %vm375, %v364, 0
        %v1059 = vsel %vm375, %v365, 0
        %v1062 = vsel %vm375, %v366, 0
        %v1065 = vsel %vm375, %v367, 0
        %v1068 = vsel %vm375, %v368, 0
        %v1071 = vsel %vm375, %v369, 0
        %1073 = vmatprep.subr.mxu0 0.0
        %1074 = vmatpush1.msra.mxu0 0.0
        %1075 = vmatprep.subr.mxu0 0.0
        %1076 = vmatpush1.msra.mxu0 0.0
        %1077 = vmatprep.subr.mxu0 0.0
        %1078 = vmatpush1.msra.mxu0 0.0
        %1079 = vmatprep.subr.mxu0 0.0
        %1080 = vmatpush1.msra.mxu0 0.0
        %1081 = vmatprep.subr.mxu0 0.0
        %1082 = vmatpush1.msra.mxu0 0.0
        %1083 = vmatprep.subr.mxu0 0.0
        %1084 = vmatpush1.msra.mxu0 0.0
        %1085 = vmatprep.subr.mxu0 0.0
        %1086 = vmatpush1.msra.mxu0 0.0
        %1087 = vmatprep.subr.mxu0 0.0
        %1088 = vmatpush1.msra.mxu0 0.0
        %1089 = vmatprep.subr.mxu0 0.0
        %1090 = vmatpush1.msra.mxu0 0.0
        %1091 = vmatprep.subr.mxu0 0.0
        %1092 = vmatpush1.msra.mxu0 0.0
        %1093 = vmatprep.subr.mxu0 0.0
        %1094 = vmatpush1.msra.mxu0 0.0
        %1095 = vmatprep.subr.mxu0 0.0
        %1096 = vmatpush1.msra.mxu0 0.0
        %1097 = vmatprep.subr.mxu0 %v1053
        %1098 = vmatpush1.msra.mxu0 %v1050
        %1099 = vmatprep.subr.mxu0 %v355
        %1100 = vmatpush1.msra.mxu0 %v354
        %1101 = vmatprep.subr.mxu0 %v347
        %1102 = vmatpush1.msra.mxu0 %v346
        %1103 = vmatprep.subr.mxu0 %v339
        %1104 = vmatpush1.msra.mxu0 %v338
        %1105 = vmatprep.subr.mxu0 0.0
        %1106 = vmatpush2.msra.mxu0 0.0
        %1107 = vmatprep.subr.mxu0 0.0
        %1108 = vmatpush2.msra.mxu0 0.0
        %1109 = vmatprep.subr.mxu0 0.0
        %1110 = vmatpush2.msra.mxu0 0.0
        %1111 = vmatprep.subr.mxu0 0.0
        %1112 = vmatpush2.msra.mxu0 0.0
        %1113 = vmatprep.subr.mxu0 0.0
        %1114 = vmatpush2.msra.mxu0 0.0
        %1115 = vmatprep.subr.mxu0 0.0
        %1116 = vmatpush2.msra.mxu0 0.0
        %1117 = vmatprep.subr.mxu0 0.0
        %1118 = vmatpush2.msra.mxu0 0.0
        %1119 = vmatprep.subr.mxu0 0.0
        %1120 = vmatpush2.msra.mxu0 0.0
        %1121 = vmatprep.subr.mxu0 0.0
        %1122 = vmatpush2.msra.mxu0 0.0
        %1123 = vmatprep.subr.mxu0 0.0
        %1124 = vmatpush2.msra.mxu0 0.0
        %1125 = vmatprep.subr.mxu0 0.0
        %1126 = vmatpush2.msra.mxu0 0.0
        %1127 = vmatprep.subr.mxu0 0.0
        %1128 = vmatpush2.msra.mxu0 0.0
        %1129 = vmatprep.subr.mxu0 0.0
        %1130 = vmatpush2.msra.mxu0 0.0
        %1131 = vmatprep.subr.mxu0 0.0
        %1132 = vmatpush2.msra.mxu0 0.0
        %1133 = vmatprep.subr.mxu0 0.0
        %1134 = vmatpush2.msra.mxu0 0.0
        %1135 = vmatprep.subr.mxu0 0.0
        %1136 = vmatpush2.msra.mxu0 0.0
        %1137 = vmatprep.mubr.f32.mxu0 0.0
        %1138 = vmatmul.mubr.f32.gmra.mxu0 %v1044
        %v1139 = vpop.f32.mrf.mxu0
        %v1140 = vadd.f32 0.0, %v1139
        %v1141 = vpop.f32.mrf.mxu0
        %v1142 = vadd.f32 0.0, %v1141
        %1143 = vmatprep.mubr.f32.mxu0 0.0
        %1144 = vmatmul.mubr.f32.gmra.mxu0 %v1047
        %v1145 = vpop.f32.mrf.mxu0
        %v1146 = vadd.f32 0.0, %v1145
        %v1147 = vpop.f32.mrf.mxu0
        %v1148 = vadd.f32 0.0, %v1147
        %1149 = vdwg.mxu0
        %1150 = vmatprep.subr.mxu0 0.0
        %1151 = vmatpush1.msra.mxu0 0.0
        %1152 = vmatprep.subr.mxu0 0.0
        %1153 = vmatpush1.msra.mxu0 0.0
        %1154 = vmatprep.subr.mxu0 0.0
        %1155 = vmatpush1.msra.mxu0 0.0
        %1156 = vmatprep.subr.mxu0 0.0
        %1157 = vmatpush1.msra.mxu0 0.0
        %1158 = vmatprep.subr.mxu0 0.0
        %1159 = vmatpush1.msra.mxu0 0.0
        %1160 = vmatprep.subr.mxu0 0.0
        %1161 = vmatpush1.msra.mxu0 0.0
        %1162 = vmatprep.subr.mxu0 0.0
        %1163 = vmatpush1.msra.mxu0 0.0
        %1164 = vmatprep.subr.mxu0 0.0
        %1165 = vmatpush1.msra.mxu0 0.0
        %1166 = vmatprep.subr.mxu0 0.0
        %1167 = vmatpush1.msra.mxu0 0.0
        %1168 = vmatprep.subr.mxu0 0.0
        %1169 = vmatpush1.msra.mxu0 0.0
        %1170 = vmatprep.subr.mxu0 0.0
        %1171 = vmatpush1.msra.mxu0 0.0
        %1172 = vmatprep.subr.mxu0 0.0
        %1173 = vmatpush1.msra.mxu0 0.0
        %1174 = vmatprep.subr.mxu0 %v1059
        %1175 = vmatpush1.msra.mxu0 %v1056
        %1176 = vmatprep.subr.mxu0 %v357
        %1177 = vmatpush1.msra.mxu0 %v356
        %1178 = vmatprep.subr.mxu0 %v349
        %1179 = vmatpush1.msra.mxu0 %v348
        %1180 = vmatprep.subr.mxu0 %v341
        %1181 = vmatpush1.msra.mxu0 %v340
        %1182 = vmatprep.subr.mxu0 0.0
        %1183 = vmatpush2.msra.mxu0 0.0
        %1184 = vmatprep.subr.mxu0 0.0
        %1185 = vmatpush2.msra.mxu0 0.0
        %1186 = vmatprep.subr.mxu0 0.0
        %1187 = vmatpush2.msra.mxu0 0.0
        %1188 = vmatprep.subr.mxu0 0.0
        %1189 = vmatpush2.msra.mxu0 0.0
        %1190 = vmatprep.subr.mxu0 0.0
        %1191 = vmatpush2.msra.mxu0 0.0
        %1192 = vmatprep.subr.mxu0 0.0
        %1193 = vmatpush2.msra.mxu0 0.0
        %1194 = vmatprep.subr.mxu0 0.0
        %1195 = vmatpush2.msra.mxu0 0.0
        %1196 = vmatprep.subr.mxu0 0.0
        %1197 = vmatpush2.msra.mxu0 0.0
        %1198 = vmatprep.subr.mxu0 0.0
        %1199 = vmatpush2.msra.mxu0 0.0
        %1200 = vmatprep.subr.mxu0 0.0
        %1201 = vmatpush2.msra.mxu0 0.0
        %1202 = vmatprep.subr.mxu0 0.0
        %1203 = vmatpush2.msra.mxu0 0.0
        %1204 = vmatprep.subr.mxu0 0.0
        %1205 = vmatpush2.msra.mxu0 0.0
        %1206 = vmatprep.subr.mxu0 0.0
        %1207 = vmatpush2.msra.mxu0 0.0
        %1208 = vmatprep.subr.mxu0 0.0
        %1209 = vmatpush2.msra.mxu0 0.0
        %1210 = vmatprep.subr.mxu0 0.0
        %1211 = vmatpush2.msra.mxu0 0.0
        %1212 = vmatprep.subr.mxu0 0.0
        %1213 = vmatpush2.msra.mxu0 0.0
        %1214 = vmatprep.mubr.f32.mxu0 0.0
        %1215 = vmatmul.mubr.f32.gmra.mxu0 %v1044
        %v1216 = vpop.f32.mrf.mxu0
        %v1217 = vadd.f32 0.0, %v1216
        %v1218 = vpop.f32.mrf.mxu0
        %v1219 = vadd.f32 0.0, %v1218
        %1220 = vmatprep.mubr.f32.mxu0 0.0
        %1221 = vmatmul.mubr.f32.gmra.mxu0 %v1047
        %v1222 = vpop.f32.mrf.mxu0
        %v1223 = vadd.f32 0.0, %v1222
        %v1224 = vpop.f32.mrf.mxu0
        %v1225 = vadd.f32 0.0, %v1224
        %1226 = vdwg.mxu0
        %1227 = vmatprep.subr.mxu0 0.0
        %1228 = vmatpush1.msra.mxu0 0.0
        %1229 = vmatprep.subr.mxu0 0.0
        %1230 = vmatpush1.msra.mxu0 0.0
        %1231 = vmatprep.subr.mxu0 0.0
        %1232 = vmatpush1.msra.mxu0 0.0
        %1233 = vmatprep.subr.mxu0 0.0
        %1234 = vmatpush1.msra.mxu0 0.0
        %1235 = vmatprep.subr.mxu0 0.0
        %1236 = vmatpush1.msra.mxu0 0.0
        %1237 = vmatprep.subr.mxu0 0.0
        %1238 = vmatpush1.msra.mxu0 0.0
        %1239 = vmatprep.subr.mxu0 0.0
        %1240 = vmatpush1.msra.mxu0 0.0
        %1241 = vmatprep.subr.mxu0 0.0
        %1242 = vmatpush1.msra.mxu0 0.0
        %1243 = vmatprep.subr.mxu0 0.0
        %1244 = vmatpush1.msra.mxu0 0.0
        %1245 = vmatprep.subr.mxu0 0.0
        %1246 = vmatpush1.msra.mxu0 0.0
        %1247 = vmatprep.subr.mxu0 0.0
        %1248 = vmatpush1.msra.mxu0 0.0
        %1249 = vmatprep.subr.mxu0 0.0
        %1250 = vmatpush1.msra.mxu0 0.0
        %1251 = vmatprep.subr.mxu0 %v1065
        %1252 = vmatpush1.msra.mxu0 %v1062
        %1253 = vmatprep.subr.mxu0 %v359
        %1254 = vmatpush1.msra.mxu0 %v358
        %1255 = vmatprep.subr.mxu0 %v351
        %1256 = vmatpush1.msra.mxu0 %v350
        %1257 = vmatprep.subr.mxu0 %v343
        %1258 = vmatpush1.msra.mxu0 %v342
        %1259 = vmatprep.subr.mxu0 0.0
        %1260 = vmatpush2.msra.mxu0 0.0
        %1261 = vmatprep.subr.mxu0 0.0
        %1262 = vmatpush2.msra.mxu0 0.0
        %1263 = vmatprep.subr.mxu0 0.0
        %1264 = vmatpush2.msra.mxu0 0.0
        %1265 = vmatprep.subr.mxu0 0.0
        %1266 = vmatpush2.msra.mxu0 0.0
        %1267 = vmatprep.subr.mxu0 0.0
        %1268 = vmatpush2.msra.mxu0 0.0
        %1269 = vmatprep.subr.mxu0 0.0
        %1270 = vmatpush2.msra.mxu0 0.0
        %1271 = vmatprep.subr.mxu0 0.0
        %1272 = vmatpush2.msra.mxu0 0.0
        %1273 = vmatprep.subr.mxu0 0.0
        %1274 = vmatpush2.msra.mxu0 0.0
        %1275 = vmatprep.subr.mxu0 0.0
        %1276 = vmatpush2.msra.mxu0 0.0
        %1277 = vmatprep.subr.mxu0 0.0
        %1278 = vmatpush2.msra.mxu0 0.0
        %1279 = vmatprep.subr.mxu0 0.0
        %1280 = vmatpush2.msra.mxu0 0.0
        %1281 = vmatprep.subr.mxu0 0.0
        %1282 = vmatpush2.msra.mxu0 0.0
        %1283 = vmatprep.subr.mxu0 0.0
        %1284 = vmatpush2.msra.mxu0 0.0
        %1285 = vmatprep.subr.mxu0 0.0
        %1286 = vmatpush2.msra.mxu0 0.0
        %1287 = vmatprep.subr.mxu0 0.0
        %1288 = vmatpush2.msra.mxu0 0.0
        %1289 = vmatprep.subr.mxu0 0.0
        %1290 = vmatpush2.msra.mxu0 0.0
        %1291 = vmatprep.mubr.f32.mxu0 0.0
        %1292 = vmatmul.mubr.f32.gmra.mxu0 %v1044
        %v1293 = vpop.f32.mrf.mxu0
        %v1294 = vadd.f32 0.0, %v1293
        %v1295 = vpop.f32.mrf.mxu0
        %v1296 = vadd.f32 0.0, %v1295
        %1297 = vmatprep.mubr.f32.mxu0 0.0
        %1298 = vmatmul.mubr.f32.gmra.mxu0 %v1047
        %v1299 = vpop.f32.mrf.mxu0
        %v1300 = vadd.f32 0.0, %v1299
        %v1301 = vpop.f32.mrf.mxu0
        %v1302 = vadd.f32 0.0, %v1301
        %1303 = vdwg.mxu0
        %1304 = vmatprep.subr.mxu0 0.0
        %1305 = vmatpush1.msra.mxu0 0.0
        %1306 = vmatprep.subr.mxu0 0.0
        %1307 = vmatpush1.msra.mxu0 0.0
        %1308 = vmatprep.subr.mxu0 0.0
        %1309 = vmatpush1.msra.mxu0 0.0
        %1310 = vmatprep.subr.mxu0 0.0
        %1311 = vmatpush1.msra.mxu0 0.0
        %1312 = vmatprep.subr.mxu0 0.0
        %1313 = vmatpush1.msra.mxu0 0.0
        %1314 = vmatprep.subr.mxu0 0.0
        %1315 = vmatpush1.msra.mxu0 0.0
        %1316 = vmatprep.subr.mxu0 0.0
        %1317 = vmatpush1.msra.mxu0 0.0
        %1318 = vmatprep.subr.mxu0 0.0
        %1319 = vmatpush1.msra.mxu0 0.0
        %1320 = vmatprep.subr.mxu0 0.0
        %1321 = vmatpush1.msra.mxu0 0.0
        %1322 = vmatprep.subr.mxu0 0.0
        %1323 = vmatpush1.msra.mxu0 0.0
        %1324 = vmatprep.subr.mxu0 0.0
        %1325 = vmatpush1.msra.mxu0 0.0
        %1326 = vmatprep.subr.mxu0 0.0
        %1327 = vmatpush1.msra.mxu0 0.0
        %1328 = vmatprep.subr.mxu0 %v1071
        %1329 = vmatpush1.msra.mxu0 %v1068
        %1330 = vmatprep.subr.mxu0 %v361
        %1331 = vmatpush1.msra.mxu0 %v360
        %1332 = vmatprep.subr.mxu0 %v353
        %1333 = vmatpush1.msra.mxu0 %v352
        %1334 = vmatprep.subr.mxu0 %v345
        %1335 = vmatpush1.msra.mxu0 %v344
        %1336 = vmatprep.subr.mxu0 0.0
        %1337 = vmatpush2.msra.mxu0 0.0
        %1338 = vmatprep.subr.mxu0 0.0
        %1339 = vmatpush2.msra.mxu0 0.0
        %1340 = vmatprep.subr.mxu0 0.0
        %1341 = vmatpush2.msra.mxu0 0.0
        %1342 = vmatprep.subr.mxu0 0.0
        %1343 = vmatpush2.msra.mxu0 0.0
        %1344 = vmatprep.subr.mxu0 0.0
        %1345 = vmatpush2.msra.mxu0 0.0
        %1346 = vmatprep.subr.mxu0 0.0
        %1347 = vmatpush2.msra.mxu0 0.0
        %1348 = vmatprep.subr.mxu0 0.0
        %1349 = vmatpush2.msra.mxu0 0.0
        %1350 = vmatprep.subr.mxu0 0.0
        %1351 = vmatpush2.msra.mxu0 0.0
        %1352 = vmatprep.subr.mxu0 0.0
        %1353 = vmatpush2.msra.mxu0 0.0
        %1354 = vmatprep.subr.mxu0 0.0
        %1355 = vmatpush2.msra.mxu0 0.0
        %1356 = vmatprep.subr.mxu0 0.0
        %1357 = vmatpush2.msra.mxu0 0.0
        %1358 = vmatprep.subr.mxu0 0.0
        %1359 = vmatpush2.msra.mxu0 0.0
        %1360 = vmatprep.subr.mxu0 0.0
        %1361 = vmatpush2.msra.mxu0 0.0
        %1362 = vmatprep.subr.mxu0 0.0
        %1363 = vmatpush2.msra.mxu0 0.0
        %1364 = vmatprep.subr.mxu0 0.0
        %1365 = vmatpush2.msra.mxu0 0.0
        %1366 = vmatprep.subr.mxu0 0.0
        %1367 = vmatpush2.msra.mxu0 0.0
        %1368 = vmatprep.mubr.f32.mxu0 0.0
        %1369 = vmatmul.mubr.f32.gmra.mxu0 %v1044
        %v1370 = vpop.f32.mrf.mxu0
        %v1371 = vadd.f32 0.0, %v1370
        %v1372 = vpop.f32.mrf.mxu0
        %v1373 = vadd.f32 0.0, %v1372
        %1374 = vmatprep.mubr.f32.mxu0 0.0
        %1375 = vmatmul.mubr.f32.gmra.mxu0 %v1047
        %v1376 = vpop.f32.mrf.mxu0
        %v1377 = vadd.f32 0.0, %v1376
        %v1378 = vpop.f32.mrf.mxu0
        %v1379 = vadd.f32 0.0, %v1378
        %1380 = vdwg.mxu0
        %v1381 = vadd.f32 %v803, %v1140
        %v1382 = vadd.f32 %v805, %v1142
        %v1383 = vadd.f32 %v880, %v1217
        %v1384 = vadd.f32 %v882, %v1219
        %v1385 = vadd.f32 %v957, %v1294
        %v1386 = vadd.f32 %v959, %v1296
        %v1387 = vadd.f32 %v1034, %v1371
        %v1388 = vadd.f32 %v1036, %v1373
        %v1389 = vadd.f32 %v809, %v1146
        %v1390 = vadd.f32 %v811, %v1148
        %v1391 = vadd.f32 %v886, %v1223
        %v1392 = vadd.f32 %v888, %v1225
        %v1393 = vadd.f32 %v963, %v1300
        %v1394 = vadd.f32 %v965, %v1302
        %v1395 = vadd.f32 %v1040, %v1377
        %v1396 = vadd.f32 %v1042, %v1379
        %1397 = vmatprep.subr.mxu0 0.0
        %1398 = vmatpush1.msra.mxu0 0.0
        %1399 = vmatprep.subr.mxu0 0.0
        %1400 = vmatpush1.msra.mxu0 0.0
        %1401 = vmatprep.subr.mxu0 0.0
        %1402 = vmatpush1.msra.mxu0 0.0
        %1403 = vmatprep.subr.mxu0 0.0
        %1404 = vmatpush1.msra.mxu0 0.0
        %1405 = vmatprep.subr.mxu0 0.0
        %1406 = vmatpush1.msra.mxu0 0.0
        %1407 = vmatprep.subr.mxu0 0.0
        %1408 = vmatpush1.msra.mxu0 0.0
        %1409 = vmatprep.subr.mxu0 0.0
        %1410 = vmatpush1.msra.mxu0 0.0
        %1411 = vmatprep.subr.mxu0 0.0
        %1412 = vmatpush1.msra.mxu0 0.0
        %1413 = vmatprep.subr.mxu0 0.0
        %1414 = vmatpush1.msra.mxu0 0.0
        %1415 = vmatprep.subr.mxu0 0.0
        %1416 = vmatpush1.msra.mxu0 0.0
        %1417 = vmatprep.subr.mxu0 0.0
        %1418 = vmatpush1.msra.mxu0 0.0
        %1419 = vmatprep.subr.mxu0 0.0
        %1420 = vmatpush1.msra.mxu0 0.0
        %1421 = vmatprep.subr.mxu0 %v380
        %1422 = vmatpush1.msra.mxu0 %v377
        %1423 = vmatprep.subr.mxu0 %v322
        %1424 = vmatpush1.msra.mxu0 %v321
        %1425 = vmatprep.subr.mxu0 %v314
        %1426 = vmatpush1.msra.mxu0 %v313
        %1427 = vmatprep.subr.mxu0 %v306
        %1428 = vmatpush1.msra.mxu0 %v305
        %1429 = vmatprep.subr.mxu0 0.0
        %1430 = vmatpush2.msra.mxu0 0.0
        %1431 = vmatprep.subr.mxu0 0.0
        %1432 = vmatpush2.msra.mxu0 0.0
        %1433 = vmatprep.subr.mxu0 0.0
        %1434 = vmatpush2.msra.mxu0 0.0
        %1435 = vmatprep.subr.mxu0 0.0
        %1436 = vmatpush2.msra.mxu0 0.0
        %1437 = vmatprep.subr.mxu0 0.0
        %1438 = vmatpush2.msra.mxu0 0.0
        %1439 = vmatprep.subr.mxu0 0.0
        %1440 = vmatpush2.msra.mxu0 0.0
        %1441 = vmatprep.subr.mxu0 0.0
        %1442 = vmatpush2.msra.mxu0 0.0
        %1443 = vmatprep.subr.mxu0 0.0
        %1444 = vmatpush2.msra.mxu0 0.0
        %1445 = vmatprep.subr.mxu0 0.0
        %1446 = vmatpush2.msra.mxu0 0.0
        %1447 = vmatprep.subr.mxu0 0.0
        %1448 = vmatpush2.msra.mxu0 0.0
        %1449 = vmatprep.subr.mxu0 0.0
        %1450 = vmatpush2.msra.mxu0 0.0
        %1451 = vmatprep.subr.mxu0 0.0
        %1452 = vmatpush2.msra.mxu0 0.0
        %1453 = vmatprep.subr.mxu0 0.0
        %1454 = vmatpush2.msra.mxu0 0.0
        %1455 = vmatprep.subr.mxu0 0.0
        %1456 = vmatpush2.msra.mxu0 0.0
        %1457 = vmatprep.subr.mxu0 0.0
        %1458 = vmatpush2.msra.mxu0 0.0
        %1459 = vmatprep.subr.mxu0 0.0
        %1460 = vmatpush2.msra.mxu0 0.0
        %1461 = vmatprep.mubr.f32.mxu0 0.0
        %1462 = vmatmul.mubr.f32.gmra.mxu0 %v1044
        %v1463 = vpop.f32.mrf.mxu0
        %v1464 = vadd.f32 0.0, %v1463
        %v1465 = vpop.f32.mrf.mxu0
        %v1466 = vadd.f32 0.0, %v1465
        %1467 = vmatprep.mubr.f32.mxu0 0.0
        %1468 = vmatmul.mubr.f32.gmra.mxu0 %v1047
        %v1469 = vpop.f32.mrf.mxu0
        %v1470 = vadd.f32 0.0, %v1469
        %v1471 = vpop.f32.mrf.mxu0
        %v1472 = vadd.f32 0.0, %v1471
        %1473 = vdwg.mxu0
        %1474 = vmatprep.subr.mxu0 0.0
        %1475 = vmatpush1.msra.mxu0 0.0
        %1476 = vmatprep.subr.mxu0 0.0
        %1477 = vmatpush1.msra.mxu0 0.0
        %1478 = vmatprep.subr.mxu0 0.0
        %1479 = vmatpush1.msra.mxu0 0.0
        %1480 = vmatprep.subr.mxu0 0.0
        %1481 = vmatpush1.msra.mxu0 0.0
        %1482 = vmatprep.subr.mxu0 0.0
        %1483 = vmatpush1.msra.mxu0 0.0
        %1484 = vmatprep.subr.mxu0 0.0
        %1485 = vmatpush1.msra.mxu0 0.0
        %1486 = vmatprep.subr.mxu0 0.0
        %1487 = vmatpush1.msra.mxu0 0.0
        %1488 = vmatprep.subr.mxu0 0.0
        %1489 = vmatpush1.msra.mxu0 0.0
        %1490 = vmatprep.subr.mxu0 0.0
        %1491 = vmatpush1.msra.mxu0 0.0
        %1492 = vmatprep.subr.mxu0 0.0
        %1493 = vmatpush1.msra.mxu0 0.0
        %1494 = vmatprep.subr.mxu0 0.0
        %1495 = vmatpush1.msra.mxu0 0.0
        %1496 = vmatprep.subr.mxu0 0.0
        %1497 = vmatpush1.msra.mxu0 0.0
        %1498 = vmatprep.subr.mxu0 %v386
        %1499 = vmatpush1.msra.mxu0 %v383
        %1500 = vmatprep.subr.mxu0 %v324
        %1501 = vmatpush1.msra.mxu0 %v323
        %1502 = vmatprep.subr.mxu0 %v316
        %1503 = vmatpush1.msra.mxu0 %v315
        %1504 = vmatprep.subr.mxu0 %v308
        %1505 = vmatpush1.msra.mxu0 %v307
        %1506 = vmatprep.subr.mxu0 0.0
        %1507 = vmatpush2.msra.mxu0 0.0
        %1508 = vmatprep.subr.mxu0 0.0
        %1509 = vmatpush2.msra.mxu0 0.0
        %1510 = vmatprep.subr.mxu0 0.0
        %1511 = vmatpush2.msra.mxu0 0.0
        %1512 = vmatprep.subr.mxu0 0.0
        %1513 = vmatpush2.msra.mxu0 0.0
        %1514 = vmatprep.subr.mxu0 0.0
        %1515 = vmatpush2.msra.mxu0 0.0
        %1516 = vmatprep.subr.mxu0 0.0
        %1517 = vmatpush2.msra.mxu0 0.0
        %1518 = vmatprep.subr.mxu0 0.0
        %1519 = vmatpush2.msra.mxu0 0.0
        %1520 = vmatprep.subr.mxu0 0.0
        %1521 = vmatpush2.msra.mxu0 0.0
        %1522 = vmatprep.subr.mxu0 0.0
        %1523 = vmatpush2.msra.mxu0 0.0
        %1524 = vmatprep.subr.mxu0 0.0
        %1525 = vmatpush2.msra.mxu0 0.0
        %1526 = vmatprep.subr.mxu0 0.0
        %1527 = vmatpush2.msra.mxu0 0.0
        %1528 = vmatprep.subr.mxu0 0.0
        %1529 = vmatpush2.msra.mxu0 0.0
        %1530 = vmatprep.subr.mxu0 0.0
        %1531 = vmatpush2.msra.mxu0 0.0
        %1532 = vmatprep.subr.mxu0 0.0
        %1533 = vmatpush2.msra.mxu0 0.0
        %1534 = vmatprep.subr.mxu0 0.0
        %1535 = vmatpush2.msra.mxu0 0.0
        %1536 = vmatprep.subr.mxu0 0.0
        %1537 = vmatpush2.msra.mxu0 0.0
        %1538 = vmatprep.mubr.f32.mxu0 0.0
        %1539 = vmatmul.mubr.f32.gmra.mxu0 %v1044
        %v1540 = vpop.f32.mrf.mxu0
        %v1541 = vadd.f32 0.0, %v1540
        %v1542 = vpop.f32.mrf.mxu0
        %v1543 = vadd.f32 0.0, %v1542
        %1544 = vmatprep.mubr.f32.mxu0 0.0
        %1545 = vmatmul.mubr.f32.gmra.mxu0 %v1047
        %v1546 = vpop.f32.mrf.mxu0
        %v1547 = vadd.f32 0.0, %v1546
        %v1548 = vpop.f32.mrf.mxu0
        %v1549 = vadd.f32 0.0, %v1548
        %1550 = vdwg.mxu0
        %1551 = vmatprep.subr.mxu0 0.0
        %1552 = vmatpush1.msra.mxu0 0.0
        %1553 = vmatprep.subr.mxu0 0.0
        %1554 = vmatpush1.msra.mxu0 0.0
        %1555 = vmatprep.subr.mxu0 0.0
        %1556 = vmatpush1.msra.mxu0 0.0
        %1557 = vmatprep.subr.mxu0 0.0
        %1558 = vmatpush1.msra.mxu0 0.0
        %1559 = vmatprep.subr.mxu0 0.0
        %1560 = vmatpush1.msra.mxu0 0.0
        %1561 = vmatprep.subr.mxu0 0.0
        %1562 = vmatpush1.msra.mxu0 0.0
        %1563 = vmatprep.subr.mxu0 0.0
        %1564 = vmatpush1.msra.mxu0 0.0
        %1565 = vmatprep.subr.mxu0 0.0
        %1566 = vmatpush1.msra.mxu0 0.0
        %1567 = vmatprep.subr.mxu0 0.0
        %1568 = vmatpush1.msra.mxu0 0.0
        %1569 = vmatprep.subr.mxu0 0.0
        %1570 = vmatpush1.msra.mxu0 0.0
        %1571 = vmatprep.subr.mxu0 0.0
        %1572 = vmatpush1.msra.mxu0 0.0
        %1573 = vmatprep.subr.mxu0 0.0
        %1574 = vmatpush1.msra.mxu0 0.0
        %1575 = vmatprep.subr.mxu0 %v392
        %1576 = vmatpush1.msra.mxu0 %v389
        %1577 = vmatprep.subr.mxu0 %v326
        %1578 = vmatpush1.msra.mxu0 %v325
        %1579 = vmatprep.subr.mxu0 %v318
        %1580 = vmatpush1.msra.mxu0 %v317
        %1581 = vmatprep.subr.mxu0 %v310
        %1582 = vmatpush1.msra.mxu0 %v309
        %1583 = vmatprep.subr.mxu0 0.0
        %1584 = vmatpush2.msra.mxu0 0.0
        %1585 = vmatprep.subr.mxu0 0.0
        %1586 = vmatpush2.msra.mxu0 0.0
        %1587 = vmatprep.subr.mxu0 0.0
        %1588 = vmatpush2.msra.mxu0 0.0
        %1589 = vmatprep.subr.mxu0 0.0
        %1590 = vmatpush2.msra.mxu0 0.0
        %1591 = vmatprep.subr.mxu0 0.0
        %1592 = vmatpush2.msra.mxu0 0.0
        %1593 = vmatprep.subr.mxu0 0.0
        %1594 = vmatpush2.msra.mxu0 0.0
        %1595 = vmatprep.subr.mxu0 0.0
        %1596 = vmatpush2.msra.mxu0 0.0
        %1597 = vmatprep.subr.mxu0 0.0
        %1598 = vmatpush2.msra.mxu0 0.0
        %1599 = vmatprep.subr.mxu0 0.0
        %1600 = vmatpush2.msra.mxu0 0.0
        %1601 = vmatprep.subr.mxu0 0.0
        %1602 = vmatpush2.msra.mxu0 0.0
        %1603 = vmatprep.subr.mxu0 0.0
        %1604 = vmatpush2.msra.mxu0 0.0
        %1605 = vmatprep.subr.mxu0 0.0
        %1606 = vmatpush2.msra.mxu0 0.0
        %1607 = vmatprep.subr.mxu0 0.0
        %1608 = vmatpush2.msra.mxu0 0.0
        %1609 = vmatprep.subr.mxu0 0.0
        %1610 = vmatpush2.msra.mxu0 0.0
        %1611 = vmatprep.subr.mxu0 0.0
        %1612 = vmatpush2.msra.mxu0 0.0
        %1613 = vmatprep.subr.mxu0 0.0
        %1614 = vmatpush2.msra.mxu0 0.0
        %1615 = vmatprep.mubr.f32.mxu0 0.0
        %1616 = vmatmul.mubr.f32.gmra.mxu0 %v1044
        %v1617 = vpop.f32.mrf.mxu0
        %v1618 = vadd.f32 0.0, %v1617
        %v1619 = vpop.f32.mrf.mxu0
        %v1620 = vadd.f32 0.0, %v1619
        %1621 = vmatprep.mubr.f32.mxu0 0.0
        %1622 = vmatmul.mubr.f32.gmra.mxu0 %v1047
        %v1623 = vpop.f32.mrf.mxu0
        %v1624 = vadd.f32 0.0, %v1623
        %v1625 = vpop.f32.mrf.mxu0
        %v1626 = vadd.f32 0.0, %v1625
        %1627 = vdwg.mxu0
        %1628 = vmatprep.subr.mxu0 0.0
        %1629 = vmatpush1.msra.mxu0 0.0
        %1630 = vmatprep.subr.mxu0 0.0
        %1631 = vmatpush1.msra.mxu0 0.0
        %1632 = vmatprep.subr.mxu0 0.0
        %1633 = vmatpush1.msra.mxu0 0.0
        %1634 = vmatprep.subr.mxu0 0.0
        %1635 = vmatpush1.msra.mxu0 0.0
        %1636 = vmatprep.subr.mxu0 0.0
        %1637 = vmatpush1.msra.mxu0 0.0
        %1638 = vmatprep.subr.mxu0 0.0
        %1639 = vmatpush1.msra.mxu0 0.0
        %1640 = vmatprep.subr.mxu0 0.0
        %1641 = vmatpush1.msra.mxu0 0.0
        %1642 = vmatprep.subr.mxu0 0.0
        %1643 = vmatpush1.msra.mxu0 0.0
        %1644 = vmatprep.subr.mxu0 0.0
        %1645 = vmatpush1.msra.mxu0 0.0
        %1646 = vmatprep.subr.mxu0 0.0
        %1647 = vmatpush1.msra.mxu0 0.0
        %1648 = vmatprep.subr.mxu0 0.0
        %1649 = vmatpush1.msra.mxu0 0.0
        %1650 = vmatprep.subr.mxu0 0.0
        %1651 = vmatpush1.msra.mxu0 0.0
        %1652 = vmatprep.subr.mxu0 %v398
        %1653 = vmatpush1.msra.mxu0 %v395
        %1654 = vmatprep.subr.mxu0 %v328
        %1655 = vmatpush1.msra.mxu0 %v327
        %1656 = vmatprep.subr.mxu0 %v320
        %1657 = vmatpush1.msra.mxu0 %v319
        %1658 = vmatprep.subr.mxu0 %v312
        %1659 = vmatpush1.msra.mxu0 %v311
        %1660 = vmatprep.subr.mxu0 0.0
        %1661 = vmatpush2.msra.mxu0 0.0
        %1662 = vmatprep.subr.mxu0 0.0
        %1663 = vmatpush2.msra.mxu0 0.0
        %1664 = vmatprep.subr.mxu0 0.0
        %1665 = vmatpush2.msra.mxu0 0.0
        %1666 = vmatprep.subr.mxu0 0.0
        %1667 = vmatpush2.msra.mxu0 0.0
        %1668 = vmatprep.subr.mxu0 0.0
        %1669 = vmatpush2.msra.mxu0 0.0
        %1670 = vmatprep.subr.mxu0 0.0
        %1671 = vmatpush2.msra.mxu0 0.0
        %1672 = vmatprep.subr.mxu0 0.0
        %1673 = vmatpush2.msra.mxu0 0.0
        %1674 = vmatprep.subr.mxu0 0.0
        %1675 = vmatpush2.msra.mxu0 0.0
        %1676 = vmatprep.subr.mxu0 0.0
        %1677 = vmatpush2.msra.mxu0 0.0
        %1678 = vmatprep.subr.mxu0 0.0
        %1679 = vmatpush2.msra.mxu0 0.0
        %1680 = vmatprep.subr.mxu0 0.0
        %1681 = vmatpush2.msra.mxu0 0.0
        %1682 = vmatprep.subr.mxu0 0.0
        %1683 = vmatpush2.msra.mxu0 0.0
        %1684 = vmatprep.subr.mxu0 0.0
        %1685 = vmatpush2.msra.mxu0 0.0
        %1686 = vmatprep.subr.mxu0 0.0
        %1687 = vmatpush2.msra.mxu0 0.0
        %1688 = vmatprep.subr.mxu0 0.0
        %1689 = vmatpush2.msra.mxu0 0.0
        %1690 = vmatprep.subr.mxu0 0.0
        %1691 = vmatpush2.msra.mxu0 0.0
        %1692 = vmatprep.mubr.f32.mxu0 0.0
        %1693 = vmatmul.mubr.f32.gmra.mxu0 %v1044
        %v1694 = vpop.f32.mrf.mxu0
        %v1695 = vadd.f32 0.0, %v1694
        %v1696 = vpop.f32.mrf.mxu0
        %v1697 = vadd.f32 0.0, %v1696
        %1698 = vmatprep.mubr.f32.mxu0 0.0
        %1699 = vmatmul.mubr.f32.gmra.mxu0 %v1047
        %v1700 = vpop.f32.mrf.mxu0
        %v1701 = vadd.f32 0.0, %v1700
        %v1702 = vpop.f32.mrf.mxu0
        %v1703 = vadd.f32 0.0, %v1702
        %1704 = vdwg.mxu0
        %1705 = vmatprep.subr.mxu0 0.0
        %1706 = vmatpush1.msra.mxu0 0.0
        %1707 = vmatprep.subr.mxu0 0.0
        %1708 = vmatpush1.msra.mxu0 0.0
        %1709 = vmatprep.subr.mxu0 0.0
        %1710 = vmatpush1.msra.mxu0 0.0
        %1711 = vmatprep.subr.mxu0 0.0
        %1712 = vmatpush1.msra.mxu0 0.0
        %1713 = vmatprep.subr.mxu0 0.0
        %1714 = vmatpush1.msra.mxu0 0.0
        %1715 = vmatprep.subr.mxu0 0.0
        %1716 = vmatpush1.msra.mxu0 0.0
        %1717 = vmatprep.subr.mxu0 0.0
        %1718 = vmatpush1.msra.mxu0 0.0
        %1719 = vmatprep.subr.mxu0 0.0
        %1720 = vmatpush1.msra.mxu0 0.0
        %1721 = vmatprep.subr.mxu0 0.0
        %1722 = vmatpush1.msra.mxu0 0.0
        %1723 = vmatprep.subr.mxu0 0.0
        %1724 = vmatpush1.msra.mxu0 0.0
        %1725 = vmatprep.subr.mxu0 0.0
        %1726 = vmatpush1.msra.mxu0 0.0
        %1727 = vmatprep.subr.mxu0 0.0
        %1728 = vmatpush1.msra.mxu0 0.0
        %1729 = vmatprep.subr.mxu0 %v716
        %1730 = vmatpush1.msra.mxu0 %v713
        %1731 = vmatprep.subr.mxu0 %v289
        %1732 = vmatpush1.msra.mxu0 %v288
        %1733 = vmatprep.subr.mxu0 %v281
        %1734 = vmatpush1.msra.mxu0 %v280
        %1735 = vmatprep.subr.mxu0 %v273
        %1736 = vmatpush1.msra.mxu0 %v272
        %1737 = vmatprep.subr.mxu0 0.0
        %1738 = vmatpush2.msra.mxu0 0.0
        %1739 = vmatprep.subr.mxu0 0.0
        %1740 = vmatpush2.msra.mxu0 0.0
        %1741 = vmatprep.subr.mxu0 0.0
        %1742 = vmatpush2.msra.mxu0 0.0
        %1743 = vmatprep.subr.mxu0 0.0
        %1744 = vmatpush2.msra.mxu0 0.0
        %1745 = vmatprep.subr.mxu0 0.0
        %1746 = vmatpush2.msra.mxu0 0.0
        %1747 = vmatprep.subr.mxu0 0.0
        %1748 = vmatpush2.msra.mxu0 0.0
        %1749 = vmatprep.subr.mxu0 0.0
        %1750 = vmatpush2.msra.mxu0 0.0
        %1751 = vmatprep.subr.mxu0 0.0
        %1752 = vmatpush2.msra.mxu0 0.0
        %1753 = vmatprep.subr.mxu0 0.0
        %1754 = vmatpush2.msra.mxu0 0.0
        %1755 = vmatprep.subr.mxu0 0.0
        %1756 = vmatpush2.msra.mxu0 0.0
        %1757 = vmatprep.subr.mxu0 0.0
        %1758 = vmatpush2.msra.mxu0 0.0
        %1759 = vmatprep.subr.mxu0 0.0
        %1760 = vmatpush2.msra.mxu0 0.0
        %1761 = vmatprep.subr.mxu0 0.0
        %1762 = vmatpush2.msra.mxu0 0.0
        %1763 = vmatprep.subr.mxu0 0.0
        %1764 = vmatpush2.msra.mxu0 0.0
        %1765 = vmatprep.subr.mxu0 0.0
        %1766 = vmatpush2.msra.mxu0 0.0
        %1767 = vmatprep.subr.mxu0 0.0
        %1768 = vmatpush2.msra.mxu0 0.0
        %1769 = vmatprep.mubr.f32.mxu0 0.0
        %1770 = vmatmul.mubr.f32.gmra.mxu0 %v371
        %v1771 = vpop.f32.mrf.mxu0
        %v1772 = vadd.f32 %v1464, %v1771
        %v1773 = vpop.f32.mrf.mxu0
        %v1774 = vadd.f32 %v1466, %v1773
        %1775 = vmatprep.mubr.f32.mxu0 0.0
        %1776 = vmatmul.mubr.f32.gmra.mxu0 %v373
        %v1777 = vpop.f32.mrf.mxu0
        %v1778 = vadd.f32 %v1470, %v1777
        %v1779 = vpop.f32.mrf.mxu0
        %v1780 = vadd.f32 %v1472, %v1779
        %1781 = vdwg.mxu0
        %1782 = vmatprep.subr.mxu0 0.0
        %1783 = vmatpush1.msra.mxu0 0.0
        %1784 = vmatprep.subr.mxu0 0.0
        %1785 = vmatpush1.msra.mxu0 0.0
        %1786 = vmatprep.subr.mxu0 0.0
        %1787 = vmatpush1.msra.mxu0 0.0
        %1788 = vmatprep.subr.mxu0 0.0
        %1789 = vmatpush1.msra.mxu0 0.0
        %1790 = vmatprep.subr.mxu0 0.0
        %1791 = vmatpush1.msra.mxu0 0.0
        %1792 = vmatprep.subr.mxu0 0.0
        %1793 = vmatpush1.msra.mxu0 0.0
        %1794 = vmatprep.subr.mxu0 0.0
        %1795 = vmatpush1.msra.mxu0 0.0
        %1796 = vmatprep.subr.mxu0 0.0
        %1797 = vmatpush1.msra.mxu0 0.0
        %1798 = vmatprep.subr.mxu0 0.0
        %1799 = vmatpush1.msra.mxu0 0.0
        %1800 = vmatprep.subr.mxu0 0.0
        %1801 = vmatpush1.msra.mxu0 0.0
        %1802 = vmatprep.subr.mxu0 0.0
        %1803 = vmatpush1.msra.mxu0 0.0
        %1804 = vmatprep.subr.mxu0 0.0
        %1805 = vmatpush1.msra.mxu0 0.0
        %1806 = vmatprep.subr.mxu0 %v722
        %1807 = vmatpush1.msra.mxu0 %v719
        %1808 = vmatprep.subr.mxu0 %v291
        %1809 = vmatpush1.msra.mxu0 %v290
        %1810 = vmatprep.subr.mxu0 %v283
        %1811 = vmatpush1.msra.mxu0 %v282
        %1812 = vmatprep.subr.mxu0 %v275
        %1813 = vmatpush1.msra.mxu0 %v274
        %1814 = vmatprep.subr.mxu0 0.0
        %1815 = vmatpush2.msra.mxu0 0.0
        %1816 = vmatprep.subr.mxu0 0.0
        %1817 = vmatpush2.msra.mxu0 0.0
        %1818 = vmatprep.subr.mxu0 0.0
        %1819 = vmatpush2.msra.mxu0 0.0
        %1820 = vmatprep.subr.mxu0 0.0
        %1821 = vmatpush2.msra.mxu0 0.0
        %1822 = vmatprep.subr.mxu0 0.0
        %1823 = vmatpush2.msra.mxu0 0.0
        %1824 = vmatprep.subr.mxu0 0.0
        %1825 = vmatpush2.msra.mxu0 0.0
        %1826 = vmatprep.subr.mxu0 0.0
        %1827 = vmatpush2.msra.mxu0 0.0
        %1828 = vmatprep.subr.mxu0 0.0
        %1829 = vmatpush2.msra.mxu0 0.0
        %1830 = vmatprep.subr.mxu0 0.0
        %1831 = vmatpush2.msra.mxu0 0.0
        %1832 = vmatprep.subr.mxu0 0.0
        %1833 = vmatpush2.msra.mxu0 0.0
        %1834 = vmatprep.subr.mxu0 0.0
        %1835 = vmatpush2.msra.mxu0 0.0
        %1836 = vmatprep.subr.mxu0 0.0
        %1837 = vmatpush2.msra.mxu0 0.0
        %1838 = vmatprep.subr.mxu0 0.0
        %1839 = vmatpush2.msra.mxu0 0.0
        %1840 = vmatprep.subr.mxu0 0.0
        %1841 = vmatpush2.msra.mxu0 0.0
        %1842 = vmatprep.subr.mxu0 0.0
        %1843 = vmatpush2.msra.mxu0 0.0
        %1844 = vmatprep.subr.mxu0 0.0
        %1845 = vmatpush2.msra.mxu0 0.0
        %1846 = vmatprep.mubr.f32.mxu0 0.0
        %1847 = vmatmul.mubr.f32.gmra.mxu0 %v371
        %v1848 = vpop.f32.mrf.mxu0
        %v1849 = vadd.f32 %v1541, %v1848
        %v1850 = vpop.f32.mrf.mxu0
        %v1851 = vadd.f32 %v1543, %v1850
        %1852 = vmatprep.mubr.f32.mxu0 0.0
        %1853 = vmatmul.mubr.f32.gmra.mxu0 %v373
        %v1854 = vpop.f32.mrf.mxu0
        %v1855 = vadd.f32 %v1547, %v1854
        %v1856 = vpop.f32.mrf.mxu0
        %v1857 = vadd.f32 %v1549, %v1856
        %1858 = vdwg.mxu0
        %1859 = vmatprep.subr.mxu0 0.0
        %1860 = vmatpush1.msra.mxu0 0.0
        %1861 = vmatprep.subr.mxu0 0.0
        %1862 = vmatpush1.msra.mxu0 0.0
        %1863 = vmatprep.subr.mxu0 0.0
        %1864 = vmatpush1.msra.mxu0 0.0
        %1865 = vmatprep.subr.mxu0 0.0
        %1866 = vmatpush1.msra.mxu0 0.0
        %1867 = vmatprep.subr.mxu0 0.0
        %1868 = vmatpush1.msra.mxu0 0.0
        %1869 = vmatprep.subr.mxu0 0.0
        %1870 = vmatpush1.msra.mxu0 0.0
        %1871 = vmatprep.subr.mxu0 0.0
        %1872 = vmatpush1.msra.mxu0 0.0
        %1873 = vmatprep.subr.mxu0 0.0
        %1874 = vmatpush1.msra.mxu0 0.0
        %1875 = vmatprep.subr.mxu0 0.0
        %1876 = vmatpush1.msra.mxu0 0.0
        %1877 = vmatprep.subr.mxu0 0.0
        %1878 = vmatpush1.msra.mxu0 0.0
        %1879 = vmatprep.subr.mxu0 0.0
        %1880 = vmatpush1.msra.mxu0 0.0
        %1881 = vmatprep.subr.mxu0 0.0
        %1882 = vmatpush1.msra.mxu0 0.0
        %1883 = vmatprep.subr.mxu0 %v728
        %1884 = vmatpush1.msra.mxu0 %v725
        %1885 = vmatprep.subr.mxu0 %v293
        %1886 = vmatpush1.msra.mxu0 %v292
        %1887 = vmatprep.subr.mxu0 %v285
        %1888 = vmatpush1.msra.mxu0 %v284
        %1889 = vmatprep.subr.mxu0 %v277
        %1890 = vmatpush1.msra.mxu0 %v276
        %1891 = vmatprep.subr.mxu0 0.0
        %1892 = vmatpush2.msra.mxu0 0.0
        %1893 = vmatprep.subr.mxu0 0.0
        %1894 = vmatpush2.msra.mxu0 0.0
        %1895 = vmatprep.subr.mxu0 0.0
        %1896 = vmatpush2.msra.mxu0 0.0
        %1897 = vmatprep.subr.mxu0 0.0
        %1898 = vmatpush2.msra.mxu0 0.0
        %1899 = vmatprep.subr.mxu0 0.0
        %1900 = vmatpush2.msra.mxu0 0.0
        %1901 = vmatprep.subr.mxu0 0.0
        %1902 = vmatpush2.msra.mxu0 0.0
        %1903 = vmatprep.subr.mxu0 0.0
        %1904 = vmatpush2.msra.mxu0 0.0
        %1905 = vmatprep.subr.mxu0 0.0
        %1906 = vmatpush2.msra.mxu0 0.0
        %1907 = vmatprep.subr.mxu0 0.0
        %1908 = vmatpush2.msra.mxu0 0.0
        %1909 = vmatprep.subr.mxu0 0.0
        %1910 = vmatpush2.msra.mxu0 0.0
        %1911 = vmatprep.subr.mxu0 0.0
        %1912 = vmatpush2.msra.mxu0 0.0
        %1913 = vmatprep.subr.mxu0 0.0
        %1914 = vmatpush2.msra.mxu0 0.0
        %1915 = vmatprep.subr.mxu0 0.0
        %1916 = vmatpush2.msra.mxu0 0.0
        %1917 = vmatprep.subr.mxu0 0.0
        %1918 = vmatpush2.msra.mxu0 0.0
        %1919 = vmatprep.subr.mxu0 0.0
        %1920 = vmatpush2.msra.mxu0 0.0
        %1921 = vmatprep.subr.mxu0 0.0
        %1922 = vmatpush2.msra.mxu0 0.0
        %1923 = vmatprep.mubr.f32.mxu0 0.0
        %1924 = vmatmul.mubr.f32.gmra.mxu0 %v371
        %v1925 = vpop.f32.mrf.mxu0
        %v1926 = vadd.f32 %v1618, %v1925
        %v1927 = vpop.f32.mrf.mxu0
        %v1928 = vadd.f32 %v1620, %v1927
        %1929 = vmatprep.mubr.f32.mxu0 0.0
        %1930 = vmatmul.mubr.f32.gmra.mxu0 %v373
        %v1931 = vpop.f32.mrf.mxu0
        %v1932 = vadd.f32 %v1624, %v1931
        %v1933 = vpop.f32.mrf.mxu0
        %v1934 = vadd.f32 %v1626, %v1933
        %1935 = vdwg.mxu0
        %1936 = vmatprep.subr.mxu0 0.0
        %1937 = vmatpush1.msra.mxu0 0.0
        %1938 = vmatprep.subr.mxu0 0.0
        %1939 = vmatpush1.msra.mxu0 0.0
        %1940 = vmatprep.subr.mxu0 0.0
        %1941 = vmatpush1.msra.mxu0 0.0
        %1942 = vmatprep.subr.mxu0 0.0
        %1943 = vmatpush1.msra.mxu0 0.0
        %1944 = vmatprep.subr.mxu0 0.0
        %1945 = vmatpush1.msra.mxu0 0.0
        %1946 = vmatprep.subr.mxu0 0.0
        %1947 = vmatpush1.msra.mxu0 0.0
        %1948 = vmatprep.subr.mxu0 0.0
        %1949 = vmatpush1.msra.mxu0 0.0
        %1950 = vmatprep.subr.mxu0 0.0
        %1951 = vmatpush1.msra.mxu0 0.0
        %1952 = vmatprep.subr.mxu0 0.0
        %1953 = vmatpush1.msra.mxu0 0.0
        %1954 = vmatprep.subr.mxu0 0.0
        %1955 = vmatpush1.msra.mxu0 0.0
        %1956 = vmatprep.subr.mxu0 0.0
        %1957 = vmatpush1.msra.mxu0 0.0
        %1958 = vmatprep.subr.mxu0 0.0
        %1959 = vmatpush1.msra.mxu0 0.0
        %1960 = vmatprep.subr.mxu0 %v734
        %1961 = vmatpush1.msra.mxu0 %v731
        %1962 = vmatprep.subr.mxu0 %v295
        %1963 = vmatpush1.msra.mxu0 %v294
        %1964 = vmatprep.subr.mxu0 %v287
        %1965 = vmatpush1.msra.mxu0 %v286
        %1966 = vmatprep.subr.mxu0 %v279
        %1967 = vmatpush1.msra.mxu0 %v278
        %1968 = vmatprep.subr.mxu0 0.0
        %1969 = vmatpush2.msra.mxu0 0.0
        %1970 = vmatprep.subr.mxu0 0.0
        %1971 = vmatpush2.msra.mxu0 0.0
        %1972 = vmatprep.subr.mxu0 0.0
        %1973 = vmatpush2.msra.mxu0 0.0
        %1974 = vmatprep.subr.mxu0 0.0
        %1975 = vmatpush2.msra.mxu0 0.0
        %1976 = vmatprep.subr.mxu0 0.0
        %1977 = vmatpush2.msra.mxu0 0.0
        %1978 = vmatprep.subr.mxu0 0.0
        %1979 = vmatpush2.msra.mxu0 0.0
        %1980 = vmatprep.subr.mxu0 0.0
        %1981 = vmatpush2.msra.mxu0 0.0
        %1982 = vmatprep.subr.mxu0 0.0
        %1983 = vmatpush2.msra.mxu0 0.0
        %1984 = vmatprep.subr.mxu0 0.0
        %1985 = vmatpush2.msra.mxu0 0.0
        %1986 = vmatprep.subr.mxu0 0.0
        %1987 = vmatpush2.msra.mxu0 0.0
        %1988 = vmatprep.subr.mxu0 0.0
        %1989 = vmatpush2.msra.mxu0 0.0
        %1990 = vmatprep.subr.mxu0 0.0
        %1991 = vmatpush2.msra.mxu0 0.0
        %1992 = vmatprep.subr.mxu0 0.0
        %1993 = vmatpush2.msra.mxu0 0.0
        %1994 = vmatprep.subr.mxu0 0.0
        %1995 = vmatpush2.msra.mxu0 0.0
        %1996 = vmatprep.subr.mxu0 0.0
        %1997 = vmatpush2.msra.mxu0 0.0
        %1998 = vmatprep.subr.mxu0 0.0
        %1999 = vmatpush2.msra.mxu0 0.0
        %2000 = vmatprep.mubr.f32.mxu0 0.0
        %2001 = vmatmul.mubr.f32.gmra.mxu0 %v371
        %v2002 = vpop.f32.mrf.mxu0
        %v2003 = vadd.f32 %v1695, %v2002
        %v2004 = vpop.f32.mrf.mxu0
        %v2005 = vadd.f32 %v1697, %v2004
        %2006 = vmatprep.mubr.f32.mxu0 0.0
        %2007 = vmatmul.mubr.f32.gmra.mxu0 %v373
        %v2008 = vpop.f32.mrf.mxu0
        %v2009 = vadd.f32 %v1701, %v2008
        %v2010 = vpop.f32.mrf.mxu0
        %v2011 = vadd.f32 %v1703, %v2010
        %2012 = vdwg.mxu0
        %v2013 = vsel %vm370, %v269, 0
        %v2016 = vsel %vm370, %v271, 0
        %2018 = vmatprep.subr.mxu0 0.0
        %2019 = vmatpush1.msra.mxu0 0.0
        %2020 = vmatprep.subr.mxu0 0.0
        %2021 = vmatpush1.msra.mxu0 0.0
        %2022 = vmatprep.subr.mxu0 0.0
        %2023 = vmatpush1.msra.mxu0 0.0
        %2024 = vmatprep.subr.mxu0 0.0
        %2025 = vmatpush1.msra.mxu0 0.0
        %2026 = vmatprep.subr.mxu0 0.0
        %2027 = vmatpush1.msra.mxu0 0.0
        %2028 = vmatprep.subr.mxu0 0.0
        %2029 = vmatpush1.msra.mxu0 0.0
        %2030 = vmatprep.subr.mxu0 0.0
        %2031 = vmatpush1.msra.mxu0 0.0
        %2032 = vmatprep.subr.mxu0 0.0
        %2033 = vmatpush1.msra.mxu0 0.0
        %2034 = vmatprep.subr.mxu0 0.0
        %2035 = vmatpush1.msra.mxu0 0.0
        %2036 = vmatprep.subr.mxu0 0.0
        %2037 = vmatpush1.msra.mxu0 0.0
        %2038 = vmatprep.subr.mxu0 0.0
        %2039 = vmatpush1.msra.mxu0 0.0
        %2040 = vmatprep.subr.mxu0 0.0
        %2041 = vmatpush1.msra.mxu0 0.0
        %2042 = vmatprep.subr.mxu0 %v1053
        %2043 = vmatpush1.msra.mxu0 %v1050
        %2044 = vmatprep.subr.mxu0 %v355
        %2045 = vmatpush1.msra.mxu0 %v354
        %2046 = vmatprep.subr.mxu0 %v347
        %2047 = vmatpush1.msra.mxu0 %v346
        %2048 = vmatprep.subr.mxu0 %v339
        %2049 = vmatpush1.msra.mxu0 %v338
        %2050 = vmatprep.subr.mxu0 0.0
        %2051 = vmatpush2.msra.mxu0 0.0
        %2052 = vmatprep.subr.mxu0 0.0
        %2053 = vmatpush2.msra.mxu0 0.0
        %2054 = vmatprep.subr.mxu0 0.0
        %2055 = vmatpush2.msra.mxu0 0.0
        %2056 = vmatprep.subr.mxu0 0.0
        %2057 = vmatpush2.msra.mxu0 0.0
        %2058 = vmatprep.subr.mxu0 0.0
        %2059 = vmatpush2.msra.mxu0 0.0
        %2060 = vmatprep.subr.mxu0 0.0
        %2061 = vmatpush2.msra.mxu0 0.0
        %2062 = vmatprep.subr.mxu0 0.0
        %2063 = vmatpush2.msra.mxu0 0.0
        %2064 = vmatprep.subr.mxu0 0.0
        %2065 = vmatpush2.msra.mxu0 0.0
        %2066 = vmatprep.subr.mxu0 0.0
        %2067 = vmatpush2.msra.mxu0 0.0
        %2068 = vmatprep.subr.mxu0 0.0
        %2069 = vmatpush2.msra.mxu0 0.0
        %2070 = vmatprep.subr.mxu0 0.0
        %2071 = vmatpush2.msra.mxu0 0.0
        %2072 = vmatprep.subr.mxu0 0.0
        %2073 = vmatpush2.msra.mxu0 0.0
        %2074 = vmatprep.subr.mxu0 0.0
        %2075 = vmatpush2.msra.mxu0 0.0
        %2076 = vmatprep.subr.mxu0 0.0
        %2077 = vmatpush2.msra.mxu0 0.0
        %2078 = vmatprep.subr.mxu0 0.0
        %2079 = vmatpush2.msra.mxu0 0.0
        %2080 = vmatprep.subr.mxu0 0.0
        %2081 = vmatpush2.msra.mxu0 0.0
        %2082 = vmatprep.mubr.f32.mxu0 0.0
        %2083 = vmatmul.mubr.f32.gmra.mxu0 %v2013
        %v2084 = vpop.f32.mrf.mxu0
        %v2085 = vadd.f32 0.0, %v2084
        %v2086 = vpop.f32.mrf.mxu0
        %v2087 = vadd.f32 0.0, %v2086
        %2088 = vmatprep.mubr.f32.mxu0 0.0
        %2089 = vmatmul.mubr.f32.gmra.mxu0 %v2016
        %v2090 = vpop.f32.mrf.mxu0
        %v2091 = vadd.f32 0.0, %v2090
        %v2092 = vpop.f32.mrf.mxu0
        %v2093 = vadd.f32 0.0, %v2092
        %2094 = vdwg.mxu0
        %2095 = vmatprep.subr.mxu0 0.0
        %2096 = vmatpush1.msra.mxu0 0.0
        %2097 = vmatprep.subr.mxu0 0.0
        %2098 = vmatpush1.msra.mxu0 0.0
        %2099 = vmatprep.subr.mxu0 0.0
        %2100 = vmatpush1.msra.mxu0 0.0
        %2101 = vmatprep.subr.mxu0 0.0
        %2102 = vmatpush1.msra.mxu0 0.0
        %2103 = vmatprep.subr.mxu0 0.0
        %2104 = vmatpush1.msra.mxu0 0.0
        %2105 = vmatprep.subr.mxu0 0.0
        %2106 = vmatpush1.msra.mxu0 0.0
        %2107 = vmatprep.subr.mxu0 0.0
        %2108 = vmatpush1.msra.mxu0 0.0
        %2109 = vmatprep.subr.mxu0 0.0
        %2110 = vmatpush1.msra.mxu0 0.0
        %2111 = vmatprep.subr.mxu0 0.0
        %2112 = vmatpush1.msra.mxu0 0.0
        %2113 = vmatprep.subr.mxu0 0.0
        %2114 = vmatpush1.msra.mxu0 0.0
        %2115 = vmatprep.subr.mxu0 0.0
        %2116 = vmatpush1.msra.mxu0 0.0
        %2117 = vmatprep.subr.mxu0 0.0
        %2118 = vmatpush1.msra.mxu0 0.0
        %2119 = vmatprep.subr.mxu0 %v1059
        %2120 = vmatpush1.msra.mxu0 %v1056
        %2121 = vmatprep.subr.mxu0 %v357
        %2122 = vmatpush1.msra.mxu0 %v356
        %2123 = vmatprep.subr.mxu0 %v349
        %2124 = vmatpush1.msra.mxu0 %v348
        %2125 = vmatprep.subr.mxu0 %v341
        %2126 = vmatpush1.msra.mxu0 %v340
        %2127 = vmatprep.subr.mxu0 0.0
        %2128 = vmatpush2.msra.mxu0 0.0
        %2129 = vmatprep.subr.mxu0 0.0
        %2130 = vmatpush2.msra.mxu0 0.0
        %2131 = vmatprep.subr.mxu0 0.0
        %2132 = vmatpush2.msra.mxu0 0.0
        %2133 = vmatprep.subr.mxu0 0.0
        %2134 = vmatpush2.msra.mxu0 0.0
        %2135 = vmatprep.subr.mxu0 0.0
        %2136 = vmatpush2.msra.mxu0 0.0
        %2137 = vmatprep.subr.mxu0 0.0
        %2138 = vmatpush2.msra.mxu0 0.0
        %2139 = vmatprep.subr.mxu0 0.0
        %2140 = vmatpush2.msra.mxu0 0.0
        %2141 = vmatprep.subr.mxu0 0.0
        %2142 = vmatpush2.msra.mxu0 0.0
        %2143 = vmatprep.subr.mxu0 0.0
        %2144 = vmatpush2.msra.mxu0 0.0
        %2145 = vmatprep.subr.mxu0 0.0
        %2146 = vmatpush2.msra.mxu0 0.0
        %2147 = vmatprep.subr.mxu0 0.0
        %2148 = vmatpush2.msra.mxu0 0.0
        %2149 = vmatprep.subr.mxu0 0.0
        %2150 = vmatpush2.msra.mxu0 0.0
        %2151 = vmatprep.subr.mxu0 0.0
        %2152 = vmatpush2.msra.mxu0 0.0
        %2153 = vmatprep.subr.mxu0 0.0
        %2154 = vmatpush2.msra.mxu0 0.0
        %2155 = vmatprep.subr.mxu0 0.0
        %2156 = vmatpush2.msra.mxu0 0.0
        %2157 = vmatprep.subr.mxu0 0.0
        %2158 = vmatpush2.msra.mxu0 0.0
        %2159 = vmatprep.mubr.f32.mxu0 0.0
        %2160 = vmatmul.mubr.f32.gmra.mxu0 %v2013
        %v2161 = vpop.f32.mrf.mxu0
        %v2162 = vadd.f32 0.0, %v2161
        %v2163 = vpop.f32.mrf.mxu0
        %v2164 = vadd.f32 0.0, %v2163
        %2165 = vmatprep.mubr.f32.mxu0 0.0
        %2166 = vmatmul.mubr.f32.gmra.mxu0 %v2016
        %v2167 = vpop.f32.mrf.mxu0
        %v2168 = vadd.f32 0.0, %v2167
        %v2169 = vpop.f32.mrf.mxu0
        %v2170 = vadd.f32 0.0, %v2169
        %2171 = vdwg.mxu0
        %2172 = vmatprep.subr.mxu0 0.0
        %2173 = vmatpush1.msra.mxu0 0.0
        %2174 = vmatprep.subr.mxu0 0.0
        %2175 = vmatpush1.msra.mxu0 0.0
        %2176 = vmatprep.subr.mxu0 0.0
        %2177 = vmatpush1.msra.mxu0 0.0
        %2178 = vmatprep.subr.mxu0 0.0
        %2179 = vmatpush1.msra.mxu0 0.0
        %2180 = vmatprep.subr.mxu0 0.0
        %2181 = vmatpush1.msra.mxu0 0.0
        %2182 = vmatprep.subr.mxu0 0.0
        %2183 = vmatpush1.msra.mxu0 0.0
        %2184 = vmatprep.subr.mxu0 0.0
        %2185 = vmatpush1.msra.mxu0 0.0
        %2186 = vmatprep.subr.mxu0 0.0
        %2187 = vmatpush1.msra.mxu0 0.0
        %2188 = vmatprep.subr.mxu0 0.0
        %2189 = vmatpush1.msra.mxu0 0.0
        %2190 = vmatprep.subr.mxu0 0.0
        %2191 = vmatpush1.msra.mxu0 0.0
        %2192 = vmatprep.subr.mxu0 0.0
        %2193 = vmatpush1.msra.mxu0 0.0
        %2194 = vmatprep.subr.mxu0 0.0
        %2195 = vmatpush1.msra.mxu0 0.0
        %2196 = vmatprep.subr.mxu0 %v1065
        %2197 = vmatpush1.msra.mxu0 %v1062
        %2198 = vmatprep.subr.mxu0 %v359
        %2199 = vmatpush1.msra.mxu0 %v358
        %2200 = vmatprep.subr.mxu0 %v351
        %2201 = vmatpush1.msra.mxu0 %v350
        %2202 = vmatprep.subr.mxu0 %v343
        %2203 = vmatpush1.msra.mxu0 %v342
        %2204 = vmatprep.subr.mxu0 0.0
        %2205 = vmatpush2.msra.mxu0 0.0
        %2206 = vmatprep.subr.mxu0 0.0
        %2207 = vmatpush2.msra.mxu0 0.0
        %2208 = vmatprep.subr.mxu0 0.0
        %2209 = vmatpush2.msra.mxu0 0.0
        %2210 = vmatprep.subr.mxu0 0.0
        %2211 = vmatpush2.msra.mxu0 0.0
        %2212 = vmatprep.subr.mxu0 0.0
        %2213 = vmatpush2.msra.mxu0 0.0
        %2214 = vmatprep.subr.mxu0 0.0
        %2215 = vmatpush2.msra.mxu0 0.0
        %2216 = vmatprep.subr.mxu0 0.0
        %2217 = vmatpush2.msra.mxu0 0.0
        %2218 = vmatprep.subr.mxu0 0.0
        %2219 = vmatpush2.msra.mxu0 0.0
        %2220 = vmatprep.subr.mxu0 0.0
        %2221 = vmatpush2.msra.mxu0 0.0
        %2222 = vmatprep.subr.mxu0 0.0
        %2223 = vmatpush2.msra.mxu0 0.0
        %2224 = vmatprep.subr.mxu0 0.0
        %2225 = vmatpush2.msra.mxu0 0.0
        %2226 = vmatprep.subr.mxu0 0.0
        %2227 = vmatpush2.msra.mxu0 0.0
        %2228 = vmatprep.subr.mxu0 0.0
        %2229 = vmatpush2.msra.mxu0 0.0
        %2230 = vmatprep.subr.mxu0 0.0
        %2231 = vmatpush2.msra.mxu0 0.0
        %2232 = vmatprep.subr.mxu0 0.0
        %2233 = vmatpush2.msra.mxu0 0.0
        %2234 = vmatprep.subr.mxu0 0.0
        %2235 = vmatpush2.msra.mxu0 0.0
        %2236 = vmatprep.mubr.f32.mxu0 0.0
        %2237 = vmatmul.mubr.f32.gmra.mxu0 %v2013
        %v2238 = vpop.f32.mrf.mxu0
        %v2239 = vadd.f32 0.0, %v2238
        %v2240 = vpop.f32.mrf.mxu0
        %v2241 = vadd.f32 0.0, %v2240
        %2242 = vmatprep.mubr.f32.mxu0 0.0
        %2243 = vmatmul.mubr.f32.gmra.mxu0 %v2016
        %v2244 = vpop.f32.mrf.mxu0
        %v2245 = vadd.f32 0.0, %v2244
        %v2246 = vpop.f32.mrf.mxu0
        %v2247 = vadd.f32 0.0, %v2246
        %2248 = vdwg.mxu0
        %2249 = vmatprep.subr.mxu0 0.0
        %2250 = vmatpush1.msra.mxu0 0.0
        %2251 = vmatprep.subr.mxu0 0.0
        %2252 = vmatpush1.msra.mxu0 0.0
        %2253 = vmatprep.subr.mxu0 0.0
        %2254 = vmatpush1.msra.mxu0 0.0
        %2255 = vmatprep.subr.mxu0 0.0
        %2256 = vmatpush1.msra.mxu0 0.0
        %2257 = vmatprep.subr.mxu0 0.0
        %2258 = vmatpush1.msra.mxu0 0.0
        %2259 = vmatprep.subr.mxu0 0.0
        %2260 = vmatpush1.msra.mxu0 0.0
        %2261 = vmatprep.subr.mxu0 0.0
        %2262 = vmatpush1.msra.mxu0 0.0
        %2263 = vmatprep.subr.mxu0 0.0
        %2264 = vmatpush1.msra.mxu0 0.0
        %2265 = vmatprep.subr.mxu0 0.0
        %2266 = vmatpush1.msra.mxu0 0.0
        %2267 = vmatprep.subr.mxu0 0.0
        %2268 = vmatpush1.msra.mxu0 0.0
        %2269 = vmatprep.subr.mxu0 0.0
        %2270 = vmatpush1.msra.mxu0 0.0
        %2271 = vmatprep.subr.mxu0 0.0
        %2272 = vmatpush1.msra.mxu0 0.0
        %2273 = vmatprep.subr.mxu0 %v1071
        %2274 = vmatpush1.msra.mxu0 %v1068
        %2275 = vmatprep.subr.mxu0 %v361
        %2276 = vmatpush1.msra.mxu0 %v360
        %2277 = vmatprep.subr.mxu0 %v353
        %2278 = vmatpush1.msra.mxu0 %v352
        %2279 = vmatprep.subr.mxu0 %v345
        %2280 = vmatpush1.msra.mxu0 %v344
        %2281 = vmatprep.subr.mxu0 0.0
        %2282 = vmatpush2.msra.mxu0 0.0
        %2283 = vmatprep.subr.mxu0 0.0
        %2284 = vmatpush2.msra.mxu0 0.0
        %2285 = vmatprep.subr.mxu0 0.0
        %2286 = vmatpush2.msra.mxu0 0.0
        %2287 = vmatprep.subr.mxu0 0.0
        %2288 = vmatpush2.msra.mxu0 0.0
        %2289 = vmatprep.subr.mxu0 0.0
        %2290 = vmatpush2.msra.mxu0 0.0
        %2291 = vmatprep.subr.mxu0 0.0
        %2292 = vmatpush2.msra.mxu0 0.0
        %2293 = vmatprep.subr.mxu0 0.0
        %2294 = vmatpush2.msra.mxu0 0.0
        %2295 = vmatprep.subr.mxu0 0.0
        %2296 = vmatpush2.msra.mxu0 0.0
        %2297 = vmatprep.subr.mxu0 0.0
        %2298 = vmatpush2.msra.mxu0 0.0
        %2299 = vmatprep.subr.mxu0 0.0
        %2300 = vmatpush2.msra.mxu0 0.0
        %2301 = vmatprep.subr.mxu0 0.0
        %2302 = vmatpush2.msra.mxu0 0.0
        %2303 = vmatprep.subr.mxu0 0.0
        %2304 = vmatpush2.msra.mxu0 0.0
        %2305 = vmatprep.subr.mxu0 0.0
        %2306 = vmatpush2.msra.mxu0 0.0
        %2307 = vmatprep.subr.mxu0 0.0
        %2308 = vmatpush2.msra.mxu0 0.0
        %2309 = vmatprep.subr.mxu0 0.0
        %2310 = vmatpush2.msra.mxu0 0.0
        %2311 = vmatprep.subr.mxu0 0.0
        %2312 = vmatpush2.msra.mxu0 0.0
        %2313 = vmatprep.mubr.f32.mxu0 0.0
        %2314 = vmatmul.mubr.f32.gmra.mxu0 %v2013
        %v2315 = vpop.f32.mrf.mxu0
        %v2316 = vadd.f32 0.0, %v2315
        %v2317 = vpop.f32.mrf.mxu0
        %v2318 = vadd.f32 0.0, %v2317
        %2319 = vmatprep.mubr.f32.mxu0 0.0
        %2320 = vmatmul.mubr.f32.gmra.mxu0 %v2016
        %v2321 = vpop.f32.mrf.mxu0
        %v2322 = vadd.f32 0.0, %v2321
        %v2323 = vpop.f32.mrf.mxu0
        %v2324 = vadd.f32 0.0, %v2323
        %2325 = vdwg.mxu0
        %v2326 = vadd.f32 %v1772, %v2085
        %v2327 = vadd.f32 %v1774, %v2087
        %v2328 = vadd.f32 %v1849, %v2162
        %v2329 = vadd.f32 %v1851, %v2164
        %v2330 = vadd.f32 %v1926, %v2239
        %v2331 = vadd.f32 %v1928, %v2241
        %v2332 = vadd.f32 %v2003, %v2316
        %v2333 = vadd.f32 %v2005, %v2318
        %v2334 = vadd.f32 %v1778, %v2091
        %v2335 = vadd.f32 %v1780, %v2093
        %v2336 = vadd.f32 %v1855, %v2168
        %v2337 = vadd.f32 %v1857, %v2170
        %v2338 = vadd.f32 %v1932, %v2245
        %v2339 = vadd.f32 %v1934, %v2247
        %v2340 = vadd.f32 %v2009, %v2322
        %v2341 = vadd.f32 %v2011, %v2324
        %v2342 = vmax.f32 %v1381, %v2326
        %v2343 = vmax.f32 %v1382, %v2327
        %v2344 = vmax.f32 %v1383, %v2328
        %v2345 = vmax.f32 %v1384, %v2329
        %v2346 = vmax.f32 %v1385, %v2330
        %v2347 = vmax.f32 %v1386, %v2331
        %v2348 = vmax.f32 %v1387, %v2332
        %v2349 = vmax.f32 %v1388, %v2333
        %v2350 = vmax.f32 %v1389, %v2334
        %v2351 = vmax.f32 %v1390, %v2335
        %v2352 = vmax.f32 %v1391, %v2336
        %v2353 = vmax.f32 %v1392, %v2337
        %v2354 = vmax.f32 %v1393, %v2338
        %v2355 = vmax.f32 %v1394, %v2339
        %v2356 = vmax.f32 %v1395, %v2340
        %v2357 = vmax.f32 %v1396, %v2341
        %v2358 = vmax.f32 %v2342, %v2346
        %v2359 = vmax.f32 %v2343, %v2347
        %v2360 = vmax.f32 %v2344, %v2348
        %v2361 = vmax.f32 %v2345, %v2349
        %v2362 = vmax.f32 %v2350, %v2354
        %v2363 = vmax.f32 %v2351, %v2355
        %v2364 = vmax.f32 %v2352, %v2356
        %v2365 = vmax.f32 %v2353, %v2357
        %v2366 = vld [vmem:[#allocation4] sm:$0xf]
        %v2368 = vlaneseq
        %v2369 = vshrl.u32 %v2368, 7
        %v2370 = vsub.s32 0, %v2369
        %v2371 = vrot.slane %v2366, %v2370
        %v2372 = vlaneseq
        %v2373 = vshrl.u32 %v2372, 7
        %v2374 = vsub.s32 1, %v2373
        %v2375 = vrot.slane %v2366, %v2374
        %v2376 = vlaneseq
        %v2377 = vshrl.u32 %v2376, 7
        %v2378 = vsub.s32 2, %v2377
        %v2379 = vrot.slane %v2366, %v2378
        %v2380 = vlaneseq
        %v2381 = vshrl.u32 %v2380, 7
        %v2382 = vsub.s32 3, %v2381
        %v2383 = vrot.slane %v2366, %v2382
        %v2388 = vadd.f32 %v2358, %v2371
        %v2389 = vadd.f32 %v2359, %v2375
        %v2390 = vadd.f32 %v2360, %v2379
        %v2391 = vadd.f32 %v2361, %v2383
        %v2392 = vadd.f32 %v2362, %v2371
        %v2393 = vadd.f32 %v2363, %v2375
        %v2394 = vadd.f32 %v2364, %v2379
        %v2395 = vadd.f32 %v2365, %v2383
        %v2396 = vmax.f32 %v2388, 0.0
        %v2397 = vmax.f32 %v2389, 0.0
        %v2398 = vmax.f32 %v2390, 0.0
        %v2399 = vmax.f32 %v2391, 0.0
        %v2400 = vmax.f32 %v2392, 0.0
        %v2401 = vmax.f32 %v2393, 0.0
        %v2402 = vmax.f32 %v2394, 0.0
        %v2403 = vmax.f32 %v2395, 0.0
        %v2404 = vpack.c.bf16 %v2400, %v2396
        %v2405 = vpack.c.bf16 %v2401, %v2397
        %v2406 = vpack.c.bf16 %v2402, %v2398
        %v2407 = vpack.c.bf16 %v2403, %v2399
        %v2412 = vunpack.c.l.b16 %v2404
        %v2413 = vunpack.c.l.b16 %v2405
        %v2414 = vunpack.c.l.b16 %v2406
        %v2415 = vunpack.c.l.b16 %v2407
        %v2416 = vunpack.c.h.b16 %v2404
        %v2417 = vunpack.c.h.b16 %v2405
        %v2418 = vunpack.c.h.b16 %v2406
        %v2419 = vunpack.c.h.b16 %v2407
        %v2420 = vpack.c.b16 %v2413, %v2412
        %v2421 = vpack.c.b16 %v2415, %v2414
        %v2422 = vpack.c.b16 %v2417, %v2416
        %v2423 = vpack.c.b16 %v2419, %v2418
        %2428 = vst [vmem:[%s251] sm:$0xff] %v2420
        %2429 = vst [vmem:[%s251 + $0x8] sm:$0xff] %v2421
        %2430 = vst [vmem:[%s251 + $0x10] sm:$0xff] %v2422
        %2431 = vst [vmem:[%s251 + $0x18] sm:$0xff] %v2423
        %s2432 = smul.u32 2, %s17
        %p2433 = scmp.lt.s32.totalorder %s2432, 3
        %s2434 = scalar_select %p2433, %s2432, 3
        %s2435 = smul.addr %s2434, 4
        %s2436 = smul.addr %s2435, 4
        %s2437 = scalar_lea.vmem %s4, %s2436
        // Predicated region
        $region45: #{cnn_forward.3} parent=35 // pred_check
          %p2438 = pneg %p129
        $region46: #{cnn_forward.3} parent=35 // pred_check_branch
          %2440 = sbr.rel (%p2438) target = $region48
        $region47: #{cnn_forward.3} parent=35 // pred_region
          %s2441 = smul.u32 2, %s17
        $region48: #{cnn_forward.3} parent=35 // pred_fallthru
          _
      $region36: #{cnn_forward.3} parent=5 // pred_fallthru
        _
      %p2442 = scmp.le.s32.totalorder 2, %s12
      // Predicated region
      $region49: #{cnn_forward.3} parent=5 // pred_check
        %p2443 = pneg %p2442
      $region50: #{cnn_forward.3} parent=5 // pred_check_branch
        %2445 = sbr.rel (%p2443) target = $region52
      $region51: #{cnn_forward.3} parent=5 // pred_region
        %s2446 = ssub.s32 %s12, 2
        // Predicated region
        $region53: #{cnn_forward.3} parent=51 // pred_check
          %p2447 = pneg %p135
        $region54: #{cnn_forward.3} parent=51 // pred_check_branch
          %2449 = sbr.rel (%p2447) target = $region56
        $region55: #{cnn_forward.3} parent=51 // pred_region
          %s2450 = smul.u32 2, %s18
          %p2451 = scmp.lt.s32.totalorder %s2450, 3
          %s2452 = scalar_select %p2451, %s2450, 3
          %s2453 = smul.addr %s2452, 4
          %s2454 = smul.addr %s2453, 4
          %s2455 = scalar_lea.vmem %s4, %s2454
        $region56: #{cnn_forward.3} parent=51 // pred_fallthru
          _
      $region52: #{cnn_forward.3} parent=5 // pred_fallthru
        _
    $region6: #{cnn_forward.3} parent=1 // loop_footer
      %s16 = sadd.s32 1, %s12
    $region7: #{cnn_forward.3} parent=1 // loop_footer_branch
      %11 = sbr.rel target = $region3
    $region8: #{cnn_forward.3} parent=1 // loop_exit
      _
    %2456 = vsyncpa [#allocation3], 1
    %s2457 = scalar_lea.sflag [#allocation3], 1
    %2458 = vsyncpa %s2457, 1
    %2459 = vsyncpa [#allocation5], 1

// kernel: cnn_forward.5
$region0: #{cnn_forward.5}
  #allocation0 [shape = 'u32[]', space=smem, size = 0x4, offset = 0x4, fixed_abs, tag = 'smem constant byte address 0x4 - core index']
  #allocation1 [shape = 'u32[144,128]{1,0:T(1,128)}', space=vmem, size = 0x12000, scoped, tag = 'internal scratch']
  %s0 = inlined_call_operand.vmem [shape: bf16[2,4096], index: 0, kind: input, shape index: {}]
  %s1 = inlined_call_operand.vmem [shape: bf16[4096,128], index: 1, kind: input, shape index: {}]
  %s2 = inlined_call_operand.vmem [shape: f32[1,128], index: 2, kind: input, shape index: {}]
  %s3 = inlined_call_operand.vmem [shape: f32[128,128], index: 3, kind: input, shape index: {}]
  %s4 = inlined_call_operand.vmem [shape: f32[1,128], index: 4, kind: input, shape index: {}]
  %s5 = inlined_call_operand.hbm [shape: f32[2,128], index: 5, kind: output, shape index: {}]
  %s6 = sld [smem:[#allocation0]]
  $region30: #{cnn_forward.5} parent=0
    _
  %s8 = ssub.s32 1, %s6
  %s9 = scalar_select 0, %s8, %s6
  $region1: #{cnn_forward.5} parent=0
    #allocation2 [shape = 'u8[1024]{0}', space=vmem, size = 0x400, scoped, tag = 'output window, operand 0, single buffered']
    #allocation3 [shape = 's32[1]{0}', space=sflag, size = 0x4, scoped, tag = 'scoped memory for cnn_forward.5']
    %10 = vsyncpa [#allocation3], 0
    // Predicated region
    $region2: #{cnn_forward.5} parent=1 // pred_check
      _
    $region3: #{cnn_forward.5} parent=1 // pred_check_branch
      %12 = sbr.rel (0) target = $region5
    $region4: #{cnn_forward.5} parent=1 // pred_region
      _
    $region5: #{cnn_forward.5} parent=1 // pred_fallthru
      _
    // Predicated region
    $region6: #{cnn_forward.5} parent=1 // pred_check
      _
    $region7: #{cnn_forward.5} parent=1 // pred_check_branch
      %14 = sbr.rel (0) target = $region9
    $region8: #{cnn_forward.5} parent=1 // pred_region
      _
    $region9: #{cnn_forward.5} parent=1 // pred_fallthru
      _
    // Predicated region
    $region10: #{cnn_forward.5} parent=1 // pred_check
      _
    $region11: #{cnn_forward.5} parent=1 // pred_check_branch
      %16 = sbr.rel (0) target = $region13
    $region12: #{cnn_forward.5} parent=1 // pred_region
      _
    $region13: #{cnn_forward.5} parent=1 // pred_fallthru
      _
    // Predicated region
    $region14: #{cnn_forward.5} parent=1 // pred_check
      _
    $region15: #{cnn_forward.5} parent=1 // pred_check_branch
      %18 = sbr.rel (0) target = $region17
    $region16: #{cnn_forward.5} parent=1 // pred_region
      _
    $region17: #{cnn_forward.5} parent=1 // pred_fallthru
      _
    // Predicated region
    $region18: #{cnn_forward.5} parent=1 // pred_check
      _
    $region19: #{cnn_forward.5} parent=1 // pred_check_branch
      %20 = sbr.rel (0) target = $region21
    $region20: #{cnn_forward.5} parent=1 // pred_region
      _
    $region21: #{cnn_forward.5} parent=1 // pred_fallthru
      _
    %v22 = vld [vmem:[%s0] sm:$0xff]
    %v23 = vld [vmem:[%s0 + $0x8] sm:$0xff]
    %v24 = vld [vmem:[%s0 + $0x10] sm:$0xff]
    %v25 = vld [vmem:[%s0 + $0x18] sm:$0xff]
    %v26 = vld [vmem:[%s1] sm:$0xf]
    %v27 = vld [vmem:[%s1 + $0x4] sm:$0xf]
    %v28 = vld [vmem:[%s1 + $0x8] sm:$0xf]
    %v29 = vld [vmem:[%s1 + $0xc] sm:$0xf]
    %v30 = vld [vmem:[%s1 + $0x10] sm:$0xf]
    %v31 = vld [vmem:[%s1 + $0x14] sm:$0xf]
    %v32 = vld [vmem:[%s1 + $0x18] sm:$0xf]
    %v33 = vld [vmem:[%s1 + $0x1c] sm:$0xf]
    %v34 = vld [vmem:[%s1 + $0x20] sm:$0xf]
    %v35 = vld [vmem:[%s1 + $0x24] sm:$0xf]
    %v36 = vld [vmem:[%s1 + $0x28] sm:$0xf]
    %v37 = vld [vmem:[%s1 + $0x2c] sm:$0xf]
    %v38 = vld [vmem:[%s1 + $0x30] sm:$0xf]
    %v39 = vld [vmem:[%s1 + $0x34] sm:$0xf]
    %v40 = vld [vmem:[%s1 + $0x38] sm:$0xf]
    %v41 = vld [vmem:[%s1 + $0x3c] sm:$0xf]
    %v42 = vld [vmem:[%s1 + $0x40] sm:$0xf]
    %v43 = vld [vmem:[%s1 + $0x44] sm:$0xf]
    %v44 = vld [vmem:[%s1 + $0x48] sm:$0xf]
    %v45 = vld [vmem:[%s1 + $0x4c] sm:$0xf]
    %v46 = vld [vmem:[%s1 + $0x50] sm:$0xf]
    %v47 = vld [vmem:[%s1 + $0x54] sm:$0xf]
    %v48 = vld [vmem:[%s1 + $0x58] sm:$0xf]
    %v49 = vld [vmem:[%s1 + $0x5c] sm:$0xf]
    %v50 = vld [vmem:[%s1 + $0x60] sm:$0xf]
    %v51 = vld [vmem:[%s1 + $0x64] sm:$0xf]
    %v52 = vld [vmem:[%s1 + $0x68] sm:$0xf]
    %v53 = vld [vmem:[%s1 + $0x6c] sm:$0xf]
    %v54 = vld [vmem:[%s1 + $0x70] sm:$0xf]
    %v55 = vld [vmem:[%s1 + $0x74] sm:$0xf]
    %v56 = vld [vmem:[%s1 + $0x78] sm:$0xf]
    %v57 = vld [vmem:[%s1 + $0x7c] sm:$0xf]
    %v58 = vld [vmem:[%s1 + $0x80] sm:$0xf]
    %v59 = vld [vmem:[%s1 + $0x84] sm:$0xf]
    %v60 = vld [vmem:[%s1 + $0x88] sm:$0xf]
    %v61 = vld [vmem:[%s1 + $0x8c] sm:$0xf]
    %v62 = vld [vmem:[%s1 + $0x90] sm:$0xf]
    %v63 = vld [vmem:[%s1 + $0x94] sm:$0xf]
    %v64 = vld [vmem:[%s1 + $0x98] sm:$0xf]
    %v65 = vld [vmem:[%s1 + $0x9c] sm:$0xf]
    %v66 = vld [vmem:[%s1 + $0xa0] sm:$0xf]
    %v67 = vld [vmem:[%s1 + $0xa4] sm:$0xf]
    %v68 = vld [vmem:[%s1 + $0xa8] sm:$0xf]
    %v69 = vld [vmem:[%s1 + $0xac] sm:$0xf]
    %v70 = vld [vmem:[%s1 + $0xb0] sm:$0xf]
    %v71 = vld [vmem:[%s1 + $0xb4] sm:$0xf]
    %v72 = vld [vmem:[%s1 + $0xb8] sm:$0xf]
    %v73 = vld [vmem:[%s1 + $0xbc] sm:$0xf]
    %v74 = vld [vmem:[%s1 + $0xc0] sm:$0xf]
    %v75 = vld [vmem:[%s1 + $0xc4] sm:$0xf]
    %v76 = vld [vmem:[%s1 + $0xc8] sm:$0xf]
    %v77 = vld [vmem:[%s1 + $0xcc] sm:$0xf]
    %v78 = vld [vmem:[%s1 + $0xd0] sm:$0xf]
    %v79 = vld [vmem:[%s1 + $0xd4] sm:$0xf]
    %v80 = vld [vmem:[%s1 + $0xd8] sm:$0xf]
    %v81 = vld [vmem:[%s1 + $0xdc] sm:$0xf]
    %v82 = vld [vmem:[%s1 + $0xe0] sm:$0xf]
    %v83 = vld [vmem:[%s1 + $0xe4] sm:$0xf]
    %v84 = vld [vmem:[%s1 + $0xe8] sm:$0xf]
    %v85 = vld [vmem:[%s1 + $0xec] sm:$0xf]
    %v86 = vld [vmem:[%s1 + $0xf0] sm:$0xf]
    %v87 = vld [vmem:[%s1 + $0xf4] sm:$0xf]
    %v88 = vld [vmem:[%s1 + $0xf8] sm:$0xf]
    %v89 = vld [vmem:[%s1 + $0xfc] sm:$0xf]
    %v90 = vld [vmem:[%s1 + $0x100] sm:$0xf]
    %v91 = vld [vmem:[%s1 + $0x104] sm:$0xf]
    %v92 = vld [vmem:[%s1 + $0x108] sm:$0xf]
    %v93 = vld [vmem:[%s1 + $0x10c] sm:$0xf]
    %v94 = vld [vmem:[%s1 + $0x110] sm:$0xf]
    %v95 = vld [vmem:[%s1 + $0x114] sm:$0xf]
    %v96 = vld [vmem:[%s1 + $0x118] sm:$0xf]
    %v97 = vld [vmem:[%s1 + $0x11c] sm:$0xf]
    %v98 = vld [vmem:[%s1 + $0x120] sm:$0xf]
    %v99 = vld [vmem:[%s1 + $0x124] sm:$0xf]
    %v100 = vld [vmem:[%s1 + $0x128] sm:$0xf]
    %v101 = vld [vmem:[%s1 + $0x12c] sm:$0xf]
    %v102 = vld [vmem:[%s1 + $0x130] sm:$0xf]
    %v103 = vld [vmem:[%s1 + $0x134] sm:$0xf]
    %v104 = vld [vmem:[%s1 + $0x138] sm:$0xf]
    %v105 = vld [vmem:[%s1 + $0x13c] sm:$0xf]
    %v106 = vld [vmem:[%s1 + $0x140] sm:$0xf]
    %v107 = vld [vmem:[%s1 + $0x144] sm:$0xf]
    %v108 = vld [vmem:[%s1 + $0x148] sm:$0xf]
    %v109 = vld [vmem:[%s1 + $0x14c] sm:$0xf]
    %v110 = vld [vmem:[%s1 + $0x150] sm:$0xf]
    %v111 = vld [vmem:[%s1 + $0x154] sm:$0xf]
    %v112 = vld [vmem:[%s1 + $0x158] sm:$0xf]
    %v113 = vld [vmem:[%s1 + $0x15c] sm:$0xf]
    %v114 = vld [vmem:[%s1 + $0x160] sm:$0xf]
    %v115 = vld [vmem:[%s1 + $0x164] sm:$0xf]
    %v116 = vld [vmem:[%s1 + $0x168] sm:$0xf]
    %v117 = vld [vmem:[%s1 + $0x16c] sm:$0xf]
    %v118 = vld [vmem:[%s1 + $0x170] sm:$0xf]
    %v119 = vld [vmem:[%s1 + $0x174] sm:$0xf]
    %v120 = vld [vmem:[%s1 + $0x178] sm:$0xf]
    %v121 = vld [vmem:[%s1 + $0x17c] sm:$0xf]
    %v122 = vld [vmem:[%s1 + $0x180] sm:$0xf]
    %v123 = vld [vmem:[%s1 + $0x184] sm:$0xf]
    %v124 = vld [vmem:[%s1 + $0x188] sm:$0xf]
    %v125 = vld [vmem:[%s1 + $0x18c] sm:$0xf]
    %v126 = vld [vmem:[%s1 + $0x190] sm:$0xf]
    %v127 = vld [vmem:[%s1 + $0x194] sm:$0xf]
    %v128 = vld [vmem:[%s1 + $0x198] sm:$0xf]
    %v129 = vld [vmem:[%s1 + $0x19c] sm:$0xf]
    %v130 = vld [vmem:[%s1 + $0x1a0] sm:$0xf]
    %v131 = vld [vmem:[%s1 + $0x1a4] sm:$0xf]
    %v132 = vld [vmem:[%s1 + $0x1a8] sm:$0xf]
    %v133 = vld [vmem:[%s1 + $0x1ac] sm:$0xf]
    %v134 = vld [vmem:[%s1 + $0x1b0] sm:$0xf]
    %v135 = vld [vmem:[%s1 + $0x1b4] sm:$0xf]
    %v136 = vld [vmem:[%s1 + $0x1b8] sm:$0xf]
    %v137 = vld [vmem:[%s1 + $0x1bc] sm:$0xf]
    %v138 = vld [vmem:[%s1 + $0x1c0] sm:$0xf]
    %v139 = vld [vmem:[%s1 + $0x1c4] sm:$0xf]
    %v140 = vld [vmem:[%s1 + $0x1c8] sm:$0xf]
    %v141 = vld [vmem:[%s1 + $0x1cc] sm:$0xf]
    %v142 = vld [vmem:[%s1 + $0x1d0] sm:$0xf]
    %v143 = vld [vmem:[%s1 + $0x1d4] sm:$0xf]
    %v144 = vld [vmem:[%s1 + $0x1d8] sm:$0xf]
    %v145 = vld [vmem:[%s1 + $0x1dc] sm:$0xf]
    %v146 = vld [vmem:[%s1 + $0x1e0] sm:$0xf]
    %v147 = vld [vmem:[%s1 + $0x1e4] sm:$0xf]
    %v148 = vld [vmem:[%s1 + $0x1e8] sm:$0xf]
    %v149 = vld [vmem:[%s1 + $0x1ec] sm:$0xf]
    %v150 = vld [vmem:[%s1 + $0x1f0] sm:$0xf]
    %v151 = vld [vmem:[%s1 + $0x1f4] sm:$0xf]
    %v152 = vld [vmem:[%s1 + $0x1f8] sm:$0xf]
    %v153 = vld [vmem:[%s1 + $0x1fc] sm:$0xf]
    %v154 = vld [vmem:[%s1 + $0x200] sm:$0xf]
    %v155 = vld [vmem:[%s1 + $0x204] sm:$0xf]
    %v156 = vld [vmem:[%s1 + $0x208] sm:$0xf]
    %v157 = vld [vmem:[%s1 + $0x20c] sm:$0xf]
    %v158 = vld [vmem:[%s1 + $0x210] sm:$0xf]
    %v159 = vld [vmem:[%s1 + $0x214] sm:$0xf]
    %v160 = vld [vmem:[%s1 + $0x218] sm:$0xf]
    %v161 = vld [vmem:[%s1 + $0x21c] sm:$0xf]
    %v162 = vld [vmem:[%s1 + $0x220] sm:$0xf]
    %v163 = vld [vmem:[%s1 + $0x224] sm:$0xf]
    %v164 = vld [vmem:[%s1 + $0x228] sm:$0xf]
    %v165 = vld [vmem:[%s1 + $0x22c] sm:$0xf]
    %v166 = vld [vmem:[%s1 + $0x230] sm:$0xf]
    %v167 = vld [vmem:[%s1 + $0x234] sm:$0xf]
    %v168 = vld [vmem:[%s1 + $0x238] sm:$0xf]
    %v169 = vld [vmem:[%s1 + $0x23c] sm:$0xf]
    %v170 = vld [vmem:[%s1 + $0x240] sm:$0xf]
    %v171 = vld [vmem:[%s1 + $0x244] sm:$0xf]
    %v172 = vld [vmem:[%s1 + $0x248] sm:$0xf]
    %v173 = vld [vmem:[%s1 + $0x24c] sm:$0xf]
    %v174 = vld [vmem:[%s1 + $0x250] sm:$0xf]
    %v175 = vld [vmem:[%s1 + $0x254] sm:$0xf]
    %v176 = vld [vmem:[%s1 + $0x258] sm:$0xf]
    %v177 = vld [vmem:[%s1 + $0x25c] sm:$0xf]
    %v178 = vld [vmem:[%s1 + $0x260] sm:$0xf]
    %v179 = vld [vmem:[%s1 + $0x264] sm:$0xf]
    %v180 = vld [vmem:[%s1 + $0x268] sm:$0xf]
    %v181 = vld [vmem:[%s1 + $0x26c] sm:$0xf]
    %v182 = vld [vmem:[%s1 + $0x270] sm:$0xf]
    %v183 = vld [vmem:[%s1 + $0x274] sm:$0xf]
    %v184 = vld [vmem:[%s1 + $0x278] sm:$0xf]
    %v185 = vld [vmem:[%s1 + $0x27c] sm:$0xf]
    %v186 = vld [vmem:[%s1 + $0x280] sm:$0xf]
    %v187 = vld [vmem:[%s1 + $0x284] sm:$0xf]
    %v188 = vld [vmem:[%s1 + $0x288] sm:$0xf]
    %v189 = vld [vmem:[%s1 + $0x28c] sm:$0xf]
    %v190 = vld [vmem:[%s1 + $0x290] sm:$0xf]
    %v191 = vld [vmem:[%s1 + $0x294] sm:$0xf]
    %v192 = vld [vmem:[%s1 + $0x298] sm:$0xf]
    %v193 = vld [vmem:[%s1 + $0x29c] sm:$0xf]
    %v194 = vld [vmem:[%s1 + $0x2a0] sm:$0xf]
    %v195 = vld [vmem:[%s1 + $0x2a4] sm:$0xf]
    %v196 = vld [vmem:[%s1 + $0x2a8] sm:$0xf]
    %v197 = vld [vmem:[%s1 + $0x2ac] sm:$0xf]
    %v198 = vld [vmem:[%s1 + $0x2b0] sm:$0xf]
    %v199 = vld [vmem:[%s1 + $0x2b4] sm:$0xf]
    %v200 = vld [vmem:[%s1 + $0x2b8] sm:$0xf]
    %v201 = vld [vmem:[%s1 + $0x2bc] sm:$0xf]
    %v202 = vld [vmem:[%s1 + $0x2c0] sm:$0xf]
    %v203 = vld [vmem:[%s1 + $0x2c4] sm:$0xf]
    %v204 = vld [vmem:[%s1 + $0x2c8] sm:$0xf]
    %v205 = vld [vmem:[%s1 + $0x2cc] sm:$0xf]
    %v206 = vld [vmem:[%s1 + $0x2d0] sm:$0xf]
    %v207 = vld [vmem:[%s1 + $0x2d4] sm:$0xf]
    %v208 = vld [vmem:[%s1 + $0x2d8] sm:$0xf]
    %v209 = vld [vmem:[%s1 + $0x2dc] sm:$0xf]
    %v210 = vld [vmem:[%s1 + $0x2e0] sm:$0xf]
    %v211 = vld [vmem:[%s1 + $0x2e4] sm:$0xf]
    %v212 = vld [vmem:[%s1 + $0x2e8] sm:$0xf]
    %v213 = vld [vmem:[%s1 + $0x2ec] sm:$0xf]
    %v214 = vld [vmem:[%s1 + $0x2f0] sm:$0xf]
    %v215 = vld [vmem:[%s1 + $0x2f4] sm:$0xf]
    %v216 = vld [vmem:[%s1 + $0x2f8] sm:$0xf]
    %v217 = vld [vmem:[%s1 + $0x2fc] sm:$0xf]
    %v218 = vld [vmem:[%s1 + $0x300] sm:$0xf]
    %v219 = vld [vmem:[%s1 + $0x304] sm:$0xf]
    %v220 = vld [vmem:[%s1 + $0x308] sm:$0xf]
    %v221 = vld [vmem:[%s1 + $0x30c] sm:$0xf]
    %v222 = vld [vmem:[%s1 + $0x310] sm:$0xf]
    %v223 = vld [vmem:[%s1 + $0x314] sm:$0xf]
    %v224 = vld [vmem:[%s1 + $0x318] sm:$0xf]
    %v225 = vld [vmem:[%s1 + $0x31c] sm:$0xf]
    %v226 = vld [vmem:[%s1 + $0x320] sm:$0xf]
    %v227 = vld [vmem:[%s1 + $0x324] sm:$0xf]
    %v228 = vld [vmem:[%s1 + $0x328] sm:$0xf]
    %v229 = vld [vmem:[%s1 + $0x32c] sm:$0xf]
    %v230 = vld [vmem:[%s1 + $0x330] sm:$0xf]
    %v231 = vld [vmem:[%s1 + $0x334] sm:$0xf]
    %v232 = vld [vmem:[%s1 + $0x338] sm:$0xf]
    %v233 = vld [vmem:[%s1 + $0x33c] sm:$0xf]
    %v234 = vld [vmem:[%s1 + $0x340] sm:$0xf]
    %v235 = vld [vmem:[%s1 + $0x344] sm:$0xf]
    %v236 = vld [vmem:[%s1 + $0x348] sm:$0xf]
    %v237 = vld [vmem:[%s1 + $0x34c] sm:$0xf]
    %v238 = vld [vmem:[%s1 + $0x350] sm:$0xf]
    %v239 = vld [vmem:[%s1 + $0x354] sm:$0xf]
    %v240 = vld [vmem:[%s1 + $0x358] sm:$0xf]
    %v241 = vld [vmem:[%s1 + $0x35c] sm:$0xf]
    %v242 = vld [vmem:[%s1 + $0x360] sm:$0xf]
    %v243 = vld [vmem:[%s1 + $0x364] sm:$0xf]
    %v244 = vld [vmem:[%s1 + $0x368] sm:$0xf]
    %v245 = vld [vmem:[%s1 + $0x36c] sm:$0xf]
    %v246 = vld [vmem:[%s1 + $0x370] sm:$0xf]
    %v247 = vld [vmem:[%s1 + $0x374] sm:$0xf]
    %v248 = vld [vmem:[%s1 + $0x378] sm:$0xf]
    %v249 = vld [vmem:[%s1 + $0x37c] sm:$0xf]
    %v250 = vld [vmem:[%s1 + $0x380] sm:$0xf]
    %v251 = vld [vmem:[%s1 + $0x384] sm:$0xf]
    %v252 = vld [vmem:[%s1 + $0x388] sm:$0xf]
    %v253 = vld [vmem:[%s1 + $0x38c] sm:$0xf]
    %v254 = vld [vmem:[%s1 + $0x390] sm:$0xf]
    %v255 = vld [vmem:[%s1 + $0x394] sm:$0xf]
    %v256 = vld [vmem:[%s1 + $0x398] sm:$0xf]
    %v257 = vld [vmem:[%s1 + $0x39c] sm:$0xf]
    %v258 = vld [vmem:[%s1 + $0x3a0] sm:$0xf]
    %v259 = vld [vmem:[%s1 + $0x3a4] sm:$0xf]
    %v260 = vld [vmem:[%s1 + $0x3a8] sm:$0xf]
    %v261 = vld [vmem:[%s1 + $0x3ac] sm:$0xf]
    %v262 = vld [vmem:[%s1 + $0x3b0] sm:$0xf]
    %v263 = vld [vmem:[%s1 + $0x3b4] sm:$0xf]
    %v264 = vld [vmem:[%s1 + $0x3b8] sm:$0xf]
    %v265 = vld [vmem:[%s1 + $0x3bc] sm:$0xf]
    %v266 = vld [vmem:[%s1 + $0x3c0] sm:$0xf]
    %v267 = vld [vmem:[%s1 + $0x3c4] sm:$0xf]
    %v268 = vld [vmem:[%s1 + $0x3c8] sm:$0xf]
    %v269 = vld [vmem:[%s1 + $0x3cc] sm:$0xf]
    %v270 = vld [vmem:[%s1 + $0x3d0] sm:$0xf]
    %v271 = vld [vmem:[%s1 + $0x3d4] sm:$0xf]
    %v272 = vld [vmem:[%s1 + $0x3d8] sm:$0xf]
    %v273 = vld [vmem:[%s1 + $0x3dc] sm:$0xf]
    %v274 = vld [vmem:[%s1 + $0x3e0] sm:$0xf]
    %v275 = vld [vmem:[%s1 + $0x3e4] sm:$0xf]
    %v276 = vld [vmem:[%s1 + $0x3e8] sm:$0xf]
    %v277 = vld [vmem:[%s1 + $0x3ec] sm:$0xf]
    %v278 = vld [vmem:[%s1 + $0x3f0] sm:$0xf]
    %v279 = vld [vmem:[%s1 + $0x3f4] sm:$0xf]
    %v280 = vld [vmem:[%s1 + $0x3f8] sm:$0xf]
    %v281 = vld [vmem:[%s1 + $0x3fc] sm:$0xf]
    %v282 = vld [vmem:[%s1 + $0x400] sm:$0xf]
    %v283 = vld [vmem:[%s1 + $0x404] sm:$0xf]
    %v284 = vld [vmem:[%s1 + $0x408] sm:$0xf]
    %v285 = vld [vmem:[%s1 + $0x40c] sm:$0xf]
    %v286 = vld [vmem:[%s1 + $0x410] sm:$0xf]
    %v287 = vld [vmem:[%s1 + $0x414] sm:$0xf]
    %v288 = vld [vmem:[%s1 + $0x418] sm:$0xf]
    %v289 = vld [vmem:[%s1 + $0x41c] sm:$0xf]
    %v290 = vld [vmem:[%s1 + $0x420] sm:$0xf]
    %v291 = vld [vmem:[%s1 + $0x424] sm:$0xf]
    %v292 = vld [vmem:[%s1 + $0x428] sm:$0xf]
    %v293 = vld [vmem:[%s1 + $0x42c] sm:$0xf]
    %v294 = vld [vmem:[%s1 + $0x430] sm:$0xf]
    %v295 = vld [vmem:[%s1 + $0x434] sm:$0xf]
    %v296 = vld [vmem:[%s1 + $0x438] sm:$0xf]
    %v297 = vld [vmem:[%s1 + $0x43c] sm:$0xf]
    %v298 = vld [vmem:[%s1 + $0x440] sm:$0xf]
    %v299 = vld [vmem:[%s1 + $0x444] sm:$0xf]
    %v300 = vld [vmem:[%s1 + $0x448] sm:$0xf]
    %v301 = vld [vmem:[%s1 + $0x44c] sm:$0xf]
    %v302 = vld [vmem:[%s1 + $0x450] sm:$0xf]
    %v303 = vld [vmem:[%s1 + $0x454] sm:$0xf]
    %v304 = vld [vmem:[%s1 + $0x458] sm:$0xf]
    %v305 = vld [vmem:[%s1 + $0x45c] sm:$0xf]
    %v306 = vld [vmem:[%s1 + $0x460] sm:$0xf]
    %v307 = vld [vmem:[%s1 + $0x464] sm:$0xf]
    %v308 = vld [vmem:[%s1 + $0x468] sm:$0xf]
    %v309 = vld [vmem:[%s1 + $0x46c] sm:$0xf]
    %v310 = vld [vmem:[%s1 + $0x470] sm:$0xf]
    %v311 = vld [vmem:[%s1 + $0x474] sm:$0xf]
    %v312 = vld [vmem:[%s1 + $0x478] sm:$0xf]
    %v313 = vld [vmem:[%s1 + $0x47c] sm:$0xf]
    %v314 = vld [vmem:[%s1 + $0x480] sm:$0xf]
    %v315 = vld [vmem:[%s1 + $0x484] sm:$0xf]
    %v316 = vld [vmem:[%s1 + $0x488] sm:$0xf]
    %v317 = vld [vmem:[%s1 + $0x48c] sm:$0xf]
    %v318 = vld [vmem:[%s1 + $0x490] sm:$0xf]
    %v319 = vld [vmem:[%s1 + $0x494] sm:$0xf]
    %v320 = vld [vmem:[%s1 + $0x498] sm:$0xf]
    %v321 = vld [vmem:[%s1 + $0x49c] sm:$0xf]
    %v322 = vld [vmem:[%s1 + $0x4a0] sm:$0xf]
    %v323 = vld [vmem:[%s1 + $0x4a4] sm:$0xf]
    %v324 = vld [vmem:[%s1 + $0x4a8] sm:$0xf]
    %v325 = vld [vmem:[%s1 + $0x4ac] sm:$0xf]
    %v326 = vld [vmem:[%s1 + $0x4b0] sm:$0xf]
    %v327 = vld [vmem:[%s1 + $0x4b4] sm:$0xf]
    %v328 = vld [vmem:[%s1 + $0x4b8] sm:$0xf]
    %v329 = vld [vmem:[%s1 + $0x4bc] sm:$0xf]
    %v330 = vld [vmem:[%s1 + $0x4c0] sm:$0xf]
    %v331 = vld [vmem:[%s1 + $0x4c4] sm:$0xf]
    %v332 = vld [vmem:[%s1 + $0x4c8] sm:$0xf]
    %v333 = vld [vmem:[%s1 + $0x4cc] sm:$0xf]
    %v334 = vld [vmem:[%s1 + $0x4d0] sm:$0xf]
    %v335 = vld [vmem:[%s1 + $0x4d4] sm:$0xf]
    %v336 = vld [vmem:[%s1 + $0x4d8] sm:$0xf]
    %v337 = vld [vmem:[%s1 + $0x4dc] sm:$0xf]
    %v338 = vld [vmem:[%s1 + $0x4e0] sm:$0xf]
    %v339 = vld [vmem:[%s1 + $0x4e4] sm:$0xf]
    %v340 = vld [vmem:[%s1 + $0x4e8] sm:$0xf]
    %v341 = vld [vmem:[%s1 + $0x4ec] sm:$0xf]
    %v342 = vld [vmem:[%s1 + $0x4f0] sm:$0xf]
    %v343 = vld [vmem:[%s1 + $0x4f4] sm:$0xf]
    %v344 = vld [vmem:[%s1 + $0x4f8] sm:$0xf]
    %v345 = vld [vmem:[%s1 + $0x4fc] sm:$0xf]
    %v346 = vld [vmem:[%s1 + $0x500] sm:$0xf]
    %v347 = vld [vmem:[%s1 + $0x504] sm:$0xf]
    %v348 = vld [vmem:[%s1 + $0x508] sm:$0xf]
    %v349 = vld [vmem:[%s1 + $0x50c] sm:$0xf]
    %v350 = vld [vmem:[%s1 + $0x510] sm:$0xf]
    %v351 = vld [vmem:[%s1 + $0x514] sm:$0xf]
    %v352 = vld [vmem:[%s1 + $0x518] sm:$0xf]
    %v353 = vld [vmem:[%s1 + $0x51c] sm:$0xf]
    %v354 = vld [vmem:[%s1 + $0x520] sm:$0xf]
    %v355 = vld [vmem:[%s1 + $0x524] sm:$0xf]
    %v356 = vld [vmem:[%s1 + $0x528] sm:$0xf]
    %v357 = vld [vmem:[%s1 + $0x52c] sm:$0xf]
    %v358 = vld [vmem:[%s1 + $0x530] sm:$0xf]
    %v359 = vld [vmem:[%s1 + $0x534] sm:$0xf]
    %v360 = vld [vmem:[%s1 + $0x538] sm:$0xf]
    %v361 = vld [vmem:[%s1 + $0x53c] sm:$0xf]
    %v362 = vld [vmem:[%s1 + $0x540] sm:$0xf]
    %v363 = vld [vmem:[%s1 + $0x544] sm:$0xf]
    %v364 = vld [vmem:[%s1 + $0x548] sm:$0xf]
    %v365 = vld [vmem:[%s1 + $0x54c] sm:$0xf]
    %v366 = vld [vmem:[%s1 + $0x550] sm:$0xf]
    %v367 = vld [vmem:[%s1 + $0x554] sm:$0xf]
    %v368 = vld [vmem:[%s1 + $0x558] sm:$0xf]
    %v369 = vld [vmem:[%s1 + $0x55c] sm:$0xf]
    %v370 = vld [vmem:[%s1 + $0x560] sm:$0xf]
    %v371 = vld [vmem:[%s1 + $0x564] sm:$0xf]
    %v372 = vld [vmem:[%s1 + $0x568] sm:$0xf]
    %v373 = vld [vmem:[%s1 + $0x56c] sm:$0xf]
    %v374 = vld [vmem:[%s1 + $0x570] sm:$0xf]
    %v375 = vld [vmem:[%s1 + $0x574] sm:$0xf]
    %v376 = vld [vmem:[%s1 + $0x578] sm:$0xf]
    %v377 = vld [vmem:[%s1 + $0x57c] sm:$0xf]
    %v378 = vld [vmem:[%s1 + $0x580] sm:$0xf]
    %v379 = vld [vmem:[%s1 + $0x584] sm:$0xf]
    %v380 = vld [vmem:[%s1 + $0x588] sm:$0xf]
    %v381 = vld [vmem:[%s1 + $0x58c] sm:$0xf]
    %v382 = vld [vmem:[%s1 + $0x590] sm:$0xf]
    %v383 = vld [vmem:[%s1 + $0x594] sm:$0xf]
    %v384 = vld [vmem:[%s1 + $0x598] sm:$0xf]
    %v385 = vld [vmem:[%s1 + $0x59c] sm:$0xf]
    %v386 = vld [vmem:[%s1 + $0x5a0] sm:$0xf]
    %v387 = vld [vmem:[%s1 + $0x5a4] sm:$0xf]
    %v388 = vld [vmem:[%s1 + $0x5a8] sm:$0xf]
    %v389 = vld [vmem:[%s1 + $0x5ac] sm:$0xf]
    %v390 = vld [vmem:[%s1 + $0x5b0] sm:$0xf]
    %v391 = vld [vmem:[%s1 + $0x5b4] sm:$0xf]
    %v392 = vld [vmem:[%s1 + $0x5b8] sm:$0xf]
    %v393 = vld [vmem:[%s1 + $0x5bc] sm:$0xf]
    %v394 = vld [vmem:[%s1 + $0x5c0] sm:$0xf]
    %v395 = vld [vmem:[%s1 + $0x5c4] sm:$0xf]
    %v396 = vld [vmem:[%s1 + $0x5c8] sm:$0xf]
    %v397 = vld [vmem:[%s1 + $0x5cc] sm:$0xf]
    %v398 = vld [vmem:[%s1 + $0x5d0] sm:$0xf]
    %v399 = vld [vmem:[%s1 + $0x5d4] sm:$0xf]
    %v400 = vld [vmem:[%s1 + $0x5d8] sm:$0xf]
    %v401 = vld [vmem:[%s1 + $0x5dc] sm:$0xf]
    %v402 = vld [vmem:[%s1 + $0x5e0] sm:$0xf]
    %v403 = vld [vmem:[%s1 + $0x5e4] sm:$0xf]
    %v404 = vld [vmem:[%s1 + $0x5e8] sm:$0xf]
    %v405 = vld [vmem:[%s1 + $0x5ec] sm:$0xf]
    %v406 = vld [vmem:[%s1 + $0x5f0] sm:$0xf]
    %v407 = vld [vmem:[%s1 + $0x5f4] sm:$0xf]
    %v408 = vld [vmem:[%s1 + $0x5f8] sm:$0xf]
    %v409 = vld [vmem:[%s1 + $0x5fc] sm:$0xf]
    %v410 = vld [vmem:[%s1 + $0x600] sm:$0xf]
    %v411 = vld [vmem:[%s1 + $0x604] sm:$0xf]
    %v412 = vld [vmem:[%s1 + $0x608] sm:$0xf]
    %v413 = vld [vmem:[%s1 + $0x60c] sm:$0xf]
    %v414 = vld [vmem:[%s1 + $0x610] sm:$0xf]
    %v415 = vld [vmem:[%s1 + $0x614] sm:$0xf]
    %v416 = vld [vmem:[%s1 + $0x618] sm:$0xf]
    %v417 = vld [vmem:[%s1 + $0x61c] sm:$0xf]
    %v418 = vld [vmem:[%s1 + $0x620] sm:$0xf]
    %v419 = vld [vmem:[%s1 + $0x624] sm:$0xf]
    %v420 = vld [vmem:[%s1 + $0x628] sm:$0xf]
    %v421 = vld [vmem:[%s1 + $0x62c] sm:$0xf]
    %v422 = vld [vmem:[%s1 + $0x630] sm:$0xf]
    %v423 = vld [vmem:[%s1 + $0x634] sm:$0xf]
    %v424 = vld [vmem:[%s1 + $0x638] sm:$0xf]
    %v425 = vld [vmem:[%s1 + $0x63c] sm:$0xf]
    %v426 = vld [vmem:[%s1 + $0x640] sm:$0xf]
    %v427 = vld [vmem:[%s1 + $0x644] sm:$0xf]
    %v428 = vld [vmem:[%s1 + $0x648] sm:$0xf]
    %v429 = vld [vmem:[%s1 + $0x64c] sm:$0xf]
    %v430 = vld [vmem:[%s1 + $0x650] sm:$0xf]
    %v431 = vld [vmem:[%s1 + $0x654] sm:$0xf]
    %v432 = vld [vmem:[%s1 + $0x658] sm:$0xf]
    %v433 = vld [vmem:[%s1 + $0x65c] sm:$0xf]
    %v434 = vld [vmem:[%s1 + $0x660] sm:$0xf]
    %v435 = vld [vmem:[%s1 + $0x664] sm:$0xf]
    %v436 = vld [vmem:[%s1 + $0x668] sm:$0xf]
    %v437 = vld [vmem:[%s1 + $0x66c] sm:$0xf]
    %v438 = vld [vmem:[%s1 + $0x670] sm:$0xf]
    %v439 = vld [vmem:[%s1 + $0x674] sm:$0xf]
    %v440 = vld [vmem:[%s1 + $0x678] sm:$0xf]
    %v441 = vld [vmem:[%s1 + $0x67c] sm:$0xf]
    %v442 = vld [vmem:[%s1 + $0x680] sm:$0xf]
    %v443 = vld [vmem:[%s1 + $0x684] sm:$0xf]
    %v444 = vld [vmem:[%s1 + $0x688] sm:$0xf]
    %v445 = vld [vmem:[%s1 + $0x68c] sm:$0xf]
    %v446 = vld [vmem:[%s1 + $0x690] sm:$0xf]
    %v447 = vld [vmem:[%s1 + $0x694] sm:$0xf]
    %v448 = vld [vmem:[%s1 + $0x698] sm:$0xf]
    %v449 = vld [vmem:[%s1 + $0x69c] sm:$0xf]
    %v450 = vld [vmem:[%s1 + $0x6a0] sm:$0xf]
    %v451 = vld [vmem:[%s1 + $0x6a4] sm:$0xf]
    %v452 = vld [vmem:[%s1 + $0x6a8] sm:$0xf]
    %v453 = vld [vmem:[%s1 + $0x6ac] sm:$0xf]
    %v454 = vld [vmem:[%s1 + $0x6b0] sm:$0xf]
    %v455 = vld [vmem:[%s1 + $0x6b4] sm:$0xf]
    %v456 = vld [vmem:[%s1 + $0x6b8] sm:$0xf]
    %v457 = vld [vmem:[%s1 + $0x6bc] sm:$0xf]
    %v458 = vld [vmem:[%s1 + $0x6c0] sm:$0xf]
    %v459 = vld [vmem:[%s1 + $0x6c4] sm:$0xf]
    %v460 = vld [vmem:[%s1 + $0x6c8] sm:$0xf]
    %v461 = vld [vmem:[%s1 + $0x6cc] sm:$0xf]
    %v462 = vld [vmem:[%s1 + $0x6d0] sm:$0xf]
    %v463 = vld [vmem:[%s1 + $0x6d4] sm:$0xf]
    %v464 = vld [vmem:[%s1 + $0x6d8] sm:$0xf]
    %v465 = vld [vmem:[%s1 + $0x6dc] sm:$0xf]
    %v466 = vld [vmem:[%s1 + $0x6e0] sm:$0xf]
    %v467 = vld [vmem:[%s1 + $0x6e4] sm:$0xf]
    %v468 = vld [vmem:[%s1 + $0x6e8] sm:$0xf]
    %v469 = vld [vmem:[%s1 + $0x6ec] sm:$0xf]
    %v470 = vld [vmem:[%s1 + $0x6f0] sm:$0xf]
    %v471 = vld [vmem:[%s1 + $0x6f4] sm:$0xf]
    %v472 = vld [vmem:[%s1 + $0x6f8] sm:$0xf]
    %v473 = vld [vmem:[%s1 + $0x6fc] sm:$0xf]
    %v474 = vld [vmem:[%s1 + $0x700] sm:$0xf]
    %v475 = vld [vmem:[%s1 + $0x704] sm:$0xf]
    %v476 = vld [vmem:[%s1 + $0x708] sm:$0xf]
    %v477 = vld [vmem:[%s1 + $0x70c] sm:$0xf]
    %v478 = vld [vmem:[%s1 + $0x710] sm:$0xf]
    %v479 = vld [vmem:[%s1 + $0x714] sm:$0xf]
    %v480 = vld [vmem:[%s1 + $0x718] sm:$0xf]
    %v481 = vld [vmem:[%s1 + $0x71c] sm:$0xf]
    %v482 = vld [vmem:[%s1 + $0x720] sm:$0xf]
    %v483 = vld [vmem:[%s1 + $0x724] sm:$0xf]
    %v484 = vld [vmem:[%s1 + $0x728] sm:$0xf]
    %v485 = vld [vmem:[%s1 + $0x72c] sm:$0xf]
    %v486 = vld [vmem:[%s1 + $0x730] sm:$0xf]
    %v487 = vld [vmem:[%s1 + $0x734] sm:$0xf]
    %v488 = vld [vmem:[%s1 + $0x738] sm:$0xf]
    %v489 = vld [vmem:[%s1 + $0x73c] sm:$0xf]
    %v490 = vld [vmem:[%s1 + $0x740] sm:$0xf]
    %v491 = vld [vmem:[%s1 + $0x744] sm:$0xf]
    %v492 = vld [vmem:[%s1 + $0x748] sm:$0xf]
    %v493 = vld [vmem:[%s1 + $0x74c] sm:$0xf]
    %v494 = vld [vmem:[%s1 + $0x750] sm:$0xf]
    %v495 = vld [vmem:[%s1 + $0x754] sm:$0xf]
    %v496 = vld [vmem:[%s1 + $0x758] sm:$0xf]
    %v497 = vld [vmem:[%s1 + $0x75c] sm:$0xf]
    %v498 = vld [vmem:[%s1 + $0x760] sm:$0xf]
    %v499 = vld [vmem:[%s1 + $0x764] sm:$0xf]
    %v500 = vld [vmem:[%s1 + $0x768] sm:$0xf]
    %v501 = vld [vmem:[%s1 + $0x76c] sm:$0xf]
    %v502 = vld [vmem:[%s1 + $0x770] sm:$0xf]
    %v503 = vld [vmem:[%s1 + $0x774] sm:$0xf]
    %v504 = vld [vmem:[%s1 + $0x778] sm:$0xf]
    %v505 = vld [vmem:[%s1 + $0x77c] sm:$0xf]
    %v506 = vld [vmem:[%s1 + $0x780] sm:$0xf]
    %v507 = vld [vmem:[%s1 + $0x784] sm:$0xf]
    %v508 = vld [vmem:[%s1 + $0x788] sm:$0xf]
    %v509 = vld [vmem:[%s1 + $0x78c] sm:$0xf]
    %v510 = vld [vmem:[%s1 + $0x790] sm:$0xf]
    %v511 = vld [vmem:[%s1 + $0x794] sm:$0xf]
    %v512 = vld [vmem:[%s1 + $0x798] sm:$0xf]
    %v513 = vld [vmem:[%s1 + $0x79c] sm:$0xf]
    %v514 = vld [vmem:[%s1 + $0x7a0] sm:$0xf]
    %v515 = vld [vmem:[%s1 + $0x7a4] sm:$0xf]
    %v516 = vld [vmem:[%s1 + $0x7a8] sm:$0xf]
    %v517 = vld [vmem:[%s1 + $0x7ac] sm:$0xf]
    %v518 = vld [vmem:[%s1 + $0x7b0] sm:$0xf]
    %v519 = vld [vmem:[%s1 + $0x7b4] sm:$0xf]
    %v520 = vld [vmem:[%s1 + $0x7b8] sm:$0xf]
    %v521 = vld [vmem:[%s1 + $0x7bc] sm:$0xf]
    %v522 = vld [vmem:[%s1 + $0x7c0] sm:$0xf]
    %v523 = vld [vmem:[%s1 + $0x7c4] sm:$0xf]
    %v524 = vld [vmem:[%s1 + $0x7c8] sm:$0xf]
    %v525 = vld [vmem:[%s1 + $0x7cc] sm:$0xf]
    %v526 = vld [vmem:[%s1 + $0x7d0] sm:$0xf]
    %v527 = vld [vmem:[%s1 + $0x7d4] sm:$0xf]
    %v528 = vld [vmem:[%s1 + $0x7d8] sm:$0xf]
    %v529 = vld [vmem:[%s1 + $0x7dc] sm:$0xf]
    %v530 = vld [vmem:[%s1 + $0x7e0] sm:$0xf]
    %v531 = vld [vmem:[%s1 + $0x7e4] sm:$0xf]
    %v532 = vld [vmem:[%s1 + $0x7e8] sm:$0xf]
    %v533 = vld [vmem:[%s1 + $0x7ec] sm:$0xf]
    %v534 = vld [vmem:[%s1 + $0x7f0] sm:$0xf]
    %v535 = vld [vmem:[%s1 + $0x7f4] sm:$0xf]
    %v536 = vld [vmem:[%s1 + $0x7f8] sm:$0xf]
    %v537 = vld [vmem:[%s1 + $0x7fc] sm:$0xf]
    %v538 = vld [vmem:[%s2] sm:$0x1]
    %v540 = vlaneseq
    %v541 = vshrl.u32 %v540, 7
    %v542 = vsub.s32 0, %v541
    %v543 = vrot.slane %v538, %v542
    %v549 = vcombine.high %v22, %v22
    %v551 = vunpack.c.l.s4 1966171168
    %v552 = vunpack.c.0.s8 %v551
    %v553 = vlaneseq
    %v554 = vshrl.u32 %v553, 7
    %v555 = vsub.s32 %v552, %v554
    %v556 = vrot.slane %v22, %v555
    %v558 = vunpack.c.l.s4 1966171168
    %v559 = vunpack.c.0.s8 %v558
    %v560 = vlaneseq
    %v561 = vshrl.u32 %v560, 7
    %v562 = vsub.s32 %v559, %v561
    %v563 = vrot.slane %v549, %v562
    %v564 = vcombine.high %v556, %v556
    %v565 = vcombine.high %v563, %v563
    %v567 = vunpack.c.l.s4 1966171168
    %v568 = vunpack.c.0.s8 %v567
    %v569 = vlaneseq
    %v570 = vshrl.u32 %v569, 7
    %v571 = vsub.s32 %v568, %v570
    %v572 = vrot.slane %v556, %v571
    %v574 = vunpack.c.l.s4 1966171168
    %v575 = vunpack.c.0.s8 %v574
    %v576 = vlaneseq
    %v577 = vshrl.u32 %v576, 7
    %v578 = vsub.s32 %v575, %v577
    %v579 = vrot.slane %v563, %v578
    %v581 = vunpack.c.l.s4 1966171168
    %v582 = vunpack.c.0.s8 %v581
    %v583 = vlaneseq
    %v584 = vshrl.u32 %v583, 7
    %v585 = vsub.s32 %v582, %v584
    %v586 = vrot.slane %v564, %v585
    %v588 = vunpack.c.l.s4 1966171168
    %v589 = vunpack.c.0.s8 %v588
    %v590 = vlaneseq
    %v591 = vshrl.u32 %v590, 7
    %v592 = vsub.s32 %v589, %v591
    %v593 = vrot.slane %v565, %v592
    %v594 = vcombine.high %v572, %v572
    %v595 = vcombine.high %v579, %v579
    %v596 = vcombine.high %v586, %v586
    %v597 = vcombine.high %v593, %v593
    %v598 = vcombine.high %v23, %v23
    %v600 = vunpack.c.l.s4 1966171168
    %v601 = vunpack.c.0.s8 %v600
    %v602 = vlaneseq
    %v603 = vshrl.u32 %v602, 7
    %v604 = vsub.s32 %v601, %v603
    %v605 = vrot.slane %v23, %v604
    %v607 = vunpack.c.l.s4 1966171168
    %v608 = vunpack.c.0.s8 %v607
    %v609 = vlaneseq
    %v610 = vshrl.u32 %v609, 7
    %v611 = vsub.s32 %v608, %v610
    %v612 = vrot.slane %v598, %v611
    %v613 = vcombine.high %v605, %v605
    %v614 = vcombine.high %v612, %v612
    %v616 = vunpack.c.l.s4 1966171168
    %v617 = vunpack.c.0.s8 %v616
    %v618 = vlaneseq
    %v619 = vshrl.u32 %v618, 7
    %v620 = vsub.s32 %v617, %v619
    %v621 = vrot.slane %v605, %v620
    %v623 = vunpack.c.l.s4 1966171168
    %v624 = vunpack.c.0.s8 %v623
    %v625 = vlaneseq
    %v626 = vshrl.u32 %v625, 7
    %v627 = vsub.s32 %v624, %v626
    %v628 = vrot.slane %v612, %v627
    %v630 = vunpack.c.l.s4 1966171168
    %v631 = vunpack.c.0.s8 %v630
    %v632 = vlaneseq
    %v633 = vshrl.u32 %v632, 7
    %v634 = vsub.s32 %v631, %v633
    %v635 = vrot.slane %v613, %v634
    %v637 = vunpack.c.l.s4 1966171168
    %v638 = vunpack.c.0.s8 %v637
    %v639 = vlaneseq
    %v640 = vshrl.u32 %v639, 7
    %v641 = vsub.s32 %v638, %v640
    %v642 = vrot.slane %v614, %v641
    %v643 = vcombine.high %v621, %v621
    %v644 = vcombine.high %v628, %v628
    %v645 = vcombine.high %v635, %v635
    %v646 = vcombine.high %v642, %v642
    %v647 = vcombine.high %v24, %v24
    %v649 = vunpack.c.l.s4 1966171168
    %v650 = vunpack.c.0.s8 %v649
    %v651 = vlaneseq
    %v652 = vshrl.u32 %v651, 7
    %v653 = vsub.s32 %v650, %v652
    %v654 = vrot.slane %v24, %v653
    %v656 = vunpack.c.l.s4 1966171168
    %v657 = vunpack.c.0.s8 %v656
    %v658 = vlaneseq
    %v659 = vshrl.u32 %v658, 7
    %v660 = vsub.s32 %v657, %v659
    %v661 = vrot.slane %v647, %v660
    %v662 = vcombine.high %v654, %v654
    %v663 = vcombine.high %v661, %v661
    %v665 = vunpack.c.l.s4 1966171168
    %v666 = vunpack.c.0.s8 %v665
    %v667 = vlaneseq
    %v668 = vshrl.u32 %v667, 7
    %v669 = vsub.s32 %v666, %v668
    %v670 = vrot.slane %v654, %v669
    %v672 = vunpack.c.l.s4 1966171168
    %v673 = vunpack.c.0.s8 %v672
    %v674 = vlaneseq
    %v675 = vshrl.u32 %v674, 7
    %v676 = vsub.s32 %v673, %v675
    %v677 = vrot.slane %v661, %v676
    %v679 = vunpack.c.l.s4 1966171168
    %v680 = vunpack.c.0.s8 %v679
    %v681 = vlaneseq
    %v682 = vshrl.u32 %v681, 7
    %v683 = vsub.s32 %v680, %v682
    %v684 = vrot.slane %v662, %v683
    %v686 = vunpack.c.l.s4 1966171168
    %v687 = vunpack.c.0.s8 %v686
    %v688 = vlaneseq
    %v689 = vshrl.u32 %v688, 7
    %v690 = vsub.s32 %v687, %v689
    %v691 = vrot.slane %v663, %v690
    %v692 = vcombine.high %v670, %v670
    %v693 = vcombine.high %v677, %v677
    %v694 = vcombine.high %v684, %v684
    %v695 = vcombine.high %v691, %v691
    %v696 = vcombine.high %v25, %v25
    %v698 = vunpack.c.l.s4 1966171168
    %v699 = vunpack.c.0.s8 %v698
    %v700 = vlaneseq
    %v701 = vshrl.u32 %v700, 7
    %v702 = vsub.s32 %v699, %v701
    %v703 = vrot.slane %v25, %v702
    %v705 = vunpack.c.l.s4 1966171168
    %v706 = vunpack.c.0.s8 %v705
    %v707 = vlaneseq
    %v708 = vshrl.u32 %v707, 7
    %v709 = vsub.s32 %v706, %v708
    %v710 = vrot.slane %v696, %v709
    %v711 = vcombine.high %v703, %v703
    %v712 = vcombine.high %v710, %v710
    %v714 = vunpack.c.l.s4 1966171168
    %v715 = vunpack.c.0.s8 %v714
    %v716 = vlaneseq
    %v717 = vshrl.u32 %v716, 7
    %v718 = vsub.s32 %v715, %v717
    %v719 = vrot.slane %v703, %v718
    %v721 = vunpack.c.l.s4 1966171168
    %v722 = vunpack.c.0.s8 %v721
    %v723 = vlaneseq
    %v724 = vshrl.u32 %v723, 7
    %v725 = vsub.s32 %v722, %v724
    %v726 = vrot.slane %v710, %v725
    %v728 = vunpack.c.l.s4 1966171168
    %v729 = vunpack.c.0.s8 %v728
    %v730 = vlaneseq
    %v731 = vshrl.u32 %v730, 7
    %v732 = vsub.s32 %v729, %v731
    %v733 = vrot.slane %v711, %v732
    %v735 = vunpack.c.l.s4 1966171168
    %v736 = vunpack.c.0.s8 %v735
    %v737 = vlaneseq
    %v738 = vshrl.u32 %v737, 7
    %v739 = vsub.s32 %v736, %v738
    %v740 = vrot.slane %v712, %v739
    %v741 = vcombine.high %v719, %v719
    %v742 = vcombine.high %v726, %v726
    %v743 = vcombine.high %v733, %v733
    %v744 = vcombine.high %v740, %v740
    %v1289 = vunpack.c.l.b16 %v26
    %v1290 = vunpack.c.l.b16 %v27
    %v1291 = vunpack.c.l.b16 %v28
    %v1292 = vunpack.c.l.b16 %v29
    %v1293 = vunpack.c.l.b16 %v30
    %v1294 = vunpack.c.l.b16 %v31
    %v1295 = vunpack.c.l.b16 %v32
    %v1296 = vunpack.c.l.b16 %v33
    %v1297 = vunpack.c.l.b16 %v34
    %v1298 = vunpack.c.l.b16 %v35
    %v1299 = vunpack.c.l.b16 %v36
    %v1300 = vunpack.c.l.b16 %v37
    %v1301 = vunpack.c.l.b16 %v38
    %v1302 = vunpack.c.l.b16 %v39
    %v1303 = vunpack.c.l.b16 %v40
    %v1304 = vunpack.c.l.b16 %v41
    %v1305 = vunpack.c.l.b16 %v42
    %v1306 = vunpack.c.l.b16 %v43
    %v1307 = vunpack.c.l.b16 %v44
    %v1308 = vunpack.c.l.b16 %v45
    %v1309 = vunpack.c.l.b16 %v46
    %v1310 = vunpack.c.l.b16 %v47
    %v1311 = vunpack.c.l.b16 %v48
    %v1312 = vunpack.c.l.b16 %v49
    %v1313 = vunpack.c.l.b16 %v50
    %v1314 = vunpack.c.l.b16 %v51
    %v1315 = vunpack.c.l.b16 %v52
    %v1316 = vunpack.c.l.b16 %v53
    %v1317 = vunpack.c.l.b16 %v54
    %v1318 = vunpack.c.l.b16 %v55
    %v1319 = vunpack.c.l.b16 %v56
    %v1320 = vunpack.c.l.b16 %v57
    %v1321 = vunpack.c.l.b16 %v58
    %v1322 = vunpack.c.l.b16 %v59
    %v1323 = vunpack.c.l.b16 %v60
    %v1324 = vunpack.c.l.b16 %v61
    %v1325 = vunpack.c.l.b16 %v62
    %v1326 = vunpack.c.l.b16 %v63
    %v1327 = vunpack.c.l.b16 %v64
    %v1328 = vunpack.c.l.b16 %v65
    %v1329 = vunpack.c.l.b16 %v66
    %v1330 = vunpack.c.l.b16 %v67
    %v1331 = vunpack.c.l.b16 %v68
    %v1332 = vunpack.c.l.b16 %v69
    %v1333 = vunpack.c.l.b16 %v70
    %v1334 = vunpack.c.l.b16 %v71
    %v1335 = vunpack.c.l.b16 %v72
    %v1336 = vunpack.c.l.b16 %v73
    %v1337 = vunpack.c.l.b16 %v74
    %v1338 = vunpack.c.l.b16 %v75
    %v1339 = vunpack.c.l.b16 %v76
    %v1340 = vunpack.c.l.b16 %v77
    %v1341 = vunpack.c.l.b16 %v78
    %v1342 = vunpack.c.l.b16 %v79
    %v1343 = vunpack.c.l.b16 %v80
    %v1344 = vunpack.c.l.b16 %v81
    %v1345 = vunpack.c.l.b16 %v82
    %v1346 = vunpack.c.l.b16 %v83
    %v1347 = vunpack.c.l.b16 %v84
    %v1348 = vunpack.c.l.b16 %v85
    %v1349 = vunpack.c.l.b16 %v86
    %v1350 = vunpack.c.l.b16 %v87
    %v1351 = vunpack.c.l.b16 %v88
    %v1352 = vunpack.c.l.b16 %v89
    %v1353 = vunpack.c.l.b16 %v90
    %v1354 = vunpack.c.l.b16 %v91
    %v1355 = vunpack.c.l.b16 %v92
    %v1356 = vunpack.c.l.b16 %v93
    %v1357 = vunpack.c.l.b16 %v94
    %v1358 = vunpack.c.l.b16 %v95
    %v1359 = vunpack.c.l.b16 %v96
    %v1360 = vunpack.c.l.b16 %v97
    %v1361 = vunpack.c.l.b16 %v98
    %v1362 = vunpack.c.l.b16 %v99
    %v1363 = vunpack.c.l.b16 %v100
    %v1364 = vunpack.c.l.b16 %v101
    %v1365 = vunpack.c.l.b16 %v102
    %v1366 = vunpack.c.l.b16 %v103
    %v1367 = vunpack.c.l.b16 %v104
    %v1368 = vunpack.c.l.b16 %v105
    %v1369 = vunpack.c.l.b16 %v106
    %v1370 = vunpack.c.l.b16 %v107
    %v1371 = vunpack.c.l.b16 %v108
    %v1372 = vunpack.c.l.b16 %v109
    %v1373 = vunpack.c.l.b16 %v110
    %v1374 = vunpack.c.l.b16 %v111
    %v1375 = vunpack.c.l.b16 %v112
    %v1376 = vunpack.c.l.b16 %v113
    %v1377 = vunpack.c.l.b16 %v114
    %v1378 = vunpack.c.l.b16 %v115
    %v1379 = vunpack.c.l.b16 %v116
    %v1380 = vunpack.c.l.b16 %v117
    %v1381 = vunpack.c.l.b16 %v118
    %v1382 = vunpack.c.l.b16 %v119
    %v1383 = vunpack.c.l.b16 %v120
    %v1384 = vunpack.c.l.b16 %v121
    %v1385 = vunpack.c.l.b16 %v122
    %v1386 = vunpack.c.l.b16 %v123
    %v1387 = vunpack.c.l.b16 %v124
    %v1388 = vunpack.c.l.b16 %v125
    %v1389 = vunpack.c.l.b16 %v126
    %v1390 = vunpack.c.l.b16 %v127
    %v1391 = vunpack.c.l.b16 %v128
    %v1392 = vunpack.c.l.b16 %v129
    %v1393 = vunpack.c.l.b16 %v130
    %v1394 = vunpack.c.l.b16 %v131
    %v1395 = vunpack.c.l.b16 %v132
    %v1396 = vunpack.c.l.b16 %v133
    %v1397 = vunpack.c.l.b16 %v134
    %v1398 = vunpack.c.l.b16 %v135
    %v1399 = vunpack.c.l.b16 %v136
    %v1400 = vunpack.c.l.b16 %v137
    %v1401 = vunpack.c.l.b16 %v138
    %v1402 = vunpack.c.l.b16 %v139
    %v1403 = vunpack.c.l.b16 %v140
    %v1404 = vunpack.c.l.b16 %v141
    %v1405 = vunpack.c.l.b16 %v142
    %v1406 = vunpack.c.l.b16 %v143
    %v1407 = vunpack.c.l.b16 %v144
    %v1408 = vunpack.c.l.b16 %v145
    %v1409 = vunpack.c.l.b16 %v146
    %v1410 = vunpack.c.l.b16 %v147
    %v1411 = vunpack.c.l.b16 %v148
    %v1412 = vunpack.c.l.b16 %v149
    %v1413 = vunpack.c.l.b16 %v150
    %v1414 = vunpack.c.l.b16 %v151
    %v1415 = vunpack.c.l.b16 %v152
    %v1416 = vunpack.c.l.b16 %v153
    %v1417 = vunpack.c.l.b16 %v154
    %v1418 = vunpack.c.l.b16 %v155
    %v1419 = vunpack.c.l.b16 %v156
    %v1420 = vunpack.c.l.b16 %v157
    %v1421 = vunpack.c.l.b16 %v158
    %v1422 = vunpack.c.l.b16 %v159
    %v1423 = vunpack.c.l.b16 %v160
    %v1424 = vunpack.c.l.b16 %v161
    %v1425 = vunpack.c.l.b16 %v162
    %v1426 = vunpack.c.l.b16 %v163
    %v1427 = vunpack.c.l.b16 %v164
    %v1428 = vunpack.c.l.b16 %v165
    %v1429 = vunpack.c.l.b16 %v166
    %v1430 = vunpack.c.l.b16 %v167
    %v1431 = vunpack.c.l.b16 %v168
    %v1432 = vunpack.c.l.b16 %v169
    %v1433 = vunpack.c.l.b16 %v170
    %v1434 = vunpack.c.l.b16 %v171
    %v1435 = vunpack.c.l.b16 %v172
    %v1436 = vunpack.c.l.b16 %v173
    %v1437 = vunpack.c.l.b16 %v174
    %v1438 = vunpack.c.l.b16 %v175
    %v1439 = vunpack.c.l.b16 %v176
    %v1440 = vunpack.c.l.b16 %v177
    %v1441 = vunpack.c.l.b16 %v178
    %v1442 = vunpack.c.l.b16 %v179
    %v1443 = vunpack.c.l.b16 %v180
    %v1444 = vunpack.c.l.b16 %v181
    %v1445 = vunpack.c.l.b16 %v182
    %v1446 = vunpack.c.l.b16 %v183
    %v1447 = vunpack.c.l.b16 %v184
    %v1448 = vunpack.c.l.b16 %v185
    %v1449 = vunpack.c.l.b16 %v186
    %v1450 = vunpack.c.l.b16 %v187
    %v1451 = vunpack.c.l.b16 %v188
    %v1452 = vunpack.c.l.b16 %v189
    %v1453 = vunpack.c.l.b16 %v190
    %v1454 = vunpack.c.l.b16 %v191
    %v1455 = vunpack.c.l.b16 %v192
    %v1456 = vunpack.c.l.b16 %v193
    %v1457 = vunpack.c.l.b16 %v194
    %v1458 = vunpack.c.l.b16 %v195
    %v1459 = vunpack.c.l.b16 %v196
    %v1460 = vunpack.c.l.b16 %v197
    %v1461 = vunpack.c.l.b16 %v198
    %v1462 = vunpack.c.l.b16 %v199
    %v1463 = vunpack.c.l.b16 %v200
    %v1464 = vunpack.c.l.b16 %v201
    %v1465 = vunpack.c.l.b16 %v202
    %v1466 = vunpack.c.l.b16 %v203
    %v1467 = vunpack.c.l.b16 %v204
    %v1468 = vunpack.c.l.b16 %v205
    %v1469 = vunpack.c.l.b16 %v206
    %v1470 = vunpack.c.l.b16 %v207
    %v1471 = vunpack.c.l.b16 %v208
    %v1472 = vunpack.c.l.b16 %v209
    %v1473 = vunpack.c.l.b16 %v210
    %v1474 = vunpack.c.l.b16 %v211
    %v1475 = vunpack.c.l.b16 %v212
    %v1476 = vunpack.c.l.b16 %v213
    %v1477 = vunpack.c.l.b16 %v214
    %v1478 = vunpack.c.l.b16 %v215
    %v1479 = vunpack.c.l.b16 %v216
    %v1480 = vunpack.c.l.b16 %v217
    %v1481 = vunpack.c.l.b16 %v218
    %v1482 = vunpack.c.l.b16 %v219
    %v1483 = vunpack.c.l.b16 %v220
    %v1484 = vunpack.c.l.b16 %v221
    %v1485 = vunpack.c.l.b16 %v222
    %v1486 = vunpack.c.l.b16 %v223
    %v1487 = vunpack.c.l.b16 %v224
    %v1488 = vunpack.c.l.b16 %v225
    %v1489 = vunpack.c.l.b16 %v226
    %v1490 = vunpack.c.l.b16 %v227
    %v1491 = vunpack.c.l.b16 %v228
    %v1492 = vunpack.c.l.b16 %v229
    %v1493 = vunpack.c.l.b16 %v230
    %v1494 = vunpack.c.l.b16 %v231
    %v1495 = vunpack.c.l.b16 %v232
    %v1496 = vunpack.c.l.b16 %v233
    %v1497 = vunpack.c.l.b16 %v234
    %v1498 = vunpack.c.l.b16 %v235
    %v1499 = vunpack.c.l.b16 %v236
    %v1500 = vunpack.c.l.b16 %v237
    %v1501 = vunpack.c.l.b16 %v238
    %v1502 = vunpack.c.l.b16 %v239
    %v1503 = vunpack.c.l.b16 %v240
    %v1504 = vunpack.c.l.b16 %v241
    %v1505 = vunpack.c.l.b16 %v242
    %v1506 = vunpack.c.l.b16 %v243
    %v1507 = vunpack.c.l.b16 %v244
    %v1508 = vunpack.c.l.b16 %v245
    %v1509 = vunpack.c.l.b16 %v246
    %v1510 = vunpack.c.l.b16 %v247
    %v1511 = vunpack.c.l.b16 %v248
    %v1512 = vunpack.c.l.b16 %v249
    %v1513 = vunpack.c.l.b16 %v250
    %v1514 = vunpack.c.l.b16 %v251
    %v1515 = vunpack.c.l.b16 %v252
    %v1516 = vunpack.c.l.b16 %v253
    %v1517 = vunpack.c.l.b16 %v254
    %v1518 = vunpack.c.l.b16 %v255
    %v1519 = vunpack.c.l.b16 %v256
    %v1520 = vunpack.c.l.b16 %v257
    %v1521 = vunpack.c.l.b16 %v258
    %v1522 = vunpack.c.l.b16 %v259
    %v1523 = vunpack.c.l.b16 %v260
    %v1524 = vunpack.c.l.b16 %v261
    %v1525 = vunpack.c.l.b16 %v262
    %v1526 = vunpack.c.l.b16 %v263
    %v1527 = vunpack.c.l.b16 %v264
    %v1528 = vunpack.c.l.b16 %v265
    %v1529 = vunpack.c.l.b16 %v266
    %v1530 = vunpack.c.l.b16 %v267
    %v1531 = vunpack.c.l.b16 %v268
    %v1532 = vunpack.c.l.b16 %v269
    %v1533 = vunpack.c.l.b16 %v270
    %v1534 = vunpack.c.l.b16 %v271
    %v1535 = vunpack.c.l.b16 %v272
    %v1536 = vunpack.c.l.b16 %v273
    %v1537 = vunpack.c.l.b16 %v274
    %v1538 = vunpack.c.l.b16 %v275
    %v1539 = vunpack.c.l.b16 %v276
    %v1540 = vunpack.c.l.b16 %v277
    %v1541 = vunpack.c.l.b16 %v278
    %v1542 = vunpack.c.l.b16 %v279
    %v1543 = vunpack.c.l.b16 %v280
    %v1544 = vunpack.c.l.b16 %v281
    %v1545 = vunpack.c.l.b16 %v282
    %v1546 = vunpack.c.l.b16 %v283
    %v1547 = vunpack.c.l.b16 %v284
    %v1548 = vunpack.c.l.b16 %v285
    %v1549 = vunpack.c.l.b16 %v286
    %v1550 = vunpack.c.l.b16 %v287
    %v1551 = vunpack.c.l.b16 %v288
    %v1552 = vunpack.c.l.b16 %v289
    %v1553 = vunpack.c.l.b16 %v290
    %v1554 = vunpack.c.l.b16 %v291
    %v1555 = vunpack.c.l.b16 %v292
    %v1556 = vunpack.c.l.b16 %v293
    %v1557 = vunpack.c.l.b16 %v294
    %v1558 = vunpack.c.l.b16 %v295
    %v1559 = vunpack.c.l.b16 %v296
    %v1560 = vunpack.c.l.b16 %v297
    %v1561 = vunpack.c.l.b16 %v298
    %v1562 = vunpack.c.l.b16 %v299
    %v1563 = vunpack.c.l.b16 %v300
    %v1564 = vunpack.c.l.b16 %v301
    %v1565 = vunpack.c.l.b16 %v302
    %v1566 = vunpack.c.l.b16 %v303
    %v1567 = vunpack.c.l.b16 %v304
    %v1568 = vunpack.c.l.b16 %v305
    %v1569 = vunpack.c.l.b16 %v306
    %v1570 = vunpack.c.l.b16 %v307
    %v1571 = vunpack.c.l.b16 %v308
    %v1572 = vunpack.c.l.b16 %v309
    %v1573 = vunpack.c.l.b16 %v310
    %v1574 = vunpack.c.l.b16 %v311
    %v1575 = vunpack.c.l.b16 %v312
    %v1576 = vunpack.c.l.b16 %v313
    %v1577 = vunpack.c.l.b16 %v314
    %v1578 = vunpack.c.l.b16 %v315
    %v1579 = vunpack.c.l.b16 %v316
    %v1580 = vunpack.c.l.b16 %v317
    %v1581 = vunpack.c.l.b16 %v318
    %v1582 = vunpack.c.l.b16 %v319
    %v1583 = vunpack.c.l.b16 %v320
    %v1584 = vunpack.c.l.b16 %v321
    %v1585 = vunpack.c.l.b16 %v322
    %v1586 = vunpack.c.l.b16 %v323
    %v1587 = vunpack.c.l.b16 %v324
    %v1588 = vunpack.c.l.b16 %v325
    %v1589 = vunpack.c.l.b16 %v326
    %v1590 = vunpack.c.l.b16 %v327
    %v1591 = vunpack.c.l.b16 %v328
    %v1592 = vunpack.c.l.b16 %v329
    %v1593 = vunpack.c.l.b16 %v330
    %v1594 = vunpack.c.l.b16 %v331
    %v1595 = vunpack.c.l.b16 %v332
    %v1596 = vunpack.c.l.b16 %v333
    %v1597 = vunpack.c.l.b16 %v334
    %v1598 = vunpack.c.l.b16 %v335
    %v1599 = vunpack.c.l.b16 %v336
    %v1600 = vunpack.c.l.b16 %v337
    %v1601 = vunpack.c.l.b16 %v338
    %v1602 = vunpack.c.l.b16 %v339
    %v1603 = vunpack.c.l.b16 %v340
    %v1604 = vunpack.c.l.b16 %v341
    %v1605 = vunpack.c.l.b16 %v342
    %v1606 = vunpack.c.l.b16 %v343
    %v1607 = vunpack.c.l.b16 %v344
    %v1608 = vunpack.c.l.b16 %v345
    %v1609 = vunpack.c.l.b16 %v346
    %v1610 = vunpack.c.l.b16 %v347
    %v1611 = vunpack.c.l.b16 %v348
    %v1612 = vunpack.c.l.b16 %v349
    %v1613 = vunpack.c.l.b16 %v350
    %v1614 = vunpack.c.l.b16 %v351
    %v1615 = vunpack.c.l.b16 %v352
    %v1616 = vunpack.c.l.b16 %v353
    %v1617 = vunpack.c.l.b16 %v354
    %v1618 = vunpack.c.l.b16 %v355
    %v1619 = vunpack.c.l.b16 %v356
    %v1620 = vunpack.c.l.b16 %v357
    %v1621 = vunpack.c.l.b16 %v358
    %v1622 = vunpack.c.l.b16 %v359
    %v1623 = vunpack.c.l.b16 %v360
    %v1624 = vunpack.c.l.b16 %v361
    %v1625 = vunpack.c.l.b16 %v362
    %v1626 = vunpack.c.l.b16 %v363
    %v1627 = vunpack.c.l.b16 %v364
    %v1628 = vunpack.c.l.b16 %v365
    %v1629 = vunpack.c.l.b16 %v366
    %v1630 = vunpack.c.l.b16 %v367
    %v1631 = vunpack.c.l.b16 %v368
    %v1632 = vunpack.c.l.b16 %v369
    %v1633 = vunpack.c.l.b16 %v370
    %v1634 = vunpack.c.l.b16 %v371
    %v1635 = vunpack.c.l.b16 %v372
    %v1636 = vunpack.c.l.b16 %v373
    %v1637 = vunpack.c.l.b16 %v374
    %v1638 = vunpack.c.l.b16 %v375
    %v1639 = vunpack.c.l.b16 %v376
    %v1640 = vunpack.c.l.b16 %v377
    %v1641 = vunpack.c.l.b16 %v378
    %v1642 = vunpack.c.l.b16 %v379
    %v1643 = vunpack.c.l.b16 %v380
    %v1644 = vunpack.c.l.b16 %v381
    %v1645 = vunpack.c.l.b16 %v382
    %v1646 = vunpack.c.l.b16 %v383
    %v1647 = vunpack.c.l.b16 %v384
    %v1648 = vunpack.c.l.b16 %v385
    %v1649 = vunpack.c.l.b16 %v386
    %v1650 = vunpack.c.l.b16 %v387
    %v1651 = vunpack.c.l.b16 %v388
    %v1652 = vunpack.c.l.b16 %v389
    %v1653 = vunpack.c.l.b16 %v390
    %v1654 = vunpack.c.l.b16 %v391
    %v1655 = vunpack.c.l.b16 %v392
    %v1656 = vunpack.c.l.b16 %v393
    %v1657 = vunpack.c.l.b16 %v394
    %v1658 = vunpack.c.l.b16 %v395
    %v1659 = vunpack.c.l.b16 %v396
    %v1660 = vunpack.c.l.b16 %v397
    %v1661 = vunpack.c.l.b16 %v398
    %v1662 = vunpack.c.l.b16 %v399
    %v1663 = vunpack.c.l.b16 %v400
    %v1664 = vunpack.c.l.b16 %v401
    %v1665 = vunpack.c.l.b16 %v402
    %v1666 = vunpack.c.l.b16 %v403
    %v1667 = vunpack.c.l.b16 %v404
    %v1668 = vunpack.c.l.b16 %v405
    %v1669 = vunpack.c.l.b16 %v406
    %v1670 = vunpack.c.l.b16 %v407
    %v1671 = vunpack.c.l.b16 %v408
    %v1672 = vunpack.c.l.b16 %v409
    %v1673 = vunpack.c.l.b16 %v410
    %v1674 = vunpack.c.l.b16 %v411
    %v1675 = vunpack.c.l.b16 %v412
    %v1676 = vunpack.c.l.b16 %v413
    %v1677 = vunpack.c.l.b16 %v414
    %v1678 = vunpack.c.l.b16 %v415
    %v1679 = vunpack.c.l.b16 %v416
    %v1680 = vunpack.c.l.b16 %v417
    %v1681 = vunpack.c.l.b16 %v418
    %v1682 = vunpack.c.l.b16 %v419
    %v1683 = vunpack.c.l.b16 %v420
    %v1684 = vunpack.c.l.b16 %v421
    %v1685 = vunpack.c.l.b16 %v422
    %v1686 = vunpack.c.l.b16 %v423
    %v1687 = vunpack.c.l.b16 %v424
    %v1688 = vunpack.c.l.b16 %v425
    %v1689 = vunpack.c.l.b16 %v426
    %v1690 = vunpack.c.l.b16 %v427
    %v1691 = vunpack.c.l.b16 %v428
    %v1692 = vunpack.c.l.b16 %v429
    %v1693 = vunpack.c.l.b16 %v430
    %v1694 = vunpack.c.l.b16 %v431
    %v1695 = vunpack.c.l.b16 %v432
    %v1696 = vunpack.c.l.b16 %v433
    %v1697 = vunpack.c.l.b16 %v434
    %v1698 = vunpack.c.l.b16 %v435
    %v1699 = vunpack.c.l.b16 %v436
    %v1700 = vunpack.c.l.b16 %v437
    %v1701 = vunpack.c.l.b16 %v438
    %v1702 = vunpack.c.l.b16 %v439
    %v1703 = vunpack.c.l.b16 %v440
    %v1704 = vunpack.c.l.b16 %v441
    %v1705 = vunpack.c.l.b16 %v442
    %v1706 = vunpack.c.l.b16 %v443
    %v1707 = vunpack.c.l.b16 %v444
    %v1708 = vunpack.c.l.b16 %v445
    %v1709 = vunpack.c.l.b16 %v446
    %v1710 = vunpack.c.l.b16 %v447
    %v1711 = vunpack.c.l.b16 %v448
    %v1712 = vunpack.c.l.b16 %v449
    %v1713 = vunpack.c.l.b16 %v450
    %v1714 = vunpack.c.l.b16 %v451
    %v1715 = vunpack.c.l.b16 %v452
    %v1716 = vunpack.c.l.b16 %v453
    %v1717 = vunpack.c.l.b16 %v454
    %v1718 = vunpack.c.l.b16 %v455
    %v1719 = vunpack.c.l.b16 %v456
    %v1720 = vunpack.c.l.b16 %v457
    %v1721 = vunpack.c.l.b16 %v458
    %v1722 = vunpack.c.l.b16 %v459
    %v1723 = vunpack.c.l.b16 %v460
    %v1724 = vunpack.c.l.b16 %v461
    %v1725 = vunpack.c.l.b16 %v462
    %v1726 = vunpack.c.l.b16 %v463
    %v1727 = vunpack.c.l.b16 %v464
    %v1728 = vunpack.c.l.b16 %v465
    %v1729 = vunpack.c.l.b16 %v466
    %v1730 = vunpack.c.l.b16 %v467
    %v1731 = vunpack.c.l.b16 %v468
    %v1732 = vunpack.c.l.b16 %v469
    %v1733 = vunpack.c.l.b16 %v470
    %v1734 = vunpack.c.l.b16 %v471
    %v1735 = vunpack.c.l.b16 %v472
    %v1736 = vunpack.c.l.b16 %v473
    %v1737 = vunpack.c.l.b16 %v474
    %v1738 = vunpack.c.l.b16 %v475
    %v1739 = vunpack.c.l.b16 %v476
    %v1740 = vunpack.c.l.b16 %v477
    %v1741 = vunpack.c.l.b16 %v478
    %v1742 = vunpack.c.l.b16 %v479
    %v1743 = vunpack.c.l.b16 %v480
    %v1744 = vunpack.c.l.b16 %v481
    %v1745 = vunpack.c.l.b16 %v482
    %v1746 = vunpack.c.l.b16 %v483
    %v1747 = vunpack.c.l.b16 %v484
    %v1748 = vunpack.c.l.b16 %v485
    %v1749 = vunpack.c.l.b16 %v486
    %v1750 = vunpack.c.l.b16 %v487
    %v1751 = vunpack.c.l.b16 %v488
    %v1752 = vunpack.c.l.b16 %v489
    %v1753 = vunpack.c.l.b16 %v490
    %v1754 = vunpack.c.l.b16 %v491
    %v1755 = vunpack.c.l.b16 %v492
    %v1756 = vunpack.c.l.b16 %v493
    %v1757 = vunpack.c.l.b16 %v494
    %v1758 = vunpack.c.l.b16 %v495
    %v1759 = vunpack.c.l.b16 %v496
    %v1760 = vunpack.c.l.b16 %v497
    %v1761 = vunpack.c.l.b16 %v498
    %v1762 = vunpack.c.l.b16 %v499
    %v1763 = vunpack.c.l.b16 %v500
    %v1764 = vunpack.c.l.b16 %v501
    %v1765 = vunpack.c.l.b16 %v502
    %v1766 = vunpack.c.l.b16 %v503
    %v1767 = vunpack.c.l.b16 %v504
    %v1768 = vunpack.c.l.b16 %v505
    %v1769 = vunpack.c.l.b16 %v506
    %v1770 = vunpack.c.l.b16 %v507
    %v1771 = vunpack.c.l.b16 %v508
    %v1772 = vunpack.c.l.b16 %v509
    %v1773 = vunpack.c.l.b16 %v510
    %v1774 = vunpack.c.l.b16 %v511
    %v1775 = vunpack.c.l.b16 %v512
    %v1776 = vunpack.c.l.b16 %v513
    %v1777 = vunpack.c.l.b16 %v514
    %v1778 = vunpack.c.l.b16 %v515
    %v1779 = vunpack.c.l.b16 %v516
    %v1780 = vunpack.c.l.b16 %v517
    %v1781 = vunpack.c.l.b16 %v518
    %v1782 = vunpack.c.l.b16 %v519
    %v1783 = vunpack.c.l.b16 %v520
    %v1784 = vunpack.c.l.b16 %v521
    %v1785 = vunpack.c.l.b16 %v522
    %v1786 = vunpack.c.l.b16 %v523
    %v1787 = vunpack.c.l.b16 %v524
    %v1788 = vunpack.c.l.b16 %v525
    %v1789 = vunpack.c.l.b16 %v526
    %v1790 = vunpack.c.l.b16 %v527
    %v1791 = vunpack.c.l.b16 %v528
    %v1792 = vunpack.c.l.b16 %v529
    %v1793 = vunpack.c.l.b16 %v530
    %v1794 = vunpack.c.l.b16 %v531
    %v1795 = vunpack.c.l.b16 %v532
    %v1796 = vunpack.c.l.b16 %v533
    %v1797 = vunpack.c.l.b16 %v534
    %v1798 = vunpack.c.l.b16 %v535
    %v1799 = vunpack.c.l.b16 %v536
    %v1800 = vunpack.c.l.b16 %v537
    %v1801 = vpack.c.b16 %v1290, %v1289
    %v1802 = vpack.c.b16 %v1292, %v1291
    %v1803 = vpack.c.b16 %v1294, %v1293
    %v1804 = vpack.c.b16 %v1296, %v1295
    %v1805 = vpack.c.b16 %v1298, %v1297
    %v1806 = vpack.c.b16 %v1300, %v1299
    %v1807 = vpack.c.b16 %v1302, %v1301
    %v1808 = vpack.c.b16 %v1304, %v1303
    %v1809 = vpack.c.b16 %v1306, %v1305
    %v1810 = vpack.c.b16 %v1308, %v1307
    %v1811 = vpack.c.b16 %v1310, %v1309
    %v1812 = vpack.c.b16 %v1312, %v1311
    %v1813 = vpack.c.b16 %v1314, %v1313
    %v1814 = vpack.c.b16 %v1316, %v1315
    %v1815 = vpack.c.b16 %v1318, %v1317
    %v1816 = vpack.c.b16 %v1320, %v1319
    %v1817 = vpack.c.b16 %v1322, %v1321
    %v1818 = vpack.c.b16 %v1324, %v1323
    %v1819 = vpack.c.b16 %v1326, %v1325
    %v1820 = vpack.c.b16 %v1328, %v1327
    %v1821 = vpack.c.b16 %v1330, %v1329
    %v1822 = vpack.c.b16 %v1332, %v1331
    %v1823 = vpack.c.b16 %v1334, %v1333
    %v1824 = vpack.c.b16 %v1336, %v1335
    %v1825 = vpack.c.b16 %v1338, %v1337
    %v1826 = vpack.c.b16 %v1340, %v1339
    %v1827 = vpack.c.b16 %v1342, %v1341
    %v1828 = vpack.c.b16 %v1344, %v1343
    %v1829 = vpack.c.b16 %v1346, %v1345
    %v1830 = vpack.c.b16 %v1348, %v1347
    %v1831 = vpack.c.b16 %v1350, %v1349
    %v1832 = vpack.c.b16 %v1352, %v1351
    %v1833 = vpack.c.b16 %v1354, %v1353
    %v1834 = vpack.c.b16 %v1356, %v1355
    %v1835 = vpack.c.b16 %v1358, %v1357
    %v1836 = vpack.c.b16 %v1360, %v1359
    %v1837 = vpack.c.b16 %v1362, %v1361
    %v1838 = vpack.c.b16 %v1364, %v1363
    %v1839 = vpack.c.b16 %v1366, %v1365
    %v1840 = vpack.c.b16 %v1368, %v1367
    %v1841 = vpack.c.b16 %v1370, %v1369
    %v1842 = vpack.c.b16 %v1372, %v1371
    %v1843 = vpack.c.b16 %v1374, %v1373
    %v1844 = vpack.c.b16 %v1376, %v1375
    %v1845 = vpack.c.b16 %v1378, %v1377
    %v1846 = vpack.c.b16 %v1380, %v1379
    %v1847 = vpack.c.b16 %v1382, %v1381
    %v1848 = vpack.c.b16 %v1384, %v1383
    %v1849 = vpack.c.b16 %v1386, %v1385
    %v1850 = vpack.c.b16 %v1388, %v1387
    %v1851 = vpack.c.b16 %v1390, %v1389
    %v1852 = vpack.c.b16 %v1392, %v1391
    %v1853 = vpack.c.b16 %v1394, %v1393
    %v1854 = vpack.c.b16 %v1396, %v1395
    %v1855 = vpack.c.b16 %v1398, %v1397
    %v1856 = vpack.c.b16 %v1400, %v1399
    %v1857 = vpack.c.b16 %v1402, %v1401
    %v1858 = vpack.c.b16 %v1404, %v1403
    %v1859 = vpack.c.b16 %v1406, %v1405
    %v1860 = vpack.c.b16 %v1408, %v1407
    %v1861 = vpack.c.b16 %v1410, %v1409
    %v1862 = vpack.c.b16 %v1412, %v1411
    %v1863 = vpack.c.b16 %v1414, %v1413
    %v1864 = vpack.c.b16 %v1416, %v1415
    %v1865 = vpack.c.b16 %v1418, %v1417
    %v1866 = vpack.c.b16 %v1420, %v1419
    %v1867 = vpack.c.b16 %v1422, %v1421
    %v1868 = vpack.c.b16 %v1424, %v1423
    %v1869 = vpack.c.b16 %v1426, %v1425
    %v1870 = vpack.c.b16 %v1428, %v1427
    %v1871 = vpack.c.b16 %v1430, %v1429
    %v1872 = vpack.c.b16 %v1432, %v1431
    %v1873 = vpack.c.b16 %v1434, %v1433
    %v1874 = vpack.c.b16 %v1436, %v1435
    %v1875 = vpack.c.b16 %v1438, %v1437
    %v1876 = vpack.c.b16 %v1440, %v1439
    %v1877 = vpack.c.b16 %v1442, %v1441
    %v1878 = vpack.c.b16 %v1444, %v1443
    %v1879 = vpack.c.b16 %v1446, %v1445
    %v1880 = vpack.c.b16 %v1448, %v1447
    %v1881 = vpack.c.b16 %v1450, %v1449
    %v1882 = vpack.c.b16 %v1452, %v1451
    %v1883 = vpack.c.b16 %v1454, %v1453
    %v1884 = vpack.c.b16 %v1456, %v1455
    %v1885 = vpack.c.b16 %v1458, %v1457
    %v1886 = vpack.c.b16 %v1460, %v1459
    %v1887 = vpack.c.b16 %v1462, %v1461
    %v1888 = vpack.c.b16 %v1464, %v1463
    %v1889 = vpack.c.b16 %v1466, %v1465
    %v1890 = vpack.c.b16 %v1468, %v1467
    %v1891 = vpack.c.b16 %v1470, %v1469
    %v1892 = vpack.c.b16 %v1472, %v1471
    %v1893 = vpack.c.b16 %v1474, %v1473
    %v1894 = vpack.c.b16 %v1476, %v1475
    %v1895 = vpack.c.b16 %v1478, %v1477
    %v1896 = vpack.c.b16 %v1480, %v1479
    %v1897 = vpack.c.b16 %v1482, %v1481
    %v1898 = vpack.c.b16 %v1484, %v1483
    %v1899 = vpack.c.b16 %v1486, %v1485
    %v1900 = vpack.c.b16 %v1488, %v1487
    %v1901 = vpack.c.b16 %v1490, %v1489
    %v1902 = vpack.c.b16 %v1492, %v1491
    %v1903 = vpack.c.b16 %v1494, %v1493
    %v1904 = vpack.c.b16 %v1496, %v1495
    %v1905 = vpack.c.b16 %v1498, %v1497
    %v1906 = vpack.c.b16 %v1500, %v1499
    %v1907 = vpack.c.b16 %v1502, %v1501
    %v1908 = vpack.c.b16 %v1504, %v1503
    %v1909 = vpack.c.b16 %v1506, %v1505
    %v1910 = vpack.c.b16 %v1508, %v1507
    %v1911 = vpack.c.b16 %v1510, %v1509
    %v1912 = vpack.c.b16 %v1512, %v1511
    %v1913 = vpack.c.b16 %v1514, %v1513
    %v1914 = vpack.c.b16 %v1516, %v1515
    %v1915 = vpack.c.b16 %v1518, %v1517
    %v1916 = vpack.c.b16 %v1520, %v1519
    %v1917 = vpack.c.b16 %v1522, %v1521
    %v1918 = vpack.c.b16 %v1524, %v1523
    %v1919 = vpack.c.b16 %v1526, %v1525
    %v1920 = vpack.c.b16 %v1528, %v1527
    %v1921 = vpack.c.b16 %v1530, %v1529
    %v1922 = vpack.c.b16 %v1532, %v1531
    %v1923 = vpack.c.b16 %v1534, %v1533
    %v1924 = vpack.c.b16 %v1536, %v1535
    %v1925 = vpack.c.b16 %v1538, %v1537
    %v1926 = vpack.c.b16 %v1540, %v1539
    %v1927 = vpack.c.b16 %v1542, %v1541
    %v1928 = vpack.c.b16 %v1544, %v1543
    %v1929 = vpack.c.b16 %v1546, %v1545
    %v1930 = vpack.c.b16 %v1548, %v1547
    %v1931 = vpack.c.b16 %v1550, %v1549
    %v1932 = vpack.c.b16 %v1552, %v1551
    %v1933 = vpack.c.b16 %v1554, %v1553
    %v1934 = vpack.c.b16 %v1556, %v1555
    %v1935 = vpack.c.b16 %v1558, %v1557
    %v1936 = vpack.c.b16 %v1560, %v1559
    %v1937 = vpack.c.b16 %v1562, %v1561
    %v1938 = vpack.c.b16 %v1564, %v1563
    %v1939 = vpack.c.b16 %v1566, %v1565
    %v1940 = vpack.c.b16 %v1568, %v1567
    %v1941 = vpack.c.b16 %v1570, %v1569
    %v1942 = vpack.c.b16 %v1572, %v1571
    %v1943 = vpack.c.b16 %v1574, %v1573
    %v1944 = vpack.c.b16 %v1576, %v1575
    %v1945 = vpack.c.b16 %v1578, %v1577
    %v1946 = vpack.c.b16 %v1580, %v1579
    %v1947 = vpack.c.b16 %v1582, %v1581
    %v1948 = vpack.c.b16 %v1584, %v1583
    %v1949 = vpack.c.b16 %v1586, %v1585
    %v1950 = vpack.c.b16 %v1588, %v1587
    %v1951 = vpack.c.b16 %v1590, %v1589
    %v1952 = vpack.c.b16 %v1592, %v1591
    %v1953 = vpack.c.b16 %v1594, %v1593
    %v1954 = vpack.c.b16 %v1596, %v1595
    %v1955 = vpack.c.b16 %v1598, %v1597
    %v1956 = vpack.c.b16 %v1600, %v1599
    %v1957 = vpack.c.b16 %v1602, %v1601
    %v1958 = vpack.c.b16 %v1604, %v1603
    %v1959 = vpack.c.b16 %v1606, %v1605
    %v1960 = vpack.c.b16 %v1608, %v1607
    %v1961 = vpack.c.b16 %v1610, %v1609
    %v1962 = vpack.c.b16 %v1612, %v1611
    %v1963 = vpack.c.b16 %v1614, %v1613
    %v1964 = vpack.c.b16 %v1616, %v1615
    %v1965 = vpack.c.b16 %v1618, %v1617
    %v1966 = vpack.c.b16 %v1620, %v1619
    %v1967 = vpack.c.b16 %v1622, %v1621
    %v1968 = vpack.c.b16 %v1624, %v1623
    %v1969 = vpack.c.b16 %v1626, %v1625
    %v1970 = vpack.c.b16 %v1628, %v1627
    %v1971 = vpack.c.b16 %v1630, %v1629
    %v1972 = vpack.c.b16 %v1632, %v1631
    %v1973 = vpack.c.b16 %v1634, %v1633
    %v1974 = vpack.c.b16 %v1636, %v1635
    %v1975 = vpack.c.b16 %v1638, %v1637
    %v1976 = vpack.c.b16 %v1640, %v1639
    %v1977 = vpack.c.b16 %v1642, %v1641
    %v1978 = vpack.c.b16 %v1644, %v1643
    %v1979 = vpack.c.b16 %v1646, %v1645
    %v1980 = vpack.c.b16 %v1648, %v1647
    %v1981 = vpack.c.b16 %v1650, %v1649
    %v1982 = vpack.c.b16 %v1652, %v1651
    %v1983 = vpack.c.b16 %v1654, %v1653
    %v1984 = vpack.c.b16 %v1656, %v1655
    %v1985 = vpack.c.b16 %v1658, %v1657
    %v1986 = vpack.c.b16 %v1660, %v1659
    %v1987 = vpack.c.b16 %v1662, %v1661
    %v1988 = vpack.c.b16 %v1664, %v1663
    %v1989 = vpack.c.b16 %v1666, %v1665
    %v1990 = vpack.c.b16 %v1668, %v1667
    %v1991 = vpack.c.b16 %v1670, %v1669
    %v1992 = vpack.c.b16 %v1672, %v1671
    %v1993 = vpack.c.b16 %v1674, %v1673
    %v1994 = vpack.c.b16 %v1676, %v1675
    %v1995 = vpack.c.b16 %v1678, %v1677
    %v1996 = vpack.c.b16 %v1680, %v1679
    %v1997 = vpack.c.b16 %v1682, %v1681
    %v1998 = vpack.c.b16 %v1684, %v1683
    %v1999 = vpack.c.b16 %v1686, %v1685
    %v2000 = vpack.c.b16 %v1688, %v1687
    %v2001 = vpack.c.b16 %v1690, %v1689
    %v2002 = vpack.c.b16 %v1692, %v1691
    %v2003 = vpack.c.b16 %v1694, %v1693
    %v2004 = vpack.c.b16 %v1696, %v1695
    %v2005 = vpack.c.b16 %v1698, %v1697
    %v2006 = vpack.c.b16 %v1700, %v1699
    %v2007 = vpack.c.b16 %v1702, %v1701
    %v2008 = vpack.c.b16 %v1704, %v1703
    %v2009 = vpack.c.b16 %v1706, %v1705
    %v2010 = vpack.c.b16 %v1708, %v1707
    %v2011 = vpack.c.b16 %v1710, %v1709
    %v2012 = vpack.c.b16 %v1712, %v1711
    %v2013 = vpack.c.b16 %v1714, %v1713
    %v2014 = vpack.c.b16 %v1716, %v1715
    %v2015 = vpack.c.b16 %v1718, %v1717
    %v2016 = vpack.c.b16 %v1720, %v1719
    %v2017 = vpack.c.b16 %v1722, %v1721
    %v2018 = vpack.c.b16 %v1724, %v1723
    %v2019 = vpack.c.b16 %v1726, %v1725
    %v2020 = vpack.c.b16 %v1728, %v1727
    %v2021 = vpack.c.b16 %v1730, %v1729
    %v2022 = vpack.c.b16 %v1732, %v1731
    %v2023 = vpack.c.b16 %v1734, %v1733
    %v2024 = vpack.c.b16 %v1736, %v1735
    %v2025 = vpack.c.b16 %v1738, %v1737
    %v2026 = vpack.c.b16 %v1740, %v1739
    %v2027 = vpack.c.b16 %v1742, %v1741
    %v2028 = vpack.c.b16 %v1744, %v1743
    %v2029 = vpack.c.b16 %v1746, %v1745
    %v2030 = vpack.c.b16 %v1748, %v1747
    %v2031 = vpack.c.b16 %v1750, %v1749
    %v2032 = vpack.c.b16 %v1752, %v1751
    %v2033 = vpack.c.b16 %v1754, %v1753
    %v2034 = vpack.c.b16 %v1756, %v1755
    %v2035 = vpack.c.b16 %v1758, %v1757
    %v2036 = vpack.c.b16 %v1760, %v1759
    %v2037 = vpack.c.b16 %v1762, %v1761
    %v2038 = vpack.c.b16 %v1764, %v1763
    %v2039 = vpack.c.b16 %v1766, %v1765
    %v2040 = vpack.c.b16 %v1768, %v1767
    %v2041 = vpack.c.b16 %v1770, %v1769
    %v2042 = vpack.c.b16 %v1772, %v1771
    %v2043 = vpack.c.b16 %v1774, %v1773
    %v2044 = vpack.c.b16 %v1776, %v1775
    %v2045 = vpack.c.b16 %v1778, %v1777
    %v2046 = vpack.c.b16 %v1780, %v1779
    %v2047 = vpack.c.b16 %v1782, %v1781
    %v2048 = vpack.c.b16 %v1784, %v1783
    %v2049 = vpack.c.b16 %v1786, %v1785
    %v2050 = vpack.c.b16 %v1788, %v1787
    %v2051 = vpack.c.b16 %v1790, %v1789
    %v2052 = vpack.c.b16 %v1792, %v1791
    %v2053 = vpack.c.b16 %v1794, %v1793
    %v2054 = vpack.c.b16 %v1796, %v1795
    %v2055 = vpack.c.b16 %v1798, %v1797
    %v2056 = vpack.c.b16 %v1800, %v1799
    %2313 = vmatprep.subr.bf16.mxu0 0
    %2314 = vmatpush1.bf16.msra.mxu0 %v1808
    %2315 = vmatprep.subr.bf16.mxu0 0
    %2316 = vmatpush1.bf16.msra.mxu0 %v1807
    %2317 = vmatprep.subr.bf16.mxu0 0
    %2318 = vmatpush1.bf16.msra.mxu0 %v1806
    %2319 = vmatprep.subr.bf16.mxu0 0
    %2320 = vmatpush1.bf16.msra.mxu0 %v1805
    %2321 = vmatprep.subr.bf16.mxu0 0
    %2322 = vmatpush1.bf16.msra.mxu0 %v1804
    %2323 = vmatprep.subr.bf16.mxu0 0
    %2324 = vmatpush1.bf16.msra.mxu0 %v1803
    %2325 = vmatprep.subr.bf16.mxu0 0
    %2326 = vmatpush1.bf16.msra.mxu0 %v1802
    %2327 = vmatprep.subr.bf16.mxu0 0
    %2328 = vmatpush1.bf16.msra.mxu0 %v1801
    %2329 = vmatprep.subr.bf16.mxu0 0
    %2330 = vmatpush2.bf16.msra.mxu0 %v1816
    %2331 = vmatprep.subr.bf16.mxu0 0
    %2332 = vmatpush2.bf16.msra.mxu0 %v1815
    %2333 = vmatprep.subr.bf16.mxu0 0
    %2334 = vmatpush2.bf16.msra.mxu0 %v1814
    %2335 = vmatprep.subr.bf16.mxu0 0
    %2336 = vmatpush2.bf16.msra.mxu0 %v1813
    %2337 = vmatprep.subr.bf16.mxu0 0
    %2338 = vmatpush2.bf16.msra.mxu0 %v1812
    %2339 = vmatprep.subr.bf16.mxu0 0
    %2340 = vmatpush2.bf16.msra.mxu0 %v1811
    %2341 = vmatprep.subr.bf16.mxu0 0
    %2342 = vmatpush2.bf16.msra.mxu0 %v1810
    %2343 = vmatprep.subr.bf16.mxu0 0
    %2344 = vmatpush2.bf16.msra.mxu0 %v1809
    %2345 = vmatprep.mubr.bf16.mxu0 %v586
    %2346 = vmatmul.mubr.bf16.gmra.mxu0 %v572
    %v2347 = vpop.f32.mrf.mxu0
    %v2348 = vadd.f32 %v543, %v2347
    %v2349 = vpop.f32.mrf.mxu0
    %v2350 = vpop.f32.mrf.mxu0
    %v2351 = vpop.f32.mrf.mxu0
    %2352 = vdwg.mxu0
    %2353 = vmatprep.subr.bf16.mxu0 0
    %2354 = vmatpush1.bf16.msra.mxu0 %v1824
    %2355 = vmatprep.subr.bf16.mxu0 0
    %2356 = vmatpush1.bf16.msra.mxu0 %v1823
    %2357 = vmatprep.subr.bf16.mxu0 0
    %2358 = vmatpush1.bf16.msra.mxu0 %v1822
    %2359 = vmatprep.subr.bf16.mxu0 0
    %2360 = vmatpush1.bf16.msra.mxu0 %v1821
    %2361 = vmatprep.subr.bf16.mxu0 0
    %2362 = vmatpush1.bf16.msra.mxu0 %v1820
    %2363 = vmatprep.subr.bf16.mxu0 0
    %2364 = vmatpush1.bf16.msra.mxu0 %v1819
    %2365 = vmatprep.subr.bf16.mxu0 0
    %2366 = vmatpush1.bf16.msra.mxu0 %v1818
    %2367 = vmatprep.subr.bf16.mxu0 0
    %2368 = vmatpush1.bf16.msra.mxu0 %v1817
    %2369 = vmatprep.subr.bf16.mxu0 0
    %2370 = vmatpush2.bf16.msra.mxu0 %v1832
    %2371 = vmatprep.subr.bf16.mxu0 0
    %2372 = vmatpush2.bf16.msra.mxu0 %v1831
    %2373 = vmatprep.subr.bf16.mxu0 0
    %2374 = vmatpush2.bf16.msra.mxu0 %v1830
    %2375 = vmatprep.subr.bf16.mxu0 0
    %2376 = vmatpush2.bf16.msra.mxu0 %v1829
    %2377 = vmatprep.subr.bf16.mxu0 0
    %2378 = vmatpush2.bf16.msra.mxu0 %v1828
    %2379 = vmatprep.subr.bf16.mxu0 0
    %2380 = vmatpush2.bf16.msra.mxu0 %v1827
    %2381 = vmatprep.subr.bf16.mxu0 0
    %2382 = vmatpush2.bf16.msra.mxu0 %v1826
    %2383 = vmatprep.subr.bf16.mxu0 0
    %2384 = vmatpush2.bf16.msra.mxu0 %v1825
    %2385 = vmatprep.mubr.bf16.mxu0 %v596
    %2386 = vmatmul.mubr.bf16.gmra.mxu0 %v594
    %v2387 = vpop.f32.mrf.mxu0
    %v2388 = vadd.f32 %v2348, %v2387
    %v2389 = vpop.f32.mrf.mxu0
    %v2390 = vpop.f32.mrf.mxu0
    %v2391 = vpop.f32.mrf.mxu0
    %2392 = vdwg.mxu0
    %2393 = vmatprep.subr.bf16.mxu0 0
    %2394 = vmatpush1.bf16.msra.mxu0 %v1840
    %2395 = vmatprep.subr.bf16.mxu0 0
    %2396 = vmatpush1.bf16.msra.mxu0 %v1839
    %2397 = vmatprep.subr.bf16.mxu0 0
    %2398 = vmatpush1.bf16.msra.mxu0 %v1838
    %2399 = vmatprep.subr.bf16.mxu0 0
    %2400 = vmatpush1.bf16.msra.mxu0 %v1837
    %2401 = vmatprep.subr.bf16.mxu0 0
    %2402 = vmatpush1.bf16.msra.mxu0 %v1836
    %2403 = vmatprep.subr.bf16.mxu0 0
    %2404 = vmatpush1.bf16.msra.mxu0 %v1835
    %2405 = vmatprep.subr.bf16.mxu0 0
    %2406 = vmatpush1.bf16.msra.mxu0 %v1834
    %2407 = vmatprep.subr.bf16.mxu0 0
    %2408 = vmatpush1.bf16.msra.mxu0 %v1833
    %2409 = vmatprep.subr.bf16.mxu0 0
    %2410 = vmatpush2.bf16.msra.mxu0 %v1848
    %2411 = vmatprep.subr.bf16.mxu0 0
    %2412 = vmatpush2.bf16.msra.mxu0 %v1847
    %2413 = vmatprep.subr.bf16.mxu0 0
    %2414 = vmatpush2.bf16.msra.mxu0 %v1846
    %2415 = vmatprep.subr.bf16.mxu0 0
    %2416 = vmatpush2.bf16.msra.mxu0 %v1845
    %2417 = vmatprep.subr.bf16.mxu0 0
    %2418 = vmatpush2.bf16.msra.mxu0 %v1844
    %2419 = vmatprep.subr.bf16.mxu0 0
    %2420 = vmatpush2.bf16.msra.mxu0 %v1843
    %2421 = vmatprep.subr.bf16.mxu0 0
    %2422 = vmatpush2.bf16.msra.mxu0 %v1842
    %2423 = vmatprep.subr.bf16.mxu0 0
    %2424 = vmatpush2.bf16.msra.mxu0 %v1841
    %2425 = vmatprep.mubr.bf16.mxu0 %v593
    %2426 = vmatmul.mubr.bf16.gmra.mxu0 %v579
    %v2427 = vpop.f32.mrf.mxu0
    %v2428 = vadd.f32 %v2388, %v2427
    %v2429 = vpop.f32.mrf.mxu0
    %v2430 = vpop.f32.mrf.mxu0
    %v2431 = vpop.f32.mrf.mxu0
    %2432 = vdwg.mxu0
    %2433 = vmatprep.subr.bf16.mxu0 0
    %2434 = vmatpush1.bf16.msra.mxu0 %v1856
    %2435 = vmatprep.subr.bf16.mxu0 0
    %2436 = vmatpush1.bf16.msra.mxu0 %v1855
    %2437 = vmatprep.subr.bf16.mxu0 0
    %2438 = vmatpush1.bf16.msra.mxu0 %v1854
    %2439 = vmatprep.subr.bf16.mxu0 0
    %2440 = vmatpush1.bf16.msra.mxu0 %v1853
    %2441 = vmatprep.subr.bf16.mxu0 0
    %2442 = vmatpush1.bf16.msra.mxu0 %v1852
    %2443 = vmatprep.subr.bf16.mxu0 0
    %2444 = vmatpush1.bf16.msra.mxu0 %v1851
    %2445 = vmatprep.subr.bf16.mxu0 0
    %2446 = vmatpush1.bf16.msra.mxu0 %v1850
    %2447 = vmatprep.subr.bf16.mxu0 0
    %2448 = vmatpush1.bf16.msra.mxu0 %v1849
    %2449 = vmatprep.subr.bf16.mxu0 0
    %2450 = vmatpush2.bf16.msra.mxu0 %v1864
    %2451 = vmatprep.subr.bf16.mxu0 0
    %2452 = vmatpush2.bf16.msra.mxu0 %v1863
    %2453 = vmatprep.subr.bf16.mxu0 0
    %2454 = vmatpush2.bf16.msra.mxu0 %v1862
    %2455 = vmatprep.subr.bf16.mxu0 0
    %2456 = vmatpush2.bf16.msra.mxu0 %v1861
    %2457 = vmatprep.subr.bf16.mxu0 0
    %2458 = vmatpush2.bf16.msra.mxu0 %v1860
    %2459 = vmatprep.subr.bf16.mxu0 0
    %2460 = vmatpush2.bf16.msra.mxu0 %v1859
    %2461 = vmatprep.subr.bf16.mxu0 0
    %2462 = vmatpush2.bf16.msra.mxu0 %v1858
    %2463 = vmatprep.subr.bf16.mxu0 0
    %2464 = vmatpush2.bf16.msra.mxu0 %v1857
    %2465 = vmatprep.mubr.bf16.mxu0 %v597
    %2466 = vmatmul.mubr.bf16.gmra.mxu0 %v595
    %v2467 = vpop.f32.mrf.mxu0
    %v2468 = vadd.f32 %v2428, %v2467
    %v2469 = vpop.f32.mrf.mxu0
    %v2470 = vpop.f32.mrf.mxu0
    %v2471 = vpop.f32.mrf.mxu0
    %2472 = vdwg.mxu0
    %2473 = vmatprep.subr.bf16.mxu0 0
    %2474 = vmatpush1.bf16.msra.mxu0 %v1872
    %2475 = vmatprep.subr.bf16.mxu0 0
    %2476 = vmatpush1.bf16.msra.mxu0 %v1871
    %2477 = vmatprep.subr.bf16.mxu0 0
    %2478 = vmatpush1.bf16.msra.mxu0 %v1870
    %2479 = vmatprep.subr.bf16.mxu0 0
    %2480 = vmatpush1.bf16.msra.mxu0 %v1869
    %2481 = vmatprep.subr.bf16.mxu0 0
    %2482 = vmatpush1.bf16.msra.mxu0 %v1868
    %2483 = vmatprep.subr.bf16.mxu0 0
    %2484 = vmatpush1.bf16.msra.mxu0 %v1867
    %2485 = vmatprep.subr.bf16.mxu0 0
    %2486 = vmatpush1.bf16.msra.mxu0 %v1866
    %2487 = vmatprep.subr.bf16.mxu0 0
    %2488 = vmatpush1.bf16.msra.mxu0 %v1865
    %2489 = vmatprep.subr.bf16.mxu0 0
    %2490 = vmatpush2.bf16.msra.mxu0 %v1880
    %2491 = vmatprep.subr.bf16.mxu0 0
    %2492 = vmatpush2.bf16.msra.mxu0 %v1879
    %2493 = vmatprep.subr.bf16.mxu0 0
    %2494 = vmatpush2.bf16.msra.mxu0 %v1878
    %2495 = vmatprep.subr.bf16.mxu0 0
    %2496 = vmatpush2.bf16.msra.mxu0 %v1877
    %2497 = vmatprep.subr.bf16.mxu0 0
    %2498 = vmatpush2.bf16.msra.mxu0 %v1876
    %2499 = vmatprep.subr.bf16.mxu0 0
    %2500 = vmatpush2.bf16.msra.mxu0 %v1875
    %2501 = vmatprep.subr.bf16.mxu0 0
    %2502 = vmatpush2.bf16.msra.mxu0 %v1874
    %2503 = vmatprep.subr.bf16.mxu0 0
    %2504 = vmatpush2.bf16.msra.mxu0 %v1873
    %2505 = vmatprep.mubr.bf16.mxu0 %v635
    %2506 = vmatmul.mubr.bf16.gmra.mxu0 %v621
    %v2507 = vpop.f32.mrf.mxu0
    %v2508 = vadd.f32 %v2468, %v2507
    %v2509 = vpop.f32.mrf.mxu0
    %v2510 = vpop.f32.mrf.mxu0
    %v2511 = vpop.f32.mrf.mxu0
    %2512 = vdwg.mxu0
    %2513 = vmatprep.subr.bf16.mxu0 0
    %2514 = vmatpush1.bf16.msra.mxu0 %v1888
    %2515 = vmatprep.subr.bf16.mxu0 0
    %2516 = vmatpush1.bf16.msra.mxu0 %v1887
    %2517 = vmatprep.subr.bf16.mxu0 0
    %2518 = vmatpush1.bf16.msra.mxu0 %v1886
    %2519 = vmatprep.subr.bf16.mxu0 0
    %2520 = vmatpush1.bf16.msra.mxu0 %v1885
    %2521 = vmatprep.subr.bf16.mxu0 0
    %2522 = vmatpush1.bf16.msra.mxu0 %v1884
    %2523 = vmatprep.subr.bf16.mxu0 0
    %2524 = vmatpush1.bf16.msra.mxu0 %v1883
    %2525 = vmatprep.subr.bf16.mxu0 0
    %2526 = vmatpush1.bf16.msra.mxu0 %v1882
    %2527 = vmatprep.subr.bf16.mxu0 0
    %2528 = vmatpush1.bf16.msra.mxu0 %v1881
    %2529 = vmatprep.subr.bf16.mxu0 0
    %2530 = vmatpush2.bf16.msra.mxu0 %v1896
    %2531 = vmatprep.subr.bf16.mxu0 0
    %2532 = vmatpush2.bf16.msra.mxu0 %v1895
    %2533 = vmatprep.subr.bf16.mxu0 0
    %2534 = vmatpush2.bf16.msra.mxu0 %v1894
    %2535 = vmatprep.subr.bf16.mxu0 0
    %2536 = vmatpush2.bf16.msra.mxu0 %v1893
    %2537 = vmatprep.subr.bf16.mxu0 0
    %2538 = vmatpush2.bf16.msra.mxu0 %v1892
    %2539 = vmatprep.subr.bf16.mxu0 0
    %2540 = vmatpush2.bf16.msra.mxu0 %v1891
    %2541 = vmatprep.subr.bf16.mxu0 0
    %2542 = vmatpush2.bf16.msra.mxu0 %v1890
    %2543 = vmatprep.subr.bf16.mxu0 0
    %2544 = vmatpush2.bf16.msra.mxu0 %v1889
    %2545 = vmatprep.mubr.bf16.mxu0 %v645
    %2546 = vmatmul.mubr.bf16.gmra.mxu0 %v643
    %v2547 = vpop.f32.mrf.mxu0
    %v2548 = vadd.f32 %v2508, %v2547
    %v2549 = vpop.f32.mrf.mxu0
    %v2550 = vpop.f32.mrf.mxu0
    %v2551 = vpop.f32.mrf.mxu0
    %2552 = vdwg.mxu0
    %2553 = vmatprep.subr.bf16.mxu0 0
    %2554 = vmatpush1.bf16.msra.mxu0 %v1904
    %2555 = vmatprep.subr.bf16.mxu0 0
    %2556 = vmatpush1.bf16.msra.mxu0 %v1903
    %2557 = vmatprep.subr.bf16.mxu0 0
    %2558 = vmatpush1.bf16.msra.mxu0 %v1902
    %2559 = vmatprep.subr.bf16.mxu0 0
    %2560 = vmatpush1.bf16.msra.mxu0 %v1901
    %2561 = vmatprep.subr.bf16.mxu0 0
    %2562 = vmatpush1.bf16.msra.mxu0 %v1900
    %2563 = vmatprep.subr.bf16.mxu0 0
    %2564 = vmatpush1.bf16.msra.mxu0 %v1899
    %2565 = vmatprep.subr.bf16.mxu0 0
    %2566 = vmatpush1.bf16.msra.mxu0 %v1898
    %2567 = vmatprep.subr.bf16.mxu0 0
    %2568 = vmatpush1.bf16.msra.mxu0 %v1897
    %2569 = vmatprep.subr.bf16.mxu0 0
    %2570 = vmatpush2.bf16.msra.mxu0 %v1912
    %2571 = vmatprep.subr.bf16.mxu0 0
    %2572 = vmatpush2.bf16.msra.mxu0 %v1911
    %2573 = vmatprep.subr.bf16.mxu0 0
    %2574 = vmatpush2.bf16.msra.mxu0 %v1910
    %2575 = vmatprep.subr.bf16.mxu0 0
    %2576 = vmatpush2.bf16.msra.mxu0 %v1909
    %2577 = vmatprep.subr.bf16.mxu0 0
    %2578 = vmatpush2.bf16.msra.mxu0 %v1908
    %2579 = vmatprep.subr.bf16.mxu0 0
    %2580 = vmatpush2.bf16.msra.mxu0 %v1907
    %2581 = vmatprep.subr.bf16.mxu0 0
    %2582 = vmatpush2.bf16.msra.mxu0 %v1906
    %2583 = vmatprep.subr.bf16.mxu0 0
    %2584 = vmatpush2.bf16.msra.mxu0 %v1905
    %2585 = vmatprep.mubr.bf16.mxu0 %v642
    %2586 = vmatmul.mubr.bf16.gmra.mxu0 %v628
    %v2587 = vpop.f32.mrf.mxu0
    %v2588 = vadd.f32 %v2548, %v2587
    %v2589 = vpop.f32.mrf.mxu0
    %v2590 = vpop.f32.mrf.mxu0
    %v2591 = vpop.f32.mrf.mxu0
    %2592 = vdwg.mxu0
    %2593 = vmatprep.subr.bf16.mxu0 0
    %2594 = vmatpush1.bf16.msra.mxu0 %v1920
    %2595 = vmatprep.subr.bf16.mxu0 0
    %2596 = vmatpush1.bf16.msra.mxu0 %v1919
    %2597 = vmatprep.subr.bf16.mxu0 0
    %2598 = vmatpush1.bf16.msra.mxu0 %v1918
    %2599 = vmatprep.subr.bf16.mxu0 0
    %2600 = vmatpush1.bf16.msra.mxu0 %v1917
    %2601 = vmatprep.subr.bf16.mxu0 0
    %2602 = vmatpush1.bf16.msra.mxu0 %v1916
    %2603 = vmatprep.subr.bf16.mxu0 0
    %2604 = vmatpush1.bf16.msra.mxu0 %v1915
    %2605 = vmatprep.subr.bf16.mxu0 0
    %2606 = vmatpush1.bf16.msra.mxu0 %v1914
    %2607 = vmatprep.subr.bf16.mxu0 0
    %2608 = vmatpush1.bf16.msra.mxu0 %v1913
    %2609 = vmatprep.subr.bf16.mxu0 0
    %2610 = vmatpush2.bf16.msra.mxu0 %v1928
    %2611 = vmatprep.subr.bf16.mxu0 0
    %2612 = vmatpush2.bf16.msra.mxu0 %v1927
    %2613 = vmatprep.subr.bf16.mxu0 0
    %2614 = vmatpush2.bf16.msra.mxu0 %v1926
    %2615 = vmatprep.subr.bf16.mxu0 0
    %2616 = vmatpush2.bf16.msra.mxu0 %v1925
    %2617 = vmatprep.subr.bf16.mxu0 0
    %2618 = vmatpush2.bf16.msra.mxu0 %v1924
    %2619 = vmatprep.subr.bf16.mxu0 0
    %2620 = vmatpush2.bf16.msra.mxu0 %v1923
    %2621 = vmatprep.subr.bf16.mxu0 0
    %2622 = vmatpush2.bf16.msra.mxu0 %v1922
    %2623 = vmatprep.subr.bf16.mxu0 0
    %2624 = vmatpush2.bf16.msra.mxu0 %v1921
    %2625 = vmatprep.mubr.bf16.mxu0 %v646
    %2626 = vmatmul.mubr.bf16.gmra.mxu0 %v644
    %v2627 = vpop.f32.mrf.mxu0
    %v2628 = vadd.f32 %v2588, %v2627
    %v2629 = vpop.f32.mrf.mxu0
    %v2630 = vpop.f32.mrf.mxu0
    %v2631 = vpop.f32.mrf.mxu0
    %2632 = vdwg.mxu0
    %2633 = vmatprep.subr.bf16.mxu0 0
    %2634 = vmatpush1.bf16.msra.mxu0 %v1936
    %2635 = vmatprep.subr.bf16.mxu0 0
    %2636 = vmatpush1.bf16.msra.mxu0 %v1935
    %2637 = vmatprep.subr.bf16.mxu0 0
    %2638 = vmatpush1.bf16.msra.mxu0 %v1934
    %2639 = vmatprep.subr.bf16.mxu0 0
    %2640 = vmatpush1.bf16.msra.mxu0 %v1933
    %2641 = vmatprep.subr.bf16.mxu0 0
    %2642 = vmatpush1.bf16.msra.mxu0 %v1932
    %2643 = vmatprep.subr.bf16.mxu0 0
    %2644 = vmatpush1.bf16.msra.mxu0 %v1931
    %2645 = vmatprep.subr.bf16.mxu0 0
    %2646 = vmatpush1.bf16.msra.mxu0 %v1930
    %2647 = vmatprep.subr.bf16.mxu0 0
    %2648 = vmatpush1.bf16.msra.mxu0 %v1929
    %2649 = vmatprep.subr.bf16.mxu0 0
    %2650 = vmatpush2.bf16.msra.mxu0 %v1944
    %2651 = vmatprep.subr.bf16.mxu0 0
    %2652 = vmatpush2.bf16.msra.mxu0 %v1943
    %2653 = vmatprep.subr.bf16.mxu0 0
    %2654 = vmatpush2.bf16.msra.mxu0 %v1942
    %2655 = vmatprep.subr.bf16.mxu0 0
    %2656 = vmatpush2.bf16.msra.mxu0 %v1941
    %2657 = vmatprep.subr.bf16.mxu0 0
    %2658 = vmatpush2.bf16.msra.mxu0 %v1940
    %2659 = vmatprep.subr.bf16.mxu0 0
    %2660 = vmatpush2.bf16.msra.mxu0 %v1939
    %2661 = vmatprep.subr.bf16.mxu0 0
    %2662 = vmatpush2.bf16.msra.mxu0 %v1938
    %2663 = vmatprep.subr.bf16.mxu0 0
    %2664 = vmatpush2.bf16.msra.mxu0 %v1937
    %2665 = vmatprep.mubr.bf16.mxu0 %v684
    %2666 = vmatmul.mubr.bf16.gmra.mxu0 %v670
    %v2667 = vpop.f32.mrf.mxu0
    %v2668 = vadd.f32 %v2628, %v2667
    %v2669 = vpop.f32.mrf.mxu0
    %v2670 = vpop.f32.mrf.mxu0
    %v2671 = vpop.f32.mrf.mxu0
    %2672 = vdwg.mxu0
    %2673 = vmatprep.subr.bf16.mxu0 0
    %2674 = vmatpush1.bf16.msra.mxu0 %v1952
    %2675 = vmatprep.subr.bf16.mxu0 0
    %2676 = vmatpush1.bf16.msra.mxu0 %v1951
    %2677 = vmatprep.subr.bf16.mxu0 0
    %2678 = vmatpush1.bf16.msra.mxu0 %v1950
    %2679 = vmatprep.subr.bf16.mxu0 0
    %2680 = vmatpush1.bf16.msra.mxu0 %v1949
    %2681 = vmatprep.subr.bf16.mxu0 0
    %2682 = vmatpush1.bf16.msra.mxu0 %v1948
    %2683 = vmatprep.subr.bf16.mxu0 0
    %2684 = vmatpush1.bf16.msra.mxu0 %v1947
    %2685 = vmatprep.subr.bf16.mxu0 0
    %2686 = vmatpush1.bf16.msra.mxu0 %v1946
    %2687 = vmatprep.subr.bf16.mxu0 0
    %2688 = vmatpush1.bf16.msra.mxu0 %v1945
    %2689 = vmatprep.subr.bf16.mxu0 0
    %2690 = vmatpush2.bf16.msra.mxu0 %v1960
    %2691 = vmatprep.subr.bf16.mxu0 0
    %2692 = vmatpush2.bf16.msra.mxu0 %v1959
    %2693 = vmatprep.subr.bf16.mxu0 0
    %2694 = vmatpush2.bf16.msra.mxu0 %v1958
    %2695 = vmatprep.subr.bf16.mxu0 0
    %2696 = vmatpush2.bf16.msra.mxu0 %v1957
    %2697 = vmatprep.subr.bf16.mxu0 0
    %2698 = vmatpush2.bf16.msra.mxu0 %v1956
    %2699 = vmatprep.subr.bf16.mxu0 0
    %2700 = vmatpush2.bf16.msra.mxu0 %v1955
    %2701 = vmatprep.subr.bf16.mxu0 0
    %2702 = vmatpush2.bf16.msra.mxu0 %v1954
    %2703 = vmatprep.subr.bf16.mxu0 0
    %2704 = vmatpush2.bf16.msra.mxu0 %v1953
    %2705 = vmatprep.mubr.bf16.mxu0 %v694
    %2706 = vmatmul.mubr.bf16.gmra.mxu0 %v692
    %v2707 = vpop.f32.mrf.mxu0
    %v2708 = vadd.f32 %v2668, %v2707
    %v2709 = vpop.f32.mrf.mxu0
    %v2710 = vpop.f32.mrf.mxu0
    %v2711 = vpop.f32.mrf.mxu0
    %2712 = vdwg.mxu0
    %2713 = vmatprep.subr.bf16.mxu0 0
    %2714 = vmatpush1.bf16.msra.mxu0 %v1968
    %2715 = vmatprep.subr.bf16.mxu0 0
    %2716 = vmatpush1.bf16.msra.mxu0 %v1967
    %2717 = vmatprep.subr.bf16.mxu0 0
    %2718 = vmatpush1.bf16.msra.mxu0 %v1966
    %2719 = vmatprep.subr.bf16.mxu0 0
    %2720 = vmatpush1.bf16.msra.mxu0 %v1965
    %2721 = vmatprep.subr.bf16.mxu0 0
    %2722 = vmatpush1.bf16.msra.mxu0 %v1964
    %2723 = vmatprep.subr.bf16.mxu0 0
    %2724 = vmatpush1.bf16.msra.mxu0 %v1963
    %2725 = vmatprep.subr.bf16.mxu0 0
    %2726 = vmatpush1.bf16.msra.mxu0 %v1962
    %2727 = vmatprep.subr.bf16.mxu0 0
    %2728 = vmatpush1.bf16.msra.mxu0 %v1961
    %2729 = vmatprep.subr.bf16.mxu0 0
    %2730 = vmatpush2.bf16.msra.mxu0 %v1976
    %2731 = vmatprep.subr.bf16.mxu0 0
    %2732 = vmatpush2.bf16.msra.mxu0 %v1975
    %2733 = vmatprep.subr.bf16.mxu0 0
    %2734 = vmatpush2.bf16.msra.mxu0 %v1974
    %2735 = vmatprep.subr.bf16.mxu0 0
    %2736 = vmatpush2.bf16.msra.mxu0 %v1973
    %2737 = vmatprep.subr.bf16.mxu0 0
    %2738 = vmatpush2.bf16.msra.mxu0 %v1972
    %2739 = vmatprep.subr.bf16.mxu0 0
    %2740 = vmatpush2.bf16.msra.mxu0 %v1971
    %2741 = vmatprep.subr.bf16.mxu0 0
    %2742 = vmatpush2.bf16.msra.mxu0 %v1970
    %2743 = vmatprep.subr.bf16.mxu0 0
    %2744 = vmatpush2.bf16.msra.mxu0 %v1969
    %2745 = vmatprep.mubr.bf16.mxu0 %v691
    %2746 = vmatmul.mubr.bf16.gmra.mxu0 %v677
    %v2747 = vpop.f32.mrf.mxu0
    %v2748 = vadd.f32 %v2708, %v2747
    %v2749 = vpop.f32.mrf.mxu0
    %v2750 = vpop.f32.mrf.mxu0
    %v2751 = vpop.f32.mrf.mxu0
    %2752 = vdwg.mxu0
    %2753 = vmatprep.subr.bf16.mxu0 0
    %2754 = vmatpush1.bf16.msra.mxu0 %v1984
    %2755 = vmatprep.subr.bf16.mxu0 0
    %2756 = vmatpush1.bf16.msra.mxu0 %v1983
    %2757 = vmatprep.subr.bf16.mxu0 0
    %2758 = vmatpush1.bf16.msra.mxu0 %v1982
    %2759 = vmatprep.subr.bf16.mxu0 0
    %2760 = vmatpush1.bf16.msra.mxu0 %v1981
    %2761 = vmatprep.subr.bf16.mxu0 0
    %2762 = vmatpush1.bf16.msra.mxu0 %v1980
    %2763 = vmatprep.subr.bf16.mxu0 0
    %2764 = vmatpush1.bf16.msra.mxu0 %v1979
    %2765 = vmatprep.subr.bf16.mxu0 0
    %2766 = vmatpush1.bf16.msra.mxu0 %v1978
    %2767 = vmatprep.subr.bf16.mxu0 0
    %2768 = vmatpush1.bf16.msra.mxu0 %v1977
    %2769 = vmatprep.subr.bf16.mxu0 0
    %2770 = vmatpush2.bf16.msra.mxu0 %v1992
    %2771 = vmatprep.subr.bf16.mxu0 0
    %2772 = vmatpush2.bf16.msra.mxu0 %v1991
    %2773 = vmatprep.subr.bf16.mxu0 0
    %2774 = vmatpush2.bf16.msra.mxu0 %v1990
    %2775 = vmatprep.subr.bf16.mxu0 0
    %2776 = vmatpush2.bf16.msra.mxu0 %v1989
    %2777 = vmatprep.subr.bf16.mxu0 0
    %2778 = vmatpush2.bf16.msra.mxu0 %v1988
    %2779 = vmatprep.subr.bf16.mxu0 0
    %2780 = vmatpush2.bf16.msra.mxu0 %v1987
    %2781 = vmatprep.subr.bf16.mxu0 0
    %2782 = vmatpush2.bf16.msra.mxu0 %v1986
    %2783 = vmatprep.subr.bf16.mxu0 0
    %2784 = vmatpush2.bf16.msra.mxu0 %v1985
    %2785 = vmatprep.mubr.bf16.mxu0 %v695
    %2786 = vmatmul.mubr.bf16.gmra.mxu0 %v693
    %v2787 = vpop.f32.mrf.mxu0
    %v2788 = vadd.f32 %v2748, %v2787
    %v2789 = vpop.f32.mrf.mxu0
    %v2790 = vpop.f32.mrf.mxu0
    %v2791 = vpop.f32.mrf.mxu0
    %2792 = vdwg.mxu0
    %2793 = vmatprep.subr.bf16.mxu0 0
    %2794 = vmatpush1.bf16.msra.mxu0 %v2000
    %2795 = vmatprep.subr.bf16.mxu0 0
    %2796 = vmatpush1.bf16.msra.mxu0 %v1999
    %2797 = vmatprep.subr.bf16.mxu0 0
    %2798 = vmatpush1.bf16.msra.mxu0 %v1998
    %2799 = vmatprep.subr.bf16.mxu0 0
    %2800 = vmatpush1.bf16.msra.mxu0 %v1997
    %2801 = vmatprep.subr.bf16.mxu0 0
    %2802 = vmatpush1.bf16.msra.mxu0 %v1996
    %2803 = vmatprep.subr.bf16.mxu0 0
    %2804 = vmatpush1.bf16.msra.mxu0 %v1995
    %2805 = vmatprep.subr.bf16.mxu0 0
    %2806 = vmatpush1.bf16.msra.mxu0 %v1994
    %2807 = vmatprep.subr.bf16.mxu0 0
    %2808 = vmatpush1.bf16.msra.mxu0 %v1993
    %2809 = vmatprep.subr.bf16.mxu0 0
    %2810 = vmatpush2.bf16.msra.mxu0 %v2008
    %2811 = vmatprep.subr.bf16.mxu0 0
    %2812 = vmatpush2.bf16.msra.mxu0 %v2007
    %2813 = vmatprep.subr.bf16.mxu0 0
    %2814 = vmatpush2.bf16.msra.mxu0 %v2006
    %2815 = vmatprep.subr.bf16.mxu0 0
    %2816 = vmatpush2.bf16.msra.mxu0 %v2005
    %2817 = vmatprep.subr.bf16.mxu0 0
    %2818 = vmatpush2.bf16.msra.mxu0 %v2004
    %2819 = vmatprep.subr.bf16.mxu0 0
    %2820 = vmatpush2.bf16.msra.mxu0 %v2003
    %2821 = vmatprep.subr.bf16.mxu0 0
    %2822 = vmatpush2.bf16.msra.mxu0 %v2002
    %2823 = vmatprep.subr.bf16.mxu0 0
    %2824 = vmatpush2.bf16.msra.mxu0 %v2001
    %2825 = vmatprep.mubr.bf16.mxu0 %v733
    %2826 = vmatmul.mubr.bf16.gmra.mxu0 %v719
    %v2827 = vpop.f32.mrf.mxu0
    %v2828 = vadd.f32 %v2788, %v2827
    %v2829 = vpop.f32.mrf.mxu0
    %v2830 = vpop.f32.mrf.mxu0
    %v2831 = vpop.f32.mrf.mxu0
    %2832 = vdwg.mxu0
    %2833 = vmatprep.subr.bf16.mxu0 0
    %2834 = vmatpush1.bf16.msra.mxu0 %v2016
    %2835 = vmatprep.subr.bf16.mxu0 0
    %2836 = vmatpush1.bf16.msra.mxu0 %v2015
    %2837 = vmatprep.subr.bf16.mxu0 0
    %2838 = vmatpush1.bf16.msra.mxu0 %v2014
    %2839 = vmatprep.subr.bf16.mxu0 0
    %2840 = vmatpush1.bf16.msra.mxu0 %v2013
    %2841 = vmatprep.subr.bf16.mxu0 0
    %2842 = vmatpush1.bf16.msra.mxu0 %v2012
    %2843 = vmatprep.subr.bf16.mxu0 0
    %2844 = vmatpush1.bf16.msra.mxu0 %v2011
    %2845 = vmatprep.subr.bf16.mxu0 0
    %2846 = vmatpush1.bf16.msra.mxu0 %v2010
    %2847 = vmatprep.subr.bf16.mxu0 0
    %2848 = vmatpush1.bf16.msra.mxu0 %v2009
    %2849 = vmatprep.subr.bf16.mxu0 0
    %2850 = vmatpush2.bf16.msra.mxu0 %v2024
    %2851 = vmatprep.subr.bf16.mxu0 0
    %2852 = vmatpush2.bf16.msra.mxu0 %v2023
    %2853 = vmatprep.subr.bf16.mxu0 0
    %2854 = vmatpush2.bf16.msra.mxu0 %v2022
    %2855 = vmatprep.subr.bf16.mxu0 0
    %2856 = vmatpush2.bf16.msra.mxu0 %v2021
    %2857 = vmatprep.subr.bf16.mxu0 0
    %2858 = vmatpush2.bf16.msra.mxu0 %v2020
    %2859 = vmatprep.subr.bf16.mxu0 0
    %2860 = vmatpush2.bf16.msra.mxu0 %v2019
    %2861 = vmatprep.subr.bf16.mxu0 0
    %2862 = vmatpush2.bf16.msra.mxu0 %v2018
    %2863 = vmatprep.subr.bf16.mxu0 0
    %2864 = vmatpush2.bf16.msra.mxu0 %v2017
    %2865 = vmatprep.mubr.bf16.mxu0 %v743
    %2866 = vmatmul.mubr.bf16.gmra.mxu0 %v741
    %v2867 = vpop.f32.mrf.mxu0
    %v2868 = vadd.f32 %v2828, %v2867
    %v2869 = vpop.f32.mrf.mxu0
    %v2870 = vpop.f32.mrf.mxu0
    %v2871 = vpop.f32.mrf.mxu0
    %2872 = vdwg.mxu0
    %2873 = vmatprep.subr.bf16.mxu0 0
    %2874 = vmatpush1.bf16.msra.mxu0 %v2032
    %2875 = vmatprep.subr.bf16.mxu0 0
    %2876 = vmatpush1.bf16.msra.mxu0 %v2031
    %2877 = vmatprep.subr.bf16.mxu0 0
    %2878 = vmatpush1.bf16.msra.mxu0 %v2030
    %2879 = vmatprep.subr.bf16.mxu0 0
    %2880 = vmatpush1.bf16.msra.mxu0 %v2029
    %2881 = vmatprep.subr.bf16.mxu0 0
    %2882 = vmatpush1.bf16.msra.mxu0 %v2028
    %2883 = vmatprep.subr.bf16.mxu0 0
    %2884 = vmatpush1.bf16.msra.mxu0 %v2027
    %2885 = vmatprep.subr.bf16.mxu0 0
    %2886 = vmatpush1.bf16.msra.mxu0 %v2026
    %2887 = vmatprep.subr.bf16.mxu0 0
    %2888 = vmatpush1.bf16.msra.mxu0 %v2025
    %2889 = vmatprep.subr.bf16.mxu0 0
    %2890 = vmatpush2.bf16.msra.mxu0 %v2040
    %2891 = vmatprep.subr.bf16.mxu0 0
    %2892 = vmatpush2.bf16.msra.mxu0 %v2039
    %2893 = vmatprep.subr.bf16.mxu0 0
    %2894 = vmatpush2.bf16.msra.mxu0 %v2038
    %2895 = vmatprep.subr.bf16.mxu0 0
    %2896 = vmatpush2.bf16.msra.mxu0 %v2037
    %2897 = vmatprep.subr.bf16.mxu0 0
    %2898 = vmatpush2.bf16.msra.mxu0 %v2036
    %2899 = vmatprep.subr.bf16.mxu0 0
    %2900 = vmatpush2.bf16.msra.mxu0 %v2035
    %2901 = vmatprep.subr.bf16.mxu0 0
    %2902 = vmatpush2.bf16.msra.mxu0 %v2034
    %2903 = vmatprep.subr.bf16.mxu0 0
    %2904 = vmatpush2.bf16.msra.mxu0 %v2033
    %2905 = vmatprep.mubr.bf16.mxu0 %v740
    %2906 = vmatmul.mubr.bf16.gmra.mxu0 %v726
    %v2907 = vpop.f32.mrf.mxu0
    %v2908 = vadd.f32 %v2868, %v2907
    %v2909 = vpop.f32.mrf.mxu0
    %v2910 = vpop.f32.mrf.mxu0
    %v2911 = vpop.f32.mrf.mxu0
    %2912 = vdwg.mxu0
    %2913 = vmatprep.subr.bf16.mxu0 0
    %2914 = vmatpush1.bf16.msra.mxu0 %v2048
    %2915 = vmatprep.subr.bf16.mxu0 0
    %2916 = vmatpush1.bf16.msra.mxu0 %v2047
    %2917 = vmatprep.subr.bf16.mxu0 0
    %2918 = vmatpush1.bf16.msra.mxu0 %v2046
    %2919 = vmatprep.subr.bf16.mxu0 0
    %2920 = vmatpush1.bf16.msra.mxu0 %v2045
    %2921 = vmatprep.subr.bf16.mxu0 0
    %2922 = vmatpush1.bf16.msra.mxu0 %v2044
    %2923 = vmatprep.subr.bf16.mxu0 0
    %2924 = vmatpush1.bf16.msra.mxu0 %v2043
    %2925 = vmatprep.subr.bf16.mxu0 0
    %2926 = vmatpush1.bf16.msra.mxu0 %v2042
    %2927 = vmatprep.subr.bf16.mxu0 0
    %2928 = vmatpush1.bf16.msra.mxu0 %v2041
    %2929 = vmatprep.subr.bf16.mxu0 0
    %2930 = vmatpush2.bf16.msra.mxu0 %v2056
    %2931 = vmatprep.subr.bf16.mxu0 0
    %2932 = vmatpush2.bf16.msra.mxu0 %v2055
    %2933 = vmatprep.subr.bf16.mxu0 0
    %2934 = vmatpush2.bf16.msra.mxu0 %v2054
    %2935 = vmatprep.subr.bf16.mxu0 0
    %2936 = vmatpush2.bf16.msra.mxu0 %v2053
    %2937 = vmatprep.subr.bf16.mxu0 0
    %2938 = vmatpush2.bf16.msra.mxu0 %v2052
    %2939 = vmatprep.subr.bf16.mxu0 0
    %2940 = vmatpush2.bf16.msra.mxu0 %v2051
    %2941 = vmatprep.subr.bf16.mxu0 0
    %2942 = vmatpush2.bf16.msra.mxu0 %v2050
    %2943 = vmatprep.subr.bf16.mxu0 0
    %2944 = vmatpush2.bf16.msra.mxu0 %v2049
    %2945 = vmatprep.mubr.bf16.mxu0 %v744
    %2946 = vmatmul.mubr.bf16.gmra.mxu0 %v742
    %v2947 = vpop.f32.mrf.mxu0
    %v2948 = vadd.f32 %v2908, %v2947
    %v2949 = vpop.f32.mrf.mxu0
    %v2950 = vpop.f32.mrf.mxu0
    %v2951 = vpop.f32.mrf.mxu0
    %2952 = vdwg.mxu0
    %v2953 = vmax.f32 %v2948, 0.0
    %v2954 = vld [vmem:[%s3] sm:$0xff]
    %v2955 = vld [vmem:[%s3 + $0x8] sm:$0xff]
    %v2956 = vld [vmem:[%s3 + $0x10] sm:$0xff]
    %v2957 = vld [vmem:[%s3 + $0x18] sm:$0xff]
    %v2958 = vld [vmem:[%s3 + $0x20] sm:$0xff]
    %v2959 = vld [vmem:[%s3 + $0x28] sm:$0xff]
    %v2960 = vld [vmem:[%s3 + $0x30] sm:$0xff]
    %v2961 = vld [vmem:[%s3 + $0x38] sm:$0xff]
    %v2962 = vld [vmem:[%s3 + $0x40] sm:$0xff]
    %v2963 = vld [vmem:[%s3 + $0x48] sm:$0xff]
    %v2964 = vld [vmem:[%s3 + $0x50] sm:$0xff]
    %v2965 = vld [vmem:[%s3 + $0x58] sm:$0xff]
    %v2966 = vld [vmem:[%s3 + $0x60] sm:$0xff]
    %v2967 = vld [vmem:[%s3 + $0x68] sm:$0xff]
    %v2968 = vld [vmem:[%s3 + $0x70] sm:$0xff]
    %v2969 = vld [vmem:[%s3 + $0x78] sm:$0xff]
    %v2970 = vld [vmem:[%s4] sm:$0x1]
    %v2972 = vlaneseq
    %v2973 = vshrl.u32 %v2972, 7
    %v2974 = vsub.s32 0, %v2973
    %v2975 = vrot.slane %v2970, %v2974
    %2977 = vmatprep.subr.mxu0 0.0
    %2978 = vmatpush1.msra.mxu0 %v2969
    %2979 = vmatprep.subr.mxu0 0.0
    %2980 = vmatpush1.msra.mxu0 %v2968
    %2981 = vmatprep.subr.mxu0 0.0
    %2982 = vmatpush1.msra.mxu0 %v2967
    %2983 = vmatprep.subr.mxu0 0.0
    %2984 = vmatpush1.msra.mxu0 %v2966
    %2985 = vmatprep.subr.mxu0 0.0
    %2986 = vmatpush1.msra.mxu0 %v2965
    %2987 = vmatprep.subr.mxu0 0.0
    %2988 = vmatpush1.msra.mxu0 %v2964
    %2989 = vmatprep.subr.mxu0 0.0
    %2990 = vmatpush1.msra.mxu0 %v2963
    %2991 = vmatprep.subr.mxu0 0.0
    %2992 = vmatpush1.msra.mxu0 %v2962
    %2993 = vmatprep.subr.mxu0 0.0
    %2994 = vmatpush1.msra.mxu0 %v2961
    %2995 = vmatprep.subr.mxu0 0.0
    %2996 = vmatpush1.msra.mxu0 %v2960
    %2997 = vmatprep.subr.mxu0 0.0
    %2998 = vmatpush1.msra.mxu0 %v2959
    %2999 = vmatprep.subr.mxu0 0.0
    %3000 = vmatpush1.msra.mxu0 %v2958
    %3001 = vmatprep.subr.mxu0 0.0
    %3002 = vmatpush1.msra.mxu0 %v2957
    %3003 = vmatprep.subr.mxu0 0.0
    %3004 = vmatpush1.msra.mxu0 %v2956
    %3005 = vmatprep.subr.mxu0 0.0
    %3006 = vmatpush1.msra.mxu0 %v2955
    %3007 = vmatprep.subr.mxu0 0.0
    %3008 = vmatpush1.msra.mxu0 %v2954
    %3009 = vmatprep.subr.mxu0 0.0
    %3010 = vmatpush2.msra.mxu0 0.0
    %3011 = vmatprep.subr.mxu0 0.0
    %3012 = vmatpush2.msra.mxu0 0.0
    %3013 = vmatprep.subr.mxu0 0.0
    %3014 = vmatpush2.msra.mxu0 0.0
    %3015 = vmatprep.subr.mxu0 0.0
    %3016 = vmatpush2.msra.mxu0 0.0
    %3017 = vmatprep.subr.mxu0 0.0
    %3018 = vmatpush2.msra.mxu0 0.0
    %3019 = vmatprep.subr.mxu0 0.0
    %3020 = vmatpush2.msra.mxu0 0.0
    %3021 = vmatprep.subr.mxu0 0.0
    %3022 = vmatpush2.msra.mxu0 0.0
    %3023 = vmatprep.subr.mxu0 0.0
    %3024 = vmatpush2.msra.mxu0 0.0
    %3025 = vmatprep.subr.mxu0 0.0
    %3026 = vmatpush2.msra.mxu0 0.0
    %3027 = vmatprep.subr.mxu0 0.0
    %3028 = vmatpush2.msra.mxu0 0.0
    %3029 = vmatprep.subr.mxu0 0.0
    %3030 = vmatpush2.msra.mxu0 0.0
    %3031 = vmatprep.subr.mxu0 0.0
    %3032 = vmatpush2.msra.mxu0 0.0
    %3033 = vmatprep.subr.mxu0 0.0
    %3034 = vmatpush2.msra.mxu0 0.0
    %3035 = vmatprep.subr.mxu0 0.0
    %3036 = vmatpush2.msra.mxu0 0.0
    %3037 = vmatprep.subr.mxu0 0.0
    %3038 = vmatpush2.msra.mxu0 0.0
    %3039 = vmatprep.subr.mxu0 0.0
    %3040 = vmatpush2.msra.mxu0 0.0
    %3041 = vmatprep.mubr.f32.mxu0 0.0
    %3042 = vmatmul.mubr.f32.gmra.mxu0 %v2953
    %v3043 = vpop.f32.mrf.mxu0
    %v3044 = vadd.f32 %v2975, %v3043
    %v3045 = vpop.f32.mrf.mxu0
    %3046 = vdwg.mxu0
    %3047 = vst [vmem:[#allocation2] sm:$0x3] %v3044
    // Predicated region
    $region22: #{cnn_forward.5} parent=1 // pred_check
      _
    $region23: #{cnn_forward.5} parent=1 // pred_check_branch
      %3049 = sbr.rel (0) target = $region25
    $region24: #{cnn_forward.5} parent=1 // pred_region
      %s3051 = ssub.s32 32, 32
      %3052 = vsyncadd [#allocation3], %s3051
      %s3054 = sshll.u32 [#allocation2], 4
      %s3055 = int_to_ptr.vmem [resolvable:$true] %s3054
      %3057 = dma.vmem_to_hbm [thread:$0]  %s3055, 32, %s5, [#allocation3]
    $region25: #{cnn_forward.5} parent=1 // pred_fallthru
      _
    // Predicated region
    $region26: #{cnn_forward.5} parent=1 // pred_check
      _
    $region27: #{cnn_forward.5} parent=1 // pred_check_branch
      %3059 = sbr.rel (0) target = $region29
    $region28: #{cnn_forward.5} parent=1 // pred_region
      %3060 = dma.done [#allocation3], 32
    $region29: #{cnn_forward.5} parent=1 // pred_fallthru
      _
    %3061 = vsyncpa [#allocation3], 1

// kernel: cnn_forward.4
$region0: #{cnn_forward.4}
  #allocation0 [shape = 'u32[]', space=smem, size = 0x4, offset = 0x4, fixed_abs, tag = 'smem constant byte address 0x4 - core index']
  #allocation1 [shape = 'u32[144,128]{1,0:T(1,128)}', space=vmem, size = 0x12000, scoped, tag = 'internal scratch']
  %s0 = inlined_call_operand.vmem [shape: bf16[16,512], index: 0, kind: input, shape index: {}]
  %s1 = inlined_call_operand.vmem [shape: bf16[16,512], index: 1, kind: input, shape index: {}]
  %s2 = inlined_call_operand.hbm [shape: bf16[3,512,1024], index: 2, kind: input, shape index: {}]
  %s3 = inlined_call_operand.hbm [shape: f32[1,512], index: 3, kind: input, shape index: {}]
  %s4 = inlined_call_operand.vmem [shape: bf16[16,512], index: 4, kind: output, shape index: {}]
  %s5 = sld [smem:[#allocation0]]
  $region57: #{cnn_forward.4} parent=0
    _
  %s7 = ssub.s32 1, %s5
  %s8 = scalar_select 0, %s7, %s5
  $region1: #{cnn_forward.4} parent=0
    #allocation2 [shape = 'u8[3145728]{0}', space=vmem, size = 0x300000, scoped, tag = 'input window, operand 2, single buffered']
    #allocation3 [shape = 's32[2]{0}', space=sflag, size = 0x8, scoped, tag = 'scoped memory for cnn_forward.4']
    #allocation4 [shape = 'u8[2048]{0}', space=vmem, size = 0x800, scoped, tag = 'input window, operand 3, single buffered']
    #allocation5 [shape = 's32[1]{0}', space=sflag, size = 0x4, scoped, tag = 'scoped memory for cnn_forward.4']
    %9 = vsyncpa [#allocation3], 0
    %10 = vsyncpa [#allocation5], 0
    loop: start=0, step=1, limit=4
    $region2: #{cnn_forward.4} parent=1 // loop_pre_header
      _
    $region3: #{cnn_forward.4} parent=1 // loop_header
      %s12 = sphi 0, %s16
      %p13 = scmp.ge.s32.totalorder %s12, 4
      %s22 = sphi 0, %s24
      %s25 = sphi 0, %s22
      %s26 = sphi 0, %s25
      %s42 = sphi 0, %s26
      %s48 = sphi 0, %s50
      %s51 = sphi 0, %s48
      %s52 = sphi 0, %s51
      %s68 = sphi 0, %s52
      %s72 = sphi 0, %s72
      %s74 = sphi 0, %s72
      %s75 = sphi 0, %s74
      %s89 = sphi 0, %s75
      %s93 = sphi 0, %s93
      %s95 = sphi 0, %s93
      %s96 = sphi 0, %s95
      %s110 = sphi 0, %s96
      %s116 = sphi 0, %s118
      %s119 = sphi 0, %s116
      %s120 = sphi 0, %s119
      %s136 = sphi 0, %s120
    $region4: #{cnn_forward.4} parent=1 // loop_header_branch
      %15 = sbr.rel (%p13) target = $region8
    $region5: #{cnn_forward.4} parent=1 // loop_body
      %s17 = ssub.s32 %s12, 1
      %s18 = ssub.s32 %s12, 2
      %s19 = sadd.s32 %s12, 1
      %s20 = ssub.s32 %s12, %s19
      %p21 = scmp.eq.s32.totalorder %s20, 0
      %s23 = sadd.s32 %s22, 1
      %s24 = scalar_select %p21, %s22, %s23
      %p27 = pneg %p21
      %p28 = scmp.eq.s32.totalorder %s12, 1
      %p29 = por %p27, %p28
      %p30 = scmp.ne.s32.totalorder %s22, %s25
      %p31 = scmp.eq.s32.totalorder %s12, 0
      %p32 = por %p30, %p31
      %p33 = scmp.ne.s32.totalorder %s22, %s25
      %p34 = scmp.eq.s32.totalorder %s17, 1
      %p35 = por %p33, %p34
      %p36 = scmp.ne.s32.totalorder %s25, %s26
      %p37 = scmp.eq.s32.totalorder %s17, 0
      %p38 = por %p36, %p37
      %p39 = scmp.ne.s32.totalorder %s25, %s26
      %p40 = scmp.eq.s32.totalorder %s18, 1
      %p41 = por %p39, %p40
      %p43 = scmp.ne.s32.totalorder %s26, %s42
      %p44 = scmp.eq.s32.totalorder %s18, 0
      %p45 = por %p43, %p44
      %s46 = ssub.s32 %s12, %s19
      %p47 = scmp.eq.s32.totalorder %s46, 0
      %s49 = sadd.s32 %s48, 1
      %s50 = scalar_select %p47, %s48, %s49
      %p53 = pneg %p47
      %p54 = scmp.eq.s32.totalorder %s12, 1
      %p55 = por %p53, %p54
      %p56 = scmp.ne.s32.totalorder %s48, %s51
      %p57 = scmp.eq.s32.totalorder %s12, 0
      %p58 = por %p56, %p57
      %p59 = scmp.ne.s32.totalorder %s48, %s51
      %p60 = scmp.eq.s32.totalorder %s17, 1
      %p61 = por %p59, %p60
      %p62 = scmp.ne.s32.totalorder %s51, %s52
      %p63 = scmp.eq.s32.totalorder %s17, 0
      %p64 = por %p62, %p63
      %p65 = scmp.ne.s32.totalorder %s51, %s52
      %p66 = scmp.eq.s32.totalorder %s18, 1
      %p67 = por %p65, %p66
      %p69 = scmp.ne.s32.totalorder %s52, %s68
      %p70 = scmp.eq.s32.totalorder %s18, 0
      %p71 = por %p69, %p70
      %s73 = sadd.s32 %s72, 1
      %p76 = scmp.eq.s32.totalorder %s12, 1
      %p77 = scmp.ne.s32.totalorder %s72, %s74
      %p78 = scmp.eq.s32.totalorder %s12, 0
      %p79 = por %p77, %p78
      %p80 = scmp.ne.s32.totalorder %s72, %s74
      %p81 = scmp.eq.s32.totalorder %s17, 1
      %p82 = por %p80, %p81
      %p83 = scmp.ne.s32.totalorder %s74, %s75
      %p84 = scmp.eq.s32.totalorder %s17, 0
      %p85 = por %p83, %p84
      %p86 = scmp.ne.s32.totalorder %s74, %s75
      %p87 = scmp.eq.s32.totalorder %s18, 1
      %p88 = por %p86, %p87
      %p90 = scmp.ne.s32.totalorder %s75, %s89
      %p91 = scmp.eq.s32.totalorder %s18, 0
      %p92 = por %p90, %p91
      %s94 = sadd.s32 %s93, 1
      %p97 = scmp.eq.s32.totalorder %s12, 1
      %p98 = scmp.ne.s32.totalorder %s93, %s95
      %p99 = scmp.eq.s32.totalorder %s12, 0
      %p100 = por %p98, %p99
      %p101 = scmp.ne.s32.totalorder %s93, %s95
      %p102 = scmp.eq.s32.totalorder %s17, 1
      %p103 = por %p101, %p102
      %p104 = scmp.ne.s32.totalorder %s95, %s96
      %p105 = scmp.eq.s32.totalorder %s17, 0
      %p106 = por %p104, %p105
      %p107 = scmp.ne.s32.totalorder %s95, %s96
      %p108 = scmp.eq.s32.totalorder %s18, 1
      %p109 = por %p107, %p108
      %p111 = scmp.ne.s32.totalorder %s96, %s110
      %p112 = scmp.eq.s32.totalorder %s18, 0
      %p113 = por %p111, %p112
      %s114 = ssub.s32 %s12, %s19
      %p115 = scmp.eq.s32.totalorder %s114, 0
      %s117 = sadd.s32 %s116, 1
      %s118 = scalar_select %p115, %s116, %s117
      %p121 = pneg %p115
      %p122 = scmp.eq.s32.totalorder %s12, 1
      %p123 = por %p121, %p122
      %p124 = scmp.ne.s32.totalorder %s116, %s119
      %p125 = scmp.eq.s32.totalorder %s12, 0
      %p126 = por %p124, %p125
      %p127 = scmp.ne.s32.totalorder %s116, %s119
      %p128 = scmp.eq.s32.totalorder %s17, 1
      %p129 = por %p127, %p128
      %p130 = scmp.ne.s32.totalorder %s119, %s120
      %p131 = scmp.eq.s32.totalorder %s17, 0
      %p132 = por %p130, %p131
      %p133 = scmp.ne.s32.totalorder %s119, %s120
      %p134 = scmp.eq.s32.totalorder %s18, 1
      %p135 = por %p133, %p134
      %p137 = scmp.ne.s32.totalorder %s120, %s136
      %p138 = scmp.eq.s32.totalorder %s18, 0
      %p139 = por %p137, %p138
      %p140 = scmp.le.s32.totalorder 1, %s12
      %p141 = scmp.lt.s32.totalorder %s12, 3
      %p142 = pnand %p140, %p141
      %p143 = pneg %p142
      // Predicated region
      $region9: #{cnn_forward.4} parent=5 // pred_check
        _
      $region10: #{cnn_forward.4} parent=5 // pred_check_branch
        %145 = sbr.rel (%p142) target = $region12
      $region11: #{cnn_forward.4} parent=5 // pred_region
        %s146 = ssub.s32 %s12, 1
        // Predicated region
        $region13: #{cnn_forward.4} parent=11 // pred_check
          %p147 = pneg %p85
        $region14: #{cnn_forward.4} parent=11 // pred_check_branch
          %149 = sbr.rel (%p147) target = $region16
        $region15: #{cnn_forward.4} parent=11 // pred_region
          %s151 = ssub.s32 98304, 98304
          %152 = vsyncadd [#allocation3], %s151
          %s153 = sshll.u32 [#allocation2], 4
          %s154 = int_to_ptr.vmem [resolvable:$true] %s153
          %159 = dma.hbm_to_vmem [thread:$0]  %s2, 98304, %s154, [#allocation3], 512, 512, 32
        $region16: #{cnn_forward.4} parent=11 // pred_fallthru
          _
        // Predicated region
        $region17: #{cnn_forward.4} parent=11 // pred_check
          %p160 = pneg %p106
        $region18: #{cnn_forward.4} parent=11 // pred_check_branch
          %162 = sbr.rel (%p160) target = $region20
        $region19: #{cnn_forward.4} parent=11 // pred_region
          %s164 = ssub.s32 64, 64
          %165 = vsyncadd [#allocation5], %s164
          %s167 = sshll.u32 [#allocation4], 4
          %s168 = int_to_ptr.vmem [resolvable:$true] %s167
          %170 = dma.hbm_to_vmem [thread:$0]  %s3, 64, %s168, [#allocation5]
        $region20: #{cnn_forward.4} parent=11 // pred_fallthru
          _
      $region12: #{cnn_forward.4} parent=5 // pred_fallthru
        _
      %p171 = scmp.lt.s32.totalorder %s12, 2
      // Predicated region
      $region21: #{cnn_forward.4} parent=5 // pred_check
        %p172 = pneg %p171
      $region22: #{cnn_forward.4} parent=5 // pred_check_branch
        %174 = sbr.rel (%p172) target = $region24
      $region23: #{cnn_forward.4} parent=5 // pred_region
        // Predicated region
        $region25: #{cnn_forward.4} parent=23 // pred_check
          %p175 = pneg %p32
        $region26: #{cnn_forward.4} parent=23 // pred_check_branch
          %177 = sbr.rel (%p175) target = $region28
        $region27: #{cnn_forward.4} parent=23 // pred_region
          %p178 = scmp.lt.s32.totalorder %s12, 1
          %s179 = scalar_select %p178, %s12, 1
          %s180 = smul.addr %s179, 4
          %s181 = smul.addr %s180, 4
          %s182 = scalar_lea.vmem %s0, %s181
        $region28: #{cnn_forward.4} parent=23 // pred_fallthru
          _
        // Predicated region
        $region29: #{cnn_forward.4} parent=23 // pred_check
          %p183 = pneg %p58
        $region30: #{cnn_forward.4} parent=23 // pred_check_branch
          %185 = sbr.rel (%p183) target = $region32
        $region31: #{cnn_forward.4} parent=23 // pred_region
          %p186 = scmp.lt.s32.totalorder %s12, 1
          %s187 = scalar_select %p186, %s12, 1
          %s188 = smul.addr %s187, 4
          %s189 = smul.addr %s188, 4
          %s190 = scalar_lea.vmem %s1, %s189
        $region32: #{cnn_forward.4} parent=23 // pred_fallthru
          _
      $region24: #{cnn_forward.4} parent=5 // pred_fallthru
        _
      %p191 = scmp.le.s32.totalorder 1, %s12
      %p192 = scmp.lt.s32.totalorder %s12, 3
      %p193 = pnand %p191, %p192
      %p194 = pneg %p193
      // Predicated region
      $region33: #{cnn_forward.4} parent=5 // pred_check
        _
      $region34: #{cnn_forward.4} parent=5 // pred_check_branch
        %196 = sbr.rel (%p193) target = $region36
      $region35: #{cnn_forward.4} parent=5 // pred_region
        %s197 = ssub.s32 %s12, 1
        // Predicated region
        $region37: #{cnn_forward.4} parent=35 // pred_check
          %p198 = pneg %p85
        $region38: #{cnn_forward.4} parent=35 // pred_check_branch
          %200 = sbr.rel (%p198) target = $region40
        $region39: #{cnn_forward.4} parent=35 // pred_region
          %201 = dma.done [#allocation3], 98304
        $region40: #{cnn_forward.4} parent=35 // pred_fallthru
          _
        // Predicated region
        $region41: #{cnn_forward.4} parent=35 // pred_check
          %p202 = pneg %p106
        $region42: #{cnn_forward.4} parent=35 // pred_check_branch
          %204 = sbr.rel (%p202) target = $region44
        $region43: #{cnn_forward.4} parent=35 // pred_region
          %205 = dma.done [#allocation5], 64
        $region44: #{cnn_forward.4} parent=35 // pred_fallthru
          _
        %p206 = scmp.lt.s32.totalorder %s17, 1
        %s207 = scalar_select %p206, %s17, 1
        %s208 = smul.addr %s207, 4
        %s209 = smul.addr %s208, 4
        %s210 = scalar_lea.vmem %s0, %s209
        %p211 = pneg %p38
        %p212 = pneg %p35
        %p213 = scmp.lt.s32.totalorder %s17, 1
        %s214 = scalar_select %p213, %s17, 1
        %s215 = smul.addr %s214, 4
        %s216 = smul.addr %s215, 4
        %s217 = scalar_lea.vmem %s1, %s216
        %p218 = pneg %p64
        %p219 = pneg %p61
        %p220 = pneg %p85
        %p221 = pneg %p82
        %p222 = pneg %p106
        %p223 = pneg %p103
        %p224 = pneg %p132
        %p225 = pneg %p129
        %p226 = scmp.lt.s32.totalorder %s17, 1
        %s227 = scalar_select %p226, %s17, 1
        %s228 = smul.addr %s227, 4
        %s229 = smul.addr %s228, 4
        %s230 = scalar_lea.vmem %s4, %s229
        %p231 = scmp.lt.s32.totalorder %s17, 1
        %s232 = scalar_select %p231, %s17, 1
        %s233 = smul.addr %s232, 4
        %s234 = smul.addr %s233, 4
        %s235 = scalar_lea.vmem %s0, %s234
        %p236 = scmp.lt.s32.totalorder %s17, 1
        %s237 = scalar_select %p236, %s17, 1
        %s238 = smul.addr %s237, 4
        %s239 = smul.addr %s238, 4
        %s240 = scalar_lea.vmem %s1, %s239
        %p241 = scmp.lt.s32.totalorder %s17, 1
        %s242 = scalar_select %p241, %s17, 1
        %s243 = smul.addr %s242, 4
        %s244 = smul.addr %s243, 4
        %s245 = scalar_lea.vmem %s4, %s244
        %v247 = vld [vmem:[%s235] sm:$0xff]
        %v248 = vld [vmem:[%s235 + $0x8] sm:$0xff]
        %v249 = vld [vmem:[%s240] sm:$0xff]
        %v250 = vld [vmem:[%s240 + $0x8] sm:$0xff]
        %v253 = vunpack.c.l.b16 %v247
        %v254 = vunpack.c.h.b16 %v247
        %v255 = vunpack.c.l.b16 %v248
        %v256 = vunpack.c.h.b16 %v248
        %v257 = vpack.c.b16 %v253, %v253
        %v258 = vpack.c.b16 %v254, %v254
        %v259 = vpack.c.b16 %v255, %v255
        %v260 = vpack.c.b16 %v256, %v256
        %v262 = vshrl.u32 %v257, 16
        %v264 = vshll.u32 %v257, 16
        %v266 = vrot.slane %v264, 1
        %v267 = vor.u32 %v262, %v266
        %v269 = vshrl.u32 %v258, 16
        %v271 = vshll.u32 %v258, 16
        %v273 = vrot.slane %v271, 1
        %v274 = vor.u32 %v269, %v273
        %v276 = vshrl.u32 %v259, 16
        %v278 = vshll.u32 %v259, 16
        %v280 = vrot.slane %v278, 1
        %v281 = vor.u32 %v276, %v280
        %v283 = vshrl.u32 %v260, 16
        %v285 = vshll.u32 %v260, 16
        %v287 = vrot.slane %v285, 1
        %v288 = vor.u32 %v283, %v287
        %vm293 = vcmask 1043456
        %vm294 = vsmask.f32 3328
        %vm295 = vmand %vm293, %vm294
        %v296 = vsel %vm295, %v267, 0
        %v297 = vsel %vm295, %v274, 0
        %v298 = vsel %vm295, %v281, 0
        %v299 = vsel %vm295, %v288, 0
        %v302 = vunpack.c.l.b16 %v249
        %v303 = vunpack.c.h.b16 %v249
        %v304 = vunpack.c.l.b16 %v250
        %v305 = vunpack.c.h.b16 %v250
        %v306 = vpack.c.b16 %v302, %v302
        %v307 = vpack.c.b16 %v303, %v303
        %v308 = vpack.c.b16 %v304, %v304
        %v309 = vpack.c.b16 %v305, %v305
        %v311 = vshrl.u32 %v306, 16
        %v313 = vshll.u32 %v306, 16
        %v315 = vrot.slane %v313, 1
        %v316 = vor.u32 %v311, %v315
        %v318 = vshrl.u32 %v307, 16
        %v320 = vshll.u32 %v307, 16
        %v322 = vrot.slane %v320, 1
        %v323 = vor.u32 %v318, %v322
        %v325 = vshrl.u32 %v308, 16
        %v327 = vshll.u32 %v308, 16
        %v329 = vrot.slane %v327, 1
        %v330 = vor.u32 %v325, %v329
        %v332 = vshrl.u32 %v309, 16
        %v334 = vshll.u32 %v309, 16
        %v336 = vrot.slane %v334, 1
        %v337 = vor.u32 %v332, %v336
        %v342 = vsel %vm295, %v316, 0
        %v343 = vsel %vm295, %v323, 0
        %v344 = vsel %vm295, %v330, 0
        %v345 = vsel %vm295, %v337, 0
        %v346 = vld [vmem:[#allocation2] sm:$0xff]
        %v347 = vld [vmem:[#allocation2 + $0x8] sm:$0xff]
        %v348 = vld [vmem:[#allocation2 + $0x10] sm:$0xff]
        %v349 = vld [vmem:[#allocation2 + $0x18] sm:$0xff]
        %v350 = vld [vmem:[#allocation2 + $0x20] sm:$0xff]
        %v351 = vld [vmem:[#allocation2 + $0x28] sm:$0xff]
        %v352 = vld [vmem:[#allocation2 + $0x30] sm:$0xff]
        %v353 = vld [vmem:[#allocation2 + $0x38] sm:$0xff]
        %v354 = vld [vmem:[#allocation2 + $0x40] sm:$0xff]
        %v355 = vld [vmem:[#allocation2 + $0x48] sm:$0xff]
        %v356 = vld [vmem:[#allocation2 + $0x50] sm:$0xff]
        %v357 = vld [vmem:[#allocation2 + $0x58] sm:$0xff]
        %v358 = vld [vmem:[#allocation2 + $0x60] sm:$0xff]
        %v359 = vld [vmem:[#allocation2 + $0x68] sm:$0xff]
        %v360 = vld [vmem:[#allocation2 + $0x70] sm:$0xff]
        %v361 = vld [vmem:[#allocation2 + $0x78] sm:$0xff]
        %v362 = vld [vmem:[#allocation2 + $0x80] sm:$0xff]
        %v363 = vld [vmem:[#allocation2 + $0x88] sm:$0xff]
        %v364 = vld [vmem:[#allocation2 + $0x90] sm:$0xff]
        %v365 = vld [vmem:[#allocation2 + $0x98] sm:$0xff]
        %v366 = vld [vmem:[#allocation2 + $0xa0] sm:$0xff]
        %v367 = vld [vmem:[#allocation2 + $0xa8] sm:$0xff]
        %v368 = vld [vmem:[#allocation2 + $0xb0] sm:$0xff]
        %v369 = vld [vmem:[#allocation2 + $0xb8] sm:$0xff]
        %v370 = vld [vmem:[#allocation2 + $0xc0] sm:$0xff]
        %v371 = vld [vmem:[#allocation2 + $0xc8] sm:$0xff]
        %v372 = vld [vmem:[#allocation2 + $0xd0] sm:$0xff]
        %v373 = vld [vmem:[#allocation2 + $0xd8] sm:$0xff]
        %v374 = vld [vmem:[#allocation2 + $0xe0] sm:$0xff]
        %v375 = vld [vmem:[#allocation2 + $0xe8] sm:$0xff]
        %v376 = vld [vmem:[#allocation2 + $0xf0] sm:$0xff]
        %v377 = vld [vmem:[#allocation2 + $0xf8] sm:$0xff]
        %v378 = vld [vmem:[#allocation2 + $0x100] sm:$0xff]
        %v379 = vld [vmem:[#allocation2 + $0x108] sm:$0xff]
        %v380 = vld [vmem:[#allocation2 + $0x110] sm:$0xff]
        %v381 = vld [vmem:[#allocation2 + $0x118] sm:$0xff]
        %v382 = vld [vmem:[#allocation2 + $0x120] sm:$0xff]
        %v383 = vld [vmem:[#allocation2 + $0x128] sm:$0xff]
        %v384 = vld [vmem:[#allocation2 + $0x130] sm:$0xff]
        %v385 = vld [vmem:[#allocation2 + $0x138] sm:$0xff]
        %v386 = vld [vmem:[#allocation2 + $0x140] sm:$0xff]
        %v387 = vld [vmem:[#allocation2 + $0x148] sm:$0xff]
        %v388 = vld [vmem:[#allocation2 + $0x150] sm:$0xff]
        %v389 = vld [vmem:[#allocation2 + $0x158] sm:$0xff]
        %v390 = vld [vmem:[#allocation2 + $0x160] sm:$0xff]
        %v391 = vld [vmem:[#allocation2 + $0x168] sm:$0xff]
        %v392 = vld [vmem:[#allocation2 + $0x170] sm:$0xff]
        %v393 = vld [vmem:[#allocation2 + $0x178] sm:$0xff]
        %v394 = vld [vmem:[#allocation2 + $0x180] sm:$0xff]
        %v395 = vld [vmem:[#allocation2 + $0x188] sm:$0xff]
        %v396 = vld [vmem:[#allocation2 + $0x190] sm:$0xff]
        %v397 = vld [vmem:[#allocation2 + $0x198] sm:$0xff]
        %v398 = vld [vmem:[#allocation2 + $0x1a0] sm:$0xff]
        %v399 = vld [vmem:[#allocation2 + $0x1a8] sm:$0xff]
        %v400 = vld [vmem:[#allocation2 + $0x1b0] sm:$0xff]
        %v401 = vld [vmem:[#allocation2 + $0x1b8] sm:$0xff]
        %v402 = vld [vmem:[#allocation2 + $0x1c0] sm:$0xff]
        %v403 = vld [vmem:[#allocation2 + $0x1c8] sm:$0xff]
        %v404 = vld [vmem:[#allocation2 + $0x1d0] sm:$0xff]
        %v405 = vld [vmem:[#allocation2 + $0x1d8] sm:$0xff]
        %v406 = vld [vmem:[#allocation2 + $0x1e0] sm:$0xff]
        %v407 = vld [vmem:[#allocation2 + $0x1e8] sm:$0xff]
        %v408 = vld [vmem:[#allocation2 + $0x1f0] sm:$0xff]
        %v409 = vld [vmem:[#allocation2 + $0x1f8] sm:$0xff]
        %v410 = vld [vmem:[#allocation2 + $0x200] sm:$0xff]
        %v411 = vld [vmem:[#allocation2 + $0x208] sm:$0xff]
        %v412 = vld [vmem:[#allocation2 + $0x210] sm:$0xff]
        %v413 = vld [vmem:[#allocation2 + $0x218] sm:$0xff]
        %v414 = vld [vmem:[#allocation2 + $0x220] sm:$0xff]
        %v415 = vld [vmem:[#allocation2 + $0x228] sm:$0xff]
        %v416 = vld [vmem:[#allocation2 + $0x230] sm:$0xff]
        %v417 = vld [vmem:[#allocation2 + $0x238] sm:$0xff]
        %v418 = vld [vmem:[#allocation2 + $0x240] sm:$0xff]
        %v419 = vld [vmem:[#allocation2 + $0x248] sm:$0xff]
        %v420 = vld [vmem:[#allocation2 + $0x250] sm:$0xff]
        %v421 = vld [vmem:[#allocation2 + $0x258] sm:$0xff]
        %v422 = vld [vmem:[#allocation2 + $0x260] sm:$0xff]
        %v423 = vld [vmem:[#allocation2 + $0x268] sm:$0xff]
        %v424 = vld [vmem:[#allocation2 + $0x270] sm:$0xff]
        %v425 = vld [vmem:[#allocation2 + $0x278] sm:$0xff]
        %v426 = vld [vmem:[#allocation2 + $0x280] sm:$0xff]
        %v427 = vld [vmem:[#allocation2 + $0x288] sm:$0xff]
        %v428 = vld [vmem:[#allocation2 + $0x290] sm:$0xff]
        %v429 = vld [vmem:[#allocation2 + $0x298] sm:$0xff]
        %v430 = vld [vmem:[#allocation2 + $0x2a0] sm:$0xff]
        %v431 = vld [vmem:[#allocation2 + $0x2a8] sm:$0xff]
        %v432 = vld [vmem:[#allocation2 + $0x2b0] sm:$0xff]
        %v433 = vld [vmem:[#allocation2 + $0x2b8] sm:$0xff]
        %v434 = vld [vmem:[#allocation2 + $0x2c0] sm:$0xff]
        %v435 = vld [vmem:[#allocation2 + $0x2c8] sm:$0xff]
        %v436 = vld [vmem:[#allocation2 + $0x2d0] sm:$0xff]
        %v437 = vld [vmem:[#allocation2 + $0x2d8] sm:$0xff]
        %v438 = vld [vmem:[#allocation2 + $0x2e0] sm:$0xff]
        %v439 = vld [vmem:[#allocation2 + $0x2e8] sm:$0xff]
        %v440 = vld [vmem:[#allocation2 + $0x2f0] sm:$0xff]
        %v441 = vld [vmem:[#allocation2 + $0x2f8] sm:$0xff]
        %v442 = vld [vmem:[#allocation2 + $0x300] sm:$0xff]
        %v443 = vld [vmem:[#allocation2 + $0x308] sm:$0xff]
        %v444 = vld [vmem:[#allocation2 + $0x310] sm:$0xff]
        %v445 = vld [vmem:[#allocation2 + $0x318] sm:$0xff]
        %v446 = vld [vmem:[#allocation2 + $0x320] sm:$0xff]
        %v447 = vld [vmem:[#allocation2 + $0x328] sm:$0xff]
        %v448 = vld [vmem:[#allocation2 + $0x330] sm:$0xff]
        %v449 = vld [vmem:[#allocation2 + $0x338] sm:$0xff]
        %v450 = vld [vmem:[#allocation2 + $0x340] sm:$0xff]
        %v451 = vld [vmem:[#allocation2 + $0x348] sm:$0xff]
        %v452 = vld [vmem:[#allocation2 + $0x350] sm:$0xff]
        %v453 = vld [vmem:[#allocation2 + $0x358] sm:$0xff]
        %v454 = vld [vmem:[#allocation2 + $0x360] sm:$0xff]
        %v455 = vld [vmem:[#allocation2 + $0x368] sm:$0xff]
        %v456 = vld [vmem:[#allocation2 + $0x370] sm:$0xff]
        %v457 = vld [vmem:[#allocation2 + $0x378] sm:$0xff]
        %v458 = vld [vmem:[#allocation2 + $0x380] sm:$0xff]
        %v459 = vld [vmem:[#allocation2 + $0x388] sm:$0xff]
        %v460 = vld [vmem:[#allocation2 + $0x390] sm:$0xff]
        %v461 = vld [vmem:[#allocation2 + $0x398] sm:$0xff]
        %v462 = vld [vmem:[#allocation2 + $0x3a0] sm:$0xff]
        %v463 = vld [vmem:[#allocation2 + $0x3a8] sm:$0xff]
        %v464 = vld [vmem:[#allocation2 + $0x3b0] sm:$0xff]
        %v465 = vld [vmem:[#allocation2 + $0x3b8] sm:$0xff]
        %v466 = vld [vmem:[#allocation2 + $0x3c0] sm:$0xff]
        %v467 = vld [vmem:[#allocation2 + $0x3c8] sm:$0xff]
        %v468 = vld [vmem:[#allocation2 + $0x3d0] sm:$0xff]
        %v469 = vld [vmem:[#allocation2 + $0x3d8] sm:$0xff]
        %v470 = vld [vmem:[#allocation2 + $0x3e0] sm:$0xff]
        %v471 = vld [vmem:[#allocation2 + $0x3e8] sm:$0xff]
        %v472 = vld [vmem:[#allocation2 + $0x3f0] sm:$0xff]
        %v473 = vld [vmem:[#allocation2 + $0x3f8] sm:$0xff]
        %v474 = vld [vmem:[#allocation2 + $0x400] sm:$0xff]
        %v475 = vld [vmem:[#allocation2 + $0x408] sm:$0xff]
        %v476 = vld [vmem:[#allocation2 + $0x410] sm:$0xff]
        %v477 = vld [vmem:[#allocation2 + $0x418] sm:$0xff]
        %v478 = vld [vmem:[#allocation2 + $0x420] sm:$0xff]
        %v479 = vld [vmem:[#allocation2 + $0x428] sm:$0xff]
        %v480 = vld [vmem:[#allocation2 + $0x430] sm:$0xff]
        %v481 = vld [vmem:[#allocation2 + $0x438] sm:$0xff]
        %v482 = vld [vmem:[#allocation2 + $0x440] sm:$0xff]
        %v483 = vld [vmem:[#allocation2 + $0x448] sm:$0xff]
        %v484 = vld [vmem:[#allocation2 + $0x450] sm:$0xff]
        %v485 = vld [vmem:[#allocation2 + $0x458] sm:$0xff]
        %v486 = vld [vmem:[#allocation2 + $0x460] sm:$0xff]
        %v487 = vld [vmem:[#allocation2 + $0x468] sm:$0xff]
        %v488 = vld [vmem:[#allocation2 + $0x470] sm:$0xff]
        %v489 = vld [vmem:[#allocation2 + $0x478] sm:$0xff]
        %v490 = vld [vmem:[#allocation2 + $0x480] sm:$0xff]
        %v491 = vld [vmem:[#allocation2 + $0x488] sm:$0xff]
        %v492 = vld [vmem:[#allocation2 + $0x490] sm:$0xff]
        %v493 = vld [vmem:[#allocation2 + $0x498] sm:$0xff]
        %v494 = vld [vmem:[#allocation2 + $0x4a0] sm:$0xff]
        %v495 = vld [vmem:[#allocation2 + $0x4a8] sm:$0xff]
        %v496 = vld [vmem:[#allocation2 + $0x4b0] sm:$0xff]
        %v497 = vld [vmem:[#allocation2 + $0x4b8] sm:$0xff]
        %v498 = vld [vmem:[#allocation2 + $0x4c0] sm:$0xff]
        %v499 = vld [vmem:[#allocation2 + $0x4c8] sm:$0xff]
        %v500 = vld [vmem:[#allocation2 + $0x4d0] sm:$0xff]
        %v501 = vld [vmem:[#allocation2 + $0x4d8] sm:$0xff]
        %v502 = vld [vmem:[#allocation2 + $0x4e0] sm:$0xff]
        %v503 = vld [vmem:[#allocation2 + $0x4e8] sm:$0xff]
        %v504 = vld [vmem:[#allocation2 + $0x4f0] sm:$0xff]
        %v505 = vld [vmem:[#allocation2 + $0x4f8] sm:$0xff]
        %v506 = vld [vmem:[#allocation2 + $0x500] sm:$0xff]
        %v507 = vld [vmem:[#allocation2 + $0x508] sm:$0xff]
        %v508 = vld [vmem:[#allocation2 + $0x510] sm:$0xff]
        %v509 = vld [vmem:[#allocation2 + $0x518] sm:$0xff]
        %v510 = vld [vmem:[#allocation2 + $0x520] sm:$0xff]
        %v511 = vld [vmem:[#allocation2 + $0x528] sm:$0xff]
        %v512 = vld [vmem:[#allocation2 + $0x530] sm:$0xff]
        %v513 = vld [vmem:[#allocation2 + $0x538] sm:$0xff]
        %v514 = vld [vmem:[#allocation2 + $0x540] sm:$0xff]
        %v515 = vld [vmem:[#allocation2 + $0x548] sm:$0xff]
        %v516 = vld [vmem:[#allocation2 + $0x550] sm:$0xff]
        %v517 = vld [vmem:[#allocation2 + $0x558] sm:$0xff]
        %v518 = vld [vmem:[#allocation2 + $0x560] sm:$0xff]
        %v519 = vld [vmem:[#allocation2 + $0x568] sm:$0xff]
        %v520 = vld [vmem:[#allocation2 + $0x570] sm:$0xff]
        %v521 = vld [vmem:[#allocation2 + $0x578] sm:$0xff]
        %v522 = vld [vmem:[#allocation2 + $0x580] sm:$0xff]
        %v523 = vld [vmem:[#allocation2 + $0x588] sm:$0xff]
        %v524 = vld [vmem:[#allocation2 + $0x590] sm:$0xff]
        %v525 = vld [vmem:[#allocation2 + $0x598] sm:$0xff]
        %v526 = vld [vmem:[#allocation2 + $0x5a0] sm:$0xff]
        %v527 = vld [vmem:[#allocation2 + $0x5a8] sm:$0xff]
        %v528 = vld [vmem:[#allocation2 + $0x5b0] sm:$0xff]
        %v529 = vld [vmem:[#allocation2 + $0x5b8] sm:$0xff]
        %v530 = vld [vmem:[#allocation2 + $0x5c0] sm:$0xff]
        %v531 = vld [vmem:[#allocation2 + $0x5c8] sm:$0xff]
        %v532 = vld [vmem:[#allocation2 + $0x5d0] sm:$0xff]
        %v533 = vld [vmem:[#allocation2 + $0x5d8] sm:$0xff]
        %v534 = vld [vmem:[#allocation2 + $0x5e0] sm:$0xff]
        %v535 = vld [vmem:[#allocation2 + $0x5e8] sm:$0xff]
        %v536 = vld [vmem:[#allocation2 + $0x5f0] sm:$0xff]
        %v537 = vld [vmem:[#allocation2 + $0x5f8] sm:$0xff]
        %v538 = vld [vmem:[#allocation2 + $0x600] sm:$0xff]
        %v539 = vld [vmem:[#allocation2 + $0x608] sm:$0xff]
        %v540 = vld [vmem:[#allocation2 + $0x610] sm:$0xff]
        %v541 = vld [vmem:[#allocation2 + $0x618] sm:$0xff]
        %v542 = vld [vmem:[#allocation2 + $0x620] sm:$0xff]
        %v543 = vld [vmem:[#allocation2 + $0x628] sm:$0xff]
        %v544 = vld [vmem:[#allocation2 + $0x630] sm:$0xff]
        %v545 = vld [vmem:[#allocation2 + $0x638] sm:$0xff]
        %v546 = vld [vmem:[#allocation2 + $0x640] sm:$0xff]
        %v547 = vld [vmem:[#allocation2 + $0x648] sm:$0xff]
        %v548 = vld [vmem:[#allocation2 + $0x650] sm:$0xff]
        %v549 = vld [vmem:[#allocation2 + $0x658] sm:$0xff]
        %v550 = vld [vmem:[#allocation2 + $0x660] sm:$0xff]
        %v551 = vld [vmem:[#allocation2 + $0x668] sm:$0xff]
        %v552 = vld [vmem:[#allocation2 + $0x670] sm:$0xff]
        %v553 = vld [vmem:[#allocation2 + $0x678] sm:$0xff]
        %v554 = vld [vmem:[#allocation2 + $0x680] sm:$0xff]
        %v555 = vld [vmem:[#allocation2 + $0x688] sm:$0xff]
        %v556 = vld [vmem:[#allocation2 + $0x690] sm:$0xff]
        %v557 = vld [vmem:[#allocation2 + $0x698] sm:$0xff]
        %v558 = vld [vmem:[#allocation2 + $0x6a0] sm:$0xff]
        %v559 = vld [vmem:[#allocation2 + $0x6a8] sm:$0xff]
        %v560 = vld [vmem:[#allocation2 + $0x6b0] sm:$0xff]
        %v561 = vld [vmem:[#allocation2 + $0x6b8] sm:$0xff]
        %v562 = vld [vmem:[#allocation2 + $0x6c0] sm:$0xff]
        %v563 = vld [vmem:[#allocation2 + $0x6c8] sm:$0xff]
        %v564 = vld [vmem:[#allocation2 + $0x6d0] sm:$0xff]
        %v565 = vld [vmem:[#allocation2 + $0x6d8] sm:$0xff]
        %v566 = vld [vmem:[#allocation2 + $0x6e0] sm:$0xff]
        %v567 = vld [vmem:[#allocation2 + $0x6e8] sm:$0xff]
        %v568 = vld [vmem:[#allocation2 + $0x6f0] sm:$0xff]
        %v569 = vld [vmem:[#allocation2 + $0x6f8] sm:$0xff]
        %v570 = vld [vmem:[#allocation2 + $0x700] sm:$0xff]
        %v571 = vld [vmem:[#allocation2 + $0x708] sm:$0xff]
        %v572 = vld [vmem:[#allocation2 + $0x710] sm:$0xff]
        %v573 = vld [vmem:[#allocation2 + $0x718] sm:$0xff]
        %v574 = vld [vmem:[#allocation2 + $0x720] sm:$0xff]
        %v575 = vld [vmem:[#allocation2 + $0x728] sm:$0xff]
        %v576 = vld [vmem:[#allocation2 + $0x730] sm:$0xff]
        %v577 = vld [vmem:[#allocation2 + $0x738] sm:$0xff]
        %v578 = vld [vmem:[#allocation2 + $0x740] sm:$0xff]
        %v579 = vld [vmem:[#allocation2 + $0x748] sm:$0xff]
        %v580 = vld [vmem:[#allocation2 + $0x750] sm:$0xff]
        %v581 = vld [vmem:[#allocation2 + $0x758] sm:$0xff]
        %v582 = vld [vmem:[#allocation2 + $0x760] sm:$0xff]
        %v583 = vld [vmem:[#allocation2 + $0x768] sm:$0xff]
        %v584 = vld [vmem:[#allocation2 + $0x770] sm:$0xff]
        %v585 = vld [vmem:[#allocation2 + $0x778] sm:$0xff]
        %v586 = vld [vmem:[#allocation2 + $0x780] sm:$0xff]
        %v587 = vld [vmem:[#allocation2 + $0x788] sm:$0xff]
        %v588 = vld [vmem:[#allocation2 + $0x790] sm:$0xff]
        %v589 = vld [vmem:[#allocation2 + $0x798] sm:$0xff]
        %v590 = vld [vmem:[#allocation2 + $0x7a0] sm:$0xff]
        %v591 = vld [vmem:[#allocation2 + $0x7a8] sm:$0xff]
        %v592 = vld [vmem:[#allocation2 + $0x7b0] sm:$0xff]
        %v593 = vld [vmem:[#allocation2 + $0x7b8] sm:$0xff]
        %v594 = vld [vmem:[#allocation2 + $0x7c0] sm:$0xff]
        %v595 = vld [vmem:[#allocation2 + $0x7c8] sm:$0xff]
        %v596 = vld [vmem:[#allocation2 + $0x7d0] sm:$0xff]
        %v597 = vld [vmem:[#allocation2 + $0x7d8] sm:$0xff]
        %v598 = vld [vmem:[#allocation2 + $0x7e0] sm:$0xff]
        %v599 = vld [vmem:[#allocation2 + $0x7e8] sm:$0xff]
        %v600 = vld [vmem:[#allocation2 + $0x7f0] sm:$0xff]
        %v601 = vld [vmem:[#allocation2 + $0x7f8] sm:$0xff]
        %s602 = scalar_lea.vmem [#allocation2], 2048
        %v603 = vld [vmem:[%s602] sm:$0xff]
        %v604 = vld [vmem:[%s602 + $0x8] sm:$0xff]
        %v605 = vld [vmem:[%s602 + $0x10] sm:$0xff]
        %v606 = vld [vmem:[%s602 + $0x18] sm:$0xff]
        %v607 = vld [vmem:[%s602 + $0x20] sm:$0xff]
        %v608 = vld [vmem:[%s602 + $0x28] sm:$0xff]
        %v609 = vld [vmem:[%s602 + $0x30] sm:$0xff]
        %v610 = vld [vmem:[%s602 + $0x38] sm:$0xff]
        %v611 = vld [vmem:[%s602 + $0x40] sm:$0xff]
        %v612 = vld [vmem:[%s602 + $0x48] sm:$0xff]
        %v613 = vld [vmem:[%s602 + $0x50] sm:$0xff]
        %v614 = vld [vmem:[%s602 + $0x58] sm:$0xff]
        %v615 = vld [vmem:[%s602 + $0x60] sm:$0xff]
        %v616 = vld [vmem:[%s602 + $0x68] sm:$0xff]
        %v617 = vld [vmem:[%s602 + $0x70] sm:$0xff]
        %v618 = vld [vmem:[%s602 + $0x78] sm:$0xff]
        %v619 = vld [vmem:[%s602 + $0x80] sm:$0xff]
        %v620 = vld [vmem:[%s602 + $0x88] sm:$0xff]
        %v621 = vld [vmem:[%s602 + $0x90] sm:$0xff]
        %v622 = vld [vmem:[%s602 + $0x98] sm:$0xff]
        %v623 = vld [vmem:[%s602 + $0xa0] sm:$0xff]
        %v624 = vld [vmem:[%s602 + $0xa8] sm:$0xff]
        %v625 = vld [vmem:[%s602 + $0xb0] sm:$0xff]
        %v626 = vld [vmem:[%s602 + $0xb8] sm:$0xff]
        %v627 = vld [vmem:[%s602 + $0xc0] sm:$0xff]
        %v628 = vld [vmem:[%s602 + $0xc8] sm:$0xff]
        %v629 = vld [vmem:[%s602 + $0xd0] sm:$0xff]
        %v630 = vld [vmem:[%s602 + $0xd8] sm:$0xff]
        %v631 = vld [vmem:[%s602 + $0xe0] sm:$0xff]
        %v632 = vld [vmem:[%s602 + $0xe8] sm:$0xff]
        %v633 = vld [vmem:[%s602 + $0xf0] sm:$0xff]
        %v634 = vld [vmem:[%s602 + $0xf8] sm:$0xff]
        %v635 = vld [vmem:[%s602 + $0x100] sm:$0xff]
        %v636 = vld [vmem:[%s602 + $0x108] sm:$0xff]
        %v637 = vld [vmem:[%s602 + $0x110] sm:$0xff]
        %v638 = vld [vmem:[%s602 + $0x118] sm:$0xff]
        %v639 = vld [vmem:[%s602 + $0x120] sm:$0xff]
        %v640 = vld [vmem:[%s602 + $0x128] sm:$0xff]
        %v641 = vld [vmem:[%s602 + $0x130] sm:$0xff]
        %v642 = vld [vmem:[%s602 + $0x138] sm:$0xff]
        %v643 = vld [vmem:[%s602 + $0x140] sm:$0xff]
        %v644 = vld [vmem:[%s602 + $0x148] sm:$0xff]
        %v645 = vld [vmem:[%s602 + $0x150] sm:$0xff]
        %v646 = vld [vmem:[%s602 + $0x158] sm:$0xff]
        %v647 = vld [vmem:[%s602 + $0x160] sm:$0xff]
        %v648 = vld [vmem:[%s602 + $0x168] sm:$0xff]
        %v649 = vld [vmem:[%s602 + $0x170] sm:$0xff]
        %v650 = vld [vmem:[%s602 + $0x178] sm:$0xff]
        %v651 = vld [vmem:[%s602 + $0x180] sm:$0xff]
        %v652 = vld [vmem:[%s602 + $0x188] sm:$0xff]
        %v653 = vld [vmem:[%s602 + $0x190] sm:$0xff]
        %v654 = vld [vmem:[%s602 + $0x198] sm:$0xff]
        %v655 = vld [vmem:[%s602 + $0x1a0] sm:$0xff]
        %v656 = vld [vmem:[%s602 + $0x1a8] sm:$0xff]
        %v657 = vld [vmem:[%s602 + $0x1b0] sm:$0xff]
        %v658 = vld [vmem:[%s602 + $0x1b8] sm:$0xff]
        %v659 = vld [vmem:[%s602 + $0x1c0] sm:$0xff]
        %v660 = vld [vmem:[%s602 + $0x1c8] sm:$0xff]
        %v661 = vld [vmem:[%s602 + $0x1d0] sm:$0xff]
        %v662 = vld [vmem:[%s602 + $0x1d8] sm:$0xff]
        %v663 = vld [vmem:[%s602 + $0x1e0] sm:$0xff]
        %v664 = vld [vmem:[%s602 + $0x1e8] sm:$0xff]
        %v665 = vld [vmem:[%s602 + $0x1f0] sm:$0xff]
        %v666 = vld [vmem:[%s602 + $0x1f8] sm:$0xff]
        %v667 = vld [vmem:[%s602 + $0x200] sm:$0xff]
        %v668 = vld [vmem:[%s602 + $0x208] sm:$0xff]
        %v669 = vld [vmem:[%s602 + $0x210] sm:$0xff]
        %v670 = vld [vmem:[%s602 + $0x218] sm:$0xff]
        %v671 = vld [vmem:[%s602 + $0x220] sm:$0xff]
        %v672 = vld [vmem:[%s602 + $0x228] sm:$0xff]
        %v673 = vld [vmem:[%s602 + $0x230] sm:$0xff]
        %v674 = vld [vmem:[%s602 + $0x238] sm:$0xff]
        %v675 = vld [vmem:[%s602 + $0x240] sm:$0xff]
        %v676 = vld [vmem:[%s602 + $0x248] sm:$0xff]
        %v677 = vld [vmem:[%s602 + $0x250] sm:$0xff]
        %v678 = vld [vmem:[%s602 + $0x258] sm:$0xff]
        %v679 = vld [vmem:[%s602 + $0x260] sm:$0xff]
        %v680 = vld [vmem:[%s602 + $0x268] sm:$0xff]
        %v681 = vld [vmem:[%s602 + $0x270] sm:$0xff]
        %v682 = vld [vmem:[%s602 + $0x278] sm:$0xff]
        %v683 = vld [vmem:[%s602 + $0x280] sm:$0xff]
        %v684 = vld [vmem:[%s602 + $0x288] sm:$0xff]
        %v685 = vld [vmem:[%s602 + $0x290] sm:$0xff]
        %v686 = vld [vmem:[%s602 + $0x298] sm:$0xff]
        %v687 = vld [vmem:[%s602 + $0x2a0] sm:$0xff]
        %v688 = vld [vmem:[%s602 + $0x2a8] sm:$0xff]
        %v689 = vld [vmem:[%s602 + $0x2b0] sm:$0xff]
        %v690 = vld [vmem:[%s602 + $0x2b8] sm:$0xff]
        %v691 = vld [vmem:[%s602 + $0x2c0] sm:$0xff]
        %v692 = vld [vmem:[%s602 + $0x2c8] sm:$0xff]
        %v693 = vld [vmem:[%s602 + $0x2d0] sm:$0xff]
        %v694 = vld [vmem:[%s602 + $0x2d8] sm:$0xff]
        %v695 = vld [vmem:[%s602 + $0x2e0] sm:$0xff]
        %v696 = vld [vmem:[%s602 + $0x2e8] sm:$0xff]
        %v697 = vld [vmem:[%s602 + $0x2f0] sm:$0xff]
        %v698 = vld [vmem:[%s602 + $0x2f8] sm:$0xff]
        %v699 = vld [vmem:[%s602 + $0x300] sm:$0xff]
        %v700 = vld [vmem:[%s602 + $0x308] sm:$0xff]
        %v701 = vld [vmem:[%s602 + $0x310] sm:$0xff]
        %v702 = vld [vmem:[%s602 + $0x318] sm:$0xff]
        %v703 = vld [vmem:[%s602 + $0x320] sm:$0xff]
        %v704 = vld [vmem:[%s602 + $0x328] sm:$0xff]
        %v705 = vld [vmem:[%s602 + $0x330] sm:$0xff]
        %v706 = vld [vmem:[%s602 + $0x338] sm:$0xff]
        %v707 = vld [vmem:[%s602 + $0x340] sm:$0xff]
        %v708 = vld [vmem:[%s602 + $0x348] sm:$0xff]
        %v709 = vld [vmem:[%s602 + $0x350] sm:$0xff]
        %v710 = vld [vmem:[%s602 + $0x358] sm:$0xff]
        %v711 = vld [vmem:[%s602 + $0x360] sm:$0xff]
        %v712 = vld [vmem:[%s602 + $0x368] sm:$0xff]
        %v713 = vld [vmem:[%s602 + $0x370] sm:$0xff]
        %v714 = vld [vmem:[%s602 + $0x378] sm:$0xff]
        %v715 = vld [vmem:[%s602 + $0x380] sm:$0xff]
        %v716 = vld [vmem:[%s602 + $0x388] sm:$0xff]
        %v717 = vld [vmem:[%s602 + $0x390] sm:$0xff]
        %v718 = vld [vmem:[%s602 + $0x398] sm:$0xff]
        %v719 = vld [vmem:[%s602 + $0x3a0] sm:$0xff]
        %v720 = vld [vmem:[%s602 + $0x3a8] sm:$0xff]
        %v721 = vld [vmem:[%s602 + $0x3b0] sm:$0xff]
        %v722 = vld [vmem:[%s602 + $0x3b8] sm:$0xff]
        %v723 = vld [vmem:[%s602 + $0x3c0] sm:$0xff]
        %v724 = vld [vmem:[%s602 + $0x3c8] sm:$0xff]
        %v725 = vld [vmem:[%s602 + $0x3d0] sm:$0xff]
        %v726 = vld [vmem:[%s602 + $0x3d8] sm:$0xff]
        %v727 = vld [vmem:[%s602 + $0x3e0] sm:$0xff]
        %v728 = vld [vmem:[%s602 + $0x3e8] sm:$0xff]
        %v729 = vld [vmem:[%s602 + $0x3f0] sm:$0xff]
        %v730 = vld [vmem:[%s602 + $0x3f8] sm:$0xff]
        %v731 = vld [vmem:[%s602 + $0x400] sm:$0xff]
        %v732 = vld [vmem:[%s602 + $0x408] sm:$0xff]
        %v733 = vld [vmem:[%s602 + $0x410] sm:$0xff]
        %v734 = vld [vmem:[%s602 + $0x418] sm:$0xff]
        %v735 = vld [vmem:[%s602 + $0x420] sm:$0xff]
        %v736 = vld [vmem:[%s602 + $0x428] sm:$0xff]
        %v737 = vld [vmem:[%s602 + $0x430] sm:$0xff]
        %v738 = vld [vmem:[%s602 + $0x438] sm:$0xff]
        %v739 = vld [vmem:[%s602 + $0x440] sm:$0xff]
        %v740 = vld [vmem:[%s602 + $0x448] sm:$0xff]
        %v741 = vld [vmem:[%s602 + $0x450] sm:$0xff]
        %v742 = vld [vmem:[%s602 + $0x458] sm:$0xff]
        %v743 = vld [vmem:[%s602 + $0x460] sm:$0xff]
        %v744 = vld [vmem:[%s602 + $0x468] sm:$0xff]
        %v745 = vld [vmem:[%s602 + $0x470] sm:$0xff]
        %v746 = vld [vmem:[%s602 + $0x478] sm:$0xff]
        %v747 = vld [vmem:[%s602 + $0x480] sm:$0xff]
        %v748 = vld [vmem:[%s602 + $0x488] sm:$0xff]
        %v749 = vld [vmem:[%s602 + $0x490] sm:$0xff]
        %v750 = vld [vmem:[%s602 + $0x498] sm:$0xff]
        %v751 = vld [vmem:[%s602 + $0x4a0] sm:$0xff]
        %v752 = vld [vmem:[%s602 + $0x4a8] sm:$0xff]
        %v753 = vld [vmem:[%s602 + $0x4b0] sm:$0xff]
        %v754 = vld [vmem:[%s602 + $0x4b8] sm:$0xff]
        %v755 = vld [vmem:[%s602 + $0x4c0] sm:$0xff]
        %v756 = vld [vmem:[%s602 + $0x4c8] sm:$0xff]
        %v757 = vld [vmem:[%s602 + $0x4d0] sm:$0xff]
        %v758 = vld [vmem:[%s602 + $0x4d8] sm:$0xff]
        %v759 = vld [vmem:[%s602 + $0x4e0] sm:$0xff]
        %v760 = vld [vmem:[%s602 + $0x4e8] sm:$0xff]
        %v761 = vld [vmem:[%s602 + $0x4f0] sm:$0xff]
        %v762 = vld [vmem:[%s602 + $0x4f8] sm:$0xff]
        %v763 = vld [vmem:[%s602 + $0x500] sm:$0xff]
        %v764 = vld [vmem:[%s602 + $0x508] sm:$0xff]
        %v765 = vld [vmem:[%s602 + $0x510] sm:$0xff]
        %v766 = vld [vmem:[%s602 + $0x518] sm:$0xff]
        %v767 = vld [vmem:[%s602 + $0x520] sm:$0xff]
        %v768 = vld [vmem:[%s602 + $0x528] sm:$0xff]
        %v769 = vld [vmem:[%s602 + $0x530] sm:$0xff]
        %v770 = vld [vmem:[%s602 + $0x538] sm:$0xff]
        %v771 = vld [vmem:[%s602 + $0x540] sm:$0xff]
        %v772 = vld [vmem:[%s602 + $0x548] sm:$0xff]
        %v773 = vld [vmem:[%s602 + $0x550] sm:$0xff]
        %v774 = vld [vmem:[%s602 + $0x558] sm:$0xff]
        %v775 = vld [vmem:[%s602 + $0x560] sm:$0xff]
        %v776 = vld [vmem:[%s602 + $0x568] sm:$0xff]
        %v777 = vld [vmem:[%s602 + $0x570] sm:$0xff]
        %v778 = vld [vmem:[%s602 + $0x578] sm:$0xff]
        %v779 = vld [vmem:[%s602 + $0x580] sm:$0xff]
        %v780 = vld [vmem:[%s602 + $0x588] sm:$0xff]
        %v781 = vld [vmem:[%s602 + $0x590] sm:$0xff]
        %v782 = vld [vmem:[%s602 + $0x598] sm:$0xff]
        %v783 = vld [vmem:[%s602 + $0x5a0] sm:$0xff]
        %v784 = vld [vmem:[%s602 + $0x5a8] sm:$0xff]
        %v785 = vld [vmem:[%s602 + $0x5b0] sm:$0xff]
        %v786 = vld [vmem:[%s602 + $0x5b8] sm:$0xff]
        %v787 = vld [vmem:[%s602 + $0x5c0] sm:$0xff]
        %v788 = vld [vmem:[%s602 + $0x5c8] sm:$0xff]
        %v789 = vld [vmem:[%s602 + $0x5d0] sm:$0xff]
        %v790 = vld [vmem:[%s602 + $0x5d8] sm:$0xff]
        %v791 = vld [vmem:[%s602 + $0x5e0] sm:$0xff]
        %v792 = vld [vmem:[%s602 + $0x5e8] sm:$0xff]
        %v793 = vld [vmem:[%s602 + $0x5f0] sm:$0xff]
        %v794 = vld [vmem:[%s602 + $0x5f8] sm:$0xff]
        %v795 = vld [vmem:[%s602 + $0x600] sm:$0xff]
        %v796 = vld [vmem:[%s602 + $0x608] sm:$0xff]
        %v797 = vld [vmem:[%s602 + $0x610] sm:$0xff]
        %v798 = vld [vmem:[%s602 + $0x618] sm:$0xff]
        %v799 = vld [vmem:[%s602 + $0x620] sm:$0xff]
        %v800 = vld [vmem:[%s602 + $0x628] sm:$0xff]
        %v801 = vld [vmem:[%s602 + $0x630] sm:$0xff]
        %v802 = vld [vmem:[%s602 + $0x638] sm:$0xff]
        %v803 = vld [vmem:[%s602 + $0x640] sm:$0xff]
        %v804 = vld [vmem:[%s602 + $0x648] sm:$0xff]
        %v805 = vld [vmem:[%s602 + $0x650] sm:$0xff]
        %v806 = vld [vmem:[%s602 + $0x658] sm:$0xff]
        %v807 = vld [vmem:[%s602 + $0x660] sm:$0xff]
        %v808 = vld [vmem:[%s602 + $0x668] sm:$0xff]
        %v809 = vld [vmem:[%s602 + $0x670] sm:$0xff]
        %v810 = vld [vmem:[%s602 + $0x678] sm:$0xff]
        %v811 = vld [vmem:[%s602 + $0x680] sm:$0xff]
        %v812 = vld [vmem:[%s602 + $0x688] sm:$0xff]
        %v813 = vld [vmem:[%s602 + $0x690] sm:$0xff]
        %v814 = vld [vmem:[%s602 + $0x698] sm:$0xff]
        %v815 = vld [vmem:[%s602 + $0x6a0] sm:$0xff]
        %v816 = vld [vmem:[%s602 + $0x6a8] sm:$0xff]
        %v817 = vld [vmem:[%s602 + $0x6b0] sm:$0xff]
        %v818 = vld [vmem:[%s602 + $0x6b8] sm:$0xff]
        %v819 = vld [vmem:[%s602 + $0x6c0] sm:$0xff]
        %v820 = vld [vmem:[%s602 + $0x6c8] sm:$0xff]
        %v821 = vld [vmem:[%s602 + $0x6d0] sm:$0xff]
        %v822 = vld [vmem:[%s602 + $0x6d8] sm:$0xff]
        %v823 = vld [vmem:[%s602 + $0x6e0] sm:$0xff]
        %v824 = vld [vmem:[%s602 + $0x6e8] sm:$0xff]
        %v825 = vld [vmem:[%s602 + $0x6f0] sm:$0xff]
        %v826 = vld [vmem:[%s602 + $0x6f8] sm:$0xff]
        %v827 = vld [vmem:[%s602 + $0x700] sm:$0xff]
        %v828 = vld [vmem:[%s602 + $0x708] sm:$0xff]
        %v829 = vld [vmem:[%s602 + $0x710] sm:$0xff]
        %v830 = vld [vmem:[%s602 + $0x718] sm:$0xff]
        %v831 = vld [vmem:[%s602 + $0x720] sm:$0xff]
        %v832 = vld [vmem:[%s602 + $0x728] sm:$0xff]
        %v833 = vld [vmem:[%s602 + $0x730] sm:$0xff]
        %v834 = vld [vmem:[%s602 + $0x738] sm:$0xff]
        %v835 = vld [vmem:[%s602 + $0x740] sm:$0xff]
        %v836 = vld [vmem:[%s602 + $0x748] sm:$0xff]
        %v837 = vld [vmem:[%s602 + $0x750] sm:$0xff]
        %v838 = vld [vmem:[%s602 + $0x758] sm:$0xff]
        %v839 = vld [vmem:[%s602 + $0x760] sm:$0xff]
        %v840 = vld [vmem:[%s602 + $0x768] sm:$0xff]
        %v841 = vld [vmem:[%s602 + $0x770] sm:$0xff]
        %v842 = vld [vmem:[%s602 + $0x778] sm:$0xff]
        %v843 = vld [vmem:[%s602 + $0x780] sm:$0xff]
        %v844 = vld [vmem:[%s602 + $0x788] sm:$0xff]
        %v845 = vld [vmem:[%s602 + $0x790] sm:$0xff]
        %v846 = vld [vmem:[%s602 + $0x798] sm:$0xff]
        %v847 = vld [vmem:[%s602 + $0x7a0] sm:$0xff]
        %v848 = vld [vmem:[%s602 + $0x7a8] sm:$0xff]
        %v849 = vld [vmem:[%s602 + $0x7b0] sm:$0xff]
        %v850 = vld [vmem:[%s602 + $0x7b8] sm:$0xff]
        %v851 = vld [vmem:[%s602 + $0x7c0] sm:$0xff]
        %v852 = vld [vmem:[%s602 + $0x7c8] sm:$0xff]
        %v853 = vld [vmem:[%s602 + $0x7d0] sm:$0xff]
        %v854 = vld [vmem:[%s602 + $0x7d8] sm:$0xff]
        %v855 = vld [vmem:[%s602 + $0x7e0] sm:$0xff]
        %v856 = vld [vmem:[%s602 + $0x7e8] sm:$0xff]
        %v857 = vld [vmem:[%s602 + $0x7f0] sm:$0xff]
        %v858 = vld [vmem:[%s602 + $0x7f8] sm:$0xff]
        %s859 = scalar_lea.vmem [#allocation2], 4096
        %v860 = vld [vmem:[%s859] sm:$0xff]
        %v861 = vld [vmem:[%s859 + $0x8] sm:$0xff]
        %v862 = vld [vmem:[%s859 + $0x10] sm:$0xff]
        %v863 = vld [vmem:[%s859 + $0x18] sm:$0xff]
        %v864 = vld [vmem:[%s859 + $0x20] sm:$0xff]
        %v865 = vld [vmem:[%s859 + $0x28] sm:$0xff]
        %v866 = vld [vmem:[%s859 + $0x30] sm:$0xff]
        %v867 = vld [vmem:[%s859 + $0x38] sm:$0xff]
        %v868 = vld [vmem:[%s859 + $0x40] sm:$0xff]
        %v869 = vld [vmem:[%s859 + $0x48] sm:$0xff]
        %v870 = vld [vmem:[%s859 + $0x50] sm:$0xff]
        %v871 = vld [vmem:[%s859 + $0x58] sm:$0xff]
        %v872 = vld [vmem:[%s859 + $0x60] sm:$0xff]
        %v873 = vld [vmem:[%s859 + $0x68] sm:$0xff]
        %v874 = vld [vmem:[%s859 + $0x70] sm:$0xff]
        %v875 = vld [vmem:[%s859 + $0x78] sm:$0xff]
        %v876 = vld [vmem:[%s859 + $0x80] sm:$0xff]
        %v877 = vld [vmem:[%s859 + $0x88] sm:$0xff]
        %v878 = vld [vmem:[%s859 + $0x90] sm:$0xff]
        %v879 = vld [vmem:[%s859 + $0x98] sm:$0xff]
        %v880 = vld [vmem:[%s859 + $0xa0] sm:$0xff]
        %v881 = vld [vmem:[%s859 + $0xa8] sm:$0xff]
        %v882 = vld [vmem:[%s859 + $0xb0] sm:$0xff]
        %v883 = vld [vmem:[%s859 + $0xb8] sm:$0xff]
        %v884 = vld [vmem:[%s859 + $0xc0] sm:$0xff]
        %v885 = vld [vmem:[%s859 + $0xc8] sm:$0xff]
        %v886 = vld [vmem:[%s859 + $0xd0] sm:$0xff]
        %v887 = vld [vmem:[%s859 + $0xd8] sm:$0xff]
        %v888 = vld [vmem:[%s859 + $0xe0] sm:$0xff]
        %v889 = vld [vmem:[%s859 + $0xe8] sm:$0xff]
        %v890 = vld [vmem:[%s859 + $0xf0] sm:$0xff]
        %v891 = vld [vmem:[%s859 + $0xf8] sm:$0xff]
        %v892 = vld [vmem:[%s859 + $0x100] sm:$0xff]
        %v893 = vld [vmem:[%s859 + $0x108] sm:$0xff]
        %v894 = vld [vmem:[%s859 + $0x110] sm:$0xff]
        %v895 = vld [vmem:[%s859 + $0x118] sm:$0xff]
        %v896 = vld [vmem:[%s859 + $0x120] sm:$0xff]
        %v897 = vld [vmem:[%s859 + $0x128] sm:$0xff]
        %v898 = vld [vmem:[%s859 + $0x130] sm:$0xff]
        %v899 = vld [vmem:[%s859 + $0x138] sm:$0xff]
        %v900 = vld [vmem:[%s859 + $0x140] sm:$0xff]
        %v901 = vld [vmem:[%s859 + $0x148] sm:$0xff]
        %v902 = vld [vmem:[%s859 + $0x150] sm:$0xff]
        %v903 = vld [vmem:[%s859 + $0x158] sm:$0xff]
        %v904 = vld [vmem:[%s859 + $0x160] sm:$0xff]
        %v905 = vld [vmem:[%s859 + $0x168] sm:$0xff]
        %v906 = vld [vmem:[%s859 + $0x170] sm:$0xff]
        %v907 = vld [vmem:[%s859 + $0x178] sm:$0xff]
        %v908 = vld [vmem:[%s859 + $0x180] sm:$0xff]
        %v909 = vld [vmem:[%s859 + $0x188] sm:$0xff]
        %v910 = vld [vmem:[%s859 + $0x190] sm:$0xff]
        %v911 = vld [vmem:[%s859 + $0x198] sm:$0xff]
        %v912 = vld [vmem:[%s859 + $0x1a0] sm:$0xff]
        %v913 = vld [vmem:[%s859 + $0x1a8] sm:$0xff]
        %v914 = vld [vmem:[%s859 + $0x1b0] sm:$0xff]
        %v915 = vld [vmem:[%s859 + $0x1b8] sm:$0xff]
        %v916 = vld [vmem:[%s859 + $0x1c0] sm:$0xff]
        %v917 = vld [vmem:[%s859 + $0x1c8] sm:$0xff]
        %v918 = vld [vmem:[%s859 + $0x1d0] sm:$0xff]
        %v919 = vld [vmem:[%s859 + $0x1d8] sm:$0xff]
        %v920 = vld [vmem:[%s859 + $0x1e0] sm:$0xff]
        %v921 = vld [vmem:[%s859 + $0x1e8] sm:$0xff]
        %v922 = vld [vmem:[%s859 + $0x1f0] sm:$0xff]
        %v923 = vld [vmem:[%s859 + $0x1f8] sm:$0xff]
        %v924 = vld [vmem:[%s859 + $0x200] sm:$0xff]
        %v925 = vld [vmem:[%s859 + $0x208] sm:$0xff]
        %v926 = vld [vmem:[%s859 + $0x210] sm:$0xff]
        %v927 = vld [vmem:[%s859 + $0x218] sm:$0xff]
        %v928 = vld [vmem:[%s859 + $0x220] sm:$0xff]
        %v929 = vld [vmem:[%s859 + $0x228] sm:$0xff]
        %v930 = vld [vmem:[%s859 + $0x230] sm:$0xff]
        %v931 = vld [vmem:[%s859 + $0x238] sm:$0xff]
        %v932 = vld [vmem:[%s859 + $0x240] sm:$0xff]
        %v933 = vld [vmem:[%s859 + $0x248] sm:$0xff]
        %v934 = vld [vmem:[%s859 + $0x250] sm:$0xff]
        %v935 = vld [vmem:[%s859 + $0x258] sm:$0xff]
        %v936 = vld [vmem:[%s859 + $0x260] sm:$0xff]
        %v937 = vld [vmem:[%s859 + $0x268] sm:$0xff]
        %v938 = vld [vmem:[%s859 + $0x270] sm:$0xff]
        %v939 = vld [vmem:[%s859 + $0x278] sm:$0xff]
        %v940 = vld [vmem:[%s859 + $0x280] sm:$0xff]
        %v941 = vld [vmem:[%s859 + $0x288] sm:$0xff]
        %v942 = vld [vmem:[%s859 + $0x290] sm:$0xff]
        %v943 = vld [vmem:[%s859 + $0x298] sm:$0xff]
        %v944 = vld [vmem:[%s859 + $0x2a0] sm:$0xff]
        %v945 = vld [vmem:[%s859 + $0x2a8] sm:$0xff]
        %v946 = vld [vmem:[%s859 + $0x2b0] sm:$0xff]
        %v947 = vld [vmem:[%s859 + $0x2b8] sm:$0xff]
        %v948 = vld [vmem:[%s859 + $0x2c0] sm:$0xff]
        %v949 = vld [vmem:[%s859 + $0x2c8] sm:$0xff]
        %v950 = vld [vmem:[%s859 + $0x2d0] sm:$0xff]
        %v951 = vld [vmem:[%s859 + $0x2d8] sm:$0xff]
        %v952 = vld [vmem:[%s859 + $0x2e0] sm:$0xff]
        %v953 = vld [vmem:[%s859 + $0x2e8] sm:$0xff]
        %v954 = vld [vmem:[%s859 + $0x2f0] sm:$0xff]
        %v955 = vld [vmem:[%s859 + $0x2f8] sm:$0xff]
        %v956 = vld [vmem:[%s859 + $0x300] sm:$0xff]
        %v957 = vld [vmem:[%s859 + $0x308] sm:$0xff]
        %v958 = vld [vmem:[%s859 + $0x310] sm:$0xff]
        %v959 = vld [vmem:[%s859 + $0x318] sm:$0xff]
        %v960 = vld [vmem:[%s859 + $0x320] sm:$0xff]
        %v961 = vld [vmem:[%s859 + $0x328] sm:$0xff]
        %v962 = vld [vmem:[%s859 + $0x330] sm:$0xff]
        %v963 = vld [vmem:[%s859 + $0x338] sm:$0xff]
        %v964 = vld [vmem:[%s859 + $0x340] sm:$0xff]
        %v965 = vld [vmem:[%s859 + $0x348] sm:$0xff]
        %v966 = vld [vmem:[%s859 + $0x350] sm:$0xff]
        %v967 = vld [vmem:[%s859 + $0x358] sm:$0xff]
        %v968 = vld [vmem:[%s859 + $0x360] sm:$0xff]
        %v969 = vld [vmem:[%s859 + $0x368] sm:$0xff]
        %v970 = vld [vmem:[%s859 + $0x370] sm:$0xff]
        %v971 = vld [vmem:[%s859 + $0x378] sm:$0xff]
        %v972 = vld [vmem:[%s859 + $0x380] sm:$0xff]
        %v973 = vld [vmem:[%s859 + $0x388] sm:$0xff]
        %v974 = vld [vmem:[%s859 + $0x390] sm:$0xff]
        %v975 = vld [vmem:[%s859 + $0x398] sm:$0xff]
        %v976 = vld [vmem:[%s859 + $0x3a0] sm:$0xff]
        %v977 = vld [vmem:[%s859 + $0x3a8] sm:$0xff]
        %v978 = vld [vmem:[%s859 + $0x3b0] sm:$0xff]
        %v979 = vld [vmem:[%s859 + $0x3b8] sm:$0xff]
        %v980 = vld [vmem:[%s859 + $0x3c0] sm:$0xff]
        %v981 = vld [vmem:[%s859 + $0x3c8] sm:$0xff]
        %v982 = vld [vmem:[%s859 + $0x3d0] sm:$0xff]
        %v983 = vld [vmem:[%s859 + $0x3d8] sm:$0xff]
        %v984 = vld [vmem:[%s859 + $0x3e0] sm:$0xff]
        %v985 = vld [vmem:[%s859 + $0x3e8] sm:$0xff]
        %v986 = vld [vmem:[%s859 + $0x3f0] sm:$0xff]
        %v987 = vld [vmem:[%s859 + $0x3f8] sm:$0xff]
        %v988 = vld [vmem:[%s859 + $0x400] sm:$0xff]
        %v989 = vld [vmem:[%s859 + $0x408] sm:$0xff]
        %v990 = vld [vmem:[%s859 + $0x410] sm:$0xff]
        %v991 = vld [vmem:[%s859 + $0x418] sm:$0xff]
        %v992 = vld [vmem:[%s859 + $0x420] sm:$0xff]
        %v993 = vld [vmem:[%s859 + $0x428] sm:$0xff]
        %v994 = vld [vmem:[%s859 + $0x430] sm:$0xff]
        %v995 = vld [vmem:[%s859 + $0x438] sm:$0xff]
        %v996 = vld [vmem:[%s859 + $0x440] sm:$0xff]
        %v997 = vld [vmem:[%s859 + $0x448] sm:$0xff]
        %v998 = vld [vmem:[%s859 + $0x450] sm:$0xff]
        %v999 = vld [vmem:[%s859 + $0x458] sm:$0xff]
        %v1000 = vld [vmem:[%s859 + $0x460] sm:$0xff]
        %v1001 = vld [vmem:[%s859 + $0x468] sm:$0xff]
        %v1002 = vld [vmem:[%s859 + $0x470] sm:$0xff]
        %v1003 = vld [vmem:[%s859 + $0x478] sm:$0xff]
        %v1004 = vld [vmem:[%s859 + $0x480] sm:$0xff]
        %v1005 = vld [vmem:[%s859 + $0x488] sm:$0xff]
        %v1006 = vld [vmem:[%s859 + $0x490] sm:$0xff]
        %v1007 = vld [vmem:[%s859 + $0x498] sm:$0xff]
        %v1008 = vld [vmem:[%s859 + $0x4a0] sm:$0xff]
        %v1009 = vld [vmem:[%s859 + $0x4a8] sm:$0xff]
        %v1010 = vld [vmem:[%s859 + $0x4b0] sm:$0xff]
        %v1011 = vld [vmem:[%s859 + $0x4b8] sm:$0xff]
        %v1012 = vld [vmem:[%s859 + $0x4c0] sm:$0xff]
        %v1013 = vld [vmem:[%s859 + $0x4c8] sm:$0xff]
        %v1014 = vld [vmem:[%s859 + $0x4d0] sm:$0xff]
        %v1015 = vld [vmem:[%s859 + $0x4d8] sm:$0xff]
        %v1016 = vld [vmem:[%s859 + $0x4e0] sm:$0xff]
        %v1017 = vld [vmem:[%s859 + $0x4e8] sm:$0xff]
        %v1018 = vld [vmem:[%s859 + $0x4f0] sm:$0xff]
        %v1019 = vld [vmem:[%s859 + $0x4f8] sm:$0xff]
        %v1020 = vld [vmem:[%s859 + $0x500] sm:$0xff]
        %v1021 = vld [vmem:[%s859 + $0x508] sm:$0xff]
        %v1022 = vld [vmem:[%s859 + $0x510] sm:$0xff]
        %v1023 = vld [vmem:[%s859 + $0x518] sm:$0xff]
        %v1024 = vld [vmem:[%s859 + $0x520] sm:$0xff]
        %v1025 = vld [vmem:[%s859 + $0x528] sm:$0xff]
        %v1026 = vld [vmem:[%s859 + $0x530] sm:$0xff]
        %v1027 = vld [vmem:[%s859 + $0x538] sm:$0xff]
        %v1028 = vld [vmem:[%s859 + $0x540] sm:$0xff]
        %v1029 = vld [vmem:[%s859 + $0x548] sm:$0xff]
        %v1030 = vld [vmem:[%s859 + $0x550] sm:$0xff]
        %v1031 = vld [vmem:[%s859 + $0x558] sm:$0xff]
        %v1032 = vld [vmem:[%s859 + $0x560] sm:$0xff]
        %v1033 = vld [vmem:[%s859 + $0x568] sm:$0xff]
        %v1034 = vld [vmem:[%s859 + $0x570] sm:$0xff]
        %v1035 = vld [vmem:[%s859 + $0x578] sm:$0xff]
        %v1036 = vld [vmem:[%s859 + $0x580] sm:$0xff]
        %v1037 = vld [vmem:[%s859 + $0x588] sm:$0xff]
        %v1038 = vld [vmem:[%s859 + $0x590] sm:$0xff]
        %v1039 = vld [vmem:[%s859 + $0x598] sm:$0xff]
        %v1040 = vld [vmem:[%s859 + $0x5a0] sm:$0xff]
        %v1041 = vld [vmem:[%s859 + $0x5a8] sm:$0xff]
        %v1042 = vld [vmem:[%s859 + $0x5b0] sm:$0xff]
        %v1043 = vld [vmem:[%s859 + $0x5b8] sm:$0xff]
        %v1044 = vld [vmem:[%s859 + $0x5c0] sm:$0xff]
        %v1045 = vld [vmem:[%s859 + $0x5c8] sm:$0xff]
        %v1046 = vld [vmem:[%s859 + $0x5d0] sm:$0xff]
        %v1047 = vld [vmem:[%s859 + $0x5d8] sm:$0xff]
        %v1048 = vld [vmem:[%s859 + $0x5e0] sm:$0xff]
        %v1049 = vld [vmem:[%s859 + $0x5e8] sm:$0xff]
        %v1050 = vld [vmem:[%s859 + $0x5f0] sm:$0xff]
        %v1051 = vld [vmem:[%s859 + $0x5f8] sm:$0xff]
        %v1052 = vld [vmem:[%s859 + $0x600] sm:$0xff]
        %v1053 = vld [vmem:[%s859 + $0x608] sm:$0xff]
        %v1054 = vld [vmem:[%s859 + $0x610] sm:$0xff]
        %v1055 = vld [vmem:[%s859 + $0x618] sm:$0xff]
        %v1056 = vld [vmem:[%s859 + $0x620] sm:$0xff]
        %v1057 = vld [vmem:[%s859 + $0x628] sm:$0xff]
        %v1058 = vld [vmem:[%s859 + $0x630] sm:$0xff]
        %v1059 = vld [vmem:[%s859 + $0x638] sm:$0xff]
        %v1060 = vld [vmem:[%s859 + $0x640] sm:$0xff]
        %v1061 = vld [vmem:[%s859 + $0x648] sm:$0xff]
        %v1062 = vld [vmem:[%s859 + $0x650] sm:$0xff]
        %v1063 = vld [vmem:[%s859 + $0x658] sm:$0xff]
        %v1064 = vld [vmem:[%s859 + $0x660] sm:$0xff]
        %v1065 = vld [vmem:[%s859 + $0x668] sm:$0xff]
        %v1066 = vld [vmem:[%s859 + $0x670] sm:$0xff]
        %v1067 = vld [vmem:[%s859 + $0x678] sm:$0xff]
        %v1068 = vld [vmem:[%s859 + $0x680] sm:$0xff]
        %v1069 = vld [vmem:[%s859 + $0x688] sm:$0xff]
        %v1070 = vld [vmem:[%s859 + $0x690] sm:$0xff]
        %v1071 = vld [vmem:[%s859 + $0x698] sm:$0xff]
        %v1072 = vld [vmem:[%s859 + $0x6a0] sm:$0xff]
        %v1073 = vld [vmem:[%s859 + $0x6a8] sm:$0xff]
        %v1074 = vld [vmem:[%s859 + $0x6b0] sm:$0xff]
        %v1075 = vld [vmem:[%s859 + $0x6b8] sm:$0xff]
        %v1076 = vld [vmem:[%s859 + $0x6c0] sm:$0xff]
        %v1077 = vld [vmem:[%s859 + $0x6c8] sm:$0xff]
        %v1078 = vld [vmem:[%s859 + $0x6d0] sm:$0xff]
        %v1079 = vld [vmem:[%s859 + $0x6d8] sm:$0xff]
        %v1080 = vld [vmem:[%s859 + $0x6e0] sm:$0xff]
        %v1081 = vld [vmem:[%s859 + $0x6e8] sm:$0xff]
        %v1082 = vld [vmem:[%s859 + $0x6f0] sm:$0xff]
        %v1083 = vld [vmem:[%s859 + $0x6f8] sm:$0xff]
        %v1084 = vld [vmem:[%s859 + $0x700] sm:$0xff]
        %v1085 = vld [vmem:[%s859 + $0x708] sm:$0xff]
        %v1086 = vld [vmem:[%s859 + $0x710] sm:$0xff]
        %v1087 = vld [vmem:[%s859 + $0x718] sm:$0xff]
        %v1088 = vld [vmem:[%s859 + $0x720] sm:$0xff]
        %v1089 = vld [vmem:[%s859 + $0x728] sm:$0xff]
        %v1090 = vld [vmem:[%s859 + $0x730] sm:$0xff]
        %v1091 = vld [vmem:[%s859 + $0x738] sm:$0xff]
        %v1092 = vld [vmem:[%s859 + $0x740] sm:$0xff]
        %v1093 = vld [vmem:[%s859 + $0x748] sm:$0xff]
        %v1094 = vld [vmem:[%s859 + $0x750] sm:$0xff]
        %v1095 = vld [vmem:[%s859 + $0x758] sm:$0xff]
        %v1096 = vld [vmem:[%s859 + $0x760] sm:$0xff]
        %v1097 = vld [vmem:[%s859 + $0x768] sm:$0xff]
        %v1098 = vld [vmem:[%s859 + $0x770] sm:$0xff]
        %v1099 = vld [vmem:[%s859 + $0x778] sm:$0xff]
        %v1100 = vld [vmem:[%s859 + $0x780] sm:$0xff]
        %v1101 = vld [vmem:[%s859 + $0x788] sm:$0xff]
        %v1102 = vld [vmem:[%s859 + $0x790] sm:$0xff]
        %v1103 = vld [vmem:[%s859 + $0x798] sm:$0xff]
        %v1104 = vld [vmem:[%s859 + $0x7a0] sm:$0xff]
        %v1105 = vld [vmem:[%s859 + $0x7a8] sm:$0xff]
        %v1106 = vld [vmem:[%s859 + $0x7b0] sm:$0xff]
        %v1107 = vld [vmem:[%s859 + $0x7b8] sm:$0xff]
        %v1108 = vld [vmem:[%s859 + $0x7c0] sm:$0xff]
        %v1109 = vld [vmem:[%s859 + $0x7c8] sm:$0xff]
        %v1110 = vld [vmem:[%s859 + $0x7d0] sm:$0xff]
        %v1111 = vld [vmem:[%s859 + $0x7d8] sm:$0xff]
        %v1112 = vld [vmem:[%s859 + $0x7e0] sm:$0xff]
        %v1113 = vld [vmem:[%s859 + $0x7e8] sm:$0xff]
        %v1114 = vld [vmem:[%s859 + $0x7f0] sm:$0xff]
        %v1115 = vld [vmem:[%s859 + $0x7f8] sm:$0xff]
        %v1376 = vunpack.c.l.b16 %v603
        %v1377 = vunpack.c.h.b16 %v603
        %v1378 = vunpack.c.l.b16 %v604
        %v1379 = vunpack.c.h.b16 %v604
        %v1380 = vunpack.c.l.b16 %v605
        %v1381 = vunpack.c.h.b16 %v605
        %v1382 = vunpack.c.l.b16 %v606
        %v1383 = vunpack.c.h.b16 %v606
        %v1384 = vunpack.c.l.b16 %v607
        %v1385 = vunpack.c.h.b16 %v607
        %v1386 = vunpack.c.l.b16 %v608
        %v1387 = vunpack.c.h.b16 %v608
        %v1388 = vunpack.c.l.b16 %v609
        %v1389 = vunpack.c.h.b16 %v609
        %v1390 = vunpack.c.l.b16 %v610
        %v1391 = vunpack.c.h.b16 %v610
        %v1392 = vunpack.c.l.b16 %v611
        %v1393 = vunpack.c.h.b16 %v611
        %v1394 = vunpack.c.l.b16 %v612
        %v1395 = vunpack.c.h.b16 %v612
        %v1396 = vunpack.c.l.b16 %v613
        %v1397 = vunpack.c.h.b16 %v613
        %v1398 = vunpack.c.l.b16 %v614
        %v1399 = vunpack.c.h.b16 %v614
        %v1400 = vunpack.c.l.b16 %v615
        %v1401 = vunpack.c.h.b16 %v615
        %v1402 = vunpack.c.l.b16 %v616
        %v1403 = vunpack.c.h.b16 %v616
        %v1404 = vunpack.c.l.b16 %v617
        %v1405 = vunpack.c.h.b16 %v617
        %v1406 = vunpack.c.l.b16 %v618
        %v1407 = vunpack.c.h.b16 %v618
        %v1408 = vunpack.c.l.b16 %v619
        %v1409 = vunpack.c.h.b16 %v619
        %v1410 = vunpack.c.l.b16 %v620
        %v1411 = vunpack.c.h.b16 %v620
        %v1412 = vunpack.c.l.b16 %v621
        %v1413 = vunpack.c.h.b16 %v621
        %v1414 = vunpack.c.l.b16 %v622
        %v1415 = vunpack.c.h.b16 %v622
        %v1416 = vunpack.c.l.b16 %v623
        %v1417 = vunpack.c.h.b16 %v623
        %v1418 = vunpack.c.l.b16 %v624
        %v1419 = vunpack.c.h.b16 %v624
        %v1420 = vunpack.c.l.b16 %v625
        %v1421 = vunpack.c.h.b16 %v625
        %v1422 = vunpack.c.l.b16 %v626
        %v1423 = vunpack.c.h.b16 %v626
        %v1424 = vunpack.c.l.b16 %v627
        %v1425 = vunpack.c.h.b16 %v627
        %v1426 = vunpack.c.l.b16 %v628
        %v1427 = vunpack.c.h.b16 %v628
        %v1428 = vunpack.c.l.b16 %v629
        %v1429 = vunpack.c.h.b16 %v629
        %v1430 = vunpack.c.l.b16 %v630
        %v1431 = vunpack.c.h.b16 %v630
        %v1432 = vunpack.c.l.b16 %v631
        %v1433 = vunpack.c.h.b16 %v631
        %v1434 = vunpack.c.l.b16 %v632
        %v1435 = vunpack.c.h.b16 %v632
        %v1436 = vunpack.c.l.b16 %v633
        %v1437 = vunpack.c.h.b16 %v633
        %v1438 = vunpack.c.l.b16 %v634
        %v1439 = vunpack.c.h.b16 %v634
        %v1440 = vunpack.c.l.b16 %v635
        %v1441 = vunpack.c.h.b16 %v635
        %v1442 = vunpack.c.l.b16 %v636
        %v1443 = vunpack.c.h.b16 %v636
        %v1444 = vunpack.c.l.b16 %v637
        %v1445 = vunpack.c.h.b16 %v637
        %v1446 = vunpack.c.l.b16 %v638
        %v1447 = vunpack.c.h.b16 %v638
        %v1448 = vunpack.c.l.b16 %v639
        %v1449 = vunpack.c.h.b16 %v639
        %v1450 = vunpack.c.l.b16 %v640
        %v1451 = vunpack.c.h.b16 %v640
        %v1452 = vunpack.c.l.b16 %v641
        %v1453 = vunpack.c.h.b16 %v641
        %v1454 = vunpack.c.l.b16 %v642
        %v1455 = vunpack.c.h.b16 %v642
        %v1456 = vunpack.c.l.b16 %v643
        %v1457 = vunpack.c.h.b16 %v643
        %v1458 = vunpack.c.l.b16 %v644
        %v1459 = vunpack.c.h.b16 %v644
        %v1460 = vunpack.c.l.b16 %v645
        %v1461 = vunpack.c.h.b16 %v645
        %v1462 = vunpack.c.l.b16 %v646
        %v1463 = vunpack.c.h.b16 %v646
        %v1464 = vunpack.c.l.b16 %v647
        %v1465 = vunpack.c.h.b16 %v647
        %v1466 = vunpack.c.l.b16 %v648
        %v1467 = vunpack.c.h.b16 %v648
        %v1468 = vunpack.c.l.b16 %v649
        %v1469 = vunpack.c.h.b16 %v649
        %v1470 = vunpack.c.l.b16 %v650
        %v1471 = vunpack.c.h.b16 %v650
        %v1472 = vunpack.c.l.b16 %v651
        %v1473 = vunpack.c.h.b16 %v651
        %v1474 = vunpack.c.l.b16 %v652
        %v1475 = vunpack.c.h.b16 %v652
        %v1476 = vunpack.c.l.b16 %v653
        %v1477 = vunpack.c.h.b16 %v653
        %v1478 = vunpack.c.l.b16 %v654
        %v1479 = vunpack.c.h.b16 %v654
        %v1480 = vunpack.c.l.b16 %v655
        %v1481 = vunpack.c.h.b16 %v655
        %v1482 = vunpack.c.l.b16 %v656
        %v1483 = vunpack.c.h.b16 %v656
        %v1484 = vunpack.c.l.b16 %v657
        %v1485 = vunpack.c.h.b16 %v657
        %v1486 = vunpack.c.l.b16 %v658
        %v1487 = vunpack.c.h.b16 %v658
        %v1488 = vunpack.c.l.b16 %v659
        %v1489 = vunpack.c.h.b16 %v659
        %v1490 = vunpack.c.l.b16 %v660
        %v1491 = vunpack.c.h.b16 %v660
        %v1492 = vunpack.c.l.b16 %v661
        %v1493 = vunpack.c.h.b16 %v661
        %v1494 = vunpack.c.l.b16 %v662
        %v1495 = vunpack.c.h.b16 %v662
        %v1496 = vunpack.c.l.b16 %v663
        %v1497 = vunpack.c.h.b16 %v663
        %v1498 = vunpack.c.l.b16 %v664
        %v1499 = vunpack.c.h.b16 %v664
        %v1500 = vunpack.c.l.b16 %v665
        %v1501 = vunpack.c.h.b16 %v665
        %v1502 = vunpack.c.l.b16 %v666
        %v1503 = vunpack.c.h.b16 %v666
        %v1504 = vunpack.c.l.b16 %v667
        %v1505 = vunpack.c.h.b16 %v667
        %v1506 = vunpack.c.l.b16 %v668
        %v1507 = vunpack.c.h.b16 %v668
        %v1508 = vunpack.c.l.b16 %v669
        %v1509 = vunpack.c.h.b16 %v669
        %v1510 = vunpack.c.l.b16 %v670
        %v1511 = vunpack.c.h.b16 %v670
        %v1512 = vunpack.c.l.b16 %v671
        %v1513 = vunpack.c.h.b16 %v671
        %v1514 = vunpack.c.l.b16 %v672
        %v1515 = vunpack.c.h.b16 %v672
        %v1516 = vunpack.c.l.b16 %v673
        %v1517 = vunpack.c.h.b16 %v673
        %v1518 = vunpack.c.l.b16 %v674
        %v1519 = vunpack.c.h.b16 %v674
        %v1520 = vunpack.c.l.b16 %v675
        %v1521 = vunpack.c.h.b16 %v675
        %v1522 = vunpack.c.l.b16 %v676
        %v1523 = vunpack.c.h.b16 %v676
        %v1524 = vunpack.c.l.b16 %v677
        %v1525 = vunpack.c.h.b16 %v677
        %v1526 = vunpack.c.l.b16 %v678
        %v1527 = vunpack.c.h.b16 %v678
        %v1528 = vunpack.c.l.b16 %v679
        %v1529 = vunpack.c.h.b16 %v679
        %v1530 = vunpack.c.l.b16 %v680
        %v1531 = vunpack.c.h.b16 %v680
        %v1532 = vunpack.c.l.b16 %v681
        %v1533 = vunpack.c.h.b16 %v681
        %v1534 = vunpack.c.l.b16 %v682
        %v1535 = vunpack.c.h.b16 %v682
        %v1536 = vunpack.c.l.b16 %v683
        %v1537 = vunpack.c.h.b16 %v683
        %v1538 = vunpack.c.l.b16 %v684
        %v1539 = vunpack.c.h.b16 %v684
        %v1540 = vunpack.c.l.b16 %v685
        %v1541 = vunpack.c.h.b16 %v685
        %v1542 = vunpack.c.l.b16 %v686
        %v1543 = vunpack.c.h.b16 %v686
        %v1544 = vunpack.c.l.b16 %v687
        %v1545 = vunpack.c.h.b16 %v687
        %v1546 = vunpack.c.l.b16 %v688
        %v1547 = vunpack.c.h.b16 %v688
        %v1548 = vunpack.c.l.b16 %v689
        %v1549 = vunpack.c.h.b16 %v689
        %v1550 = vunpack.c.l.b16 %v690
        %v1551 = vunpack.c.h.b16 %v690
        %v1552 = vunpack.c.l.b16 %v691
        %v1553 = vunpack.c.h.b16 %v691
        %v1554 = vunpack.c.l.b16 %v692
        %v1555 = vunpack.c.h.b16 %v692
        %v1556 = vunpack.c.l.b16 %v693
        %v1557 = vunpack.c.h.b16 %v693
        %v1558 = vunpack.c.l.b16 %v694
        %v1559 = vunpack.c.h.b16 %v694
        %v1560 = vunpack.c.l.b16 %v695
        %v1561 = vunpack.c.h.b16 %v695
        %v1562 = vunpack.c.l.b16 %v696
        %v1563 = vunpack.c.h.b16 %v696
        %v1564 = vunpack.c.l.b16 %v697
        %v1565 = vunpack.c.h.b16 %v697
        %v1566 = vunpack.c.l.b16 %v698
        %v1567 = vunpack.c.h.b16 %v698
        %v1568 = vunpack.c.l.b16 %v699
        %v1569 = vunpack.c.h.b16 %v699
        %v1570 = vunpack.c.l.b16 %v700
        %v1571 = vunpack.c.h.b16 %v700
        %v1572 = vunpack.c.l.b16 %v701
        %v1573 = vunpack.c.h.b16 %v701
        %v1574 = vunpack.c.l.b16 %v702
        %v1575 = vunpack.c.h.b16 %v702
        %v1576 = vunpack.c.l.b16 %v703
        %v1577 = vunpack.c.h.b16 %v703
        %v1578 = vunpack.c.l.b16 %v704
        %v1579 = vunpack.c.h.b16 %v704
        %v1580 = vunpack.c.l.b16 %v705
        %v1581 = vunpack.c.h.b16 %v705
        %v1582 = vunpack.c.l.b16 %v706
        %v1583 = vunpack.c.h.b16 %v706
        %v1584 = vunpack.c.l.b16 %v707
        %v1585 = vunpack.c.h.b16 %v707
        %v1586 = vunpack.c.l.b16 %v708
        %v1587 = vunpack.c.h.b16 %v708
        %v1588 = vunpack.c.l.b16 %v709
        %v1589 = vunpack.c.h.b16 %v709
        %v1590 = vunpack.c.l.b16 %v710
        %v1591 = vunpack.c.h.b16 %v710
        %v1592 = vunpack.c.l.b16 %v711
        %v1593 = vunpack.c.h.b16 %v711
        %v1594 = vunpack.c.l.b16 %v712
        %v1595 = vunpack.c.h.b16 %v712
        %v1596 = vunpack.c.l.b16 %v713
        %v1597 = vunpack.c.h.b16 %v713
        %v1598 = vunpack.c.l.b16 %v714
        %v1599 = vunpack.c.h.b16 %v714
        %v1600 = vunpack.c.l.b16 %v715
        %v1601 = vunpack.c.h.b16 %v715
        %v1602 = vunpack.c.l.b16 %v716
        %v1603 = vunpack.c.h.b16 %v716
        %v1604 = vunpack.c.l.b16 %v717
        %v1605 = vunpack.c.h.b16 %v717
        %v1606 = vunpack.c.l.b16 %v718
        %v1607 = vunpack.c.h.b16 %v718
        %v1608 = vunpack.c.l.b16 %v719
        %v1609 = vunpack.c.h.b16 %v719
        %v1610 = vunpack.c.l.b16 %v720
        %v1611 = vunpack.c.h.b16 %v720
        %v1612 = vunpack.c.l.b16 %v721
        %v1613 = vunpack.c.h.b16 %v721
        %v1614 = vunpack.c.l.b16 %v722
        %v1615 = vunpack.c.h.b16 %v722
        %v1616 = vunpack.c.l.b16 %v723
        %v1617 = vunpack.c.h.b16 %v723
        %v1618 = vunpack.c.l.b16 %v724
        %v1619 = vunpack.c.h.b16 %v724
        %v1620 = vunpack.c.l.b16 %v725
        %v1621 = vunpack.c.h.b16 %v725
        %v1622 = vunpack.c.l.b16 %v726
        %v1623 = vunpack.c.h.b16 %v726
        %v1624 = vunpack.c.l.b16 %v727
        %v1625 = vunpack.c.h.b16 %v727
        %v1626 = vunpack.c.l.b16 %v728
        %v1627 = vunpack.c.h.b16 %v728
        %v1628 = vunpack.c.l.b16 %v729
        %v1629 = vunpack.c.h.b16 %v729
        %v1630 = vunpack.c.l.b16 %v730
        %v1631 = vunpack.c.h.b16 %v730
        %v1632 = vunpack.c.l.b16 %v731
        %v1633 = vunpack.c.h.b16 %v731
        %v1634 = vunpack.c.l.b16 %v732
        %v1635 = vunpack.c.h.b16 %v732
        %v1636 = vunpack.c.l.b16 %v733
        %v1637 = vunpack.c.h.b16 %v733
        %v1638 = vunpack.c.l.b16 %v734
        %v1639 = vunpack.c.h.b16 %v734
        %v1640 = vunpack.c.l.b16 %v735
        %v1641 = vunpack.c.h.b16 %v735
        %v1642 = vunpack.c.l.b16 %v736
        %v1643 = vunpack.c.h.b16 %v736
        %v1644 = vunpack.c.l.b16 %v737
        %v1645 = vunpack.c.h.b16 %v737
        %v1646 = vunpack.c.l.b16 %v738
        %v1647 = vunpack.c.h.b16 %v738
        %v1648 = vunpack.c.l.b16 %v739
        %v1649 = vunpack.c.h.b16 %v739
        %v1650 = vunpack.c.l.b16 %v740
        %v1651 = vunpack.c.h.b16 %v740
        %v1652 = vunpack.c.l.b16 %v741
        %v1653 = vunpack.c.h.b16 %v741
        %v1654 = vunpack.c.l.b16 %v742
        %v1655 = vunpack.c.h.b16 %v742
        %v1656 = vunpack.c.l.b16 %v743
        %v1657 = vunpack.c.h.b16 %v743
        %v1658 = vunpack.c.l.b16 %v744
        %v1659 = vunpack.c.h.b16 %v744
        %v1660 = vunpack.c.l.b16 %v745
        %v1661 = vunpack.c.h.b16 %v745
        %v1662 = vunpack.c.l.b16 %v746
        %v1663 = vunpack.c.h.b16 %v746
        %v1664 = vunpack.c.l.b16 %v747
        %v1665 = vunpack.c.h.b16 %v747
        %v1666 = vunpack.c.l.b16 %v748
        %v1667 = vunpack.c.h.b16 %v748
        %v1668 = vunpack.c.l.b16 %v749
        %v1669 = vunpack.c.h.b16 %v749
        %v1670 = vunpack.c.l.b16 %v750
        %v1671 = vunpack.c.h.b16 %v750
        %v1672 = vunpack.c.l.b16 %v751
        %v1673 = vunpack.c.h.b16 %v751
        %v1674 = vunpack.c.l.b16 %v752
        %v1675 = vunpack.c.h.b16 %v752
        %v1676 = vunpack.c.l.b16 %v753
        %v1677 = vunpack.c.h.b16 %v753
        %v1678 = vunpack.c.l.b16 %v754
        %v1679 = vunpack.c.h.b16 %v754
        %v1680 = vunpack.c.l.b16 %v755
        %v1681 = vunpack.c.h.b16 %v755
        %v1682 = vunpack.c.l.b16 %v756
        %v1683 = vunpack.c.h.b16 %v756
        %v1684 = vunpack.c.l.b16 %v757
        %v1685 = vunpack.c.h.b16 %v757
        %v1686 = vunpack.c.l.b16 %v758
        %v1687 = vunpack.c.h.b16 %v758
        %v1688 = vunpack.c.l.b16 %v759
        %v1689 = vunpack.c.h.b16 %v759
        %v1690 = vunpack.c.l.b16 %v760
        %v1691 = vunpack.c.h.b16 %v760
        %v1692 = vunpack.c.l.b16 %v761
        %v1693 = vunpack.c.h.b16 %v761
        %v1694 = vunpack.c.l.b16 %v762
        %v1695 = vunpack.c.h.b16 %v762
        %v1696 = vunpack.c.l.b16 %v763
        %v1697 = vunpack.c.h.b16 %v763
        %v1698 = vunpack.c.l.b16 %v764
        %v1699 = vunpack.c.h.b16 %v764
        %v1700 = vunpack.c.l.b16 %v765
        %v1701 = vunpack.c.h.b16 %v765
        %v1702 = vunpack.c.l.b16 %v766
        %v1703 = vunpack.c.h.b16 %v766
        %v1704 = vunpack.c.l.b16 %v767
        %v1705 = vunpack.c.h.b16 %v767
        %v1706 = vunpack.c.l.b16 %v768
        %v1707 = vunpack.c.h.b16 %v768
        %v1708 = vunpack.c.l.b16 %v769
        %v1709 = vunpack.c.h.b16 %v769
        %v1710 = vunpack.c.l.b16 %v770
        %v1711 = vunpack.c.h.b16 %v770
        %v1712 = vunpack.c.l.b16 %v771
        %v1713 = vunpack.c.h.b16 %v771
        %v1714 = vunpack.c.l.b16 %v772
        %v1715 = vunpack.c.h.b16 %v772
        %v1716 = vunpack.c.l.b16 %v773
        %v1717 = vunpack.c.h.b16 %v773
        %v1718 = vunpack.c.l.b16 %v774
        %v1719 = vunpack.c.h.b16 %v774
        %v1720 = vunpack.c.l.b16 %v775
        %v1721 = vunpack.c.h.b16 %v775
        %v1722 = vunpack.c.l.b16 %v776
        %v1723 = vunpack.c.h.b16 %v776
        %v1724 = vunpack.c.l.b16 %v777
        %v1725 = vunpack.c.h.b16 %v777
        %v1726 = vunpack.c.l.b16 %v778
        %v1727 = vunpack.c.h.b16 %v778
        %v1728 = vunpack.c.l.b16 %v779
        %v1729 = vunpack.c.h.b16 %v779
        %v1730 = vunpack.c.l.b16 %v780
        %v1731 = vunpack.c.h.b16 %v780
        %v1732 = vunpack.c.l.b16 %v781
        %v1733 = vunpack.c.h.b16 %v781
        %v1734 = vunpack.c.l.b16 %v782
        %v1735 = vunpack.c.h.b16 %v782
        %v1736 = vunpack.c.l.b16 %v783
        %v1737 = vunpack.c.h.b16 %v783
        %v1738 = vunpack.c.l.b16 %v784
        %v1739 = vunpack.c.h.b16 %v784
        %v1740 = vunpack.c.l.b16 %v785
        %v1741 = vunpack.c.h.b16 %v785
        %v1742 = vunpack.c.l.b16 %v786
        %v1743 = vunpack.c.h.b16 %v786
        %v1744 = vunpack.c.l.b16 %v787
        %v1745 = vunpack.c.h.b16 %v787
        %v1746 = vunpack.c.l.b16 %v788
        %v1747 = vunpack.c.h.b16 %v788
        %v1748 = vunpack.c.l.b16 %v789
        %v1749 = vunpack.c.h.b16 %v789
        %v1750 = vunpack.c.l.b16 %v790
        %v1751 = vunpack.c.h.b16 %v790
        %v1752 = vunpack.c.l.b16 %v791
        %v1753 = vunpack.c.h.b16 %v791
        %v1754 = vunpack.c.l.b16 %v792
        %v1755 = vunpack.c.h.b16 %v792
        %v1756 = vunpack.c.l.b16 %v793
        %v1757 = vunpack.c.h.b16 %v793
        %v1758 = vunpack.c.l.b16 %v794
        %v1759 = vunpack.c.h.b16 %v794
        %v1760 = vunpack.c.l.b16 %v795
        %v1761 = vunpack.c.h.b16 %v795
        %v1762 = vunpack.c.l.b16 %v796
        %v1763 = vunpack.c.h.b16 %v796
        %v1764 = vunpack.c.l.b16 %v797
        %v1765 = vunpack.c.h.b16 %v797
        %v1766 = vunpack.c.l.b16 %v798
        %v1767 = vunpack.c.h.b16 %v798
        %v1768 = vunpack.c.l.b16 %v799
        %v1769 = vunpack.c.h.b16 %v799
        %v1770 = vunpack.c.l.b16 %v800
        %v1771 = vunpack.c.h.b16 %v800
        %v1772 = vunpack.c.l.b16 %v801
        %v1773 = vunpack.c.h.b16 %v801
        %v1774 = vunpack.c.l.b16 %v802
        %v1775 = vunpack.c.h.b16 %v802
        %v1776 = vunpack.c.l.b16 %v803
        %v1777 = vunpack.c.h.b16 %v803
        %v1778 = vunpack.c.l.b16 %v804
        %v1779 = vunpack.c.h.b16 %v804
        %v1780 = vunpack.c.l.b16 %v805
        %v1781 = vunpack.c.h.b16 %v805
        %v1782 = vunpack.c.l.b16 %v806
        %v1783 = vunpack.c.h.b16 %v806
        %v1784 = vunpack.c.l.b16 %v807
        %v1785 = vunpack.c.h.b16 %v807
        %v1786 = vunpack.c.l.b16 %v808
        %v1787 = vunpack.c.h.b16 %v808
        %v1788 = vunpack.c.l.b16 %v809
        %v1789 = vunpack.c.h.b16 %v809
        %v1790 = vunpack.c.l.b16 %v810
        %v1791 = vunpack.c.h.b16 %v810
        %v1792 = vunpack.c.l.b16 %v811
        %v1793 = vunpack.c.h.b16 %v811
        %v1794 = vunpack.c.l.b16 %v812
        %v1795 = vunpack.c.h.b16 %v812
        %v1796 = vunpack.c.l.b16 %v813
        %v1797 = vunpack.c.h.b16 %v813
        %v1798 = vunpack.c.l.b16 %v814
        %v1799 = vunpack.c.h.b16 %v814
        %v1800 = vunpack.c.l.b16 %v815
        %v1801 = vunpack.c.h.b16 %v815
        %v1802 = vunpack.c.l.b16 %v816
        %v1803 = vunpack.c.h.b16 %v816
        %v1804 = vunpack.c.l.b16 %v817
        %v1805 = vunpack.c.h.b16 %v817
        %v1806 = vunpack.c.l.b16 %v818
        %v1807 = vunpack.c.h.b16 %v818
        %v1808 = vunpack.c.l.b16 %v819
        %v1809 = vunpack.c.h.b16 %v819
        %v1810 = vunpack.c.l.b16 %v820
        %v1811 = vunpack.c.h.b16 %v820
        %v1812 = vunpack.c.l.b16 %v821
        %v1813 = vunpack.c.h.b16 %v821
        %v1814 = vunpack.c.l.b16 %v822
        %v1815 = vunpack.c.h.b16 %v822
        %v1816 = vunpack.c.l.b16 %v823
        %v1817 = vunpack.c.h.b16 %v823
        %v1818 = vunpack.c.l.b16 %v824
        %v1819 = vunpack.c.h.b16 %v824
        %v1820 = vunpack.c.l.b16 %v825
        %v1821 = vunpack.c.h.b16 %v825
        %v1822 = vunpack.c.l.b16 %v826
        %v1823 = vunpack.c.h.b16 %v826
        %v1824 = vunpack.c.l.b16 %v827
        %v1825 = vunpack.c.h.b16 %v827
        %v1826 = vunpack.c.l.b16 %v828
        %v1827 = vunpack.c.h.b16 %v828
        %v1828 = vunpack.c.l.b16 %v829
        %v1829 = vunpack.c.h.b16 %v829
        %v1830 = vunpack.c.l.b16 %v830
        %v1831 = vunpack.c.h.b16 %v830
        %v1832 = vunpack.c.l.b16 %v831
        %v1833 = vunpack.c.h.b16 %v831
        %v1834 = vunpack.c.l.b16 %v832
        %v1835 = vunpack.c.h.b16 %v832
        %v1836 = vunpack.c.l.b16 %v833
        %v1837 = vunpack.c.h.b16 %v833
        %v1838 = vunpack.c.l.b16 %v834
        %v1839 = vunpack.c.h.b16 %v834
        %v1840 = vunpack.c.l.b16 %v835
        %v1841 = vunpack.c.h.b16 %v835
        %v1842 = vunpack.c.l.b16 %v836
        %v1843 = vunpack.c.h.b16 %v836
        %v1844 = vunpack.c.l.b16 %v837
        %v1845 = vunpack.c.h.b16 %v837
        %v1846 = vunpack.c.l.b16 %v838
        %v1847 = vunpack.c.h.b16 %v838
        %v1848 = vunpack.c.l.b16 %v839
        %v1849 = vunpack.c.h.b16 %v839
        %v1850 = vunpack.c.l.b16 %v840
        %v1851 = vunpack.c.h.b16 %v840
        %v1852 = vunpack.c.l.b16 %v841
        %v1853 = vunpack.c.h.b16 %v841
        %v1854 = vunpack.c.l.b16 %v842
        %v1855 = vunpack.c.h.b16 %v842
        %v1856 = vunpack.c.l.b16 %v843
        %v1857 = vunpack.c.h.b16 %v843
        %v1858 = vunpack.c.l.b16 %v844
        %v1859 = vunpack.c.h.b16 %v844
        %v1860 = vunpack.c.l.b16 %v845
        %v1861 = vunpack.c.h.b16 %v845
        %v1862 = vunpack.c.l.b16 %v846
        %v1863 = vunpack.c.h.b16 %v846
        %v1864 = vunpack.c.l.b16 %v847
        %v1865 = vunpack.c.h.b16 %v847
        %v1866 = vunpack.c.l.b16 %v848
        %v1867 = vunpack.c.h.b16 %v848
        %v1868 = vunpack.c.l.b16 %v849
        %v1869 = vunpack.c.h.b16 %v849
        %v1870 = vunpack.c.l.b16 %v850
        %v1871 = vunpack.c.h.b16 %v850
        %v1872 = vunpack.c.l.b16 %v851
        %v1873 = vunpack.c.h.b16 %v851
        %v1874 = vunpack.c.l.b16 %v852
        %v1875 = vunpack.c.h.b16 %v852
        %v1876 = vunpack.c.l.b16 %v853
        %v1877 = vunpack.c.h.b16 %v853
        %v1878 = vunpack.c.l.b16 %v854
        %v1879 = vunpack.c.h.b16 %v854
        %v1880 = vunpack.c.l.b16 %v855
        %v1881 = vunpack.c.h.b16 %v855
        %v1882 = vunpack.c.l.b16 %v856
        %v1883 = vunpack.c.h.b16 %v856
        %v1884 = vunpack.c.l.b16 %v857
        %v1885 = vunpack.c.h.b16 %v857
        %v1886 = vunpack.c.l.b16 %v858
        %v1887 = vunpack.c.h.b16 %v858
        %v1888 = vpack.c.b16 %v1384, %v1376
        %v1889 = vpack.c.b16 %v1385, %v1377
        %v1890 = vpack.c.b16 %v1386, %v1378
        %v1891 = vpack.c.b16 %v1387, %v1379
        %v1892 = vpack.c.b16 %v1388, %v1380
        %v1893 = vpack.c.b16 %v1389, %v1381
        %v1894 = vpack.c.b16 %v1390, %v1382
        %v1895 = vpack.c.b16 %v1391, %v1383
        %v1896 = vpack.c.b16 %v1400, %v1392
        %v1897 = vpack.c.b16 %v1401, %v1393
        %v1898 = vpack.c.b16 %v1402, %v1394
        %v1899 = vpack.c.b16 %v1403, %v1395
        %v1900 = vpack.c.b16 %v1404, %v1396
        %v1901 = vpack.c.b16 %v1405, %v1397
        %v1902 = vpack.c.b16 %v1406, %v1398
        %v1903 = vpack.c.b16 %v1407, %v1399
        %v1904 = vpack.c.b16 %v1416, %v1408
        %v1905 = vpack.c.b16 %v1417, %v1409
        %v1906 = vpack.c.b16 %v1418, %v1410
        %v1907 = vpack.c.b16 %v1419, %v1411
        %v1908 = vpack.c.b16 %v1420, %v1412
        %v1909 = vpack.c.b16 %v1421, %v1413
        %v1910 = vpack.c.b16 %v1422, %v1414
        %v1911 = vpack.c.b16 %v1423, %v1415
        %v1912 = vpack.c.b16 %v1432, %v1424
        %v1913 = vpack.c.b16 %v1433, %v1425
        %v1914 = vpack.c.b16 %v1434, %v1426
        %v1915 = vpack.c.b16 %v1435, %v1427
        %v1916 = vpack.c.b16 %v1436, %v1428
        %v1917 = vpack.c.b16 %v1437, %v1429
        %v1918 = vpack.c.b16 %v1438, %v1430
        %v1919 = vpack.c.b16 %v1439, %v1431
        %v1920 = vpack.c.b16 %v1448, %v1440
        %v1921 = vpack.c.b16 %v1449, %v1441
        %v1922 = vpack.c.b16 %v1450, %v1442
        %v1923 = vpack.c.b16 %v1451, %v1443
        %v1924 = vpack.c.b16 %v1452, %v1444
        %v1925 = vpack.c.b16 %v1453, %v1445
        %v1926 = vpack.c.b16 %v1454, %v1446
        %v1927 = vpack.c.b16 %v1455, %v1447
        %v1928 = vpack.c.b16 %v1464, %v1456
        %v1929 = vpack.c.b16 %v1465, %v1457
        %v1930 = vpack.c.b16 %v1466, %v1458
        %v1931 = vpack.c.b16 %v1467, %v1459
        %v1932 = vpack.c.b16 %v1468, %v1460
        %v1933 = vpack.c.b16 %v1469, %v1461
        %v1934 = vpack.c.b16 %v1470, %v1462
        %v1935 = vpack.c.b16 %v1471, %v1463
        %v1936 = vpack.c.b16 %v1480, %v1472
        %v1937 = vpack.c.b16 %v1481, %v1473
        %v1938 = vpack.c.b16 %v1482, %v1474
        %v1939 = vpack.c.b16 %v1483, %v1475
        %v1940 = vpack.c.b16 %v1484, %v1476
        %v1941 = vpack.c.b16 %v1485, %v1477
        %v1942 = vpack.c.b16 %v1486, %v1478
        %v1943 = vpack.c.b16 %v1487, %v1479
        %v1944 = vpack.c.b16 %v1496, %v1488
        %v1945 = vpack.c.b16 %v1497, %v1489
        %v1946 = vpack.c.b16 %v1498, %v1490
        %v1947 = vpack.c.b16 %v1499, %v1491
        %v1948 = vpack.c.b16 %v1500, %v1492
        %v1949 = vpack.c.b16 %v1501, %v1493
        %v1950 = vpack.c.b16 %v1502, %v1494
        %v1951 = vpack.c.b16 %v1503, %v1495
        %v1952 = vpack.c.b16 %v1512, %v1504
        %v1953 = vpack.c.b16 %v1513, %v1505
        %v1954 = vpack.c.b16 %v1514, %v1506
        %v1955 = vpack.c.b16 %v1515, %v1507
        %v1956 = vpack.c.b16 %v1516, %v1508
        %v1957 = vpack.c.b16 %v1517, %v1509
        %v1958 = vpack.c.b16 %v1518, %v1510
        %v1959 = vpack.c.b16 %v1519, %v1511
        %v1960 = vpack.c.b16 %v1528, %v1520
        %v1961 = vpack.c.b16 %v1529, %v1521
        %v1962 = vpack.c.b16 %v1530, %v1522
        %v1963 = vpack.c.b16 %v1531, %v1523
        %v1964 = vpack.c.b16 %v1532, %v1524
        %v1965 = vpack.c.b16 %v1533, %v1525
        %v1966 = vpack.c.b16 %v1534, %v1526
        %v1967 = vpack.c.b16 %v1535, %v1527
        %v1968 = vpack.c.b16 %v1544, %v1536
        %v1969 = vpack.c.b16 %v1545, %v1537
        %v1970 = vpack.c.b16 %v1546, %v1538
        %v1971 = vpack.c.b16 %v1547, %v1539
        %v1972 = vpack.c.b16 %v1548, %v1540
        %v1973 = vpack.c.b16 %v1549, %v1541
        %v1974 = vpack.c.b16 %v1550, %v1542
        %v1975 = vpack.c.b16 %v1551, %v1543
        %v1976 = vpack.c.b16 %v1560, %v1552
        %v1977 = vpack.c.b16 %v1561, %v1553
        %v1978 = vpack.c.b16 %v1562, %v1554
        %v1979 = vpack.c.b16 %v1563, %v1555
        %v1980 = vpack.c.b16 %v1564, %v1556
        %v1981 = vpack.c.b16 %v1565, %v1557
        %v1982 = vpack.c.b16 %v1566, %v1558
        %v1983 = vpack.c.b16 %v1567, %v1559
        %v1984 = vpack.c.b16 %v1576, %v1568
        %v1985 = vpack.c.b16 %v1577, %v1569
        %v1986 = vpack.c.b16 %v1578, %v1570
        %v1987 = vpack.c.b16 %v1579, %v1571
        %v1988 = vpack.c.b16 %v1580, %v1572
        %v1989 = vpack.c.b16 %v1581, %v1573
        %v1990 = vpack.c.b16 %v1582, %v1574
        %v1991 = vpack.c.b16 %v1583, %v1575
        %v1992 = vpack.c.b16 %v1592, %v1584
        %v1993 = vpack.c.b16 %v1593, %v1585
        %v1994 = vpack.c.b16 %v1594, %v1586
        %v1995 = vpack.c.b16 %v1595, %v1587
        %v1996 = vpack.c.b16 %v1596, %v1588
        %v1997 = vpack.c.b16 %v1597, %v1589
        %v1998 = vpack.c.b16 %v1598, %v1590
        %v1999 = vpack.c.b16 %v1599, %v1591
        %v2000 = vpack.c.b16 %v1608, %v1600
        %v2001 = vpack.c.b16 %v1609, %v1601
        %v2002 = vpack.c.b16 %v1610, %v1602
        %v2003 = vpack.c.b16 %v1611, %v1603
        %v2004 = vpack.c.b16 %v1612, %v1604
        %v2005 = vpack.c.b16 %v1613, %v1605
        %v2006 = vpack.c.b16 %v1614, %v1606
        %v2007 = vpack.c.b16 %v1615, %v1607
        %v2008 = vpack.c.b16 %v1624, %v1616
        %v2009 = vpack.c.b16 %v1625, %v1617
        %v2010 = vpack.c.b16 %v1626, %v1618
        %v2011 = vpack.c.b16 %v1627, %v1619
        %v2012 = vpack.c.b16 %v1628, %v1620
        %v2013 = vpack.c.b16 %v1629, %v1621
        %v2014 = vpack.c.b16 %v1630, %v1622
        %v2015 = vpack.c.b16 %v1631, %v1623
        %v2016 = vpack.c.b16 %v1640, %v1632
        %v2017 = vpack.c.b16 %v1641, %v1633
        %v2018 = vpack.c.b16 %v1642, %v1634
        %v2019 = vpack.c.b16 %v1643, %v1635
        %v2020 = vpack.c.b16 %v1644, %v1636
        %v2021 = vpack.c.b16 %v1645, %v1637
        %v2022 = vpack.c.b16 %v1646, %v1638
        %v2023 = vpack.c.b16 %v1647, %v1639
        %v2024 = vpack.c.b16 %v1656, %v1648
        %v2025 = vpack.c.b16 %v1657, %v1649
        %v2026 = vpack.c.b16 %v1658, %v1650
        %v2027 = vpack.c.b16 %v1659, %v1651
        %v2028 = vpack.c.b16 %v1660, %v1652
        %v2029 = vpack.c.b16 %v1661, %v1653
        %v2030 = vpack.c.b16 %v1662, %v1654
        %v2031 = vpack.c.b16 %v1663, %v1655
        %v2032 = vpack.c.b16 %v1672, %v1664
        %v2033 = vpack.c.b16 %v1673, %v1665
        %v2034 = vpack.c.b16 %v1674, %v1666
        %v2035 = vpack.c.b16 %v1675, %v1667
        %v2036 = vpack.c.b16 %v1676, %v1668
        %v2037 = vpack.c.b16 %v1677, %v1669
        %v2038 = vpack.c.b16 %v1678, %v1670
        %v2039 = vpack.c.b16 %v1679, %v1671
        %v2040 = vpack.c.b16 %v1688, %v1680
        %v2041 = vpack.c.b16 %v1689, %v1681
        %v2042 = vpack.c.b16 %v1690, %v1682
        %v2043 = vpack.c.b16 %v1691, %v1683
        %v2044 = vpack.c.b16 %v1692, %v1684
        %v2045 = vpack.c.b16 %v1693, %v1685
        %v2046 = vpack.c.b16 %v1694, %v1686
        %v2047 = vpack.c.b16 %v1695, %v1687
        %v2048 = vpack.c.b16 %v1704, %v1696
        %v2049 = vpack.c.b16 %v1705, %v1697
        %v2050 = vpack.c.b16 %v1706, %v1698
        %v2051 = vpack.c.b16 %v1707, %v1699
        %v2052 = vpack.c.b16 %v1708, %v1700
        %v2053 = vpack.c.b16 %v1709, %v1701
        %v2054 = vpack.c.b16 %v1710, %v1702
        %v2055 = vpack.c.b16 %v1711, %v1703
        %v2056 = vpack.c.b16 %v1720, %v1712
        %v2057 = vpack.c.b16 %v1721, %v1713
        %v2058 = vpack.c.b16 %v1722, %v1714
        %v2059 = vpack.c.b16 %v1723, %v1715
        %v2060 = vpack.c.b16 %v1724, %v1716
        %v2061 = vpack.c.b16 %v1725, %v1717
        %v2062 = vpack.c.b16 %v1726, %v1718
        %v2063 = vpack.c.b16 %v1727, %v1719
        %v2064 = vpack.c.b16 %v1736, %v1728
        %v2065 = vpack.c.b16 %v1737, %v1729
        %v2066 = vpack.c.b16 %v1738, %v1730
        %v2067 = vpack.c.b16 %v1739, %v1731
        %v2068 = vpack.c.b16 %v1740, %v1732
        %v2069 = vpack.c.b16 %v1741, %v1733
        %v2070 = vpack.c.b16 %v1742, %v1734
        %v2071 = vpack.c.b16 %v1743, %v1735
        %v2072 = vpack.c.b16 %v1752, %v1744
        %v2073 = vpack.c.b16 %v1753, %v1745
        %v2074 = vpack.c.b16 %v1754, %v1746
        %v2075 = vpack.c.b16 %v1755, %v1747
        %v2076 = vpack.c.b16 %v1756, %v1748
        %v2077 = vpack.c.b16 %v1757, %v1749
        %v2078 = vpack.c.b16 %v1758, %v1750
        %v2079 = vpack.c.b16 %v1759, %v1751
        %v2080 = vpack.c.b16 %v1768, %v1760
        %v2081 = vpack.c.b16 %v1769, %v1761
        %v2082 = vpack.c.b16 %v1770, %v1762
        %v2083 = vpack.c.b16 %v1771, %v1763
        %v2084 = vpack.c.b16 %v1772, %v1764
        %v2085 = vpack.c.b16 %v1773, %v1765
        %v2086 = vpack.c.b16 %v1774, %v1766
        %v2087 = vpack.c.b16 %v1775, %v1767
        %v2088 = vpack.c.b16 %v1784, %v1776
        %v2089 = vpack.c.b16 %v1785, %v1777
        %v2090 = vpack.c.b16 %v1786, %v1778
        %v2091 = vpack.c.b16 %v1787, %v1779
        %v2092 = vpack.c.b16 %v1788, %v1780
        %v2093 = vpack.c.b16 %v1789, %v1781
        %v2094 = vpack.c.b16 %v1790, %v1782
        %v2095 = vpack.c.b16 %v1791, %v1783
        %v2096 = vpack.c.b16 %v1800, %v1792
        %v2097 = vpack.c.b16 %v1801, %v1793
        %v2098 = vpack.c.b16 %v1802, %v1794
        %v2099 = vpack.c.b16 %v1803, %v1795
        %v2100 = vpack.c.b16 %v1804, %v1796
        %v2101 = vpack.c.b16 %v1805, %v1797
        %v2102 = vpack.c.b16 %v1806, %v1798
        %v2103 = vpack.c.b16 %v1807, %v1799
        %v2104 = vpack.c.b16 %v1816, %v1808
        %v2105 = vpack.c.b16 %v1817, %v1809
        %v2106 = vpack.c.b16 %v1818, %v1810
        %v2107 = vpack.c.b16 %v1819, %v1811
        %v2108 = vpack.c.b16 %v1820, %v1812
        %v2109 = vpack.c.b16 %v1821, %v1813
        %v2110 = vpack.c.b16 %v1822, %v1814
        %v2111 = vpack.c.b16 %v1823, %v1815
        %v2112 = vpack.c.b16 %v1832, %v1824
        %v2113 = vpack.c.b16 %v1833, %v1825
        %v2114 = vpack.c.b16 %v1834, %v1826
        %v2115 = vpack.c.b16 %v1835, %v1827
        %v2116 = vpack.c.b16 %v1836, %v1828
        %v2117 = vpack.c.b16 %v1837, %v1829
        %v2118 = vpack.c.b16 %v1838, %v1830
        %v2119 = vpack.c.b16 %v1839, %v1831
        %v2120 = vpack.c.b16 %v1848, %v1840
        %v2121 = vpack.c.b16 %v1849, %v1841
        %v2122 = vpack.c.b16 %v1850, %v1842
        %v2123 = vpack.c.b16 %v1851, %v1843
        %v2124 = vpack.c.b16 %v1852, %v1844
        %v2125 = vpack.c.b16 %v1853, %v1845
        %v2126 = vpack.c.b16 %v1854, %v1846
        %v2127 = vpack.c.b16 %v1855, %v1847
        %v2128 = vpack.c.b16 %v1864, %v1856
        %v2129 = vpack.c.b16 %v1865, %v1857
        %v2130 = vpack.c.b16 %v1866, %v1858
        %v2131 = vpack.c.b16 %v1867, %v1859
        %v2132 = vpack.c.b16 %v1868, %v1860
        %v2133 = vpack.c.b16 %v1869, %v1861
        %v2134 = vpack.c.b16 %v1870, %v1862
        %v2135 = vpack.c.b16 %v1871, %v1863
        %v2136 = vpack.c.b16 %v1880, %v1872
        %v2137 = vpack.c.b16 %v1881, %v1873
        %v2138 = vpack.c.b16 %v1882, %v1874
        %v2139 = vpack.c.b16 %v1883, %v1875
        %v2140 = vpack.c.b16 %v1884, %v1876
        %v2141 = vpack.c.b16 %v1885, %v1877
        %v2142 = vpack.c.b16 %v1886, %v1878
        %v2143 = vpack.c.b16 %v1887, %v1879
        %2400 = vmatprep.subr.bf16.mxu0 %v1945
        %2401 = vmatpush1.bf16.msra.mxu0 %v1944
        %2402 = vmatprep.subr.bf16.mxu0 %v1937
        %2403 = vmatpush1.bf16.msra.mxu0 %v1936
        %2404 = vmatprep.subr.bf16.mxu0 %v1929
        %2405 = vmatpush1.bf16.msra.mxu0 %v1928
        %2406 = vmatprep.subr.bf16.mxu0 %v1921
        %2407 = vmatpush1.bf16.msra.mxu0 %v1920
        %2408 = vmatprep.subr.bf16.mxu0 %v1913
        %2409 = vmatpush1.bf16.msra.mxu0 %v1912
        %2410 = vmatprep.subr.bf16.mxu0 %v1905
        %2411 = vmatpush1.bf16.msra.mxu0 %v1904
        %2412 = vmatprep.subr.bf16.mxu0 %v1897
        %2413 = vmatpush1.bf16.msra.mxu0 %v1896
        %2414 = vmatprep.subr.bf16.mxu0 %v1889
        %2415 = vmatpush1.bf16.msra.mxu0 %v1888
        %2416 = vmatprep.subr.bf16.mxu0 %v2009
        %2417 = vmatpush2.bf16.msra.mxu0 %v2008
        %2418 = vmatprep.subr.bf16.mxu0 %v2001
        %2419 = vmatpush2.bf16.msra.mxu0 %v2000
        %2420 = vmatprep.subr.bf16.mxu0 %v1993
        %2421 = vmatpush2.bf16.msra.mxu0 %v1992
        %2422 = vmatprep.subr.bf16.mxu0 %v1985
        %2423 = vmatpush2.bf16.msra.mxu0 %v1984
        %2424 = vmatprep.subr.bf16.mxu0 %v1977
        %2425 = vmatpush2.bf16.msra.mxu0 %v1976
        %2426 = vmatprep.subr.bf16.mxu0 %v1969
        %2427 = vmatpush2.bf16.msra.mxu0 %v1968
        %2428 = vmatprep.subr.bf16.mxu0 %v1961
        %2429 = vmatpush2.bf16.msra.mxu0 %v1960
        %2430 = vmatprep.subr.bf16.mxu0 %v1953
        %2431 = vmatpush2.bf16.msra.mxu0 %v1952
        %2432 = vmatprep.mubr.bf16.mxu0 %v307
        %2433 = vmatmul.mubr.bf16.gmra.mxu0 %v306
        %v2434 = vpop.f32.mrf.mxu0
        %v2435 = vadd.f32 0.0, %v2434
        %v2436 = vpop.f32.mrf.mxu0
        %v2437 = vadd.f32 0.0, %v2436
        %v2438 = vpop.f32.mrf.mxu0
        %v2439 = vpop.f32.mrf.mxu0
        %2440 = vdwg.mxu0
        %2441 = vmatprep.subr.bf16.mxu0 %v2073
        %2442 = vmatpush1.bf16.msra.mxu0 %v2072
        %2443 = vmatprep.subr.bf16.mxu0 %v2065
        %2444 = vmatpush1.bf16.msra.mxu0 %v2064
        %2445 = vmatprep.subr.bf16.mxu0 %v2057
        %2446 = vmatpush1.bf16.msra.mxu0 %v2056
        %2447 = vmatprep.subr.bf16.mxu0 %v2049
        %2448 = vmatpush1.bf16.msra.mxu0 %v2048
        %2449 = vmatprep.subr.bf16.mxu0 %v2041
        %2450 = vmatpush1.bf16.msra.mxu0 %v2040
        %2451 = vmatprep.subr.bf16.mxu0 %v2033
        %2452 = vmatpush1.bf16.msra.mxu0 %v2032
        %2453 = vmatprep.subr.bf16.mxu0 %v2025
        %2454 = vmatpush1.bf16.msra.mxu0 %v2024
        %2455 = vmatprep.subr.bf16.mxu0 %v2017
        %2456 = vmatpush1.bf16.msra.mxu0 %v2016
        %2457 = vmatprep.subr.bf16.mxu0 %v2137
        %2458 = vmatpush2.bf16.msra.mxu0 %v2136
        %2459 = vmatprep.subr.bf16.mxu0 %v2129
        %2460 = vmatpush2.bf16.msra.mxu0 %v2128
        %2461 = vmatprep.subr.bf16.mxu0 %v2121
        %2462 = vmatpush2.bf16.msra.mxu0 %v2120
        %2463 = vmatprep.subr.bf16.mxu0 %v2113
        %2464 = vmatpush2.bf16.msra.mxu0 %v2112
        %2465 = vmatprep.subr.bf16.mxu0 %v2105
        %2466 = vmatpush2.bf16.msra.mxu0 %v2104
        %2467 = vmatprep.subr.bf16.mxu0 %v2097
        %2468 = vmatpush2.bf16.msra.mxu0 %v2096
        %2469 = vmatprep.subr.bf16.mxu0 %v2089
        %2470 = vmatpush2.bf16.msra.mxu0 %v2088
        %2471 = vmatprep.subr.bf16.mxu0 %v2081
        %2472 = vmatpush2.bf16.msra.mxu0 %v2080
        %2473 = vmatprep.mubr.bf16.mxu0 %v309
        %2474 = vmatmul.mubr.bf16.gmra.mxu0 %v308
        %v2475 = vpop.f32.mrf.mxu0
        %v2476 = vadd.f32 %v2435, %v2475
        %v2477 = vpop.f32.mrf.mxu0
        %v2478 = vadd.f32 %v2437, %v2477
        %v2479 = vpop.f32.mrf.mxu0
        %v2480 = vpop.f32.mrf.mxu0
        %2481 = vdwg.mxu0
        %2482 = vmatprep.subr.bf16.mxu0 %v1947
        %2483 = vmatpush1.bf16.msra.mxu0 %v1946
        %2484 = vmatprep.subr.bf16.mxu0 %v1939
        %2485 = vmatpush1.bf16.msra.mxu0 %v1938
        %2486 = vmatprep.subr.bf16.mxu0 %v1931
        %2487 = vmatpush1.bf16.msra.mxu0 %v1930
        %2488 = vmatprep.subr.bf16.mxu0 %v1923
        %2489 = vmatpush1.bf16.msra.mxu0 %v1922
        %2490 = vmatprep.subr.bf16.mxu0 %v1915
        %2491 = vmatpush1.bf16.msra.mxu0 %v1914
        %2492 = vmatprep.subr.bf16.mxu0 %v1907
        %2493 = vmatpush1.bf16.msra.mxu0 %v1906
        %2494 = vmatprep.subr.bf16.mxu0 %v1899
        %2495 = vmatpush1.bf16.msra.mxu0 %v1898
        %2496 = vmatprep.subr.bf16.mxu0 %v1891
        %2497 = vmatpush1.bf16.msra.mxu0 %v1890
        %2498 = vmatprep.subr.bf16.mxu0 %v2011
        %2499 = vmatpush2.bf16.msra.mxu0 %v2010
        %2500 = vmatprep.subr.bf16.mxu0 %v2003
        %2501 = vmatpush2.bf16.msra.mxu0 %v2002
        %2502 = vmatprep.subr.bf16.mxu0 %v1995
        %2503 = vmatpush2.bf16.msra.mxu0 %v1994
        %2504 = vmatprep.subr.bf16.mxu0 %v1987
        %2505 = vmatpush2.bf16.msra.mxu0 %v1986
        %2506 = vmatprep.subr.bf16.mxu0 %v1979
        %2507 = vmatpush2.bf16.msra.mxu0 %v1978
        %2508 = vmatprep.subr.bf16.mxu0 %v1971
        %2509 = vmatpush2.bf16.msra.mxu0 %v1970
        %2510 = vmatprep.subr.bf16.mxu0 %v1963
        %2511 = vmatpush2.bf16.msra.mxu0 %v1962
        %2512 = vmatprep.subr.bf16.mxu0 %v1955
        %2513 = vmatpush2.bf16.msra.mxu0 %v1954
        %2514 = vmatprep.mubr.bf16.mxu0 %v307
        %2515 = vmatmul.mubr.bf16.gmra.mxu0 %v306
        %v2516 = vpop.f32.mrf.mxu0
        %v2517 = vadd.f32 0.0, %v2516
        %v2518 = vpop.f32.mrf.mxu0
        %v2519 = vadd.f32 0.0, %v2518
        %v2520 = vpop.f32.mrf.mxu0
        %v2521 = vpop.f32.mrf.mxu0
        %2522 = vdwg.mxu0
        %2523 = vmatprep.subr.bf16.mxu0 %v2075
        %2524 = vmatpush1.bf16.msra.mxu0 %v2074
        %2525 = vmatprep.subr.bf16.mxu0 %v2067
        %2526 = vmatpush1.bf16.msra.mxu0 %v2066
        %2527 = vmatprep.subr.bf16.mxu0 %v2059
        %2528 = vmatpush1.bf16.msra.mxu0 %v2058
        %2529 = vmatprep.subr.bf16.mxu0 %v2051
        %2530 = vmatpush1.bf16.msra.mxu0 %v2050
        %2531 = vmatprep.subr.bf16.mxu0 %v2043
        %2532 = vmatpush1.bf16.msra.mxu0 %v2042
        %2533 = vmatprep.subr.bf16.mxu0 %v2035
        %2534 = vmatpush1.bf16.msra.mxu0 %v2034
        %2535 = vmatprep.subr.bf16.mxu0 %v2027
        %2536 = vmatpush1.bf16.msra.mxu0 %v2026
        %2537 = vmatprep.subr.bf16.mxu0 %v2019
        %2538 = vmatpush1.bf16.msra.mxu0 %v2018
        %2539 = vmatprep.subr.bf16.mxu0 %v2139
        %2540 = vmatpush2.bf16.msra.mxu0 %v2138
        %2541 = vmatprep.subr.bf16.mxu0 %v2131
        %2542 = vmatpush2.bf16.msra.mxu0 %v2130
        %2543 = vmatprep.subr.bf16.mxu0 %v2123
        %2544 = vmatpush2.bf16.msra.mxu0 %v2122
        %2545 = vmatprep.subr.bf16.mxu0 %v2115
        %2546 = vmatpush2.bf16.msra.mxu0 %v2114
        %2547 = vmatprep.subr.bf16.mxu0 %v2107
        %2548 = vmatpush2.bf16.msra.mxu0 %v2106
        %2549 = vmatprep.subr.bf16.mxu0 %v2099
        %2550 = vmatpush2.bf16.msra.mxu0 %v2098
        %2551 = vmatprep.subr.bf16.mxu0 %v2091
        %2552 = vmatpush2.bf16.msra.mxu0 %v2090
        %2553 = vmatprep.subr.bf16.mxu0 %v2083
        %2554 = vmatpush2.bf16.msra.mxu0 %v2082
        %2555 = vmatprep.mubr.bf16.mxu0 %v309
        %2556 = vmatmul.mubr.bf16.gmra.mxu0 %v308
        %v2557 = vpop.f32.mrf.mxu0
        %v2558 = vadd.f32 %v2517, %v2557
        %v2559 = vpop.f32.mrf.mxu0
        %v2560 = vadd.f32 %v2519, %v2559
        %v2561 = vpop.f32.mrf.mxu0
        %v2562 = vpop.f32.mrf.mxu0
        %2563 = vdwg.mxu0
        %2564 = vmatprep.subr.bf16.mxu0 %v1949
        %2565 = vmatpush1.bf16.msra.mxu0 %v1948
        %2566 = vmatprep.subr.bf16.mxu0 %v1941
        %2567 = vmatpush1.bf16.msra.mxu0 %v1940
        %2568 = vmatprep.subr.bf16.mxu0 %v1933
        %2569 = vmatpush1.bf16.msra.mxu0 %v1932
        %2570 = vmatprep.subr.bf16.mxu0 %v1925
        %2571 = vmatpush1.bf16.msra.mxu0 %v1924
        %2572 = vmatprep.subr.bf16.mxu0 %v1917
        %2573 = vmatpush1.bf16.msra.mxu0 %v1916
        %2574 = vmatprep.subr.bf16.mxu0 %v1909
        %2575 = vmatpush1.bf16.msra.mxu0 %v1908
        %2576 = vmatprep.subr.bf16.mxu0 %v1901
        %2577 = vmatpush1.bf16.msra.mxu0 %v1900
        %2578 = vmatprep.subr.bf16.mxu0 %v1893
        %2579 = vmatpush1.bf16.msra.mxu0 %v1892
        %2580 = vmatprep.subr.bf16.mxu0 %v2013
        %2581 = vmatpush2.bf16.msra.mxu0 %v2012
        %2582 = vmatprep.subr.bf16.mxu0 %v2005
        %2583 = vmatpush2.bf16.msra.mxu0 %v2004
        %2584 = vmatprep.subr.bf16.mxu0 %v1997
        %2585 = vmatpush2.bf16.msra.mxu0 %v1996
        %2586 = vmatprep.subr.bf16.mxu0 %v1989
        %2587 = vmatpush2.bf16.msra.mxu0 %v1988
        %2588 = vmatprep.subr.bf16.mxu0 %v1981
        %2589 = vmatpush2.bf16.msra.mxu0 %v1980
        %2590 = vmatprep.subr.bf16.mxu0 %v1973
        %2591 = vmatpush2.bf16.msra.mxu0 %v1972
        %2592 = vmatprep.subr.bf16.mxu0 %v1965
        %2593 = vmatpush2.bf16.msra.mxu0 %v1964
        %2594 = vmatprep.subr.bf16.mxu0 %v1957
        %2595 = vmatpush2.bf16.msra.mxu0 %v1956
        %2596 = vmatprep.mubr.bf16.mxu0 %v307
        %2597 = vmatmul.mubr.bf16.gmra.mxu0 %v306
        %v2598 = vpop.f32.mrf.mxu0
        %v2599 = vadd.f32 0.0, %v2598
        %v2600 = vpop.f32.mrf.mxu0
        %v2601 = vadd.f32 0.0, %v2600
        %v2602 = vpop.f32.mrf.mxu0
        %v2603 = vpop.f32.mrf.mxu0
        %2604 = vdwg.mxu0
        %2605 = vmatprep.subr.bf16.mxu0 %v2077
        %2606 = vmatpush1.bf16.msra.mxu0 %v2076
        %2607 = vmatprep.subr.bf16.mxu0 %v2069
        %2608 = vmatpush1.bf16.msra.mxu0 %v2068
        %2609 = vmatprep.subr.bf16.mxu0 %v2061
        %2610 = vmatpush1.bf16.msra.mxu0 %v2060
        %2611 = vmatprep.subr.bf16.mxu0 %v2053
        %2612 = vmatpush1.bf16.msra.mxu0 %v2052
        %2613 = vmatprep.subr.bf16.mxu0 %v2045
        %2614 = vmatpush1.bf16.msra.mxu0 %v2044
        %2615 = vmatprep.subr.bf16.mxu0 %v2037
        %2616 = vmatpush1.bf16.msra.mxu0 %v2036
        %2617 = vmatprep.subr.bf16.mxu0 %v2029
        %2618 = vmatpush1.bf16.msra.mxu0 %v2028
        %2619 = vmatprep.subr.bf16.mxu0 %v2021
        %2620 = vmatpush1.bf16.msra.mxu0 %v2020
        %2621 = vmatprep.subr.bf16.mxu0 %v2141
        %2622 = vmatpush2.bf16.msra.mxu0 %v2140
        %2623 = vmatprep.subr.bf16.mxu0 %v2133
        %2624 = vmatpush2.bf16.msra.mxu0 %v2132
        %2625 = vmatprep.subr.bf16.mxu0 %v2125
        %2626 = vmatpush2.bf16.msra.mxu0 %v2124
        %2627 = vmatprep.subr.bf16.mxu0 %v2117
        %2628 = vmatpush2.bf16.msra.mxu0 %v2116
        %2629 = vmatprep.subr.bf16.mxu0 %v2109
        %2630 = vmatpush2.bf16.msra.mxu0 %v2108
        %2631 = vmatprep.subr.bf16.mxu0 %v2101
        %2632 = vmatpush2.bf16.msra.mxu0 %v2100
        %2633 = vmatprep.subr.bf16.mxu0 %v2093
        %2634 = vmatpush2.bf16.msra.mxu0 %v2092
        %2635 = vmatprep.subr.bf16.mxu0 %v2085
        %2636 = vmatpush2.bf16.msra.mxu0 %v2084
        %2637 = vmatprep.mubr.bf16.mxu0 %v309
        %2638 = vmatmul.mubr.bf16.gmra.mxu0 %v308
        %v2639 = vpop.f32.mrf.mxu0
        %v2640 = vadd.f32 %v2599, %v2639
        %v2641 = vpop.f32.mrf.mxu0
        %v2642 = vadd.f32 %v2601, %v2641
        %v2643 = vpop.f32.mrf.mxu0
        %v2644 = vpop.f32.mrf.mxu0
        %2645 = vdwg.mxu0
        %2646 = vmatprep.subr.bf16.mxu0 %v1951
        %2647 = vmatpush1.bf16.msra.mxu0 %v1950
        %2648 = vmatprep.subr.bf16.mxu0 %v1943
        %2649 = vmatpush1.bf16.msra.mxu0 %v1942
        %2650 = vmatprep.subr.bf16.mxu0 %v1935
        %2651 = vmatpush1.bf16.msra.mxu0 %v1934
        %2652 = vmatprep.subr.bf16.mxu0 %v1927
        %2653 = vmatpush1.bf16.msra.mxu0 %v1926
        %2654 = vmatprep.subr.bf16.mxu0 %v1919
        %2655 = vmatpush1.bf16.msra.mxu0 %v1918
        %2656 = vmatprep.subr.bf16.mxu0 %v1911
        %2657 = vmatpush1.bf16.msra.mxu0 %v1910
        %2658 = vmatprep.subr.bf16.mxu0 %v1903
        %2659 = vmatpush1.bf16.msra.mxu0 %v1902
        %2660 = vmatprep.subr.bf16.mxu0 %v1895
        %2661 = vmatpush1.bf16.msra.mxu0 %v1894
        %2662 = vmatprep.subr.bf16.mxu0 %v2015
        %2663 = vmatpush2.bf16.msra.mxu0 %v2014
        %2664 = vmatprep.subr.bf16.mxu0 %v2007
        %2665 = vmatpush2.bf16.msra.mxu0 %v2006
        %2666 = vmatprep.subr.bf16.mxu0 %v1999
        %2667 = vmatpush2.bf16.msra.mxu0 %v1998
        %2668 = vmatprep.subr.bf16.mxu0 %v1991
        %2669 = vmatpush2.bf16.msra.mxu0 %v1990
        %2670 = vmatprep.subr.bf16.mxu0 %v1983
        %2671 = vmatpush2.bf16.msra.mxu0 %v1982
        %2672 = vmatprep.subr.bf16.mxu0 %v1975
        %2673 = vmatpush2.bf16.msra.mxu0 %v1974
        %2674 = vmatprep.subr.bf16.mxu0 %v1967
        %2675 = vmatpush2.bf16.msra.mxu0 %v1966
        %2676 = vmatprep.subr.bf16.mxu0 %v1959
        %2677 = vmatpush2.bf16.msra.mxu0 %v1958
        %2678 = vmatprep.mubr.bf16.mxu0 %v307
        %2679 = vmatmul.mubr.bf16.gmra.mxu0 %v306
        %v2680 = vpop.f32.mrf.mxu0
        %v2681 = vadd.f32 0.0, %v2680
        %v2682 = vpop.f32.mrf.mxu0
        %v2683 = vadd.f32 0.0, %v2682
        %v2684 = vpop.f32.mrf.mxu0
        %v2685 = vpop.f32.mrf.mxu0
        %2686 = vdwg.mxu0
        %2687 = vmatprep.subr.bf16.mxu0 %v2079
        %2688 = vmatpush1.bf16.msra.mxu0 %v2078
        %2689 = vmatprep.subr.bf16.mxu0 %v2071
        %2690 = vmatpush1.bf16.msra.mxu0 %v2070
        %2691 = vmatprep.subr.bf16.mxu0 %v2063
        %2692 = vmatpush1.bf16.msra.mxu0 %v2062
        %2693 = vmatprep.subr.bf16.mxu0 %v2055
        %2694 = vmatpush1.bf16.msra.mxu0 %v2054
        %2695 = vmatprep.subr.bf16.mxu0 %v2047
        %2696 = vmatpush1.bf16.msra.mxu0 %v2046
        %2697 = vmatprep.subr.bf16.mxu0 %v2039
        %2698 = vmatpush1.bf16.msra.mxu0 %v2038
        %2699 = vmatprep.subr.bf16.mxu0 %v2031
        %2700 = vmatpush1.bf16.msra.mxu0 %v2030
        %2701 = vmatprep.subr.bf16.mxu0 %v2023
        %2702 = vmatpush1.bf16.msra.mxu0 %v2022
        %2703 = vmatprep.subr.bf16.mxu0 %v2143
        %2704 = vmatpush2.bf16.msra.mxu0 %v2142
        %2705 = vmatprep.subr.bf16.mxu0 %v2135
        %2706 = vmatpush2.bf16.msra.mxu0 %v2134
        %2707 = vmatprep.subr.bf16.mxu0 %v2127
        %2708 = vmatpush2.bf16.msra.mxu0 %v2126
        %2709 = vmatprep.subr.bf16.mxu0 %v2119
        %2710 = vmatpush2.bf16.msra.mxu0 %v2118
        %2711 = vmatprep.subr.bf16.mxu0 %v2111
        %2712 = vmatpush2.bf16.msra.mxu0 %v2110
        %2713 = vmatprep.subr.bf16.mxu0 %v2103
        %2714 = vmatpush2.bf16.msra.mxu0 %v2102
        %2715 = vmatprep.subr.bf16.mxu0 %v2095
        %2716 = vmatpush2.bf16.msra.mxu0 %v2094
        %2717 = vmatprep.subr.bf16.mxu0 %v2087
        %2718 = vmatpush2.bf16.msra.mxu0 %v2086
        %2719 = vmatprep.mubr.bf16.mxu0 %v309
        %2720 = vmatmul.mubr.bf16.gmra.mxu0 %v308
        %v2721 = vpop.f32.mrf.mxu0
        %v2722 = vadd.f32 %v2681, %v2721
        %v2723 = vpop.f32.mrf.mxu0
        %v2724 = vadd.f32 %v2683, %v2723
        %v2725 = vpop.f32.mrf.mxu0
        %v2726 = vpop.f32.mrf.mxu0
        %2727 = vdwg.mxu0
        %v2988 = vunpack.c.l.b16 %v346
        %v2989 = vunpack.c.h.b16 %v346
        %v2990 = vunpack.c.l.b16 %v347
        %v2991 = vunpack.c.h.b16 %v347
        %v2992 = vunpack.c.l.b16 %v348
        %v2993 = vunpack.c.h.b16 %v348
        %v2994 = vunpack.c.l.b16 %v349
        %v2995 = vunpack.c.h.b16 %v349
        %v2996 = vunpack.c.l.b16 %v350
        %v2997 = vunpack.c.h.b16 %v350
        %v2998 = vunpack.c.l.b16 %v351
        %v2999 = vunpack.c.h.b16 %v351
        %v3000 = vunpack.c.l.b16 %v352
        %v3001 = vunpack.c.h.b16 %v352
        %v3002 = vunpack.c.l.b16 %v353
        %v3003 = vunpack.c.h.b16 %v353
        %v3004 = vunpack.c.l.b16 %v354
        %v3005 = vunpack.c.h.b16 %v354
        %v3006 = vunpack.c.l.b16 %v355
        %v3007 = vunpack.c.h.b16 %v355
        %v3008 = vunpack.c.l.b16 %v356
        %v3009 = vunpack.c.h.b16 %v356
        %v3010 = vunpack.c.l.b16 %v357
        %v3011 = vunpack.c.h.b16 %v357
        %v3012 = vunpack.c.l.b16 %v358
        %v3013 = vunpack.c.h.b16 %v358
        %v3014 = vunpack.c.l.b16 %v359
        %v3015 = vunpack.c.h.b16 %v359
        %v3016 = vunpack.c.l.b16 %v360
        %v3017 = vunpack.c.h.b16 %v360
        %v3018 = vunpack.c.l.b16 %v361
        %v3019 = vunpack.c.h.b16 %v361
        %v3020 = vunpack.c.l.b16 %v362
        %v3021 = vunpack.c.h.b16 %v362
        %v3022 = vunpack.c.l.b16 %v363
        %v3023 = vunpack.c.h.b16 %v363
        %v3024 = vunpack.c.l.b16 %v364
        %v3025 = vunpack.c.h.b16 %v364
        %v3026 = vunpack.c.l.b16 %v365
        %v3027 = vunpack.c.h.b16 %v365
        %v3028 = vunpack.c.l.b16 %v366
        %v3029 = vunpack.c.h.b16 %v366
        %v3030 = vunpack.c.l.b16 %v367
        %v3031 = vunpack.c.h.b16 %v367
        %v3032 = vunpack.c.l.b16 %v368
        %v3033 = vunpack.c.h.b16 %v368
        %v3034 = vunpack.c.l.b16 %v369
        %v3035 = vunpack.c.h.b16 %v369
        %v3036 = vunpack.c.l.b16 %v370
        %v3037 = vunpack.c.h.b16 %v370
        %v3038 = vunpack.c.l.b16 %v371
        %v3039 = vunpack.c.h.b16 %v371
        %v3040 = vunpack.c.l.b16 %v372
        %v3041 = vunpack.c.h.b16 %v372
        %v3042 = vunpack.c.l.b16 %v373
        %v3043 = vunpack.c.h.b16 %v373
        %v3044 = vunpack.c.l.b16 %v374
        %v3045 = vunpack.c.h.b16 %v374
        %v3046 = vunpack.c.l.b16 %v375
        %v3047 = vunpack.c.h.b16 %v375
        %v3048 = vunpack.c.l.b16 %v376
        %v3049 = vunpack.c.h.b16 %v376
        %v3050 = vunpack.c.l.b16 %v377
        %v3051 = vunpack.c.h.b16 %v377
        %v3052 = vunpack.c.l.b16 %v378
        %v3053 = vunpack.c.h.b16 %v378
        %v3054 = vunpack.c.l.b16 %v379
        %v3055 = vunpack.c.h.b16 %v379
        %v3056 = vunpack.c.l.b16 %v380
        %v3057 = vunpack.c.h.b16 %v380
        %v3058 = vunpack.c.l.b16 %v381
        %v3059 = vunpack.c.h.b16 %v381
        %v3060 = vunpack.c.l.b16 %v382
        %v3061 = vunpack.c.h.b16 %v382
        %v3062 = vunpack.c.l.b16 %v383
        %v3063 = vunpack.c.h.b16 %v383
        %v3064 = vunpack.c.l.b16 %v384
        %v3065 = vunpack.c.h.b16 %v384
        %v3066 = vunpack.c.l.b16 %v385
        %v3067 = vunpack.c.h.b16 %v385
        %v3068 = vunpack.c.l.b16 %v386
        %v3069 = vunpack.c.h.b16 %v386
        %v3070 = vunpack.c.l.b16 %v387
        %v3071 = vunpack.c.h.b16 %v387
        %v3072 = vunpack.c.l.b16 %v388
        %v3073 = vunpack.c.h.b16 %v388
        %v3074 = vunpack.c.l.b16 %v389
        %v3075 = vunpack.c.h.b16 %v389
        %v3076 = vunpack.c.l.b16 %v390
        %v3077 = vunpack.c.h.b16 %v390
        %v3078 = vunpack.c.l.b16 %v391
        %v3079 = vunpack.c.h.b16 %v391
        %v3080 = vunpack.c.l.b16 %v392
        %v3081 = vunpack.c.h.b16 %v392
        %v3082 = vunpack.c.l.b16 %v393
        %v3083 = vunpack.c.h.b16 %v393
        %v3084 = vunpack.c.l.b16 %v394
        %v3085 = vunpack.c.h.b16 %v394
        %v3086 = vunpack.c.l.b16 %v395
        %v3087 = vunpack.c.h.b16 %v395
        %v3088 = vunpack.c.l.b16 %v396
        %v3089 = vunpack.c.h.b16 %v396
        %v3090 = vunpack.c.l.b16 %v397
        %v3091 = vunpack.c.h.b16 %v397
        %v3092 = vunpack.c.l.b16 %v398
        %v3093 = vunpack.c.h.b16 %v398
        %v3094 = vunpack.c.l.b16 %v399
        %v3095 = vunpack.c.h.b16 %v399
        %v3096 = vunpack.c.l.b16 %v400
        %v3097 = vunpack.c.h.b16 %v400
        %v3098 = vunpack.c.l.b16 %v401
        %v3099 = vunpack.c.h.b16 %v401
        %v3100 = vunpack.c.l.b16 %v402
        %v3101 = vunpack.c.h.b16 %v402
        %v3102 = vunpack.c.l.b16 %v403
        %v3103 = vunpack.c.h.b16 %v403
        %v3104 = vunpack.c.l.b16 %v404
        %v3105 = vunpack.c.h.b16 %v404
        %v3106 = vunpack.c.l.b16 %v405
        %v3107 = vunpack.c.h.b16 %v405
        %v3108 = vunpack.c.l.b16 %v406
        %v3109 = vunpack.c.h.b16 %v406
        %v3110 = vunpack.c.l.b16 %v407
        %v3111 = vunpack.c.h.b16 %v407
        %v3112 = vunpack.c.l.b16 %v408
        %v3113 = vunpack.c.h.b16 %v408
        %v3114 = vunpack.c.l.b16 %v409
        %v3115 = vunpack.c.h.b16 %v409
        %v3116 = vunpack.c.l.b16 %v410
        %v3117 = vunpack.c.h.b16 %v410
        %v3118 = vunpack.c.l.b16 %v411
        %v3119 = vunpack.c.h.b16 %v411
        %v3120 = vunpack.c.l.b16 %v412
        %v3121 = vunpack.c.h.b16 %v412
        %v3122 = vunpack.c.l.b16 %v413
        %v3123 = vunpack.c.h.b16 %v413
        %v3124 = vunpack.c.l.b16 %v414
        %v3125 = vunpack.c.h.b16 %v414
        %v3126 = vunpack.c.l.b16 %v415
        %v3127 = vunpack.c.h.b16 %v415
        %v3128 = vunpack.c.l.b16 %v416
        %v3129 = vunpack.c.h.b16 %v416
        %v3130 = vunpack.c.l.b16 %v417
        %v3131 = vunpack.c.h.b16 %v417
        %v3132 = vunpack.c.l.b16 %v418
        %v3133 = vunpack.c.h.b16 %v418
        %v3134 = vunpack.c.l.b16 %v419
        %v3135 = vunpack.c.h.b16 %v419
        %v3136 = vunpack.c.l.b16 %v420
        %v3137 = vunpack.c.h.b16 %v420
        %v3138 = vunpack.c.l.b16 %v421
        %v3139 = vunpack.c.h.b16 %v421
        %v3140 = vunpack.c.l.b16 %v422
        %v3141 = vunpack.c.h.b16 %v422
        %v3142 = vunpack.c.l.b16 %v423
        %v3143 = vunpack.c.h.b16 %v423
        %v3144 = vunpack.c.l.b16 %v424
        %v3145 = vunpack.c.h.b16 %v424
        %v3146 = vunpack.c.l.b16 %v425
        %v3147 = vunpack.c.h.b16 %v425
        %v3148 = vunpack.c.l.b16 %v426
        %v3149 = vunpack.c.h.b16 %v426
        %v3150 = vunpack.c.l.b16 %v427
        %v3151 = vunpack.c.h.b16 %v427
        %v3152 = vunpack.c.l.b16 %v428
        %v3153 = vunpack.c.h.b16 %v428
        %v3154 = vunpack.c.l.b16 %v429
        %v3155 = vunpack.c.h.b16 %v429
        %v3156 = vunpack.c.l.b16 %v430
        %v3157 = vunpack.c.h.b16 %v430
        %v3158 = vunpack.c.l.b16 %v431
        %v3159 = vunpack.c.h.b16 %v431
        %v3160 = vunpack.c.l.b16 %v432
        %v3161 = vunpack.c.h.b16 %v432
        %v3162 = vunpack.c.l.b16 %v433
        %v3163 = vunpack.c.h.b16 %v433
        %v3164 = vunpack.c.l.b16 %v434
        %v3165 = vunpack.c.h.b16 %v434
        %v3166 = vunpack.c.l.b16 %v435
        %v3167 = vunpack.c.h.b16 %v435
        %v3168 = vunpack.c.l.b16 %v436
        %v3169 = vunpack.c.h.b16 %v436
        %v3170 = vunpack.c.l.b16 %v437
        %v3171 = vunpack.c.h.b16 %v437
        %v3172 = vunpack.c.l.b16 %v438
        %v3173 = vunpack.c.h.b16 %v438
        %v3174 = vunpack.c.l.b16 %v439
        %v3175 = vunpack.c.h.b16 %v439
        %v3176 = vunpack.c.l.b16 %v440
        %v3177 = vunpack.c.h.b16 %v440
        %v3178 = vunpack.c.l.b16 %v441
        %v3179 = vunpack.c.h.b16 %v441
        %v3180 = vunpack.c.l.b16 %v442
        %v3181 = vunpack.c.h.b16 %v442
        %v3182 = vunpack.c.l.b16 %v443
        %v3183 = vunpack.c.h.b16 %v443
        %v3184 = vunpack.c.l.b16 %v444
        %v3185 = vunpack.c.h.b16 %v444
        %v3186 = vunpack.c.l.b16 %v445
        %v3187 = vunpack.c.h.b16 %v445
        %v3188 = vunpack.c.l.b16 %v446
        %v3189 = vunpack.c.h.b16 %v446
        %v3190 = vunpack.c.l.b16 %v447
        %v3191 = vunpack.c.h.b16 %v447
        %v3192 = vunpack.c.l.b16 %v448
        %v3193 = vunpack.c.h.b16 %v448
        %v3194 = vunpack.c.l.b16 %v449
        %v3195 = vunpack.c.h.b16 %v449
        %v3196 = vunpack.c.l.b16 %v450
        %v3197 = vunpack.c.h.b16 %v450
        %v3198 = vunpack.c.l.b16 %v451
        %v3199 = vunpack.c.h.b16 %v451
        %v3200 = vunpack.c.l.b16 %v452
        %v3201 = vunpack.c.h.b16 %v452
        %v3202 = vunpack.c.l.b16 %v453
        %v3203 = vunpack.c.h.b16 %v453
        %v3204 = vunpack.c.l.b16 %v454
        %v3205 = vunpack.c.h.b16 %v454
        %v3206 = vunpack.c.l.b16 %v455
        %v3207 = vunpack.c.h.b16 %v455
        %v3208 = vunpack.c.l.b16 %v456
        %v3209 = vunpack.c.h.b16 %v456
        %v3210 = vunpack.c.l.b16 %v457
        %v3211 = vunpack.c.h.b16 %v457
        %v3212 = vunpack.c.l.b16 %v458
        %v3213 = vunpack.c.h.b16 %v458
        %v3214 = vunpack.c.l.b16 %v459
        %v3215 = vunpack.c.h.b16 %v459
        %v3216 = vunpack.c.l.b16 %v460
        %v3217 = vunpack.c.h.b16 %v460
        %v3218 = vunpack.c.l.b16 %v461
        %v3219 = vunpack.c.h.b16 %v461
        %v3220 = vunpack.c.l.b16 %v462
        %v3221 = vunpack.c.h.b16 %v462
        %v3222 = vunpack.c.l.b16 %v463
        %v3223 = vunpack.c.h.b16 %v463
        %v3224 = vunpack.c.l.b16 %v464
        %v3225 = vunpack.c.h.b16 %v464
        %v3226 = vunpack.c.l.b16 %v465
        %v3227 = vunpack.c.h.b16 %v465
        %v3228 = vunpack.c.l.b16 %v466
        %v3229 = vunpack.c.h.b16 %v466
        %v3230 = vunpack.c.l.b16 %v467
        %v3231 = vunpack.c.h.b16 %v467
        %v3232 = vunpack.c.l.b16 %v468
        %v3233 = vunpack.c.h.b16 %v468
        %v3234 = vunpack.c.l.b16 %v469
        %v3235 = vunpack.c.h.b16 %v469
        %v3236 = vunpack.c.l.b16 %v470
        %v3237 = vunpack.c.h.b16 %v470
        %v3238 = vunpack.c.l.b16 %v471
        %v3239 = vunpack.c.h.b16 %v471
        %v3240 = vunpack.c.l.b16 %v472
        %v3241 = vunpack.c.h.b16 %v472
        %v3242 = vunpack.c.l.b16 %v473
        %v3243 = vunpack.c.h.b16 %v473
        %v3244 = vunpack.c.l.b16 %v474
        %v3245 = vunpack.c.h.b16 %v474
        %v3246 = vunpack.c.l.b16 %v475
        %v3247 = vunpack.c.h.b16 %v475
        %v3248 = vunpack.c.l.b16 %v476
        %v3249 = vunpack.c.h.b16 %v476
        %v3250 = vunpack.c.l.b16 %v477
        %v3251 = vunpack.c.h.b16 %v477
        %v3252 = vunpack.c.l.b16 %v478
        %v3253 = vunpack.c.h.b16 %v478
        %v3254 = vunpack.c.l.b16 %v479
        %v3255 = vunpack.c.h.b16 %v479
        %v3256 = vunpack.c.l.b16 %v480
        %v3257 = vunpack.c.h.b16 %v480
        %v3258 = vunpack.c.l.b16 %v481
        %v3259 = vunpack.c.h.b16 %v481
        %v3260 = vunpack.c.l.b16 %v482
        %v3261 = vunpack.c.h.b16 %v482
        %v3262 = vunpack.c.l.b16 %v483
        %v3263 = vunpack.c.h.b16 %v483
        %v3264 = vunpack.c.l.b16 %v484
        %v3265 = vunpack.c.h.b16 %v484
        %v3266 = vunpack.c.l.b16 %v485
        %v3267 = vunpack.c.h.b16 %v485
        %v3268 = vunpack.c.l.b16 %v486
        %v3269 = vunpack.c.h.b16 %v486
        %v3270 = vunpack.c.l.b16 %v487
        %v3271 = vunpack.c.h.b16 %v487
        %v3272 = vunpack.c.l.b16 %v488
        %v3273 = vunpack.c.h.b16 %v488
        %v3274 = vunpack.c.l.b16 %v489
        %v3275 = vunpack.c.h.b16 %v489
        %v3276 = vunpack.c.l.b16 %v490
        %v3277 = vunpack.c.h.b16 %v490
        %v3278 = vunpack.c.l.b16 %v491
        %v3279 = vunpack.c.h.b16 %v491
        %v3280 = vunpack.c.l.b16 %v492
        %v3281 = vunpack.c.h.b16 %v492
        %v3282 = vunpack.c.l.b16 %v493
        %v3283 = vunpack.c.h.b16 %v493
        %v3284 = vunpack.c.l.b16 %v494
        %v3285 = vunpack.c.h.b16 %v494
        %v3286 = vunpack.c.l.b16 %v495
        %v3287 = vunpack.c.h.b16 %v495
        %v3288 = vunpack.c.l.b16 %v496
        %v3289 = vunpack.c.h.b16 %v496
        %v3290 = vunpack.c.l.b16 %v497
        %v3291 = vunpack.c.h.b16 %v497
        %v3292 = vunpack.c.l.b16 %v498
        %v3293 = vunpack.c.h.b16 %v498
        %v3294 = vunpack.c.l.b16 %v499
        %v3295 = vunpack.c.h.b16 %v499
        %v3296 = vunpack.c.l.b16 %v500
        %v3297 = vunpack.c.h.b16 %v500
        %v3298 = vunpack.c.l.b16 %v501
        %v3299 = vunpack.c.h.b16 %v501
        %v3300 = vunpack.c.l.b16 %v502
        %v3301 = vunpack.c.h.b16 %v502
        %v3302 = vunpack.c.l.b16 %v503
        %v3303 = vunpack.c.h.b16 %v503
        %v3304 = vunpack.c.l.b16 %v504
        %v3305 = vunpack.c.h.b16 %v504
        %v3306 = vunpack.c.l.b16 %v505
        %v3307 = vunpack.c.h.b16 %v505
        %v3308 = vunpack.c.l.b16 %v506
        %v3309 = vunpack.c.h.b16 %v506
        %v3310 = vunpack.c.l.b16 %v507
        %v3311 = vunpack.c.h.b16 %v507
        %v3312 = vunpack.c.l.b16 %v508
        %v3313 = vunpack.c.h.b16 %v508
        %v3314 = vunpack.c.l.b16 %v509
        %v3315 = vunpack.c.h.b16 %v509
        %v3316 = vunpack.c.l.b16 %v510
        %v3317 = vunpack.c.h.b16 %v510
        %v3318 = vunpack.c.l.b16 %v511
        %v3319 = vunpack.c.h.b16 %v511
        %v3320 = vunpack.c.l.b16 %v512
        %v3321 = vunpack.c.h.b16 %v512
        %v3322 = vunpack.c.l.b16 %v513
        %v3323 = vunpack.c.h.b16 %v513
        %v3324 = vunpack.c.l.b16 %v514
        %v3325 = vunpack.c.h.b16 %v514
        %v3326 = vunpack.c.l.b16 %v515
        %v3327 = vunpack.c.h.b16 %v515
        %v3328 = vunpack.c.l.b16 %v516
        %v3329 = vunpack.c.h.b16 %v516
        %v3330 = vunpack.c.l.b16 %v517
        %v3331 = vunpack.c.h.b16 %v517
        %v3332 = vunpack.c.l.b16 %v518
        %v3333 = vunpack.c.h.b16 %v518
        %v3334 = vunpack.c.l.b16 %v519
        %v3335 = vunpack.c.h.b16 %v519
        %v3336 = vunpack.c.l.b16 %v520
        %v3337 = vunpack.c.h.b16 %v520
        %v3338 = vunpack.c.l.b16 %v521
        %v3339 = vunpack.c.h.b16 %v521
        %v3340 = vunpack.c.l.b16 %v522
        %v3341 = vunpack.c.h.b16 %v522
        %v3342 = vunpack.c.l.b16 %v523
        %v3343 = vunpack.c.h.b16 %v523
        %v3344 = vunpack.c.l.b16 %v524
        %v3345 = vunpack.c.h.b16 %v524
        %v3346 = vunpack.c.l.b16 %v525
        %v3347 = vunpack.c.h.b16 %v525
        %v3348 = vunpack.c.l.b16 %v526
        %v3349 = vunpack.c.h.b16 %v526
        %v3350 = vunpack.c.l.b16 %v527
        %v3351 = vunpack.c.h.b16 %v527
        %v3352 = vunpack.c.l.b16 %v528
        %v3353 = vunpack.c.h.b16 %v528
        %v3354 = vunpack.c.l.b16 %v529
        %v3355 = vunpack.c.h.b16 %v529
        %v3356 = vunpack.c.l.b16 %v530
        %v3357 = vunpack.c.h.b16 %v530
        %v3358 = vunpack.c.l.b16 %v531
        %v3359 = vunpack.c.h.b16 %v531
        %v3360 = vunpack.c.l.b16 %v532
        %v3361 = vunpack.c.h.b16 %v532
        %v3362 = vunpack.c.l.b16 %v533
        %v3363 = vunpack.c.h.b16 %v533
        %v3364 = vunpack.c.l.b16 %v534
        %v3365 = vunpack.c.h.b16 %v534
        %v3366 = vunpack.c.l.b16 %v535
        %v3367 = vunpack.c.h.b16 %v535
        %v3368 = vunpack.c.l.b16 %v536
        %v3369 = vunpack.c.h.b16 %v536
        %v3370 = vunpack.c.l.b16 %v537
        %v3371 = vunpack.c.h.b16 %v537
        %v3372 = vunpack.c.l.b16 %v538
        %v3373 = vunpack.c.h.b16 %v538
        %v3374 = vunpack.c.l.b16 %v539
        %v3375 = vunpack.c.h.b16 %v539
        %v3376 = vunpack.c.l.b16 %v540
        %v3377 = vunpack.c.h.b16 %v540
        %v3378 = vunpack.c.l.b16 %v541
        %v3379 = vunpack.c.h.b16 %v541
        %v3380 = vunpack.c.l.b16 %v542
        %v3381 = vunpack.c.h.b16 %v542
        %v3382 = vunpack.c.l.b16 %v543
        %v3383 = vunpack.c.h.b16 %v543
        %v3384 = vunpack.c.l.b16 %v544
        %v3385 = vunpack.c.h.b16 %v544
        %v3386 = vunpack.c.l.b16 %v545
        %v3387 = vunpack.c.h.b16 %v545
        %v3388 = vunpack.c.l.b16 %v546
        %v3389 = vunpack.c.h.b16 %v546
        %v3390 = vunpack.c.l.b16 %v547
        %v3391 = vunpack.c.h.b16 %v547
        %v3392 = vunpack.c.l.b16 %v548
        %v3393 = vunpack.c.h.b16 %v548
        %v3394 = vunpack.c.l.b16 %v549
        %v3395 = vunpack.c.h.b16 %v549
        %v3396 = vunpack.c.l.b16 %v550
        %v3397 = vunpack.c.h.b16 %v550
        %v3398 = vunpack.c.l.b16 %v551
        %v3399 = vunpack.c.h.b16 %v551
        %v3400 = vunpack.c.l.b16 %v552
        %v3401 = vunpack.c.h.b16 %v552
        %v3402 = vunpack.c.l.b16 %v553
        %v3403 = vunpack.c.h.b16 %v553
        %v3404 = vunpack.c.l.b16 %v554
        %v3405 = vunpack.c.h.b16 %v554
        %v3406 = vunpack.c.l.b16 %v555
        %v3407 = vunpack.c.h.b16 %v555
        %v3408 = vunpack.c.l.b16 %v556
        %v3409 = vunpack.c.h.b16 %v556
        %v3410 = vunpack.c.l.b16 %v557
        %v3411 = vunpack.c.h.b16 %v557
        %v3412 = vunpack.c.l.b16 %v558
        %v3413 = vunpack.c.h.b16 %v558
        %v3414 = vunpack.c.l.b16 %v559
        %v3415 = vunpack.c.h.b16 %v559
        %v3416 = vunpack.c.l.b16 %v560
        %v3417 = vunpack.c.h.b16 %v560
        %v3418 = vunpack.c.l.b16 %v561
        %v3419 = vunpack.c.h.b16 %v561
        %v3420 = vunpack.c.l.b16 %v562
        %v3421 = vunpack.c.h.b16 %v562
        %v3422 = vunpack.c.l.b16 %v563
        %v3423 = vunpack.c.h.b16 %v563
        %v3424 = vunpack.c.l.b16 %v564
        %v3425 = vunpack.c.h.b16 %v564
        %v3426 = vunpack.c.l.b16 %v565
        %v3427 = vunpack.c.h.b16 %v565
        %v3428 = vunpack.c.l.b16 %v566
        %v3429 = vunpack.c.h.b16 %v566
        %v3430 = vunpack.c.l.b16 %v567
        %v3431 = vunpack.c.h.b16 %v567
        %v3432 = vunpack.c.l.b16 %v568
        %v3433 = vunpack.c.h.b16 %v568
        %v3434 = vunpack.c.l.b16 %v569
        %v3435 = vunpack.c.h.b16 %v569
        %v3436 = vunpack.c.l.b16 %v570
        %v3437 = vunpack.c.h.b16 %v570
        %v3438 = vunpack.c.l.b16 %v571
        %v3439 = vunpack.c.h.b16 %v571
        %v3440 = vunpack.c.l.b16 %v572
        %v3441 = vunpack.c.h.b16 %v572
        %v3442 = vunpack.c.l.b16 %v573
        %v3443 = vunpack.c.h.b16 %v573
        %v3444 = vunpack.c.l.b16 %v574
        %v3445 = vunpack.c.h.b16 %v574
        %v3446 = vunpack.c.l.b16 %v575
        %v3447 = vunpack.c.h.b16 %v575
        %v3448 = vunpack.c.l.b16 %v576
        %v3449 = vunpack.c.h.b16 %v576
        %v3450 = vunpack.c.l.b16 %v577
        %v3451 = vunpack.c.h.b16 %v577
        %v3452 = vunpack.c.l.b16 %v578
        %v3453 = vunpack.c.h.b16 %v578
        %v3454 = vunpack.c.l.b16 %v579
        %v3455 = vunpack.c.h.b16 %v579
        %v3456 = vunpack.c.l.b16 %v580
        %v3457 = vunpack.c.h.b16 %v580
        %v3458 = vunpack.c.l.b16 %v581
        %v3459 = vunpack.c.h.b16 %v581
        %v3460 = vunpack.c.l.b16 %v582
        %v3461 = vunpack.c.h.b16 %v582
        %v3462 = vunpack.c.l.b16 %v583
        %v3463 = vunpack.c.h.b16 %v583
        %v3464 = vunpack.c.l.b16 %v584
        %v3465 = vunpack.c.h.b16 %v584
        %v3466 = vunpack.c.l.b16 %v585
        %v3467 = vunpack.c.h.b16 %v585
        %v3468 = vunpack.c.l.b16 %v586
        %v3469 = vunpack.c.h.b16 %v586
        %v3470 = vunpack.c.l.b16 %v587
        %v3471 = vunpack.c.h.b16 %v587
        %v3472 = vunpack.c.l.b16 %v588
        %v3473 = vunpack.c.h.b16 %v588
        %v3474 = vunpack.c.l.b16 %v589
        %v3475 = vunpack.c.h.b16 %v589
        %v3476 = vunpack.c.l.b16 %v590
        %v3477 = vunpack.c.h.b16 %v590
        %v3478 = vunpack.c.l.b16 %v591
        %v3479 = vunpack.c.h.b16 %v591
        %v3480 = vunpack.c.l.b16 %v592
        %v3481 = vunpack.c.h.b16 %v592
        %v3482 = vunpack.c.l.b16 %v593
        %v3483 = vunpack.c.h.b16 %v593
        %v3484 = vunpack.c.l.b16 %v594
        %v3485 = vunpack.c.h.b16 %v594
        %v3486 = vunpack.c.l.b16 %v595
        %v3487 = vunpack.c.h.b16 %v595
        %v3488 = vunpack.c.l.b16 %v596
        %v3489 = vunpack.c.h.b16 %v596
        %v3490 = vunpack.c.l.b16 %v597
        %v3491 = vunpack.c.h.b16 %v597
        %v3492 = vunpack.c.l.b16 %v598
        %v3493 = vunpack.c.h.b16 %v598
        %v3494 = vunpack.c.l.b16 %v599
        %v3495 = vunpack.c.h.b16 %v599
        %v3496 = vunpack.c.l.b16 %v600
        %v3497 = vunpack.c.h.b16 %v600
        %v3498 = vunpack.c.l.b16 %v601
        %v3499 = vunpack.c.h.b16 %v601
        %v3500 = vpack.c.b16 %v2996, %v2988
        %v3501 = vpack.c.b16 %v2997, %v2989
        %v3502 = vpack.c.b16 %v2998, %v2990
        %v3503 = vpack.c.b16 %v2999, %v2991
        %v3504 = vpack.c.b16 %v3000, %v2992
        %v3505 = vpack.c.b16 %v3001, %v2993
        %v3506 = vpack.c.b16 %v3002, %v2994
        %v3507 = vpack.c.b16 %v3003, %v2995
        %v3508 = vpack.c.b16 %v3012, %v3004
        %v3509 = vpack.c.b16 %v3013, %v3005
        %v3510 = vpack.c.b16 %v3014, %v3006
        %v3511 = vpack.c.b16 %v3015, %v3007
        %v3512 = vpack.c.b16 %v3016, %v3008
        %v3513 = vpack.c.b16 %v3017, %v3009
        %v3514 = vpack.c.b16 %v3018, %v3010
        %v3515 = vpack.c.b16 %v3019, %v3011
        %v3516 = vpack.c.b16 %v3028, %v3020
        %v3517 = vpack.c.b16 %v3029, %v3021
        %v3518 = vpack.c.b16 %v3030, %v3022
        %v3519 = vpack.c.b16 %v3031, %v3023
        %v3520 = vpack.c.b16 %v3032, %v3024
        %v3521 = vpack.c.b16 %v3033, %v3025
        %v3522 = vpack.c.b16 %v3034, %v3026
        %v3523 = vpack.c.b16 %v3035, %v3027
        %v3524 = vpack.c.b16 %v3044, %v3036
        %v3525 = vpack.c.b16 %v3045, %v3037
        %v3526 = vpack.c.b16 %v3046, %v3038
        %v3527 = vpack.c.b16 %v3047, %v3039
        %v3528 = vpack.c.b16 %v3048, %v3040
        %v3529 = vpack.c.b16 %v3049, %v3041
        %v3530 = vpack.c.b16 %v3050, %v3042
        %v3531 = vpack.c.b16 %v3051, %v3043
        %v3532 = vpack.c.b16 %v3060, %v3052
        %v3533 = vpack.c.b16 %v3061, %v3053
        %v3534 = vpack.c.b16 %v3062, %v3054
        %v3535 = vpack.c.b16 %v3063, %v3055
        %v3536 = vpack.c.b16 %v3064, %v3056
        %v3537 = vpack.c.b16 %v3065, %v3057
        %v3538 = vpack.c.b16 %v3066, %v3058
        %v3539 = vpack.c.b16 %v3067, %v3059
        %v3540 = vpack.c.b16 %v3076, %v3068
        %v3541 = vpack.c.b16 %v3077, %v3069
        %v3542 = vpack.c.b16 %v3078, %v3070
        %v3543 = vpack.c.b16 %v3079, %v3071
        %v3544 = vpack.c.b16 %v3080, %v3072
        %v3545 = vpack.c.b16 %v3081, %v3073
        %v3546 = vpack.c.b16 %v3082, %v3074
        %v3547 = vpack.c.b16 %v3083, %v3075
        %v3548 = vpack.c.b16 %v3092, %v3084
        %v3549 = vpack.c.b16 %v3093, %v3085
        %v3550 = vpack.c.b16 %v3094, %v3086
        %v3551 = vpack.c.b16 %v3095, %v3087
        %v3552 = vpack.c.b16 %v3096, %v3088
        %v3553 = vpack.c.b16 %v3097, %v3089
        %v3554 = vpack.c.b16 %v3098, %v3090
        %v3555 = vpack.c.b16 %v3099, %v3091
        %v3556 = vpack.c.b16 %v3108, %v3100
        %v3557 = vpack.c.b16 %v3109, %v3101
        %v3558 = vpack.c.b16 %v3110, %v3102
        %v3559 = vpack.c.b16 %v3111, %v3103
        %v3560 = vpack.c.b16 %v3112, %v3104
        %v3561 = vpack.c.b16 %v3113, %v3105
        %v3562 = vpack.c.b16 %v3114, %v3106
        %v3563 = vpack.c.b16 %v3115, %v3107
        %v3564 = vpack.c.b16 %v3124, %v3116
        %v3565 = vpack.c.b16 %v3125, %v3117
        %v3566 = vpack.c.b16 %v3126, %v3118
        %v3567 = vpack.c.b16 %v3127, %v3119
        %v3568 = vpack.c.b16 %v3128, %v3120
        %v3569 = vpack.c.b16 %v3129, %v3121
        %v3570 = vpack.c.b16 %v3130, %v3122
        %v3571 = vpack.c.b16 %v3131, %v3123
        %v3572 = vpack.c.b16 %v3140, %v3132
        %v3573 = vpack.c.b16 %v3141, %v3133
        %v3574 = vpack.c.b16 %v3142, %v3134
        %v3575 = vpack.c.b16 %v3143, %v3135
        %v3576 = vpack.c.b16 %v3144, %v3136
        %v3577 = vpack.c.b16 %v3145, %v3137
        %v3578 = vpack.c.b16 %v3146, %v3138
        %v3579 = vpack.c.b16 %v3147, %v3139
        %v3580 = vpack.c.b16 %v3156, %v3148
        %v3581 = vpack.c.b16 %v3157, %v3149
        %v3582 = vpack.c.b16 %v3158, %v3150
        %v3583 = vpack.c.b16 %v3159, %v3151
        %v3584 = vpack.c.b16 %v3160, %v3152
        %v3585 = vpack.c.b16 %v3161, %v3153
        %v3586 = vpack.c.b16 %v3162, %v3154
        %v3587 = vpack.c.b16 %v3163, %v3155
        %v3588 = vpack.c.b16 %v3172, %v3164
        %v3589 = vpack.c.b16 %v3173, %v3165
        %v3590 = vpack.c.b16 %v3174, %v3166
        %v3591 = vpack.c.b16 %v3175, %v3167
        %v3592 = vpack.c.b16 %v3176, %v3168
        %v3593 = vpack.c.b16 %v3177, %v3169
        %v3594 = vpack.c.b16 %v3178, %v3170
        %v3595 = vpack.c.b16 %v3179, %v3171
        %v3596 = vpack.c.b16 %v3188, %v3180
        %v3597 = vpack.c.b16 %v3189, %v3181
        %v3598 = vpack.c.b16 %v3190, %v3182
        %v3599 = vpack.c.b16 %v3191, %v3183
        %v3600 = vpack.c.b16 %v3192, %v3184
        %v3601 = vpack.c.b16 %v3193, %v3185
        %v3602 = vpack.c.b16 %v3194, %v3186
        %v3603 = vpack.c.b16 %v3195, %v3187
        %v3604 = vpack.c.b16 %v3204, %v3196
        %v3605 = vpack.c.b16 %v3205, %v3197
        %v3606 = vpack.c.b16 %v3206, %v3198
        %v3607 = vpack.c.b16 %v3207, %v3199
        %v3608 = vpack.c.b16 %v3208, %v3200
        %v3609 = vpack.c.b16 %v3209, %v3201
        %v3610 = vpack.c.b16 %v3210, %v3202
        %v3611 = vpack.c.b16 %v3211, %v3203
        %v3612 = vpack.c.b16 %v3220, %v3212
        %v3613 = vpack.c.b16 %v3221, %v3213
        %v3614 = vpack.c.b16 %v3222, %v3214
        %v3615 = vpack.c.b16 %v3223, %v3215
        %v3616 = vpack.c.b16 %v3224, %v3216
        %v3617 = vpack.c.b16 %v3225, %v3217
        %v3618 = vpack.c.b16 %v3226, %v3218
        %v3619 = vpack.c.b16 %v3227, %v3219
        %v3620 = vpack.c.b16 %v3236, %v3228
        %v3621 = vpack.c.b16 %v3237, %v3229
        %v3622 = vpack.c.b16 %v3238, %v3230
        %v3623 = vpack.c.b16 %v3239, %v3231
        %v3624 = vpack.c.b16 %v3240, %v3232
        %v3625 = vpack.c.b16 %v3241, %v3233
        %v3626 = vpack.c.b16 %v3242, %v3234
        %v3627 = vpack.c.b16 %v3243, %v3235
        %v3628 = vpack.c.b16 %v3252, %v3244
        %v3629 = vpack.c.b16 %v3253, %v3245
        %v3630 = vpack.c.b16 %v3254, %v3246
        %v3631 = vpack.c.b16 %v3255, %v3247
        %v3632 = vpack.c.b16 %v3256, %v3248
        %v3633 = vpack.c.b16 %v3257, %v3249
        %v3634 = vpack.c.b16 %v3258, %v3250
        %v3635 = vpack.c.b16 %v3259, %v3251
        %v3636 = vpack.c.b16 %v3268, %v3260
        %v3637 = vpack.c.b16 %v3269, %v3261
        %v3638 = vpack.c.b16 %v3270, %v3262
        %v3639 = vpack.c.b16 %v3271, %v3263
        %v3640 = vpack.c.b16 %v3272, %v3264
        %v3641 = vpack.c.b16 %v3273, %v3265
        %v3642 = vpack.c.b16 %v3274, %v3266
        %v3643 = vpack.c.b16 %v3275, %v3267
        %v3644 = vpack.c.b16 %v3284, %v3276
        %v3645 = vpack.c.b16 %v3285, %v3277
        %v3646 = vpack.c.b16 %v3286, %v3278
        %v3647 = vpack.c.b16 %v3287, %v3279
        %v3648 = vpack.c.b16 %v3288, %v3280
        %v3649 = vpack.c.b16 %v3289, %v3281
        %v3650 = vpack.c.b16 %v3290, %v3282
        %v3651 = vpack.c.b16 %v3291, %v3283
        %v3652 = vpack.c.b16 %v3300, %v3292
        %v3653 = vpack.c.b16 %v3301, %v3293
        %v3654 = vpack.c.b16 %v3302, %v3294
        %v3655 = vpack.c.b16 %v3303, %v3295
        %v3656 = vpack.c.b16 %v3304, %v3296
        %v3657 = vpack.c.b16 %v3305, %v3297
        %v3658 = vpack.c.b16 %v3306, %v3298
        %v3659 = vpack.c.b16 %v3307, %v3299
        %v3660 = vpack.c.b16 %v3316, %v3308
        %v3661 = vpack.c.b16 %v3317, %v3309
        %v3662 = vpack.c.b16 %v3318, %v3310
        %v3663 = vpack.c.b16 %v3319, %v3311
        %v3664 = vpack.c.b16 %v3320, %v3312
        %v3665 = vpack.c.b16 %v3321, %v3313
        %v3666 = vpack.c.b16 %v3322, %v3314
        %v3667 = vpack.c.b16 %v3323, %v3315
        %v3668 = vpack.c.b16 %v3332, %v3324
        %v3669 = vpack.c.b16 %v3333, %v3325
        %v3670 = vpack.c.b16 %v3334, %v3326
        %v3671 = vpack.c.b16 %v3335, %v3327
        %v3672 = vpack.c.b16 %v3336, %v3328
        %v3673 = vpack.c.b16 %v3337, %v3329
        %v3674 = vpack.c.b16 %v3338, %v3330
        %v3675 = vpack.c.b16 %v3339, %v3331
        %v3676 = vpack.c.b16 %v3348, %v3340
        %v3677 = vpack.c.b16 %v3349, %v3341
        %v3678 = vpack.c.b16 %v3350, %v3342
        %v3679 = vpack.c.b16 %v3351, %v3343
        %v3680 = vpack.c.b16 %v3352, %v3344
        %v3681 = vpack.c.b16 %v3353, %v3345
        %v3682 = vpack.c.b16 %v3354, %v3346
        %v3683 = vpack.c.b16 %v3355, %v3347
        %v3684 = vpack.c.b16 %v3364, %v3356
        %v3685 = vpack.c.b16 %v3365, %v3357
        %v3686 = vpack.c.b16 %v3366, %v3358
        %v3687 = vpack.c.b16 %v3367, %v3359
        %v3688 = vpack.c.b16 %v3368, %v3360
        %v3689 = vpack.c.b16 %v3369, %v3361
        %v3690 = vpack.c.b16 %v3370, %v3362
        %v3691 = vpack.c.b16 %v3371, %v3363
        %v3692 = vpack.c.b16 %v3380, %v3372
        %v3693 = vpack.c.b16 %v3381, %v3373
        %v3694 = vpack.c.b16 %v3382, %v3374
        %v3695 = vpack.c.b16 %v3383, %v3375
        %v3696 = vpack.c.b16 %v3384, %v3376
        %v3697 = vpack.c.b16 %v3385, %v3377
        %v3698 = vpack.c.b16 %v3386, %v3378
        %v3699 = vpack.c.b16 %v3387, %v3379
        %v3700 = vpack.c.b16 %v3396, %v3388
        %v3701 = vpack.c.b16 %v3397, %v3389
        %v3702 = vpack.c.b16 %v3398, %v3390
        %v3703 = vpack.c.b16 %v3399, %v3391
        %v3704 = vpack.c.b16 %v3400, %v3392
        %v3705 = vpack.c.b16 %v3401, %v3393
        %v3706 = vpack.c.b16 %v3402, %v3394
        %v3707 = vpack.c.b16 %v3403, %v3395
        %v3708 = vpack.c.b16 %v3412, %v3404
        %v3709 = vpack.c.b16 %v3413, %v3405
        %v3710 = vpack.c.b16 %v3414, %v3406
        %v3711 = vpack.c.b16 %v3415, %v3407
        %v3712 = vpack.c.b16 %v3416, %v3408
        %v3713 = vpack.c.b16 %v3417, %v3409
        %v3714 = vpack.c.b16 %v3418, %v3410
        %v3715 = vpack.c.b16 %v3419, %v3411
        %v3716 = vpack.c.b16 %v3428, %v3420
        %v3717 = vpack.c.b16 %v3429, %v3421
        %v3718 = vpack.c.b16 %v3430, %v3422
        %v3719 = vpack.c.b16 %v3431, %v3423
        %v3720 = vpack.c.b16 %v3432, %v3424
        %v3721 = vpack.c.b16 %v3433, %v3425
        %v3722 = vpack.c.b16 %v3434, %v3426
        %v3723 = vpack.c.b16 %v3435, %v3427
        %v3724 = vpack.c.b16 %v3444, %v3436
        %v3725 = vpack.c.b16 %v3445, %v3437
        %v3726 = vpack.c.b16 %v3446, %v3438
        %v3727 = vpack.c.b16 %v3447, %v3439
        %v3728 = vpack.c.b16 %v3448, %v3440
        %v3729 = vpack.c.b16 %v3449, %v3441
        %v3730 = vpack.c.b16 %v3450, %v3442
        %v3731 = vpack.c.b16 %v3451, %v3443
        %v3732 = vpack.c.b16 %v3460, %v3452
        %v3733 = vpack.c.b16 %v3461, %v3453
        %v3734 = vpack.c.b16 %v3462, %v3454
        %v3735 = vpack.c.b16 %v3463, %v3455
        %v3736 = vpack.c.b16 %v3464, %v3456
        %v3737 = vpack.c.b16 %v3465, %v3457
        %v3738 = vpack.c.b16 %v3466, %v3458
        %v3739 = vpack.c.b16 %v3467, %v3459
        %v3740 = vpack.c.b16 %v3476, %v3468
        %v3741 = vpack.c.b16 %v3477, %v3469
        %v3742 = vpack.c.b16 %v3478, %v3470
        %v3743 = vpack.c.b16 %v3479, %v3471
        %v3744 = vpack.c.b16 %v3480, %v3472
        %v3745 = vpack.c.b16 %v3481, %v3473
        %v3746 = vpack.c.b16 %v3482, %v3474
        %v3747 = vpack.c.b16 %v3483, %v3475
        %v3748 = vpack.c.b16 %v3492, %v3484
        %v3749 = vpack.c.b16 %v3493, %v3485
        %v3750 = vpack.c.b16 %v3494, %v3486
        %v3751 = vpack.c.b16 %v3495, %v3487
        %v3752 = vpack.c.b16 %v3496, %v3488
        %v3753 = vpack.c.b16 %v3497, %v3489
        %v3754 = vpack.c.b16 %v3498, %v3490
        %v3755 = vpack.c.b16 %v3499, %v3491
        %4012 = vmatprep.subr.bf16.mxu0 %v3557
        %4013 = vmatpush1.bf16.msra.mxu0 %v3556
        %4014 = vmatprep.subr.bf16.mxu0 %v3549
        %4015 = vmatpush1.bf16.msra.mxu0 %v3548
        %4016 = vmatprep.subr.bf16.mxu0 %v3541
        %4017 = vmatpush1.bf16.msra.mxu0 %v3540
        %4018 = vmatprep.subr.bf16.mxu0 %v3533
        %4019 = vmatpush1.bf16.msra.mxu0 %v3532
        %4020 = vmatprep.subr.bf16.mxu0 %v3525
        %4021 = vmatpush1.bf16.msra.mxu0 %v3524
        %4022 = vmatprep.subr.bf16.mxu0 %v3517
        %4023 = vmatpush1.bf16.msra.mxu0 %v3516
        %4024 = vmatprep.subr.bf16.mxu0 %v3509
        %4025 = vmatpush1.bf16.msra.mxu0 %v3508
        %4026 = vmatprep.subr.bf16.mxu0 %v3501
        %4027 = vmatpush1.bf16.msra.mxu0 %v3500
        %4028 = vmatprep.subr.bf16.mxu0 %v3621
        %4029 = vmatpush2.bf16.msra.mxu0 %v3620
        %4030 = vmatprep.subr.bf16.mxu0 %v3613
        %4031 = vmatpush2.bf16.msra.mxu0 %v3612
        %4032 = vmatprep.subr.bf16.mxu0 %v3605
        %4033 = vmatpush2.bf16.msra.mxu0 %v3604
        %4034 = vmatprep.subr.bf16.mxu0 %v3597
        %4035 = vmatpush2.bf16.msra.mxu0 %v3596
        %4036 = vmatprep.subr.bf16.mxu0 %v3589
        %4037 = vmatpush2.bf16.msra.mxu0 %v3588
        %4038 = vmatprep.subr.bf16.mxu0 %v3581
        %4039 = vmatpush2.bf16.msra.mxu0 %v3580
        %4040 = vmatprep.subr.bf16.mxu0 %v3573
        %4041 = vmatpush2.bf16.msra.mxu0 %v3572
        %4042 = vmatprep.subr.bf16.mxu0 %v3565
        %4043 = vmatpush2.bf16.msra.mxu0 %v3564
        %4044 = vmatprep.mubr.bf16.mxu0 %v258
        %4045 = vmatmul.mubr.bf16.gmra.mxu0 %v257
        %v4046 = vpop.f32.mrf.mxu0
        %v4047 = vadd.f32 %v2476, %v4046
        %v4048 = vpop.f32.mrf.mxu0
        %v4049 = vadd.f32 %v2478, %v4048
        %v4050 = vpop.f32.mrf.mxu0
        %v4051 = vpop.f32.mrf.mxu0
        %4052 = vdwg.mxu0
        %4053 = vmatprep.subr.bf16.mxu0 %v3685
        %4054 = vmatpush1.bf16.msra.mxu0 %v3684
        %4055 = vmatprep.subr.bf16.mxu0 %v3677
        %4056 = vmatpush1.bf16.msra.mxu0 %v3676
        %4057 = vmatprep.subr.bf16.mxu0 %v3669
        %4058 = vmatpush1.bf16.msra.mxu0 %v3668
        %4059 = vmatprep.subr.bf16.mxu0 %v3661
        %4060 = vmatpush1.bf16.msra.mxu0 %v3660
        %4061 = vmatprep.subr.bf16.mxu0 %v3653
        %4062 = vmatpush1.bf16.msra.mxu0 %v3652
        %4063 = vmatprep.subr.bf16.mxu0 %v3645
        %4064 = vmatpush1.bf16.msra.mxu0 %v3644
        %4065 = vmatprep.subr.bf16.mxu0 %v3637
        %4066 = vmatpush1.bf16.msra.mxu0 %v3636
        %4067 = vmatprep.subr.bf16.mxu0 %v3629
        %4068 = vmatpush1.bf16.msra.mxu0 %v3628
        %4069 = vmatprep.subr.bf16.mxu0 %v3749
        %4070 = vmatpush2.bf16.msra.mxu0 %v3748
        %4071 = vmatprep.subr.bf16.mxu0 %v3741
        %4072 = vmatpush2.bf16.msra.mxu0 %v3740
        %4073 = vmatprep.subr.bf16.mxu0 %v3733
        %4074 = vmatpush2.bf16.msra.mxu0 %v3732
        %4075 = vmatprep.subr.bf16.mxu0 %v3725
        %4076 = vmatpush2.bf16.msra.mxu0 %v3724
        %4077 = vmatprep.subr.bf16.mxu0 %v3717
        %4078 = vmatpush2.bf16.msra.mxu0 %v3716
        %4079 = vmatprep.subr.bf16.mxu0 %v3709
        %4080 = vmatpush2.bf16.msra.mxu0 %v3708
        %4081 = vmatprep.subr.bf16.mxu0 %v3701
        %4082 = vmatpush2.bf16.msra.mxu0 %v3700
        %4083 = vmatprep.subr.bf16.mxu0 %v3693
        %4084 = vmatpush2.bf16.msra.mxu0 %v3692
        %4085 = vmatprep.mubr.bf16.mxu0 %v260
        %4086 = vmatmul.mubr.bf16.gmra.mxu0 %v259
        %v4087 = vpop.f32.mrf.mxu0
        %v4088 = vadd.f32 %v4047, %v4087
        %v4089 = vpop.f32.mrf.mxu0
        %v4090 = vadd.f32 %v4049, %v4089
        %v4091 = vpop.f32.mrf.mxu0
        %v4092 = vpop.f32.mrf.mxu0
        %4093 = vdwg.mxu0
        %4094 = vmatprep.subr.bf16.mxu0 %v3559
        %4095 = vmatpush1.bf16.msra.mxu0 %v3558
        %4096 = vmatprep.subr.bf16.mxu0 %v3551
        %4097 = vmatpush1.bf16.msra.mxu0 %v3550
        %4098 = vmatprep.subr.bf16.mxu0 %v3543
        %4099 = vmatpush1.bf16.msra.mxu0 %v3542
        %4100 = vmatprep.subr.bf16.mxu0 %v3535
        %4101 = vmatpush1.bf16.msra.mxu0 %v3534
        %4102 = vmatprep.subr.bf16.mxu0 %v3527
        %4103 = vmatpush1.bf16.msra.mxu0 %v3526
        %4104 = vmatprep.subr.bf16.mxu0 %v3519
        %4105 = vmatpush1.bf16.msra.mxu0 %v3518
        %4106 = vmatprep.subr.bf16.mxu0 %v3511
        %4107 = vmatpush1.bf16.msra.mxu0 %v3510
        %4108 = vmatprep.subr.bf16.mxu0 %v3503
        %4109 = vmatpush1.bf16.msra.mxu0 %v3502
        %4110 = vmatprep.subr.bf16.mxu0 %v3623
        %4111 = vmatpush2.bf16.msra.mxu0 %v3622
        %4112 = vmatprep.subr.bf16.mxu0 %v3615
        %4113 = vmatpush2.bf16.msra.mxu0 %v3614
        %4114 = vmatprep.subr.bf16.mxu0 %v3607
        %4115 = vmatpush2.bf16.msra.mxu0 %v3606
        %4116 = vmatprep.subr.bf16.mxu0 %v3599
        %4117 = vmatpush2.bf16.msra.mxu0 %v3598
        %4118 = vmatprep.subr.bf16.mxu0 %v3591
        %4119 = vmatpush2.bf16.msra.mxu0 %v3590
        %4120 = vmatprep.subr.bf16.mxu0 %v3583
        %4121 = vmatpush2.bf16.msra.mxu0 %v3582
        %4122 = vmatprep.subr.bf16.mxu0 %v3575
        %4123 = vmatpush2.bf16.msra.mxu0 %v3574
        %4124 = vmatprep.subr.bf16.mxu0 %v3567
        %4125 = vmatpush2.bf16.msra.mxu0 %v3566
        %4126 = vmatprep.mubr.bf16.mxu0 %v258
        %4127 = vmatmul.mubr.bf16.gmra.mxu0 %v257
        %v4128 = vpop.f32.mrf.mxu0
        %v4129 = vadd.f32 %v2558, %v4128
        %v4130 = vpop.f32.mrf.mxu0
        %v4131 = vadd.f32 %v2560, %v4130
        %v4132 = vpop.f32.mrf.mxu0
        %v4133 = vpop.f32.mrf.mxu0
        %4134 = vdwg.mxu0
        %4135 = vmatprep.subr.bf16.mxu0 %v3687
        %4136 = vmatpush1.bf16.msra.mxu0 %v3686
        %4137 = vmatprep.subr.bf16.mxu0 %v3679
        %4138 = vmatpush1.bf16.msra.mxu0 %v3678
        %4139 = vmatprep.subr.bf16.mxu0 %v3671
        %4140 = vmatpush1.bf16.msra.mxu0 %v3670
        %4141 = vmatprep.subr.bf16.mxu0 %v3663
        %4142 = vmatpush1.bf16.msra.mxu0 %v3662
        %4143 = vmatprep.subr.bf16.mxu0 %v3655
        %4144 = vmatpush1.bf16.msra.mxu0 %v3654
        %4145 = vmatprep.subr.bf16.mxu0 %v3647
        %4146 = vmatpush1.bf16.msra.mxu0 %v3646
        %4147 = vmatprep.subr.bf16.mxu0 %v3639
        %4148 = vmatpush1.bf16.msra.mxu0 %v3638
        %4149 = vmatprep.subr.bf16.mxu0 %v3631
        %4150 = vmatpush1.bf16.msra.mxu0 %v3630
        %4151 = vmatprep.subr.bf16.mxu0 %v3751
        %4152 = vmatpush2.bf16.msra.mxu0 %v3750
        %4153 = vmatprep.subr.bf16.mxu0 %v3743
        %4154 = vmatpush2.bf16.msra.mxu0 %v3742
        %4155 = vmatprep.subr.bf16.mxu0 %v3735
        %4156 = vmatpush2.bf16.msra.mxu0 %v3734
        %4157 = vmatprep.subr.bf16.mxu0 %v3727
        %4158 = vmatpush2.bf16.msra.mxu0 %v3726
        %4159 = vmatprep.subr.bf16.mxu0 %v3719
        %4160 = vmatpush2.bf16.msra.mxu0 %v3718
        %4161 = vmatprep.subr.bf16.mxu0 %v3711
        %4162 = vmatpush2.bf16.msra.mxu0 %v3710
        %4163 = vmatprep.subr.bf16.mxu0 %v3703
        %4164 = vmatpush2.bf16.msra.mxu0 %v3702
        %4165 = vmatprep.subr.bf16.mxu0 %v3695
        %4166 = vmatpush2.bf16.msra.mxu0 %v3694
        %4167 = vmatprep.mubr.bf16.mxu0 %v260
        %4168 = vmatmul.mubr.bf16.gmra.mxu0 %v259
        %v4169 = vpop.f32.mrf.mxu0
        %v4170 = vadd.f32 %v4129, %v4169
        %v4171 = vpop.f32.mrf.mxu0
        %v4172 = vadd.f32 %v4131, %v4171
        %v4173 = vpop.f32.mrf.mxu0
        %v4174 = vpop.f32.mrf.mxu0
        %4175 = vdwg.mxu0
        %4176 = vmatprep.subr.bf16.mxu0 %v3561
        %4177 = vmatpush1.bf16.msra.mxu0 %v3560
        %4178 = vmatprep.subr.bf16.mxu0 %v3553
        %4179 = vmatpush1.bf16.msra.mxu0 %v3552
        %4180 = vmatprep.subr.bf16.mxu0 %v3545
        %4181 = vmatpush1.bf16.msra.mxu0 %v3544
        %4182 = vmatprep.subr.bf16.mxu0 %v3537
        %4183 = vmatpush1.bf16.msra.mxu0 %v3536
        %4184 = vmatprep.subr.bf16.mxu0 %v3529
        %4185 = vmatpush1.bf16.msra.mxu0 %v3528
        %4186 = vmatprep.subr.bf16.mxu0 %v3521
        %4187 = vmatpush1.bf16.msra.mxu0 %v3520
        %4188 = vmatprep.subr.bf16.mxu0 %v3513
        %4189 = vmatpush1.bf16.msra.mxu0 %v3512
        %4190 = vmatprep.subr.bf16.mxu0 %v3505
        %4191 = vmatpush1.bf16.msra.mxu0 %v3504
        %4192 = vmatprep.subr.bf16.mxu0 %v3625
        %4193 = vmatpush2.bf16.msra.mxu0 %v3624
        %4194 = vmatprep.subr.bf16.mxu0 %v3617
        %4195 = vmatpush2.bf16.msra.mxu0 %v3616
        %4196 = vmatprep.subr.bf16.mxu0 %v3609
        %4197 = vmatpush2.bf16.msra.mxu0 %v3608
        %4198 = vmatprep.subr.bf16.mxu0 %v3601
        %4199 = vmatpush2.bf16.msra.mxu0 %v3600
        %4200 = vmatprep.subr.bf16.mxu0 %v3593
        %4201 = vmatpush2.bf16.msra.mxu0 %v3592
        %4202 = vmatprep.subr.bf16.mxu0 %v3585
        %4203 = vmatpush2.bf16.msra.mxu0 %v3584
        %4204 = vmatprep.subr.bf16.mxu0 %v3577
        %4205 = vmatpush2.bf16.msra.mxu0 %v3576
        %4206 = vmatprep.subr.bf16.mxu0 %v3569
        %4207 = vmatpush2.bf16.msra.mxu0 %v3568
        %4208 = vmatprep.mubr.bf16.mxu0 %v258
        %4209 = vmatmul.mubr.bf16.gmra.mxu0 %v257
        %v4210 = vpop.f32.mrf.mxu0
        %v4211 = vadd.f32 %v2640, %v4210
        %v4212 = vpop.f32.mrf.mxu0
        %v4213 = vadd.f32 %v2642, %v4212
        %v4214 = vpop.f32.mrf.mxu0
        %v4215 = vpop.f32.mrf.mxu0
        %4216 = vdwg.mxu0
        %4217 = vmatprep.subr.bf16.mxu0 %v3689
        %4218 = vmatpush1.bf16.msra.mxu0 %v3688
        %4219 = vmatprep.subr.bf16.mxu0 %v3681
        %4220 = vmatpush1.bf16.msra.mxu0 %v3680
        %4221 = vmatprep.subr.bf16.mxu0 %v3673
        %4222 = vmatpush1.bf16.msra.mxu0 %v3672
        %4223 = vmatprep.subr.bf16.mxu0 %v3665
        %4224 = vmatpush1.bf16.msra.mxu0 %v3664
        %4225 = vmatprep.subr.bf16.mxu0 %v3657
        %4226 = vmatpush1.bf16.msra.mxu0 %v3656
        %4227 = vmatprep.subr.bf16.mxu0 %v3649
        %4228 = vmatpush1.bf16.msra.mxu0 %v3648
        %4229 = vmatprep.subr.bf16.mxu0 %v3641
        %4230 = vmatpush1.bf16.msra.mxu0 %v3640
        %4231 = vmatprep.subr.bf16.mxu0 %v3633
        %4232 = vmatpush1.bf16.msra.mxu0 %v3632
        %4233 = vmatprep.subr.bf16.mxu0 %v3753
        %4234 = vmatpush2.bf16.msra.mxu0 %v3752
        %4235 = vmatprep.subr.bf16.mxu0 %v3745
        %4236 = vmatpush2.bf16.msra.mxu0 %v3744
        %4237 = vmatprep.subr.bf16.mxu0 %v3737
        %4238 = vmatpush2.bf16.msra.mxu0 %v3736
        %4239 = vmatprep.subr.bf16.mxu0 %v3729
        %4240 = vmatpush2.bf16.msra.mxu0 %v3728
        %4241 = vmatprep.subr.bf16.mxu0 %v3721
        %4242 = vmatpush2.bf16.msra.mxu0 %v3720
        %4243 = vmatprep.subr.bf16.mxu0 %v3713
        %4244 = vmatpush2.bf16.msra.mxu0 %v3712
        %4245 = vmatprep.subr.bf16.mxu0 %v3705
        %4246 = vmatpush2.bf16.msra.mxu0 %v3704
        %4247 = vmatprep.subr.bf16.mxu0 %v3697
        %4248 = vmatpush2.bf16.msra.mxu0 %v3696
        %4249 = vmatprep.mubr.bf16.mxu0 %v260
        %4250 = vmatmul.mubr.bf16.gmra.mxu0 %v259
        %v4251 = vpop.f32.mrf.mxu0
        %v4252 = vadd.f32 %v4211, %v4251
        %v4253 = vpop.f32.mrf.mxu0
        %v4254 = vadd.f32 %v4213, %v4253
        %v4255 = vpop.f32.mrf.mxu0
        %v4256 = vpop.f32.mrf.mxu0
        %4257 = vdwg.mxu0
        %4258 = vmatprep.subr.bf16.mxu0 %v3563
        %4259 = vmatpush1.bf16.msra.mxu0 %v3562
        %4260 = vmatprep.subr.bf16.mxu0 %v3555
        %4261 = vmatpush1.bf16.msra.mxu0 %v3554
        %4262 = vmatprep.subr.bf16.mxu0 %v3547
        %4263 = vmatpush1.bf16.msra.mxu0 %v3546
        %4264 = vmatprep.subr.bf16.mxu0 %v3539
        %4265 = vmatpush1.bf16.msra.mxu0 %v3538
        %4266 = vmatprep.subr.bf16.mxu0 %v3531
        %4267 = vmatpush1.bf16.msra.mxu0 %v3530
        %4268 = vmatprep.subr.bf16.mxu0 %v3523
        %4269 = vmatpush1.bf16.msra.mxu0 %v3522
        %4270 = vmatprep.subr.bf16.mxu0 %v3515
        %4271 = vmatpush1.bf16.msra.mxu0 %v3514
        %4272 = vmatprep.subr.bf16.mxu0 %v3507
        %4273 = vmatpush1.bf16.msra.mxu0 %v3506
        %4274 = vmatprep.subr.bf16.mxu0 %v3627
        %4275 = vmatpush2.bf16.msra.mxu0 %v3626
        %4276 = vmatprep.subr.bf16.mxu0 %v3619
        %4277 = vmatpush2.bf16.msra.mxu0 %v3618
        %4278 = vmatprep.subr.bf16.mxu0 %v3611
        %4279 = vmatpush2.bf16.msra.mxu0 %v3610
        %4280 = vmatprep.subr.bf16.mxu0 %v3603
        %4281 = vmatpush2.bf16.msra.mxu0 %v3602
        %4282 = vmatprep.subr.bf16.mxu0 %v3595
        %4283 = vmatpush2.bf16.msra.mxu0 %v3594
        %4284 = vmatprep.subr.bf16.mxu0 %v3587
        %4285 = vmatpush2.bf16.msra.mxu0 %v3586
        %4286 = vmatprep.subr.bf16.mxu0 %v3579
        %4287 = vmatpush2.bf16.msra.mxu0 %v3578
        %4288 = vmatprep.subr.bf16.mxu0 %v3571
        %4289 = vmatpush2.bf16.msra.mxu0 %v3570
        %4290 = vmatprep.mubr.bf16.mxu0 %v258
        %4291 = vmatmul.mubr.bf16.gmra.mxu0 %v257
        %v4292 = vpop.f32.mrf.mxu0
        %v4293 = vadd.f32 %v2722, %v4292
        %v4294 = vpop.f32.mrf.mxu0
        %v4295 = vadd.f32 %v2724, %v4294
        %v4296 = vpop.f32.mrf.mxu0
        %v4297 = vpop.f32.mrf.mxu0
        %4298 = vdwg.mxu0
        %4299 = vmatprep.subr.bf16.mxu0 %v3691
        %4300 = vmatpush1.bf16.msra.mxu0 %v3690
        %4301 = vmatprep.subr.bf16.mxu0 %v3683
        %4302 = vmatpush1.bf16.msra.mxu0 %v3682
        %4303 = vmatprep.subr.bf16.mxu0 %v3675
        %4304 = vmatpush1.bf16.msra.mxu0 %v3674
        %4305 = vmatprep.subr.bf16.mxu0 %v3667
        %4306 = vmatpush1.bf16.msra.mxu0 %v3666
        %4307 = vmatprep.subr.bf16.mxu0 %v3659
        %4308 = vmatpush1.bf16.msra.mxu0 %v3658
        %4309 = vmatprep.subr.bf16.mxu0 %v3651
        %4310 = vmatpush1.bf16.msra.mxu0 %v3650
        %4311 = vmatprep.subr.bf16.mxu0 %v3643
        %4312 = vmatpush1.bf16.msra.mxu0 %v3642
        %4313 = vmatprep.subr.bf16.mxu0 %v3635
        %4314 = vmatpush1.bf16.msra.mxu0 %v3634
        %4315 = vmatprep.subr.bf16.mxu0 %v3755
        %4316 = vmatpush2.bf16.msra.mxu0 %v3754
        %4317 = vmatprep.subr.bf16.mxu0 %v3747
        %4318 = vmatpush2.bf16.msra.mxu0 %v3746
        %4319 = vmatprep.subr.bf16.mxu0 %v3739
        %4320 = vmatpush2.bf16.msra.mxu0 %v3738
        %4321 = vmatprep.subr.bf16.mxu0 %v3731
        %4322 = vmatpush2.bf16.msra.mxu0 %v3730
        %4323 = vmatprep.subr.bf16.mxu0 %v3723
        %4324 = vmatpush2.bf16.msra.mxu0 %v3722
        %4325 = vmatprep.subr.bf16.mxu0 %v3715
        %4326 = vmatpush2.bf16.msra.mxu0 %v3714
        %4327 = vmatprep.subr.bf16.mxu0 %v3707
        %4328 = vmatpush2.bf16.msra.mxu0 %v3706
        %4329 = vmatprep.subr.bf16.mxu0 %v3699
        %4330 = vmatpush2.bf16.msra.mxu0 %v3698
        %4331 = vmatprep.mubr.bf16.mxu0 %v260
        %4332 = vmatmul.mubr.bf16.gmra.mxu0 %v259
        %v4333 = vpop.f32.mrf.mxu0
        %v4334 = vadd.f32 %v4293, %v4333
        %v4335 = vpop.f32.mrf.mxu0
        %v4336 = vadd.f32 %v4295, %v4335
        %v4337 = vpop.f32.mrf.mxu0
        %v4338 = vpop.f32.mrf.mxu0
        %4339 = vdwg.mxu0
        %v4596 = vunpack.c.l.b16 %v860
        %v4597 = vunpack.c.h.b16 %v860
        %v4598 = vunpack.c.l.b16 %v861
        %v4599 = vunpack.c.h.b16 %v861
        %v4600 = vunpack.c.l.b16 %v862
        %v4601 = vunpack.c.h.b16 %v862
        %v4602 = vunpack.c.l.b16 %v863
        %v4603 = vunpack.c.h.b16 %v863
        %v4604 = vunpack.c.l.b16 %v864
        %v4605 = vunpack.c.h.b16 %v864
        %v4606 = vunpack.c.l.b16 %v865
        %v4607 = vunpack.c.h.b16 %v865
        %v4608 = vunpack.c.l.b16 %v866
        %v4609 = vunpack.c.h.b16 %v866
        %v4610 = vunpack.c.l.b16 %v867
        %v4611 = vunpack.c.h.b16 %v867
        %v4612 = vunpack.c.l.b16 %v868
        %v4613 = vunpack.c.h.b16 %v868
        %v4614 = vunpack.c.l.b16 %v869
        %v4615 = vunpack.c.h.b16 %v869
        %v4616 = vunpack.c.l.b16 %v870
        %v4617 = vunpack.c.h.b16 %v870
        %v4618 = vunpack.c.l.b16 %v871
        %v4619 = vunpack.c.h.b16 %v871
        %v4620 = vunpack.c.l.b16 %v872
        %v4621 = vunpack.c.h.b16 %v872
        %v4622 = vunpack.c.l.b16 %v873
        %v4623 = vunpack.c.h.b16 %v873
        %v4624 = vunpack.c.l.b16 %v874
        %v4625 = vunpack.c.h.b16 %v874
        %v4626 = vunpack.c.l.b16 %v875
        %v4627 = vunpack.c.h.b16 %v875
        %v4628 = vunpack.c.l.b16 %v876
        %v4629 = vunpack.c.h.b16 %v876
        %v4630 = vunpack.c.l.b16 %v877
        %v4631 = vunpack.c.h.b16 %v877
        %v4632 = vunpack.c.l.b16 %v878
        %v4633 = vunpack.c.h.b16 %v878
        %v4634 = vunpack.c.l.b16 %v879
        %v4635 = vunpack.c.h.b16 %v879
        %v4636 = vunpack.c.l.b16 %v880
        %v4637 = vunpack.c.h.b16 %v880
        %v4638 = vunpack.c.l.b16 %v881
        %v4639 = vunpack.c.h.b16 %v881
        %v4640 = vunpack.c.l.b16 %v882
        %v4641 = vunpack.c.h.b16 %v882
        %v4642 = vunpack.c.l.b16 %v883
        %v4643 = vunpack.c.h.b16 %v883
        %v4644 = vunpack.c.l.b16 %v884
        %v4645 = vunpack.c.h.b16 %v884
        %v4646 = vunpack.c.l.b16 %v885
        %v4647 = vunpack.c.h.b16 %v885
        %v4648 = vunpack.c.l.b16 %v886
        %v4649 = vunpack.c.h.b16 %v886
        %v4650 = vunpack.c.l.b16 %v887
        %v4651 = vunpack.c.h.b16 %v887
        %v4652 = vunpack.c.l.b16 %v888
        %v4653 = vunpack.c.h.b16 %v888
        %v4654 = vunpack.c.l.b16 %v889
        %v4655 = vunpack.c.h.b16 %v889
        %v4656 = vunpack.c.l.b16 %v890
        %v4657 = vunpack.c.h.b16 %v890
        %v4658 = vunpack.c.l.b16 %v891
        %v4659 = vunpack.c.h.b16 %v891
        %v4660 = vunpack.c.l.b16 %v892
        %v4661 = vunpack.c.h.b16 %v892
        %v4662 = vunpack.c.l.b16 %v893
        %v4663 = vunpack.c.h.b16 %v893
        %v4664 = vunpack.c.l.b16 %v894
        %v4665 = vunpack.c.h.b16 %v894
        %v4666 = vunpack.c.l.b16 %v895
        %v4667 = vunpack.c.h.b16 %v895
        %v4668 = vunpack.c.l.b16 %v896
        %v4669 = vunpack.c.h.b16 %v896
        %v4670 = vunpack.c.l.b16 %v897
        %v4671 = vunpack.c.h.b16 %v897
        %v4672 = vunpack.c.l.b16 %v898
        %v4673 = vunpack.c.h.b16 %v898
        %v4674 = vunpack.c.l.b16 %v899
        %v4675 = vunpack.c.h.b16 %v899
        %v4676 = vunpack.c.l.b16 %v900
        %v4677 = vunpack.c.h.b16 %v900
        %v4678 = vunpack.c.l.b16 %v901
        %v4679 = vunpack.c.h.b16 %v901
        %v4680 = vunpack.c.l.b16 %v902
        %v4681 = vunpack.c.h.b16 %v902
        %v4682 = vunpack.c.l.b16 %v903
        %v4683 = vunpack.c.h.b16 %v903
        %v4684 = vunpack.c.l.b16 %v904
        %v4685 = vunpack.c.h.b16 %v904
        %v4686 = vunpack.c.l.b16 %v905
        %v4687 = vunpack.c.h.b16 %v905
        %v4688 = vunpack.c.l.b16 %v906
        %v4689 = vunpack.c.h.b16 %v906
        %v4690 = vunpack.c.l.b16 %v907
        %v4691 = vunpack.c.h.b16 %v907
        %v4692 = vunpack.c.l.b16 %v908
        %v4693 = vunpack.c.h.b16 %v908
        %v4694 = vunpack.c.l.b16 %v909
        %v4695 = vunpack.c.h.b16 %v909
        %v4696 = vunpack.c.l.b16 %v910
        %v4697 = vunpack.c.h.b16 %v910
        %v4698 = vunpack.c.l.b16 %v911
        %v4699 = vunpack.c.h.b16 %v911
        %v4700 = vunpack.c.l.b16 %v912
        %v4701 = vunpack.c.h.b16 %v912
        %v4702 = vunpack.c.l.b16 %v913
        %v4703 = vunpack.c.h.b16 %v913
        %v4704 = vunpack.c.l.b16 %v914
        %v4705 = vunpack.c.h.b16 %v914
        %v4706 = vunpack.c.l.b16 %v915
        %v4707 = vunpack.c.h.b16 %v915
        %v4708 = vunpack.c.l.b16 %v916
        %v4709 = vunpack.c.h.b16 %v916
        %v4710 = vunpack.c.l.b16 %v917
        %v4711 = vunpack.c.h.b16 %v917
        %v4712 = vunpack.c.l.b16 %v918
        %v4713 = vunpack.c.h.b16 %v918
        %v4714 = vunpack.c.l.b16 %v919
        %v4715 = vunpack.c.h.b16 %v919
        %v4716 = vunpack.c.l.b16 %v920
        %v4717 = vunpack.c.h.b16 %v920
        %v4718 = vunpack.c.l.b16 %v921
        %v4719 = vunpack.c.h.b16 %v921
        %v4720 = vunpack.c.l.b16 %v922
        %v4721 = vunpack.c.h.b16 %v922
        %v4722 = vunpack.c.l.b16 %v923
        %v4723 = vunpack.c.h.b16 %v923
        %v4724 = vunpack.c.l.b16 %v924
        %v4725 = vunpack.c.h.b16 %v924
        %v4726 = vunpack.c.l.b16 %v925
        %v4727 = vunpack.c.h.b16 %v925
        %v4728 = vunpack.c.l.b16 %v926
        %v4729 = vunpack.c.h.b16 %v926
        %v4730 = vunpack.c.l.b16 %v927
        %v4731 = vunpack.c.h.b16 %v927
        %v4732 = vunpack.c.l.b16 %v928
        %v4733 = vunpack.c.h.b16 %v928
        %v4734 = vunpack.c.l.b16 %v929
        %v4735 = vunpack.c.h.b16 %v929
        %v4736 = vunpack.c.l.b16 %v930
        %v4737 = vunpack.c.h.b16 %v930
        %v4738 = vunpack.c.l.b16 %v931
        %v4739 = vunpack.c.h.b16 %v931
        %v4740 = vunpack.c.l.b16 %v932
        %v4741 = vunpack.c.h.b16 %v932
        %v4742 = vunpack.c.l.b16 %v933
        %v4743 = vunpack.c.h.b16 %v933
        %v4744 = vunpack.c.l.b16 %v934
        %v4745 = vunpack.c.h.b16 %v934
        %v4746 = vunpack.c.l.b16 %v935
        %v4747 = vunpack.c.h.b16 %v935
        %v4748 = vunpack.c.l.b16 %v936
        %v4749 = vunpack.c.h.b16 %v936
        %v4750 = vunpack.c.l.b16 %v937
        %v4751 = vunpack.c.h.b16 %v937
        %v4752 = vunpack.c.l.b16 %v938
        %v4753 = vunpack.c.h.b16 %v938
        %v4754 = vunpack.c.l.b16 %v939
        %v4755 = vunpack.c.h.b16 %v939
        %v4756 = vunpack.c.l.b16 %v940
        %v4757 = vunpack.c.h.b16 %v940
        %v4758 = vunpack.c.l.b16 %v941
        %v4759 = vunpack.c.h.b16 %v941
        %v4760 = vunpack.c.l.b16 %v942
        %v4761 = vunpack.c.h.b16 %v942
        %v4762 = vunpack.c.l.b16 %v943
        %v4763 = vunpack.c.h.b16 %v943
        %v4764 = vunpack.c.l.b16 %v944
        %v4765 = vunpack.c.h.b16 %v944
        %v4766 = vunpack.c.l.b16 %v945
        %v4767 = vunpack.c.h.b16 %v945
        %v4768 = vunpack.c.l.b16 %v946
        %v4769 = vunpack.c.h.b16 %v946
        %v4770 = vunpack.c.l.b16 %v947
        %v4771 = vunpack.c.h.b16 %v947
        %v4772 = vunpack.c.l.b16 %v948
        %v4773 = vunpack.c.h.b16 %v948
        %v4774 = vunpack.c.l.b16 %v949
        %v4775 = vunpack.c.h.b16 %v949
        %v4776 = vunpack.c.l.b16 %v950
        %v4777 = vunpack.c.h.b16 %v950
        %v4778 = vunpack.c.l.b16 %v951
        %v4779 = vunpack.c.h.b16 %v951
        %v4780 = vunpack.c.l.b16 %v952
        %v4781 = vunpack.c.h.b16 %v952
        %v4782 = vunpack.c.l.b16 %v953
        %v4783 = vunpack.c.h.b16 %v953
        %v4784 = vunpack.c.l.b16 %v954
        %v4785 = vunpack.c.h.b16 %v954
        %v4786 = vunpack.c.l.b16 %v955
        %v4787 = vunpack.c.h.b16 %v955
        %v4788 = vunpack.c.l.b16 %v956
        %v4789 = vunpack.c.h.b16 %v956
        %v4790 = vunpack.c.l.b16 %v957
        %v4791 = vunpack.c.h.b16 %v957
        %v4792 = vunpack.c.l.b16 %v958
        %v4793 = vunpack.c.h.b16 %v958
        %v4794 = vunpack.c.l.b16 %v959
        %v4795 = vunpack.c.h.b16 %v959
        %v4796 = vunpack.c.l.b16 %v960
        %v4797 = vunpack.c.h.b16 %v960
        %v4798 = vunpack.c.l.b16 %v961
        %v4799 = vunpack.c.h.b16 %v961
        %v4800 = vunpack.c.l.b16 %v962
        %v4801 = vunpack.c.h.b16 %v962
        %v4802 = vunpack.c.l.b16 %v963
        %v4803 = vunpack.c.h.b16 %v963
        %v4804 = vunpack.c.l.b16 %v964
        %v4805 = vunpack.c.h.b16 %v964
        %v4806 = vunpack.c.l.b16 %v965
        %v4807 = vunpack.c.h.b16 %v965
        %v4808 = vunpack.c.l.b16 %v966
        %v4809 = vunpack.c.h.b16 %v966
        %v4810 = vunpack.c.l.b16 %v967
        %v4811 = vunpack.c.h.b16 %v967
        %v4812 = vunpack.c.l.b16 %v968
        %v4813 = vunpack.c.h.b16 %v968
        %v4814 = vunpack.c.l.b16 %v969
        %v4815 = vunpack.c.h.b16 %v969
        %v4816 = vunpack.c.l.b16 %v970
        %v4817 = vunpack.c.h.b16 %v970
        %v4818 = vunpack.c.l.b16 %v971
        %v4819 = vunpack.c.h.b16 %v971
        %v4820 = vunpack.c.l.b16 %v972
        %v4821 = vunpack.c.h.b16 %v972
        %v4822 = vunpack.c.l.b16 %v973
        %v4823 = vunpack.c.h.b16 %v973
        %v4824 = vunpack.c.l.b16 %v974
        %v4825 = vunpack.c.h.b16 %v974
        %v4826 = vunpack.c.l.b16 %v975
        %v4827 = vunpack.c.h.b16 %v975
        %v4828 = vunpack.c.l.b16 %v976
        %v4829 = vunpack.c.h.b16 %v976
        %v4830 = vunpack.c.l.b16 %v977
        %v4831 = vunpack.c.h.b16 %v977
        %v4832 = vunpack.c.l.b16 %v978
        %v4833 = vunpack.c.h.b16 %v978
        %v4834 = vunpack.c.l.b16 %v979
        %v4835 = vunpack.c.h.b16 %v979
        %v4836 = vunpack.c.l.b16 %v980
        %v4837 = vunpack.c.h.b16 %v980
        %v4838 = vunpack.c.l.b16 %v981
        %v4839 = vunpack.c.h.b16 %v981
        %v4840 = vunpack.c.l.b16 %v982
        %v4841 = vunpack.c.h.b16 %v982
        %v4842 = vunpack.c.l.b16 %v983
        %v4843 = vunpack.c.h.b16 %v983
        %v4844 = vunpack.c.l.b16 %v984
        %v4845 = vunpack.c.h.b16 %v984
        %v4846 = vunpack.c.l.b16 %v985
        %v4847 = vunpack.c.h.b16 %v985
        %v4848 = vunpack.c.l.b16 %v986
        %v4849 = vunpack.c.h.b16 %v986
        %v4850 = vunpack.c.l.b16 %v987
        %v4851 = vunpack.c.h.b16 %v987
        %v4852 = vunpack.c.l.b16 %v988
        %v4853 = vunpack.c.h.b16 %v988
        %v4854 = vunpack.c.l.b16 %v989
        %v4855 = vunpack.c.h.b16 %v989
        %v4856 = vunpack.c.l.b16 %v990
        %v4857 = vunpack.c.h.b16 %v990
        %v4858 = vunpack.c.l.b16 %v991
        %v4859 = vunpack.c.h.b16 %v991
        %v4860 = vunpack.c.l.b16 %v992
        %v4861 = vunpack.c.h.b16 %v992
        %v4862 = vunpack.c.l.b16 %v993
        %v4863 = vunpack.c.h.b16 %v993
        %v4864 = vunpack.c.l.b16 %v994
        %v4865 = vunpack.c.h.b16 %v994
        %v4866 = vunpack.c.l.b16 %v995
        %v4867 = vunpack.c.h.b16 %v995
        %v4868 = vunpack.c.l.b16 %v996
        %v4869 = vunpack.c.h.b16 %v996
        %v4870 = vunpack.c.l.b16 %v997
        %v4871 = vunpack.c.h.b16 %v997
        %v4872 = vunpack.c.l.b16 %v998
        %v4873 = vunpack.c.h.b16 %v998
        %v4874 = vunpack.c.l.b16 %v999
        %v4875 = vunpack.c.h.b16 %v999
        %v4876 = vunpack.c.l.b16 %v1000
        %v4877 = vunpack.c.h.b16 %v1000
        %v4878 = vunpack.c.l.b16 %v1001
        %v4879 = vunpack.c.h.b16 %v1001
        %v4880 = vunpack.c.l.b16 %v1002
        %v4881 = vunpack.c.h.b16 %v1002
        %v4882 = vunpack.c.l.b16 %v1003
        %v4883 = vunpack.c.h.b16 %v1003
        %v4884 = vunpack.c.l.b16 %v1004
        %v4885 = vunpack.c.h.b16 %v1004
        %v4886 = vunpack.c.l.b16 %v1005
        %v4887 = vunpack.c.h.b16 %v1005
        %v4888 = vunpack.c.l.b16 %v1006
        %v4889 = vunpack.c.h.b16 %v1006
        %v4890 = vunpack.c.l.b16 %v1007
        %v4891 = vunpack.c.h.b16 %v1007
        %v4892 = vunpack.c.l.b16 %v1008
        %v4893 = vunpack.c.h.b16 %v1008
        %v4894 = vunpack.c.l.b16 %v1009
        %v4895 = vunpack.c.h.b16 %v1009
        %v4896 = vunpack.c.l.b16 %v1010
        %v4897 = vunpack.c.h.b16 %v1010
        %v4898 = vunpack.c.l.b16 %v1011
        %v4899 = vunpack.c.h.b16 %v1011
        %v4900 = vunpack.c.l.b16 %v1012
        %v4901 = vunpack.c.h.b16 %v1012
        %v4902 = vunpack.c.l.b16 %v1013
        %v4903 = vunpack.c.h.b16 %v1013
        %v4904 = vunpack.c.l.b16 %v1014
        %v4905 = vunpack.c.h.b16 %v1014
        %v4906 = vunpack.c.l.b16 %v1015
        %v4907 = vunpack.c.h.b16 %v1015
        %v4908 = vunpack.c.l.b16 %v1016
        %v4909 = vunpack.c.h.b16 %v1016
        %v4910 = vunpack.c.l.b16 %v1017
        %v4911 = vunpack.c.h.b16 %v1017
        %v4912 = vunpack.c.l.b16 %v1018
        %v4913 = vunpack.c.h.b16 %v1018
        %v4914 = vunpack.c.l.b16 %v1019
        %v4915 = vunpack.c.h.b16 %v1019
        %v4916 = vunpack.c.l.b16 %v1020
        %v4917 = vunpack.c.h.b16 %v1020
        %v4918 = vunpack.c.l.b16 %v1021
        %v4919 = vunpack.c.h.b16 %v1021
        %v4920 = vunpack.c.l.b16 %v1022
        %v4921 = vunpack.c.h.b16 %v1022
        %v4922 = vunpack.c.l.b16 %v1023
        %v4923 = vunpack.c.h.b16 %v1023
        %v4924 = vunpack.c.l.b16 %v1024
        %v4925 = vunpack.c.h.b16 %v1024
        %v4926 = vunpack.c.l.b16 %v1025
        %v4927 = vunpack.c.h.b16 %v1025
        %v4928 = vunpack.c.l.b16 %v1026
        %v4929 = vunpack.c.h.b16 %v1026
        %v4930 = vunpack.c.l.b16 %v1027
        %v4931 = vunpack.c.h.b16 %v1027
        %v4932 = vunpack.c.l.b16 %v1028
        %v4933 = vunpack.c.h.b16 %v1028
        %v4934 = vunpack.c.l.b16 %v1029
        %v4935 = vunpack.c.h.b16 %v1029
        %v4936 = vunpack.c.l.b16 %v1030
        %v4937 = vunpack.c.h.b16 %v1030
        %v4938 = vunpack.c.l.b16 %v1031
        %v4939 = vunpack.c.h.b16 %v1031
        %v4940 = vunpack.c.l.b16 %v1032
        %v4941 = vunpack.c.h.b16 %v1032
        %v4942 = vunpack.c.l.b16 %v1033
        %v4943 = vunpack.c.h.b16 %v1033
        %v4944 = vunpack.c.l.b16 %v1034
        %v4945 = vunpack.c.h.b16 %v1034
        %v4946 = vunpack.c.l.b16 %v1035
        %v4947 = vunpack.c.h.b16 %v1035
        %v4948 = vunpack.c.l.b16 %v1036
        %v4949 = vunpack.c.h.b16 %v1036
        %v4950 = vunpack.c.l.b16 %v1037
        %v4951 = vunpack.c.h.b16 %v1037
        %v4952 = vunpack.c.l.b16 %v1038
        %v4953 = vunpack.c.h.b16 %v1038
        %v4954 = vunpack.c.l.b16 %v1039
        %v4955 = vunpack.c.h.b16 %v1039
        %v4956 = vunpack.c.l.b16 %v1040
        %v4957 = vunpack.c.h.b16 %v1040
        %v4958 = vunpack.c.l.b16 %v1041
        %v4959 = vunpack.c.h.b16 %v1041
        %v4960 = vunpack.c.l.b16 %v1042
        %v4961 = vunpack.c.h.b16 %v1042
        %v4962 = vunpack.c.l.b16 %v1043
        %v4963 = vunpack.c.h.b16 %v1043
        %v4964 = vunpack.c.l.b16 %v1044
        %v4965 = vunpack.c.h.b16 %v1044
        %v4966 = vunpack.c.l.b16 %v1045
        %v4967 = vunpack.c.h.b16 %v1045
        %v4968 = vunpack.c.l.b16 %v1046
        %v4969 = vunpack.c.h.b16 %v1046
        %v4970 = vunpack.c.l.b16 %v1047
        %v4971 = vunpack.c.h.b16 %v1047
        %v4972 = vunpack.c.l.b16 %v1048
        %v4973 = vunpack.c.h.b16 %v1048
        %v4974 = vunpack.c.l.b16 %v1049
        %v4975 = vunpack.c.h.b16 %v1049
        %v4976 = vunpack.c.l.b16 %v1050
        %v4977 = vunpack.c.h.b16 %v1050
        %v4978 = vunpack.c.l.b16 %v1051
        %v4979 = vunpack.c.h.b16 %v1051
        %v4980 = vunpack.c.l.b16 %v1052
        %v4981 = vunpack.c.h.b16 %v1052
        %v4982 = vunpack.c.l.b16 %v1053
        %v4983 = vunpack.c.h.b16 %v1053
        %v4984 = vunpack.c.l.b16 %v1054
        %v4985 = vunpack.c.h.b16 %v1054
        %v4986 = vunpack.c.l.b16 %v1055
        %v4987 = vunpack.c.h.b16 %v1055
        %v4988 = vunpack.c.l.b16 %v1056
        %v4989 = vunpack.c.h.b16 %v1056
        %v4990 = vunpack.c.l.b16 %v1057
        %v4991 = vunpack.c.h.b16 %v1057
        %v4992 = vunpack.c.l.b16 %v1058
        %v4993 = vunpack.c.h.b16 %v1058
        %v4994 = vunpack.c.l.b16 %v1059
        %v4995 = vunpack.c.h.b16 %v1059
        %v4996 = vunpack.c.l.b16 %v1060
        %v4997 = vunpack.c.h.b16 %v1060
        %v4998 = vunpack.c.l.b16 %v1061
        %v4999 = vunpack.c.h.b16 %v1061
        %v5000 = vunpack.c.l.b16 %v1062
        %v5001 = vunpack.c.h.b16 %v1062
        %v5002 = vunpack.c.l.b16 %v1063
        %v5003 = vunpack.c.h.b16 %v1063
        %v5004 = vunpack.c.l.b16 %v1064
        %v5005 = vunpack.c.h.b16 %v1064
        %v5006 = vunpack.c.l.b16 %v1065
        %v5007 = vunpack.c.h.b16 %v1065
        %v5008 = vunpack.c.l.b16 %v1066
        %v5009 = vunpack.c.h.b16 %v1066
        %v5010 = vunpack.c.l.b16 %v1067
        %v5011 = vunpack.c.h.b16 %v1067
        %v5012 = vunpack.c.l.b16 %v1068
        %v5013 = vunpack.c.h.b16 %v1068
        %v5014 = vunpack.c.l.b16 %v1069
        %v5015 = vunpack.c.h.b16 %v1069
        %v5016 = vunpack.c.l.b16 %v1070
        %v5017 = vunpack.c.h.b16 %v1070
        %v5018 = vunpack.c.l.b16 %v1071
        %v5019 = vunpack.c.h.b16 %v1071
        %v5020 = vunpack.c.l.b16 %v1072
        %v5021 = vunpack.c.h.b16 %v1072
        %v5022 = vunpack.c.l.b16 %v1073
        %v5023 = vunpack.c.h.b16 %v1073
        %v5024 = vunpack.c.l.b16 %v1074
        %v5025 = vunpack.c.h.b16 %v1074
        %v5026 = vunpack.c.l.b16 %v1075
        %v5027 = vunpack.c.h.b16 %v1075
        %v5028 = vunpack.c.l.b16 %v1076
        %v5029 = vunpack.c.h.b16 %v1076
        %v5030 = vunpack.c.l.b16 %v1077
        %v5031 = vunpack.c.h.b16 %v1077
        %v5032 = vunpack.c.l.b16 %v1078
        %v5033 = vunpack.c.h.b16 %v1078
        %v5034 = vunpack.c.l.b16 %v1079
        %v5035 = vunpack.c.h.b16 %v1079
        %v5036 = vunpack.c.l.b16 %v1080
        %v5037 = vunpack.c.h.b16 %v1080
        %v5038 = vunpack.c.l.b16 %v1081
        %v5039 = vunpack.c.h.b16 %v1081
        %v5040 = vunpack.c.l.b16 %v1082
        %v5041 = vunpack.c.h.b16 %v1082
        %v5042 = vunpack.c.l.b16 %v1083
        %v5043 = vunpack.c.h.b16 %v1083
        %v5044 = vunpack.c.l.b16 %v1084
        %v5045 = vunpack.c.h.b16 %v1084
        %v5046 = vunpack.c.l.b16 %v1085
        %v5047 = vunpack.c.h.b16 %v1085
        %v5048 = vunpack.c.l.b16 %v1086
        %v5049 = vunpack.c.h.b16 %v1086
        %v5050 = vunpack.c.l.b16 %v1087
        %v5051 = vunpack.c.h.b16 %v1087
        %v5052 = vunpack.c.l.b16 %v1088
        %v5053 = vunpack.c.h.b16 %v1088
        %v5054 = vunpack.c.l.b16 %v1089
        %v5055 = vunpack.c.h.b16 %v1089
        %v5056 = vunpack.c.l.b16 %v1090
        %v5057 = vunpack.c.h.b16 %v1090
        %v5058 = vunpack.c.l.b16 %v1091
        %v5059 = vunpack.c.h.b16 %v1091
        %v5060 = vunpack.c.l.b16 %v1092
        %v5061 = vunpack.c.h.b16 %v1092
        %v5062 = vunpack.c.l.b16 %v1093
        %v5063 = vunpack.c.h.b16 %v1093
        %v5064 = vunpack.c.l.b16 %v1094
        %v5065 = vunpack.c.h.b16 %v1094
        %v5066 = vunpack.c.l.b16 %v1095
        %v5067 = vunpack.c.h.b16 %v1095
        %v5068 = vunpack.c.l.b16 %v1096
        %v5069 = vunpack.c.h.b16 %v1096
        %v5070 = vunpack.c.l.b16 %v1097
        %v5071 = vunpack.c.h.b16 %v1097
        %v5072 = vunpack.c.l.b16 %v1098
        %v5073 = vunpack.c.h.b16 %v1098
        %v5074 = vunpack.c.l.b16 %v1099
        %v5075 = vunpack.c.h.b16 %v1099
        %v5076 = vunpack.c.l.b16 %v1100
        %v5077 = vunpack.c.h.b16 %v1100
        %v5078 = vunpack.c.l.b16 %v1101
        %v5079 = vunpack.c.h.b16 %v1101
        %v5080 = vunpack.c.l.b16 %v1102
        %v5081 = vunpack.c.h.b16 %v1102
        %v5082 = vunpack.c.l.b16 %v1103
        %v5083 = vunpack.c.h.b16 %v1103
        %v5084 = vunpack.c.l.b16 %v1104
        %v5085 = vunpack.c.h.b16 %v1104
        %v5086 = vunpack.c.l.b16 %v1105
        %v5087 = vunpack.c.h.b16 %v1105
        %v5088 = vunpack.c.l.b16 %v1106
        %v5089 = vunpack.c.h.b16 %v1106
        %v5090 = vunpack.c.l.b16 %v1107
        %v5091 = vunpack.c.h.b16 %v1107
        %v5092 = vunpack.c.l.b16 %v1108
        %v5093 = vunpack.c.h.b16 %v1108
        %v5094 = vunpack.c.l.b16 %v1109
        %v5095 = vunpack.c.h.b16 %v1109
        %v5096 = vunpack.c.l.b16 %v1110
        %v5097 = vunpack.c.h.b16 %v1110
        %v5098 = vunpack.c.l.b16 %v1111
        %v5099 = vunpack.c.h.b16 %v1111
        %v5100 = vunpack.c.l.b16 %v1112
        %v5101 = vunpack.c.h.b16 %v1112
        %v5102 = vunpack.c.l.b16 %v1113
        %v5103 = vunpack.c.h.b16 %v1113
        %v5104 = vunpack.c.l.b16 %v1114
        %v5105 = vunpack.c.h.b16 %v1114
        %v5106 = vunpack.c.l.b16 %v1115
        %v5107 = vunpack.c.h.b16 %v1115
        %v5108 = vpack.c.b16 %v4604, %v4596
        %v5109 = vpack.c.b16 %v4605, %v4597
        %v5110 = vpack.c.b16 %v4606, %v4598
        %v5111 = vpack.c.b16 %v4607, %v4599
        %v5112 = vpack.c.b16 %v4608, %v4600
        %v5113 = vpack.c.b16 %v4609, %v4601
        %v5114 = vpack.c.b16 %v4610, %v4602
        %v5115 = vpack.c.b16 %v4611, %v4603
        %v5116 = vpack.c.b16 %v4620, %v4612
        %v5117 = vpack.c.b16 %v4621, %v4613
        %v5118 = vpack.c.b16 %v4622, %v4614
        %v5119 = vpack.c.b16 %v4623, %v4615
        %v5120 = vpack.c.b16 %v4624, %v4616
        %v5121 = vpack.c.b16 %v4625, %v4617
        %v5122 = vpack.c.b16 %v4626, %v4618
        %v5123 = vpack.c.b16 %v4627, %v4619
        %v5124 = vpack.c.b16 %v4636, %v4628
        %v5125 = vpack.c.b16 %v4637, %v4629
        %v5126 = vpack.c.b16 %v4638, %v4630
        %v5127 = vpack.c.b16 %v4639, %v4631
        %v5128 = vpack.c.b16 %v4640, %v4632
        %v5129 = vpack.c.b16 %v4641, %v4633
        %v5130 = vpack.c.b16 %v4642, %v4634
        %v5131 = vpack.c.b16 %v4643, %v4635
        %v5132 = vpack.c.b16 %v4652, %v4644
        %v5133 = vpack.c.b16 %v4653, %v4645
        %v5134 = vpack.c.b16 %v4654, %v4646
        %v5135 = vpack.c.b16 %v4655, %v4647
        %v5136 = vpack.c.b16 %v4656, %v4648
        %v5137 = vpack.c.b16 %v4657, %v4649
        %v5138 = vpack.c.b16 %v4658, %v4650
        %v5139 = vpack.c.b16 %v4659, %v4651
        %v5140 = vpack.c.b16 %v4668, %v4660
        %v5141 = vpack.c.b16 %v4669, %v4661
        %v5142 = vpack.c.b16 %v4670, %v4662
        %v5143 = vpack.c.b16 %v4671, %v4663
        %v5144 = vpack.c.b16 %v4672, %v4664
        %v5145 = vpack.c.b16 %v4673, %v4665
        %v5146 = vpack.c.b16 %v4674, %v4666
        %v5147 = vpack.c.b16 %v4675, %v4667
        %v5148 = vpack.c.b16 %v4684, %v4676
        %v5149 = vpack.c.b16 %v4685, %v4677
        %v5150 = vpack.c.b16 %v4686, %v4678
        %v5151 = vpack.c.b16 %v4687, %v4679
        %v5152 = vpack.c.b16 %v4688, %v4680
        %v5153 = vpack.c.b16 %v4689, %v4681
        %v5154 = vpack.c.b16 %v4690, %v4682
        %v5155 = vpack.c.b16 %v4691, %v4683
        %v5156 = vpack.c.b16 %v4700, %v4692
        %v5157 = vpack.c.b16 %v4701, %v4693
        %v5158 = vpack.c.b16 %v4702, %v4694
        %v5159 = vpack.c.b16 %v4703, %v4695
        %v5160 = vpack.c.b16 %v4704, %v4696
        %v5161 = vpack.c.b16 %v4705, %v4697
        %v5162 = vpack.c.b16 %v4706, %v4698
        %v5163 = vpack.c.b16 %v4707, %v4699
        %v5164 = vpack.c.b16 %v4716, %v4708
        %v5165 = vpack.c.b16 %v4717, %v4709
        %v5166 = vpack.c.b16 %v4718, %v4710
        %v5167 = vpack.c.b16 %v4719, %v4711
        %v5168 = vpack.c.b16 %v4720, %v4712
        %v5169 = vpack.c.b16 %v4721, %v4713
        %v5170 = vpack.c.b16 %v4722, %v4714
        %v5171 = vpack.c.b16 %v4723, %v4715
        %v5172 = vpack.c.b16 %v4732, %v4724
        %v5173 = vpack.c.b16 %v4733, %v4725
        %v5174 = vpack.c.b16 %v4734, %v4726
        %v5175 = vpack.c.b16 %v4735, %v4727
        %v5176 = vpack.c.b16 %v4736, %v4728
        %v5177 = vpack.c.b16 %v4737, %v4729
        %v5178 = vpack.c.b16 %v4738, %v4730
        %v5179 = vpack.c.b16 %v4739, %v4731
        %v5180 = vpack.c.b16 %v4748, %v4740
        %v5181 = vpack.c.b16 %v4749, %v4741
        %v5182 = vpack.c.b16 %v4750, %v4742
        %v5183 = vpack.c.b16 %v4751, %v4743
        %v5184 = vpack.c.b16 %v4752, %v4744
        %v5185 = vpack.c.b16 %v4753, %v4745
        %v5186 = vpack.c.b16 %v4754, %v4746
        %v5187 = vpack.c.b16 %v4755, %v4747
        %v5188 = vpack.c.b16 %v4764, %v4756
        %v5189 = vpack.c.b16 %v4765, %v4757
        %v5190 = vpack.c.b16 %v4766, %v4758
        %v5191 = vpack.c.b16 %v4767, %v4759
        %v5192 = vpack.c.b16 %v4768, %v4760
        %v5193 = vpack.c.b16 %v4769, %v4761
        %v5194 = vpack.c.b16 %v4770, %v4762
        %v5195 = vpack.c.b16 %v4771, %v4763
        %v5196 = vpack.c.b16 %v4780, %v4772
        %v5197 = vpack.c.b16 %v4781, %v4773
        %v5198 = vpack.c.b16 %v4782, %v4774
        %v5199 = vpack.c.b16 %v4783, %v4775
        %v5200 = vpack.c.b16 %v4784, %v4776
        %v5201 = vpack.c.b16 %v4785, %v4777
        %v5202 = vpack.c.b16 %v4786, %v4778
        %v5203 = vpack.c.b16 %v4787, %v4779
        %v5204 = vpack.c.b16 %v4796, %v4788
        %v5205 = vpack.c.b16 %v4797, %v4789
        %v5206 = vpack.c.b16 %v4798, %v4790
        %v5207 = vpack.c.b16 %v4799, %v4791
        %v5208 = vpack.c.b16 %v4800, %v4792
        %v5209 = vpack.c.b16 %v4801, %v4793
        %v5210 = vpack.c.b16 %v4802, %v4794
        %v5211 = vpack.c.b16 %v4803, %v4795
        %v5212 = vpack.c.b16 %v4812, %v4804
        %v5213 = vpack.c.b16 %v4813, %v4805
        %v5214 = vpack.c.b16 %v4814, %v4806
        %v5215 = vpack.c.b16 %v4815, %v4807
        %v5216 = vpack.c.b16 %v4816, %v4808
        %v5217 = vpack.c.b16 %v4817, %v4809
        %v5218 = vpack.c.b16 %v4818, %v4810
        %v5219 = vpack.c.b16 %v4819, %v4811
        %v5220 = vpack.c.b16 %v4828, %v4820
        %v5221 = vpack.c.b16 %v4829, %v4821
        %v5222 = vpack.c.b16 %v4830, %v4822
        %v5223 = vpack.c.b16 %v4831, %v4823
        %v5224 = vpack.c.b16 %v4832, %v4824
        %v5225 = vpack.c.b16 %v4833, %v4825
        %v5226 = vpack.c.b16 %v4834, %v4826
        %v5227 = vpack.c.b16 %v4835, %v4827
        %v5228 = vpack.c.b16 %v4844, %v4836
        %v5229 = vpack.c.b16 %v4845, %v4837
        %v5230 = vpack.c.b16 %v4846, %v4838
        %v5231 = vpack.c.b16 %v4847, %v4839
        %v5232 = vpack.c.b16 %v4848, %v4840
        %v5233 = vpack.c.b16 %v4849, %v4841
        %v5234 = vpack.c.b16 %v4850, %v4842
        %v5235 = vpack.c.b16 %v4851, %v4843
        %v5236 = vpack.c.b16 %v4860, %v4852
        %v5237 = vpack.c.b16 %v4861, %v4853
        %v5238 = vpack.c.b16 %v4862, %v4854
        %v5239 = vpack.c.b16 %v4863, %v4855
        %v5240 = vpack.c.b16 %v4864, %v4856
        %v5241 = vpack.c.b16 %v4865, %v4857
        %v5242 = vpack.c.b16 %v4866, %v4858
        %v5243 = vpack.c.b16 %v4867, %v4859
        %v5244 = vpack.c.b16 %v4876, %v4868
        %v5245 = vpack.c.b16 %v4877, %v4869
        %v5246 = vpack.c.b16 %v4878, %v4870
        %v5247 = vpack.c.b16 %v4879, %v4871
        %v5248 = vpack.c.b16 %v4880, %v4872
        %v5249 = vpack.c.b16 %v4881, %v4873
        %v5250 = vpack.c.b16 %v4882, %v4874
        %v5251 = vpack.c.b16 %v4883, %v4875
        %v5252 = vpack.c.b16 %v4892, %v4884
        %v5253 = vpack.c.b16 %v4893, %v4885
        %v5254 = vpack.c.b16 %v4894, %v4886
        %v5255 = vpack.c.b16 %v4895, %v4887
        %v5256 = vpack.c.b16 %v4896, %v4888
        %v5257 = vpack.c.b16 %v4897, %v4889
        %v5258 = vpack.c.b16 %v4898, %v4890
        %v5259 = vpack.c.b16 %v4899, %v4891
        %v5260 = vpack.c.b16 %v4908, %v4900
        %v5261 = vpack.c.b16 %v4909, %v4901
        %v5262 = vpack.c.b16 %v4910, %v4902
        %v5263 = vpack.c.b16 %v4911, %v4903
        %v5264 = vpack.c.b16 %v4912, %v4904
        %v5265 = vpack.c.b16 %v4913, %v4905
        %v5266 = vpack.c.b16 %v4914, %v4906
        %v5267 = vpack.c.b16 %v4915, %v4907
        %v5268 = vpack.c.b16 %v4924, %v4916
        %v5269 = vpack.c.b16 %v4925, %v4917
        %v5270 = vpack.c.b16 %v4926, %v4918
        %v5271 = vpack.c.b16 %v4927, %v4919
        %v5272 = vpack.c.b16 %v4928, %v4920
        %v5273 = vpack.c.b16 %v4929, %v4921
        %v5274 = vpack.c.b16 %v4930, %v4922
        %v5275 = vpack.c.b16 %v4931, %v4923
        %v5276 = vpack.c.b16 %v4940, %v4932
        %v5277 = vpack.c.b16 %v4941, %v4933
        %v5278 = vpack.c.b16 %v4942, %v4934
        %v5279 = vpack.c.b16 %v4943, %v4935
        %v5280 = vpack.c.b16 %v4944, %v4936
        %v5281 = vpack.c.b16 %v4945, %v4937
        %v5282 = vpack.c.b16 %v4946, %v4938
        %v5283 = vpack.c.b16 %v4947, %v4939
        %v5284 = vpack.c.b16 %v4956, %v4948
        %v5285 = vpack.c.b16 %v4957, %v4949
        %v5286 = vpack.c.b16 %v4958, %v4950
        %v5287 = vpack.c.b16 %v4959, %v4951
        %v5288 = vpack.c.b16 %v4960, %v4952
        %v5289 = vpack.c.b16 %v4961, %v4953
        %v5290 = vpack.c.b16 %v4962, %v4954
        %v5291 = vpack.c.b16 %v4963, %v4955
        %v5292 = vpack.c.b16 %v4972, %v4964
        %v5293 = vpack.c.b16 %v4973, %v4965
        %v5294 = vpack.c.b16 %v4974, %v4966
        %v5295 = vpack.c.b16 %v4975, %v4967
        %v5296 = vpack.c.b16 %v4976, %v4968
        %v5297 = vpack.c.b16 %v4977, %v4969
        %v5298 = vpack.c.b16 %v4978, %v4970
        %v5299 = vpack.c.b16 %v4979, %v4971
        %v5300 = vpack.c.b16 %v4988, %v4980
        %v5301 = vpack.c.b16 %v4989, %v4981
        %v5302 = vpack.c.b16 %v4990, %v4982
        %v5303 = vpack.c.b16 %v4991, %v4983
        %v5304 = vpack.c.b16 %v4992, %v4984
        %v5305 = vpack.c.b16 %v4993, %v4985
        %v5306 = vpack.c.b16 %v4994, %v4986
        %v5307 = vpack.c.b16 %v4995, %v4987
        %v5308 = vpack.c.b16 %v5004, %v4996
        %v5309 = vpack.c.b16 %v5005, %v4997
        %v5310 = vpack.c.b16 %v5006, %v4998
        %v5311 = vpack.c.b16 %v5007, %v4999
        %v5312 = vpack.c.b16 %v5008, %v5000
        %v5313 = vpack.c.b16 %v5009, %v5001
        %v5314 = vpack.c.b16 %v5010, %v5002
        %v5315 = vpack.c.b16 %v5011, %v5003
        %v5316 = vpack.c.b16 %v5020, %v5012
        %v5317 = vpack.c.b16 %v5021, %v5013
        %v5318 = vpack.c.b16 %v5022, %v5014
        %v5319 = vpack.c.b16 %v5023, %v5015
        %v5320 = vpack.c.b16 %v5024, %v5016
        %v5321 = vpack.c.b16 %v5025, %v5017
        %v5322 = vpack.c.b16 %v5026, %v5018
        %v5323 = vpack.c.b16 %v5027, %v5019
        %v5324 = vpack.c.b16 %v5036, %v5028
        %v5325 = vpack.c.b16 %v5037, %v5029
        %v5326 = vpack.c.b16 %v5038, %v5030
        %v5327 = vpack.c.b16 %v5039, %v5031
        %v5328 = vpack.c.b16 %v5040, %v5032
        %v5329 = vpack.c.b16 %v5041, %v5033
        %v5330 = vpack.c.b16 %v5042, %v5034
        %v5331 = vpack.c.b16 %v5043, %v5035
        %v5332 = vpack.c.b16 %v5052, %v5044
        %v5333 = vpack.c.b16 %v5053, %v5045
        %v5334 = vpack.c.b16 %v5054, %v5046
        %v5335 = vpack.c.b16 %v5055, %v5047
        %v5336 = vpack.c.b16 %v5056, %v5048
        %v5337 = vpack.c.b16 %v5057, %v5049
        %v5338 = vpack.c.b16 %v5058, %v5050
        %v5339 = vpack.c.b16 %v5059, %v5051
        %v5340 = vpack.c.b16 %v5068, %v5060
        %v5341 = vpack.c.b16 %v5069, %v5061
        %v5342 = vpack.c.b16 %v5070, %v5062
        %v5343 = vpack.c.b16 %v5071, %v5063
        %v5344 = vpack.c.b16 %v5072, %v5064
        %v5345 = vpack.c.b16 %v5073, %v5065
        %v5346 = vpack.c.b16 %v5074, %v5066
        %v5347 = vpack.c.b16 %v5075, %v5067
        %v5348 = vpack.c.b16 %v5084, %v5076
        %v5349 = vpack.c.b16 %v5085, %v5077
        %v5350 = vpack.c.b16 %v5086, %v5078
        %v5351 = vpack.c.b16 %v5087, %v5079
        %v5352 = vpack.c.b16 %v5088, %v5080
        %v5353 = vpack.c.b16 %v5089, %v5081
        %v5354 = vpack.c.b16 %v5090, %v5082
        %v5355 = vpack.c.b16 %v5091, %v5083
        %v5356 = vpack.c.b16 %v5100, %v5092
        %v5357 = vpack.c.b16 %v5101, %v5093
        %v5358 = vpack.c.b16 %v5102, %v5094
        %v5359 = vpack.c.b16 %v5103, %v5095
        %v5360 = vpack.c.b16 %v5104, %v5096
        %v5361 = vpack.c.b16 %v5105, %v5097
        %v5362 = vpack.c.b16 %v5106, %v5098
        %v5363 = vpack.c.b16 %v5107, %v5099
        %5620 = vmatprep.subr.bf16.mxu0 %v5165
        %5621 = vmatpush1.bf16.msra.mxu0 %v5164
        %5622 = vmatprep.subr.bf16.mxu0 %v5157
        %5623 = vmatpush1.bf16.msra.mxu0 %v5156
        %5624 = vmatprep.subr.bf16.mxu0 %v5149
        %5625 = vmatpush1.bf16.msra.mxu0 %v5148
        %5626 = vmatprep.subr.bf16.mxu0 %v5141
        %5627 = vmatpush1.bf16.msra.mxu0 %v5140
        %5628 = vmatprep.subr.bf16.mxu0 %v5133
        %5629 = vmatpush1.bf16.msra.mxu0 %v5132
        %5630 = vmatprep.subr.bf16.mxu0 %v5125
        %5631 = vmatpush1.bf16.msra.mxu0 %v5124
        %5632 = vmatprep.subr.bf16.mxu0 %v5117
        %5633 = vmatpush1.bf16.msra.mxu0 %v5116
        %5634 = vmatprep.subr.bf16.mxu0 %v5109
        %5635 = vmatpush1.bf16.msra.mxu0 %v5108
        %5636 = vmatprep.subr.bf16.mxu0 %v5229
        %5637 = vmatpush2.bf16.msra.mxu0 %v5228
        %5638 = vmatprep.subr.bf16.mxu0 %v5221
        %5639 = vmatpush2.bf16.msra.mxu0 %v5220
        %5640 = vmatprep.subr.bf16.mxu0 %v5213
        %5641 = vmatpush2.bf16.msra.mxu0 %v5212
        %5642 = vmatprep.subr.bf16.mxu0 %v5205
        %5643 = vmatpush2.bf16.msra.mxu0 %v5204
        %5644 = vmatprep.subr.bf16.mxu0 %v5197
        %5645 = vmatpush2.bf16.msra.mxu0 %v5196
        %5646 = vmatprep.subr.bf16.mxu0 %v5189
        %5647 = vmatpush2.bf16.msra.mxu0 %v5188
        %5648 = vmatprep.subr.bf16.mxu0 %v5181
        %5649 = vmatpush2.bf16.msra.mxu0 %v5180
        %5650 = vmatprep.subr.bf16.mxu0 %v5173
        %5651 = vmatpush2.bf16.msra.mxu0 %v5172
        %5652 = vmatprep.mubr.bf16.mxu0 %v297
        %5653 = vmatmul.mubr.bf16.gmra.mxu0 %v296
        %v5654 = vpop.f32.mrf.mxu0
        %v5655 = vadd.f32 0.0, %v5654
        %v5656 = vpop.f32.mrf.mxu0
        %v5657 = vadd.f32 0.0, %v5656
        %v5658 = vpop.f32.mrf.mxu0
        %v5659 = vpop.f32.mrf.mxu0
        %5660 = vdwg.mxu0
        %5661 = vmatprep.subr.bf16.mxu0 %v5293
        %5662 = vmatpush1.bf16.msra.mxu0 %v5292
        %5663 = vmatprep.subr.bf16.mxu0 %v5285
        %5664 = vmatpush1.bf16.msra.mxu0 %v5284
        %5665 = vmatprep.subr.bf16.mxu0 %v5277
        %5666 = vmatpush1.bf16.msra.mxu0 %v5276
        %5667 = vmatprep.subr.bf16.mxu0 %v5269
        %5668 = vmatpush1.bf16.msra.mxu0 %v5268
        %5669 = vmatprep.subr.bf16.mxu0 %v5261
        %5670 = vmatpush1.bf16.msra.mxu0 %v5260
        %5671 = vmatprep.subr.bf16.mxu0 %v5253
        %5672 = vmatpush1.bf16.msra.mxu0 %v5252
        %5673 = vmatprep.subr.bf16.mxu0 %v5245
        %5674 = vmatpush1.bf16.msra.mxu0 %v5244
        %5675 = vmatprep.subr.bf16.mxu0 %v5237
        %5676 = vmatpush1.bf16.msra.mxu0 %v5236
        %5677 = vmatprep.subr.bf16.mxu0 %v5357
        %5678 = vmatpush2.bf16.msra.mxu0 %v5356
        %5679 = vmatprep.subr.bf16.mxu0 %v5349
        %5680 = vmatpush2.bf16.msra.mxu0 %v5348
        %5681 = vmatprep.subr.bf16.mxu0 %v5341
        %5682 = vmatpush2.bf16.msra.mxu0 %v5340
        %5683 = vmatprep.subr.bf16.mxu0 %v5333
        %5684 = vmatpush2.bf16.msra.mxu0 %v5332
        %5685 = vmatprep.subr.bf16.mxu0 %v5325
        %5686 = vmatpush2.bf16.msra.mxu0 %v5324
        %5687 = vmatprep.subr.bf16.mxu0 %v5317
        %5688 = vmatpush2.bf16.msra.mxu0 %v5316
        %5689 = vmatprep.subr.bf16.mxu0 %v5309
        %5690 = vmatpush2.bf16.msra.mxu0 %v5308
        %5691 = vmatprep.subr.bf16.mxu0 %v5301
        %5692 = vmatpush2.bf16.msra.mxu0 %v5300
        %5693 = vmatprep.mubr.bf16.mxu0 %v299
        %5694 = vmatmul.mubr.bf16.gmra.mxu0 %v298
        %v5695 = vpop.f32.mrf.mxu0
        %v5696 = vadd.f32 %v5655, %v5695
        %v5697 = vpop.f32.mrf.mxu0
        %v5698 = vadd.f32 %v5657, %v5697
        %v5699 = vpop.f32.mrf.mxu0
        %v5700 = vpop.f32.mrf.mxu0
        %5701 = vdwg.mxu0
        %5702 = vmatprep.subr.bf16.mxu0 %v5167
        %5703 = vmatpush1.bf16.msra.mxu0 %v5166
        %5704 = vmatprep.subr.bf16.mxu0 %v5159
        %5705 = vmatpush1.bf16.msra.mxu0 %v5158
        %5706 = vmatprep.subr.bf16.mxu0 %v5151
        %5707 = vmatpush1.bf16.msra.mxu0 %v5150
        %5708 = vmatprep.subr.bf16.mxu0 %v5143
        %5709 = vmatpush1.bf16.msra.mxu0 %v5142
        %5710 = vmatprep.subr.bf16.mxu0 %v5135
        %5711 = vmatpush1.bf16.msra.mxu0 %v5134
        %5712 = vmatprep.subr.bf16.mxu0 %v5127
        %5713 = vmatpush1.bf16.msra.mxu0 %v5126
        %5714 = vmatprep.subr.bf16.mxu0 %v5119
        %5715 = vmatpush1.bf16.msra.mxu0 %v5118
        %5716 = vmatprep.subr.bf16.mxu0 %v5111
        %5717 = vmatpush1.bf16.msra.mxu0 %v5110
        %5718 = vmatprep.subr.bf16.mxu0 %v5231
        %5719 = vmatpush2.bf16.msra.mxu0 %v5230
        %5720 = vmatprep.subr.bf16.mxu0 %v5223
        %5721 = vmatpush2.bf16.msra.mxu0 %v5222
        %5722 = vmatprep.subr.bf16.mxu0 %v5215
        %5723 = vmatpush2.bf16.msra.mxu0 %v5214
        %5724 = vmatprep.subr.bf16.mxu0 %v5207
        %5725 = vmatpush2.bf16.msra.mxu0 %v5206
        %5726 = vmatprep.subr.bf16.mxu0 %v5199
        %5727 = vmatpush2.bf16.msra.mxu0 %v5198
        %5728 = vmatprep.subr.bf16.mxu0 %v5191
        %5729 = vmatpush2.bf16.msra.mxu0 %v5190
        %5730 = vmatprep.subr.bf16.mxu0 %v5183
        %5731 = vmatpush2.bf16.msra.mxu0 %v5182
        %5732 = vmatprep.subr.bf16.mxu0 %v5175
        %5733 = vmatpush2.bf16.msra.mxu0 %v5174
        %5734 = vmatprep.mubr.bf16.mxu0 %v297
        %5735 = vmatmul.mubr.bf16.gmra.mxu0 %v296
        %v5736 = vpop.f32.mrf.mxu0
        %v5737 = vadd.f32 0.0, %v5736
        %v5738 = vpop.f32.mrf.mxu0
        %v5739 = vadd.f32 0.0, %v5738
        %v5740 = vpop.f32.mrf.mxu0
        %v5741 = vpop.f32.mrf.mxu0
        %5742 = vdwg.mxu0
        %5743 = vmatprep.subr.bf16.mxu0 %v5295
        %5744 = vmatpush1.bf16.msra.mxu0 %v5294
        %5745 = vmatprep.subr.bf16.mxu0 %v5287
        %5746 = vmatpush1.bf16.msra.mxu0 %v5286
        %5747 = vmatprep.subr.bf16.mxu0 %v5279
        %5748 = vmatpush1.bf16.msra.mxu0 %v5278
        %5749 = vmatprep.subr.bf16.mxu0 %v5271
        %5750 = vmatpush1.bf16.msra.mxu0 %v5270
        %5751 = vmatprep.subr.bf16.mxu0 %v5263
        %5752 = vmatpush1.bf16.msra.mxu0 %v5262
        %5753 = vmatprep.subr.bf16.mxu0 %v5255
        %5754 = vmatpush1.bf16.msra.mxu0 %v5254
        %5755 = vmatprep.subr.bf16.mxu0 %v5247
        %5756 = vmatpush1.bf16.msra.mxu0 %v5246
        %5757 = vmatprep.subr.bf16.mxu0 %v5239
        %5758 = vmatpush1.bf16.msra.mxu0 %v5238
        %5759 = vmatprep.subr.bf16.mxu0 %v5359
        %5760 = vmatpush2.bf16.msra.mxu0 %v5358
        %5761 = vmatprep.subr.bf16.mxu0 %v5351
        %5762 = vmatpush2.bf16.msra.mxu0 %v5350
        %5763 = vmatprep.subr.bf16.mxu0 %v5343
        %5764 = vmatpush2.bf16.msra.mxu0 %v5342
        %5765 = vmatprep.subr.bf16.mxu0 %v5335
        %5766 = vmatpush2.bf16.msra.mxu0 %v5334
        %5767 = vmatprep.subr.bf16.mxu0 %v5327
        %5768 = vmatpush2.bf16.msra.mxu0 %v5326
        %5769 = vmatprep.subr.bf16.mxu0 %v5319
        %5770 = vmatpush2.bf16.msra.mxu0 %v5318
        %5771 = vmatprep.subr.bf16.mxu0 %v5311
        %5772 = vmatpush2.bf16.msra.mxu0 %v5310
        %5773 = vmatprep.subr.bf16.mxu0 %v5303
        %5774 = vmatpush2.bf16.msra.mxu0 %v5302
        %5775 = vmatprep.mubr.bf16.mxu0 %v299
        %5776 = vmatmul.mubr.bf16.gmra.mxu0 %v298
        %v5777 = vpop.f32.mrf.mxu0
        %v5778 = vadd.f32 %v5737, %v5777
        %v5779 = vpop.f32.mrf.mxu0
        %v5780 = vadd.f32 %v5739, %v5779
        %v5781 = vpop.f32.mrf.mxu0
        %v5782 = vpop.f32.mrf.mxu0
        %5783 = vdwg.mxu0
        %5784 = vmatprep.subr.bf16.mxu0 %v5169
        %5785 = vmatpush1.bf16.msra.mxu0 %v5168
        %5786 = vmatprep.subr.bf16.mxu0 %v5161
        %5787 = vmatpush1.bf16.msra.mxu0 %v5160
        %5788 = vmatprep.subr.bf16.mxu0 %v5153
        %5789 = vmatpush1.bf16.msra.mxu0 %v5152
        %5790 = vmatprep.subr.bf16.mxu0 %v5145
        %5791 = vmatpush1.bf16.msra.mxu0 %v5144
        %5792 = vmatprep.subr.bf16.mxu0 %v5137
        %5793 = vmatpush1.bf16.msra.mxu0 %v5136
        %5794 = vmatprep.subr.bf16.mxu0 %v5129
        %5795 = vmatpush1.bf16.msra.mxu0 %v5128
        %5796 = vmatprep.subr.bf16.mxu0 %v5121
        %5797 = vmatpush1.bf16.msra.mxu0 %v5120
        %5798 = vmatprep.subr.bf16.mxu0 %v5113
        %5799 = vmatpush1.bf16.msra.mxu0 %v5112
        %5800 = vmatprep.subr.bf16.mxu0 %v5233
        %5801 = vmatpush2.bf16.msra.mxu0 %v5232
        %5802 = vmatprep.subr.bf16.mxu0 %v5225
        %5803 = vmatpush2.bf16.msra.mxu0 %v5224
        %5804 = vmatprep.subr.bf16.mxu0 %v5217
        %5805 = vmatpush2.bf16.msra.mxu0 %v5216
        %5806 = vmatprep.subr.bf16.mxu0 %v5209
        %5807 = vmatpush2.bf16.msra.mxu0 %v5208
        %5808 = vmatprep.subr.bf16.mxu0 %v5201
        %5809 = vmatpush2.bf16.msra.mxu0 %v5200
        %5810 = vmatprep.subr.bf16.mxu0 %v5193
        %5811 = vmatpush2.bf16.msra.mxu0 %v5192
        %5812 = vmatprep.subr.bf16.mxu0 %v5185
        %5813 = vmatpush2.bf16.msra.mxu0 %v5184
        %5814 = vmatprep.subr.bf16.mxu0 %v5177
        %5815 = vmatpush2.bf16.msra.mxu0 %v5176
        %5816 = vmatprep.mubr.bf16.mxu0 %v297
        %5817 = vmatmul.mubr.bf16.gmra.mxu0 %v296
        %v5818 = vpop.f32.mrf.mxu0
        %v5819 = vadd.f32 0.0, %v5818
        %v5820 = vpop.f32.mrf.mxu0
        %v5821 = vadd.f32 0.0, %v5820
        %v5822 = vpop.f32.mrf.mxu0
        %v5823 = vpop.f32.mrf.mxu0
        %5824 = vdwg.mxu0
        %5825 = vmatprep.subr.bf16.mxu0 %v5297
        %5826 = vmatpush1.bf16.msra.mxu0 %v5296
        %5827 = vmatprep.subr.bf16.mxu0 %v5289
        %5828 = vmatpush1.bf16.msra.mxu0 %v5288
        %5829 = vmatprep.subr.bf16.mxu0 %v5281
        %5830 = vmatpush1.bf16.msra.mxu0 %v5280
        %5831 = vmatprep.subr.bf16.mxu0 %v5273
        %5832 = vmatpush1.bf16.msra.mxu0 %v5272
        %5833 = vmatprep.subr.bf16.mxu0 %v5265
        %5834 = vmatpush1.bf16.msra.mxu0 %v5264
        %5835 = vmatprep.subr.bf16.mxu0 %v5257
        %5836 = vmatpush1.bf16.msra.mxu0 %v5256
        %5837 = vmatprep.subr.bf16.mxu0 %v5249
        %5838 = vmatpush1.bf16.msra.mxu0 %v5248
        %5839 = vmatprep.subr.bf16.mxu0 %v5241
        %5840 = vmatpush1.bf16.msra.mxu0 %v5240
        %5841 = vmatprep.subr.bf16.mxu0 %v5361
        %5842 = vmatpush2.bf16.msra.mxu0 %v5360
        %5843 = vmatprep.subr.bf16.mxu0 %v5353
        %5844 = vmatpush2.bf16.msra.mxu0 %v5352
        %5845 = vmatprep.subr.bf16.mxu0 %v5345
        %5846 = vmatpush2.bf16.msra.mxu0 %v5344
        %5847 = vmatprep.subr.bf16.mxu0 %v5337
        %5848 = vmatpush2.bf16.msra.mxu0 %v5336
        %5849 = vmatprep.subr.bf16.mxu0 %v5329
        %5850 = vmatpush2.bf16.msra.mxu0 %v5328
        %5851 = vmatprep.subr.bf16.mxu0 %v5321
        %5852 = vmatpush2.bf16.msra.mxu0 %v5320
        %5853 = vmatprep.subr.bf16.mxu0 %v5313
        %5854 = vmatpush2.bf16.msra.mxu0 %v5312
        %5855 = vmatprep.subr.bf16.mxu0 %v5305
        %5856 = vmatpush2.bf16.msra.mxu0 %v5304
        %5857 = vmatprep.mubr.bf16.mxu0 %v299
        %5858 = vmatmul.mubr.bf16.gmra.mxu0 %v298
        %v5859 = vpop.f32.mrf.mxu0
        %v5860 = vadd.f32 %v5819, %v5859
        %v5861 = vpop.f32.mrf.mxu0
        %v5862 = vadd.f32 %v5821, %v5861
        %v5863 = vpop.f32.mrf.mxu0
        %v5864 = vpop.f32.mrf.mxu0
        %5865 = vdwg.mxu0
        %5866 = vmatprep.subr.bf16.mxu0 %v5171
        %5867 = vmatpush1.bf16.msra.mxu0 %v5170
        %5868 = vmatprep.subr.bf16.mxu0 %v5163
        %5869 = vmatpush1.bf16.msra.mxu0 %v5162
        %5870 = vmatprep.subr.bf16.mxu0 %v5155
        %5871 = vmatpush1.bf16.msra.mxu0 %v5154
        %5872 = vmatprep.subr.bf16.mxu0 %v5147
        %5873 = vmatpush1.bf16.msra.mxu0 %v5146
        %5874 = vmatprep.subr.bf16.mxu0 %v5139
        %5875 = vmatpush1.bf16.msra.mxu0 %v5138
        %5876 = vmatprep.subr.bf16.mxu0 %v5131
        %5877 = vmatpush1.bf16.msra.mxu0 %v5130
        %5878 = vmatprep.subr.bf16.mxu0 %v5123
        %5879 = vmatpush1.bf16.msra.mxu0 %v5122
        %5880 = vmatprep.subr.bf16.mxu0 %v5115
        %5881 = vmatpush1.bf16.msra.mxu0 %v5114
        %5882 = vmatprep.subr.bf16.mxu0 %v5235
        %5883 = vmatpush2.bf16.msra.mxu0 %v5234
        %5884 = vmatprep.subr.bf16.mxu0 %v5227
        %5885 = vmatpush2.bf16.msra.mxu0 %v5226
        %5886 = vmatprep.subr.bf16.mxu0 %v5219
        %5887 = vmatpush2.bf16.msra.mxu0 %v5218
        %5888 = vmatprep.subr.bf16.mxu0 %v5211
        %5889 = vmatpush2.bf16.msra.mxu0 %v5210
        %5890 = vmatprep.subr.bf16.mxu0 %v5203
        %5891 = vmatpush2.bf16.msra.mxu0 %v5202
        %5892 = vmatprep.subr.bf16.mxu0 %v5195
        %5893 = vmatpush2.bf16.msra.mxu0 %v5194
        %5894 = vmatprep.subr.bf16.mxu0 %v5187
        %5895 = vmatpush2.bf16.msra.mxu0 %v5186
        %5896 = vmatprep.subr.bf16.mxu0 %v5179
        %5897 = vmatpush2.bf16.msra.mxu0 %v5178
        %5898 = vmatprep.mubr.bf16.mxu0 %v297
        %5899 = vmatmul.mubr.bf16.gmra.mxu0 %v296
        %v5900 = vpop.f32.mrf.mxu0
        %v5901 = vadd.f32 0.0, %v5900
        %v5902 = vpop.f32.mrf.mxu0
        %v5903 = vadd.f32 0.0, %v5902
        %v5904 = vpop.f32.mrf.mxu0
        %v5905 = vpop.f32.mrf.mxu0
        %5906 = vdwg.mxu0
        %5907 = vmatprep.subr.bf16.mxu0 %v5299
        %5908 = vmatpush1.bf16.msra.mxu0 %v5298
        %5909 = vmatprep.subr.bf16.mxu0 %v5291
        %5910 = vmatpush1.bf16.msra.mxu0 %v5290
        %5911 = vmatprep.subr.bf16.mxu0 %v5283
        %5912 = vmatpush1.bf16.msra.mxu0 %v5282
        %5913 = vmatprep.subr.bf16.mxu0 %v5275
        %5914 = vmatpush1.bf16.msra.mxu0 %v5274
        %5915 = vmatprep.subr.bf16.mxu0 %v5267
        %5916 = vmatpush1.bf16.msra.mxu0 %v5266
        %5917 = vmatprep.subr.bf16.mxu0 %v5259
        %5918 = vmatpush1.bf16.msra.mxu0 %v5258
        %5919 = vmatprep.subr.bf16.mxu0 %v5251
        %5920 = vmatpush1.bf16.msra.mxu0 %v5250
        %5921 = vmatprep.subr.bf16.mxu0 %v5243
        %5922 = vmatpush1.bf16.msra.mxu0 %v5242
        %5923 = vmatprep.subr.bf16.mxu0 %v5363
        %5924 = vmatpush2.bf16.msra.mxu0 %v5362
        %5925 = vmatprep.subr.bf16.mxu0 %v5355
        %5926 = vmatpush2.bf16.msra.mxu0 %v5354
        %5927 = vmatprep.subr.bf16.mxu0 %v5347
        %5928 = vmatpush2.bf16.msra.mxu0 %v5346
        %5929 = vmatprep.subr.bf16.mxu0 %v5339
        %5930 = vmatpush2.bf16.msra.mxu0 %v5338
        %5931 = vmatprep.subr.bf16.mxu0 %v5331
        %5932 = vmatpush2.bf16.msra.mxu0 %v5330
        %5933 = vmatprep.subr.bf16.mxu0 %v5323
        %5934 = vmatpush2.bf16.msra.mxu0 %v5322
        %5935 = vmatprep.subr.bf16.mxu0 %v5315
        %5936 = vmatpush2.bf16.msra.mxu0 %v5314
        %5937 = vmatprep.subr.bf16.mxu0 %v5307
        %5938 = vmatpush2.bf16.msra.mxu0 %v5306
        %5939 = vmatprep.mubr.bf16.mxu0 %v299
        %5940 = vmatmul.mubr.bf16.gmra.mxu0 %v298
        %v5941 = vpop.f32.mrf.mxu0
        %v5942 = vadd.f32 %v5901, %v5941
        %v5943 = vpop.f32.mrf.mxu0
        %v5944 = vadd.f32 %v5903, %v5943
        %v5945 = vpop.f32.mrf.mxu0
        %v5946 = vpop.f32.mrf.mxu0
        %5947 = vdwg.mxu0
        %v5948 = vadd.f32 %v4088, %v5696
        %v5949 = vadd.f32 %v4090, %v5698
        %v5950 = vadd.f32 %v4170, %v5778
        %v5951 = vadd.f32 %v4172, %v5780
        %v5952 = vadd.f32 %v4252, %v5860
        %v5953 = vadd.f32 %v4254, %v5862
        %v5954 = vadd.f32 %v4334, %v5942
        %v5955 = vadd.f32 %v4336, %v5944
        %5956 = vmatprep.subr.bf16.mxu0 %v1945
        %5957 = vmatpush1.bf16.msra.mxu0 %v1944
        %5958 = vmatprep.subr.bf16.mxu0 %v1937
        %5959 = vmatpush1.bf16.msra.mxu0 %v1936
        %5960 = vmatprep.subr.bf16.mxu0 %v1929
        %5961 = vmatpush1.bf16.msra.mxu0 %v1928
        %5962 = vmatprep.subr.bf16.mxu0 %v1921
        %5963 = vmatpush1.bf16.msra.mxu0 %v1920
        %5964 = vmatprep.subr.bf16.mxu0 %v1913
        %5965 = vmatpush1.bf16.msra.mxu0 %v1912
        %5966 = vmatprep.subr.bf16.mxu0 %v1905
        %5967 = vmatpush1.bf16.msra.mxu0 %v1904
        %5968 = vmatprep.subr.bf16.mxu0 %v1897
        %5969 = vmatpush1.bf16.msra.mxu0 %v1896
        %5970 = vmatprep.subr.bf16.mxu0 %v1889
        %5971 = vmatpush1.bf16.msra.mxu0 %v1888
        %5972 = vmatprep.subr.bf16.mxu0 %v2009
        %5973 = vmatpush2.bf16.msra.mxu0 %v2008
        %5974 = vmatprep.subr.bf16.mxu0 %v2001
        %5975 = vmatpush2.bf16.msra.mxu0 %v2000
        %5976 = vmatprep.subr.bf16.mxu0 %v1993
        %5977 = vmatpush2.bf16.msra.mxu0 %v1992
        %5978 = vmatprep.subr.bf16.mxu0 %v1985
        %5979 = vmatpush2.bf16.msra.mxu0 %v1984
        %5980 = vmatprep.subr.bf16.mxu0 %v1977
        %5981 = vmatpush2.bf16.msra.mxu0 %v1976
        %5982 = vmatprep.subr.bf16.mxu0 %v1969
        %5983 = vmatpush2.bf16.msra.mxu0 %v1968
        %5984 = vmatprep.subr.bf16.mxu0 %v1961
        %5985 = vmatpush2.bf16.msra.mxu0 %v1960
        %5986 = vmatprep.subr.bf16.mxu0 %v1953
        %5987 = vmatpush2.bf16.msra.mxu0 %v1952
        %5988 = vmatprep.mubr.bf16.mxu0 %v297
        %5989 = vmatmul.mubr.bf16.gmra.mxu0 %v296
        %v5990 = vpop.f32.mrf.mxu0
        %v5991 = vadd.f32 0.0, %v5990
        %v5992 = vpop.f32.mrf.mxu0
        %v5993 = vadd.f32 0.0, %v5992
        %v5994 = vpop.f32.mrf.mxu0
        %v5995 = vpop.f32.mrf.mxu0
        %5996 = vdwg.mxu0
        %5997 = vmatprep.subr.bf16.mxu0 %v2073
        %5998 = vmatpush1.bf16.msra.mxu0 %v2072
        %5999 = vmatprep.subr.bf16.mxu0 %v2065
        %6000 = vmatpush1.bf16.msra.mxu0 %v2064
        %6001 = vmatprep.subr.bf16.mxu0 %v2057
        %6002 = vmatpush1.bf16.msra.mxu0 %v2056
        %6003 = vmatprep.subr.bf16.mxu0 %v2049
        %6004 = vmatpush1.bf16.msra.mxu0 %v2048
        %6005 = vmatprep.subr.bf16.mxu0 %v2041
        %6006 = vmatpush1.bf16.msra.mxu0 %v2040
        %6007 = vmatprep.subr.bf16.mxu0 %v2033
        %6008 = vmatpush1.bf16.msra.mxu0 %v2032
        %6009 = vmatprep.subr.bf16.mxu0 %v2025
        %6010 = vmatpush1.bf16.msra.mxu0 %v2024
        %6011 = vmatprep.subr.bf16.mxu0 %v2017
        %6012 = vmatpush1.bf16.msra.mxu0 %v2016
        %6013 = vmatprep.subr.bf16.mxu0 %v2137
        %6014 = vmatpush2.bf16.msra.mxu0 %v2136
        %6015 = vmatprep.subr.bf16.mxu0 %v2129
        %6016 = vmatpush2.bf16.msra.mxu0 %v2128
        %6017 = vmatprep.subr.bf16.mxu0 %v2121
        %6018 = vmatpush2.bf16.msra.mxu0 %v2120
        %6019 = vmatprep.subr.bf16.mxu0 %v2113
        %6020 = vmatpush2.bf16.msra.mxu0 %v2112
        %6021 = vmatprep.subr.bf16.mxu0 %v2105
        %6022 = vmatpush2.bf16.msra.mxu0 %v2104
        %6023 = vmatprep.subr.bf16.mxu0 %v2097
        %6024 = vmatpush2.bf16.msra.mxu0 %v2096
        %6025 = vmatprep.subr.bf16.mxu0 %v2089
        %6026 = vmatpush2.bf16.msra.mxu0 %v2088
        %6027 = vmatprep.subr.bf16.mxu0 %v2081
        %6028 = vmatpush2.bf16.msra.mxu0 %v2080
        %6029 = vmatprep.mubr.bf16.mxu0 %v299
        %6030 = vmatmul.mubr.bf16.gmra.mxu0 %v298
        %v6031 = vpop.f32.mrf.mxu0
        %v6032 = vadd.f32 %v5991, %v6031
        %v6033 = vpop.f32.mrf.mxu0
        %v6034 = vadd.f32 %v5993, %v6033
        %v6035 = vpop.f32.mrf.mxu0
        %v6036 = vpop.f32.mrf.mxu0
        %6037 = vdwg.mxu0
        %6038 = vmatprep.subr.bf16.mxu0 %v1947
        %6039 = vmatpush1.bf16.msra.mxu0 %v1946
        %6040 = vmatprep.subr.bf16.mxu0 %v1939
        %6041 = vmatpush1.bf16.msra.mxu0 %v1938
        %6042 = vmatprep.subr.bf16.mxu0 %v1931
        %6043 = vmatpush1.bf16.msra.mxu0 %v1930
        %6044 = vmatprep.subr.bf16.mxu0 %v1923
        %6045 = vmatpush1.bf16.msra.mxu0 %v1922
        %6046 = vmatprep.subr.bf16.mxu0 %v1915
        %6047 = vmatpush1.bf16.msra.mxu0 %v1914
        %6048 = vmatprep.subr.bf16.mxu0 %v1907
        %6049 = vmatpush1.bf16.msra.mxu0 %v1906
        %6050 = vmatprep.subr.bf16.mxu0 %v1899
        %6051 = vmatpush1.bf16.msra.mxu0 %v1898
        %6052 = vmatprep.subr.bf16.mxu0 %v1891
        %6053 = vmatpush1.bf16.msra.mxu0 %v1890
        %6054 = vmatprep.subr.bf16.mxu0 %v2011
        %6055 = vmatpush2.bf16.msra.mxu0 %v2010
        %6056 = vmatprep.subr.bf16.mxu0 %v2003
        %6057 = vmatpush2.bf16.msra.mxu0 %v2002
        %6058 = vmatprep.subr.bf16.mxu0 %v1995
        %6059 = vmatpush2.bf16.msra.mxu0 %v1994
        %6060 = vmatprep.subr.bf16.mxu0 %v1987
        %6061 = vmatpush2.bf16.msra.mxu0 %v1986
        %6062 = vmatprep.subr.bf16.mxu0 %v1979
        %6063 = vmatpush2.bf16.msra.mxu0 %v1978
        %6064 = vmatprep.subr.bf16.mxu0 %v1971
        %6065 = vmatpush2.bf16.msra.mxu0 %v1970
        %6066 = vmatprep.subr.bf16.mxu0 %v1963
        %6067 = vmatpush2.bf16.msra.mxu0 %v1962
        %6068 = vmatprep.subr.bf16.mxu0 %v1955
        %6069 = vmatpush2.bf16.msra.mxu0 %v1954
        %6070 = vmatprep.mubr.bf16.mxu0 %v297
        %6071 = vmatmul.mubr.bf16.gmra.mxu0 %v296
        %v6072 = vpop.f32.mrf.mxu0
        %v6073 = vadd.f32 0.0, %v6072
        %v6074 = vpop.f32.mrf.mxu0
        %v6075 = vadd.f32 0.0, %v6074
        %v6076 = vpop.f32.mrf.mxu0
        %v6077 = vpop.f32.mrf.mxu0
        %6078 = vdwg.mxu0
        %6079 = vmatprep.subr.bf16.mxu0 %v2075
        %6080 = vmatpush1.bf16.msra.mxu0 %v2074
        %6081 = vmatprep.subr.bf16.mxu0 %v2067
        %6082 = vmatpush1.bf16.msra.mxu0 %v2066
        %6083 = vmatprep.subr.bf16.mxu0 %v2059
        %6084 = vmatpush1.bf16.msra.mxu0 %v2058
        %6085 = vmatprep.subr.bf16.mxu0 %v2051
        %6086 = vmatpush1.bf16.msra.mxu0 %v2050
        %6087 = vmatprep.subr.bf16.mxu0 %v2043
        %6088 = vmatpush1.bf16.msra.mxu0 %v2042
        %6089 = vmatprep.subr.bf16.mxu0 %v2035
        %6090 = vmatpush1.bf16.msra.mxu0 %v2034
        %6091 = vmatprep.subr.bf16.mxu0 %v2027
        %6092 = vmatpush1.bf16.msra.mxu0 %v2026
        %6093 = vmatprep.subr.bf16.mxu0 %v2019
        %6094 = vmatpush1.bf16.msra.mxu0 %v2018
        %6095 = vmatprep.subr.bf16.mxu0 %v2139
        %6096 = vmatpush2.bf16.msra.mxu0 %v2138
        %6097 = vmatprep.subr.bf16.mxu0 %v2131
        %6098 = vmatpush2.bf16.msra.mxu0 %v2130
        %6099 = vmatprep.subr.bf16.mxu0 %v2123
        %6100 = vmatpush2.bf16.msra.mxu0 %v2122
        %6101 = vmatprep.subr.bf16.mxu0 %v2115
        %6102 = vmatpush2.bf16.msra.mxu0 %v2114
        %6103 = vmatprep.subr.bf16.mxu0 %v2107
        %6104 = vmatpush2.bf16.msra.mxu0 %v2106
        %6105 = vmatprep.subr.bf16.mxu0 %v2099
        %6106 = vmatpush2.bf16.msra.mxu0 %v2098
        %6107 = vmatprep.subr.bf16.mxu0 %v2091
        %6108 = vmatpush2.bf16.msra.mxu0 %v2090
        %6109 = vmatprep.subr.bf16.mxu0 %v2083
        %6110 = vmatpush2.bf16.msra.mxu0 %v2082
        %6111 = vmatprep.mubr.bf16.mxu0 %v299
        %6112 = vmatmul.mubr.bf16.gmra.mxu0 %v298
        %v6113 = vpop.f32.mrf.mxu0
        %v6114 = vadd.f32 %v6073, %v6113
        %v6115 = vpop.f32.mrf.mxu0
        %v6116 = vadd.f32 %v6075, %v6115
        %v6117 = vpop.f32.mrf.mxu0
        %v6118 = vpop.f32.mrf.mxu0
        %6119 = vdwg.mxu0
        %6120 = vmatprep.subr.bf16.mxu0 %v1949
        %6121 = vmatpush1.bf16.msra.mxu0 %v1948
        %6122 = vmatprep.subr.bf16.mxu0 %v1941
        %6123 = vmatpush1.bf16.msra.mxu0 %v1940
        %6124 = vmatprep.subr.bf16.mxu0 %v1933
        %6125 = vmatpush1.bf16.msra.mxu0 %v1932
        %6126 = vmatprep.subr.bf16.mxu0 %v1925
        %6127 = vmatpush1.bf16.msra.mxu0 %v1924
        %6128 = vmatprep.subr.bf16.mxu0 %v1917
        %6129 = vmatpush1.bf16.msra.mxu0 %v1916
        %6130 = vmatprep.subr.bf16.mxu0 %v1909
        %6131 = vmatpush1.bf16.msra.mxu0 %v1908
        %6132 = vmatprep.subr.bf16.mxu0 %v1901
        %6133 = vmatpush1.bf16.msra.mxu0 %v1900
        %6134 = vmatprep.subr.bf16.mxu0 %v1893
        %6135 = vmatpush1.bf16.msra.mxu0 %v1892
        %6136 = vmatprep.subr.bf16.mxu0 %v2013
        %6137 = vmatpush2.bf16.msra.mxu0 %v2012
        %6138 = vmatprep.subr.bf16.mxu0 %v2005
        %6139 = vmatpush2.bf16.msra.mxu0 %v2004
        %6140 = vmatprep.subr.bf16.mxu0 %v1997
        %6141 = vmatpush2.bf16.msra.mxu0 %v1996
        %6142 = vmatprep.subr.bf16.mxu0 %v1989
        %6143 = vmatpush2.bf16.msra.mxu0 %v1988
        %6144 = vmatprep.subr.bf16.mxu0 %v1981
        %6145 = vmatpush2.bf16.msra.mxu0 %v1980
        %6146 = vmatprep.subr.bf16.mxu0 %v1973
        %6147 = vmatpush2.bf16.msra.mxu0 %v1972
        %6148 = vmatprep.subr.bf16.mxu0 %v1965
        %6149 = vmatpush2.bf16.msra.mxu0 %v1964
        %6150 = vmatprep.subr.bf16.mxu0 %v1957
        %6151 = vmatpush2.bf16.msra.mxu0 %v1956
        %6152 = vmatprep.mubr.bf16.mxu0 %v297
        %6153 = vmatmul.mubr.bf16.gmra.mxu0 %v296
        %v6154 = vpop.f32.mrf.mxu0
        %v6155 = vadd.f32 0.0, %v6154
        %v6156 = vpop.f32.mrf.mxu0
        %v6157 = vadd.f32 0.0, %v6156
        %v6158 = vpop.f32.mrf.mxu0
        %v6159 = vpop.f32.mrf.mxu0
        %6160 = vdwg.mxu0
        %6161 = vmatprep.subr.bf16.mxu0 %v2077
        %6162 = vmatpush1.bf16.msra.mxu0 %v2076
        %6163 = vmatprep.subr.bf16.mxu0 %v2069
        %6164 = vmatpush1.bf16.msra.mxu0 %v2068
        %6165 = vmatprep.subr.bf16.mxu0 %v2061
        %6166 = vmatpush1.bf16.msra.mxu0 %v2060
        %6167 = vmatprep.subr.bf16.mxu0 %v2053
        %6168 = vmatpush1.bf16.msra.mxu0 %v2052
        %6169 = vmatprep.subr.bf16.mxu0 %v2045
        %6170 = vmatpush1.bf16.msra.mxu0 %v2044
        %6171 = vmatprep.subr.bf16.mxu0 %v2037
        %6172 = vmatpush1.bf16.msra.mxu0 %v2036
        %6173 = vmatprep.subr.bf16.mxu0 %v2029
        %6174 = vmatpush1.bf16.msra.mxu0 %v2028
        %6175 = vmatprep.subr.bf16.mxu0 %v2021
        %6176 = vmatpush1.bf16.msra.mxu0 %v2020
        %6177 = vmatprep.subr.bf16.mxu0 %v2141
        %6178 = vmatpush2.bf16.msra.mxu0 %v2140
        %6179 = vmatprep.subr.bf16.mxu0 %v2133
        %6180 = vmatpush2.bf16.msra.mxu0 %v2132
        %6181 = vmatprep.subr.bf16.mxu0 %v2125
        %6182 = vmatpush2.bf16.msra.mxu0 %v2124
        %6183 = vmatprep.subr.bf16.mxu0 %v2117
        %6184 = vmatpush2.bf16.msra.mxu0 %v2116
        %6185 = vmatprep.subr.bf16.mxu0 %v2109
        %6186 = vmatpush2.bf16.msra.mxu0 %v2108
        %6187 = vmatprep.subr.bf16.mxu0 %v2101
        %6188 = vmatpush2.bf16.msra.mxu0 %v2100
        %6189 = vmatprep.subr.bf16.mxu0 %v2093
        %6190 = vmatpush2.bf16.msra.mxu0 %v2092
        %6191 = vmatprep.subr.bf16.mxu0 %v2085
        %6192 = vmatpush2.bf16.msra.mxu0 %v2084
        %6193 = vmatprep.mubr.bf16.mxu0 %v299
        %6194 = vmatmul.mubr.bf16.gmra.mxu0 %v298
        %v6195 = vpop.f32.mrf.mxu0
        %v6196 = vadd.f32 %v6155, %v6195
        %v6197 = vpop.f32.mrf.mxu0
        %v6198 = vadd.f32 %v6157, %v6197
        %v6199 = vpop.f32.mrf.mxu0
        %v6200 = vpop.f32.mrf.mxu0
        %6201 = vdwg.mxu0
        %6202 = vmatprep.subr.bf16.mxu0 %v1951
        %6203 = vmatpush1.bf16.msra.mxu0 %v1950
        %6204 = vmatprep.subr.bf16.mxu0 %v1943
        %6205 = vmatpush1.bf16.msra.mxu0 %v1942
        %6206 = vmatprep.subr.bf16.mxu0 %v1935
        %6207 = vmatpush1.bf16.msra.mxu0 %v1934
        %6208 = vmatprep.subr.bf16.mxu0 %v1927
        %6209 = vmatpush1.bf16.msra.mxu0 %v1926
        %6210 = vmatprep.subr.bf16.mxu0 %v1919
        %6211 = vmatpush1.bf16.msra.mxu0 %v1918
        %6212 = vmatprep.subr.bf16.mxu0 %v1911
        %6213 = vmatpush1.bf16.msra.mxu0 %v1910
        %6214 = vmatprep.subr.bf16.mxu0 %v1903
        %6215 = vmatpush1.bf16.msra.mxu0 %v1902
        %6216 = vmatprep.subr.bf16.mxu0 %v1895
        %6217 = vmatpush1.bf16.msra.mxu0 %v1894
        %6218 = vmatprep.subr.bf16.mxu0 %v2015
        %6219 = vmatpush2.bf16.msra.mxu0 %v2014
        %6220 = vmatprep.subr.bf16.mxu0 %v2007
        %6221 = vmatpush2.bf16.msra.mxu0 %v2006
        %6222 = vmatprep.subr.bf16.mxu0 %v1999
        %6223 = vmatpush2.bf16.msra.mxu0 %v1998
        %6224 = vmatprep.subr.bf16.mxu0 %v1991
        %6225 = vmatpush2.bf16.msra.mxu0 %v1990
        %6226 = vmatprep.subr.bf16.mxu0 %v1983
        %6227 = vmatpush2.bf16.msra.mxu0 %v1982
        %6228 = vmatprep.subr.bf16.mxu0 %v1975
        %6229 = vmatpush2.bf16.msra.mxu0 %v1974
        %6230 = vmatprep.subr.bf16.mxu0 %v1967
        %6231 = vmatpush2.bf16.msra.mxu0 %v1966
        %6232 = vmatprep.subr.bf16.mxu0 %v1959
        %6233 = vmatpush2.bf16.msra.mxu0 %v1958
        %6234 = vmatprep.mubr.bf16.mxu0 %v297
        %6235 = vmatmul.mubr.bf16.gmra.mxu0 %v296
        %v6236 = vpop.f32.mrf.mxu0
        %v6237 = vadd.f32 0.0, %v6236
        %v6238 = vpop.f32.mrf.mxu0
        %v6239 = vadd.f32 0.0, %v6238
        %v6240 = vpop.f32.mrf.mxu0
        %v6241 = vpop.f32.mrf.mxu0
        %6242 = vdwg.mxu0
        %6243 = vmatprep.subr.bf16.mxu0 %v2079
        %6244 = vmatpush1.bf16.msra.mxu0 %v2078
        %6245 = vmatprep.subr.bf16.mxu0 %v2071
        %6246 = vmatpush1.bf16.msra.mxu0 %v2070
        %6247 = vmatprep.subr.bf16.mxu0 %v2063
        %6248 = vmatpush1.bf16.msra.mxu0 %v2062
        %6249 = vmatprep.subr.bf16.mxu0 %v2055
        %6250 = vmatpush1.bf16.msra.mxu0 %v2054
        %6251 = vmatprep.subr.bf16.mxu0 %v2047
        %6252 = vmatpush1.bf16.msra.mxu0 %v2046
        %6253 = vmatprep.subr.bf16.mxu0 %v2039
        %6254 = vmatpush1.bf16.msra.mxu0 %v2038
        %6255 = vmatprep.subr.bf16.mxu0 %v2031
        %6256 = vmatpush1.bf16.msra.mxu0 %v2030
        %6257 = vmatprep.subr.bf16.mxu0 %v2023
        %6258 = vmatpush1.bf16.msra.mxu0 %v2022
        %6259 = vmatprep.subr.bf16.mxu0 %v2143
        %6260 = vmatpush2.bf16.msra.mxu0 %v2142
        %6261 = vmatprep.subr.bf16.mxu0 %v2135
        %6262 = vmatpush2.bf16.msra.mxu0 %v2134
        %6263 = vmatprep.subr.bf16.mxu0 %v2127
        %6264 = vmatpush2.bf16.msra.mxu0 %v2126
        %6265 = vmatprep.subr.bf16.mxu0 %v2119
        %6266 = vmatpush2.bf16.msra.mxu0 %v2118
        %6267 = vmatprep.subr.bf16.mxu0 %v2111
        %6268 = vmatpush2.bf16.msra.mxu0 %v2110
        %6269 = vmatprep.subr.bf16.mxu0 %v2103
        %6270 = vmatpush2.bf16.msra.mxu0 %v2102
        %6271 = vmatprep.subr.bf16.mxu0 %v2095
        %6272 = vmatpush2.bf16.msra.mxu0 %v2094
        %6273 = vmatprep.subr.bf16.mxu0 %v2087
        %6274 = vmatpush2.bf16.msra.mxu0 %v2086
        %6275 = vmatprep.mubr.bf16.mxu0 %v299
        %6276 = vmatmul.mubr.bf16.gmra.mxu0 %v298
        %v6277 = vpop.f32.mrf.mxu0
        %v6278 = vadd.f32 %v6237, %v6277
        %v6279 = vpop.f32.mrf.mxu0
        %v6280 = vadd.f32 %v6239, %v6279
        %v6281 = vpop.f32.mrf.mxu0
        %v6282 = vpop.f32.mrf.mxu0
        %6283 = vdwg.mxu0
        %6284 = vmatprep.subr.bf16.mxu0 %v3557
        %6285 = vmatpush1.bf16.msra.mxu0 %v3556
        %6286 = vmatprep.subr.bf16.mxu0 %v3549
        %6287 = vmatpush1.bf16.msra.mxu0 %v3548
        %6288 = vmatprep.subr.bf16.mxu0 %v3541
        %6289 = vmatpush1.bf16.msra.mxu0 %v3540
        %6290 = vmatprep.subr.bf16.mxu0 %v3533
        %6291 = vmatpush1.bf16.msra.mxu0 %v3532
        %6292 = vmatprep.subr.bf16.mxu0 %v3525
        %6293 = vmatpush1.bf16.msra.mxu0 %v3524
        %6294 = vmatprep.subr.bf16.mxu0 %v3517
        %6295 = vmatpush1.bf16.msra.mxu0 %v3516
        %6296 = vmatprep.subr.bf16.mxu0 %v3509
        %6297 = vmatpush1.bf16.msra.mxu0 %v3508
        %6298 = vmatprep.subr.bf16.mxu0 %v3501
        %6299 = vmatpush1.bf16.msra.mxu0 %v3500
        %6300 = vmatprep.subr.bf16.mxu0 %v3621
        %6301 = vmatpush2.bf16.msra.mxu0 %v3620
        %6302 = vmatprep.subr.bf16.mxu0 %v3613
        %6303 = vmatpush2.bf16.msra.mxu0 %v3612
        %6304 = vmatprep.subr.bf16.mxu0 %v3605
        %6305 = vmatpush2.bf16.msra.mxu0 %v3604
        %6306 = vmatprep.subr.bf16.mxu0 %v3597
        %6307 = vmatpush2.bf16.msra.mxu0 %v3596
        %6308 = vmatprep.subr.bf16.mxu0 %v3589
        %6309 = vmatpush2.bf16.msra.mxu0 %v3588
        %6310 = vmatprep.subr.bf16.mxu0 %v3581
        %6311 = vmatpush2.bf16.msra.mxu0 %v3580
        %6312 = vmatprep.subr.bf16.mxu0 %v3573
        %6313 = vmatpush2.bf16.msra.mxu0 %v3572
        %6314 = vmatprep.subr.bf16.mxu0 %v3565
        %6315 = vmatpush2.bf16.msra.mxu0 %v3564
        %6316 = vmatprep.mubr.bf16.mxu0 %v307
        %6317 = vmatmul.mubr.bf16.gmra.mxu0 %v306
        %v6318 = vpop.f32.mrf.mxu0
        %v6319 = vadd.f32 %v6032, %v6318
        %v6320 = vpop.f32.mrf.mxu0
        %v6321 = vadd.f32 %v6034, %v6320
        %v6322 = vpop.f32.mrf.mxu0
        %v6323 = vpop.f32.mrf.mxu0
        %6324 = vdwg.mxu0
        %6325 = vmatprep.subr.bf16.mxu0 %v3685
        %6326 = vmatpush1.bf16.msra.mxu0 %v3684
        %6327 = vmatprep.subr.bf16.mxu0 %v3677
        %6328 = vmatpush1.bf16.msra.mxu0 %v3676
        %6329 = vmatprep.subr.bf16.mxu0 %v3669
        %6330 = vmatpush1.bf16.msra.mxu0 %v3668
        %6331 = vmatprep.subr.bf16.mxu0 %v3661
        %6332 = vmatpush1.bf16.msra.mxu0 %v3660
        %6333 = vmatprep.subr.bf16.mxu0 %v3653
        %6334 = vmatpush1.bf16.msra.mxu0 %v3652
        %6335 = vmatprep.subr.bf16.mxu0 %v3645
        %6336 = vmatpush1.bf16.msra.mxu0 %v3644
        %6337 = vmatprep.subr.bf16.mxu0 %v3637
        %6338 = vmatpush1.bf16.msra.mxu0 %v3636
        %6339 = vmatprep.subr.bf16.mxu0 %v3629
        %6340 = vmatpush1.bf16.msra.mxu0 %v3628
        %6341 = vmatprep.subr.bf16.mxu0 %v3749
        %6342 = vmatpush2.bf16.msra.mxu0 %v3748
        %6343 = vmatprep.subr.bf16.mxu0 %v3741
        %6344 = vmatpush2.bf16.msra.mxu0 %v3740
        %6345 = vmatprep.subr.bf16.mxu0 %v3733
        %6346 = vmatpush2.bf16.msra.mxu0 %v3732
        %6347 = vmatprep.subr.bf16.mxu0 %v3725
        %6348 = vmatpush2.bf16.msra.mxu0 %v3724
        %6349 = vmatprep.subr.bf16.mxu0 %v3717
        %6350 = vmatpush2.bf16.msra.mxu0 %v3716
        %6351 = vmatprep.subr.bf16.mxu0 %v3709
        %6352 = vmatpush2.bf16.msra.mxu0 %v3708
        %6353 = vmatprep.subr.bf16.mxu0 %v3701
        %6354 = vmatpush2.bf16.msra.mxu0 %v3700
        %6355 = vmatprep.subr.bf16.mxu0 %v3693
        %6356 = vmatpush2.bf16.msra.mxu0 %v3692
        %6357 = vmatprep.mubr.bf16.mxu0 %v309
        %6358 = vmatmul.mubr.bf16.gmra.mxu0 %v308
        %v6359 = vpop.f32.mrf.mxu0
        %v6360 = vadd.f32 %v6319, %v6359
        %v6361 = vpop.f32.mrf.mxu0
        %v6362 = vadd.f32 %v6321, %v6361
        %v6363 = vpop.f32.mrf.mxu0
        %v6364 = vpop.f32.mrf.mxu0
        %6365 = vdwg.mxu0
        %6366 = vmatprep.subr.bf16.mxu0 %v3559
        %6367 = vmatpush1.bf16.msra.mxu0 %v3558
        %6368 = vmatprep.subr.bf16.mxu0 %v3551
        %6369 = vmatpush1.bf16.msra.mxu0 %v3550
        %6370 = vmatprep.subr.bf16.mxu0 %v3543
        %6371 = vmatpush1.bf16.msra.mxu0 %v3542
        %6372 = vmatprep.subr.bf16.mxu0 %v3535
        %6373 = vmatpush1.bf16.msra.mxu0 %v3534
        %6374 = vmatprep.subr.bf16.mxu0 %v3527
        %6375 = vmatpush1.bf16.msra.mxu0 %v3526
        %6376 = vmatprep.subr.bf16.mxu0 %v3519
        %6377 = vmatpush1.bf16.msra.mxu0 %v3518
        %6378 = vmatprep.subr.bf16.mxu0 %v3511
        %6379 = vmatpush1.bf16.msra.mxu0 %v3510
        %6380 = vmatprep.subr.bf16.mxu0 %v3503
        %6381 = vmatpush1.bf16.msra.mxu0 %v3502
        %6382 = vmatprep.subr.bf16.mxu0 %v3623
        %6383 = vmatpush2.bf16.msra.mxu0 %v3622
        %6384 = vmatprep.subr.bf16.mxu0 %v3615
        %6385 = vmatpush2.bf16.msra.mxu0 %v3614
        %6386 = vmatprep.subr.bf16.mxu0 %v3607
        %6387 = vmatpush2.bf16.msra.mxu0 %v3606
        %6388 = vmatprep.subr.bf16.mxu0 %v3599
        %6389 = vmatpush2.bf16.msra.mxu0 %v3598
        %6390 = vmatprep.subr.bf16.mxu0 %v3591
        %6391 = vmatpush2.bf16.msra.mxu0 %v3590
        %6392 = vmatprep.subr.bf16.mxu0 %v3583
        %6393 = vmatpush2.bf16.msra.mxu0 %v3582
        %6394 = vmatprep.subr.bf16.mxu0 %v3575
        %6395 = vmatpush2.bf16.msra.mxu0 %v3574
        %6396 = vmatprep.subr.bf16.mxu0 %v3567
        %6397 = vmatpush2.bf16.msra.mxu0 %v3566
        %6398 = vmatprep.mubr.bf16.mxu0 %v307
        %6399 = vmatmul.mubr.bf16.gmra.mxu0 %v306
        %v6400 = vpop.f32.mrf.mxu0
        %v6401 = vadd.f32 %v6114, %v6400
        %v6402 = vpop.f32.mrf.mxu0
        %v6403 = vadd.f32 %v6116, %v6402
        %v6404 = vpop.f32.mrf.mxu0
        %v6405 = vpop.f32.mrf.mxu0
        %6406 = vdwg.mxu0
        %6407 = vmatprep.subr.bf16.mxu0 %v3687
        %6408 = vmatpush1.bf16.msra.mxu0 %v3686
        %6409 = vmatprep.subr.bf16.mxu0 %v3679
        %6410 = vmatpush1.bf16.msra.mxu0 %v3678
        %6411 = vmatprep.subr.bf16.mxu0 %v3671
        %6412 = vmatpush1.bf16.msra.mxu0 %v3670
        %6413 = vmatprep.subr.bf16.mxu0 %v3663
        %6414 = vmatpush1.bf16.msra.mxu0 %v3662
        %6415 = vmatprep.subr.bf16.mxu0 %v3655
        %6416 = vmatpush1.bf16.msra.mxu0 %v3654
        %6417 = vmatprep.subr.bf16.mxu0 %v3647
        %6418 = vmatpush1.bf16.msra.mxu0 %v3646
        %6419 = vmatprep.subr.bf16.mxu0 %v3639
        %6420 = vmatpush1.bf16.msra.mxu0 %v3638
        %6421 = vmatprep.subr.bf16.mxu0 %v3631
        %6422 = vmatpush1.bf16.msra.mxu0 %v3630
        %6423 = vmatprep.subr.bf16.mxu0 %v3751
        %6424 = vmatpush2.bf16.msra.mxu0 %v3750
        %6425 = vmatprep.subr.bf16.mxu0 %v3743
        %6426 = vmatpush2.bf16.msra.mxu0 %v3742
        %6427 = vmatprep.subr.bf16.mxu0 %v3735
        %6428 = vmatpush2.bf16.msra.mxu0 %v3734
        %6429 = vmatprep.subr.bf16.mxu0 %v3727
        %6430 = vmatpush2.bf16.msra.mxu0 %v3726
        %6431 = vmatprep.subr.bf16.mxu0 %v3719
        %6432 = vmatpush2.bf16.msra.mxu0 %v3718
        %6433 = vmatprep.subr.bf16.mxu0 %v3711
        %6434 = vmatpush2.bf16.msra.mxu0 %v3710
        %6435 = vmatprep.subr.bf16.mxu0 %v3703
        %6436 = vmatpush2.bf16.msra.mxu0 %v3702
        %6437 = vmatprep.subr.bf16.mxu0 %v3695
        %6438 = vmatpush2.bf16.msra.mxu0 %v3694
        %6439 = vmatprep.mubr.bf16.mxu0 %v309
        %6440 = vmatmul.mubr.bf16.gmra.mxu0 %v308
        %v6441 = vpop.f32.mrf.mxu0
        %v6442 = vadd.f32 %v6401, %v6441
        %v6443 = vpop.f32.mrf.mxu0
        %v6444 = vadd.f32 %v6403, %v6443
        %v6445 = vpop.f32.mrf.mxu0
        %v6446 = vpop.f32.mrf.mxu0
        %6447 = vdwg.mxu0
        %6448 = vmatprep.subr.bf16.mxu0 %v3561
        %6449 = vmatpush1.bf16.msra.mxu0 %v3560
        %6450 = vmatprep.subr.bf16.mxu0 %v3553
        %6451 = vmatpush1.bf16.msra.mxu0 %v3552
        %6452 = vmatprep.subr.bf16.mxu0 %v3545
        %6453 = vmatpush1.bf16.msra.mxu0 %v3544
        %6454 = vmatprep.subr.bf16.mxu0 %v3537
        %6455 = vmatpush1.bf16.msra.mxu0 %v3536
        %6456 = vmatprep.subr.bf16.mxu0 %v3529
        %6457 = vmatpush1.bf16.msra.mxu0 %v3528
        %6458 = vmatprep.subr.bf16.mxu0 %v3521
        %6459 = vmatpush1.bf16.msra.mxu0 %v3520
        %6460 = vmatprep.subr.bf16.mxu0 %v3513
        %6461 = vmatpush1.bf16.msra.mxu0 %v3512
        %6462 = vmatprep.subr.bf16.mxu0 %v3505
        %6463 = vmatpush1.bf16.msra.mxu0 %v3504
        %6464 = vmatprep.subr.bf16.mxu0 %v3625
        %6465 = vmatpush2.bf16.msra.mxu0 %v3624
        %6466 = vmatprep.subr.bf16.mxu0 %v3617
        %6467 = vmatpush2.bf16.msra.mxu0 %v3616
        %6468 = vmatprep.subr.bf16.mxu0 %v3609
        %6469 = vmatpush2.bf16.msra.mxu0 %v3608
        %6470 = vmatprep.subr.bf16.mxu0 %v3601
        %6471 = vmatpush2.bf16.msra.mxu0 %v3600
        %6472 = vmatprep.subr.bf16.mxu0 %v3593
        %6473 = vmatpush2.bf16.msra.mxu0 %v3592
        %6474 = vmatprep.subr.bf16.mxu0 %v3585
        %6475 = vmatpush2.bf16.msra.mxu0 %v3584
        %6476 = vmatprep.subr.bf16.mxu0 %v3577
        %6477 = vmatpush2.bf16.msra.mxu0 %v3576
        %6478 = vmatprep.subr.bf16.mxu0 %v3569
        %6479 = vmatpush2.bf16.msra.mxu0 %v3568
        %6480 = vmatprep.mubr.bf16.mxu0 %v307
        %6481 = vmatmul.mubr.bf16.gmra.mxu0 %v306
        %v6482 = vpop.f32.mrf.mxu0
        %v6483 = vadd.f32 %v6196, %v6482
        %v6484 = vpop.f32.mrf.mxu0
        %v6485 = vadd.f32 %v6198, %v6484
        %v6486 = vpop.f32.mrf.mxu0
        %v6487 = vpop.f32.mrf.mxu0
        %6488 = vdwg.mxu0
        %6489 = vmatprep.subr.bf16.mxu0 %v3689
        %6490 = vmatpush1.bf16.msra.mxu0 %v3688
        %6491 = vmatprep.subr.bf16.mxu0 %v3681
        %6492 = vmatpush1.bf16.msra.mxu0 %v3680
        %6493 = vmatprep.subr.bf16.mxu0 %v3673
        %6494 = vmatpush1.bf16.msra.mxu0 %v3672
        %6495 = vmatprep.subr.bf16.mxu0 %v3665
        %6496 = vmatpush1.bf16.msra.mxu0 %v3664
        %6497 = vmatprep.subr.bf16.mxu0 %v3657
        %6498 = vmatpush1.bf16.msra.mxu0 %v3656
        %6499 = vmatprep.subr.bf16.mxu0 %v3649
        %6500 = vmatpush1.bf16.msra.mxu0 %v3648
        %6501 = vmatprep.subr.bf16.mxu0 %v3641
        %6502 = vmatpush1.bf16.msra.mxu0 %v3640
        %6503 = vmatprep.subr.bf16.mxu0 %v3633
        %6504 = vmatpush1.bf16.msra.mxu0 %v3632
        %6505 = vmatprep.subr.bf16.mxu0 %v3753
        %6506 = vmatpush2.bf16.msra.mxu0 %v3752
        %6507 = vmatprep.subr.bf16.mxu0 %v3745
        %6508 = vmatpush2.bf16.msra.mxu0 %v3744
        %6509 = vmatprep.subr.bf16.mxu0 %v3737
        %6510 = vmatpush2.bf16.msra.mxu0 %v3736
        %6511 = vmatprep.subr.bf16.mxu0 %v3729
        %6512 = vmatpush2.bf16.msra.mxu0 %v3728
        %6513 = vmatprep.subr.bf16.mxu0 %v3721
        %6514 = vmatpush2.bf16.msra.mxu0 %v3720
        %6515 = vmatprep.subr.bf16.mxu0 %v3713
        %6516 = vmatpush2.bf16.msra.mxu0 %v3712
        %6517 = vmatprep.subr.bf16.mxu0 %v3705
        %6518 = vmatpush2.bf16.msra.mxu0 %v3704
        %6519 = vmatprep.subr.bf16.mxu0 %v3697
        %6520 = vmatpush2.bf16.msra.mxu0 %v3696
        %6521 = vmatprep.mubr.bf16.mxu0 %v309
        %6522 = vmatmul.mubr.bf16.gmra.mxu0 %v308
        %v6523 = vpop.f32.mrf.mxu0
        %v6524 = vadd.f32 %v6483, %v6523
        %v6525 = vpop.f32.mrf.mxu0
        %v6526 = vadd.f32 %v6485, %v6525
        %v6527 = vpop.f32.mrf.mxu0
        %v6528 = vpop.f32.mrf.mxu0
        %6529 = vdwg.mxu0
        %6530 = vmatprep.subr.bf16.mxu0 %v3563
        %6531 = vmatpush1.bf16.msra.mxu0 %v3562
        %6532 = vmatprep.subr.bf16.mxu0 %v3555
        %6533 = vmatpush1.bf16.msra.mxu0 %v3554
        %6534 = vmatprep.subr.bf16.mxu0 %v3547
        %6535 = vmatpush1.bf16.msra.mxu0 %v3546
        %6536 = vmatprep.subr.bf16.mxu0 %v3539
        %6537 = vmatpush1.bf16.msra.mxu0 %v3538
        %6538 = vmatprep.subr.bf16.mxu0 %v3531
        %6539 = vmatpush1.bf16.msra.mxu0 %v3530
        %6540 = vmatprep.subr.bf16.mxu0 %v3523
        %6541 = vmatpush1.bf16.msra.mxu0 %v3522
        %6542 = vmatprep.subr.bf16.mxu0 %v3515
        %6543 = vmatpush1.bf16.msra.mxu0 %v3514
        %6544 = vmatprep.subr.bf16.mxu0 %v3507
        %6545 = vmatpush1.bf16.msra.mxu0 %v3506
        %6546 = vmatprep.subr.bf16.mxu0 %v3627
        %6547 = vmatpush2.bf16.msra.mxu0 %v3626
        %6548 = vmatprep.subr.bf16.mxu0 %v3619
        %6549 = vmatpush2.bf16.msra.mxu0 %v3618
        %6550 = vmatprep.subr.bf16.mxu0 %v3611
        %6551 = vmatpush2.bf16.msra.mxu0 %v3610
        %6552 = vmatprep.subr.bf16.mxu0 %v3603
        %6553 = vmatpush2.bf16.msra.mxu0 %v3602
        %6554 = vmatprep.subr.bf16.mxu0 %v3595
        %6555 = vmatpush2.bf16.msra.mxu0 %v3594
        %6556 = vmatprep.subr.bf16.mxu0 %v3587
        %6557 = vmatpush2.bf16.msra.mxu0 %v3586
        %6558 = vmatprep.subr.bf16.mxu0 %v3579
        %6559 = vmatpush2.bf16.msra.mxu0 %v3578
        %6560 = vmatprep.subr.bf16.mxu0 %v3571
        %6561 = vmatpush2.bf16.msra.mxu0 %v3570
        %6562 = vmatprep.mubr.bf16.mxu0 %v307
        %6563 = vmatmul.mubr.bf16.gmra.mxu0 %v306
        %v6564 = vpop.f32.mrf.mxu0
        %v6565 = vadd.f32 %v6278, %v6564
        %v6566 = vpop.f32.mrf.mxu0
        %v6567 = vadd.f32 %v6280, %v6566
        %v6568 = vpop.f32.mrf.mxu0
        %v6569 = vpop.f32.mrf.mxu0
        %6570 = vdwg.mxu0
        %6571 = vmatprep.subr.bf16.mxu0 %v3691
        %6572 = vmatpush1.bf16.msra.mxu0 %v3690
        %6573 = vmatprep.subr.bf16.mxu0 %v3683
        %6574 = vmatpush1.bf16.msra.mxu0 %v3682
        %6575 = vmatprep.subr.bf16.mxu0 %v3675
        %6576 = vmatpush1.bf16.msra.mxu0 %v3674
        %6577 = vmatprep.subr.bf16.mxu0 %v3667
        %6578 = vmatpush1.bf16.msra.mxu0 %v3666
        %6579 = vmatprep.subr.bf16.mxu0 %v3659
        %6580 = vmatpush1.bf16.msra.mxu0 %v3658
        %6581 = vmatprep.subr.bf16.mxu0 %v3651
        %6582 = vmatpush1.bf16.msra.mxu0 %v3650
        %6583 = vmatprep.subr.bf16.mxu0 %v3643
        %6584 = vmatpush1.bf16.msra.mxu0 %v3642
        %6585 = vmatprep.subr.bf16.mxu0 %v3635
        %6586 = vmatpush1.bf16.msra.mxu0 %v3634
        %6587 = vmatprep.subr.bf16.mxu0 %v3755
        %6588 = vmatpush2.bf16.msra.mxu0 %v3754
        %6589 = vmatprep.subr.bf16.mxu0 %v3747
        %6590 = vmatpush2.bf16.msra.mxu0 %v3746
        %6591 = vmatprep.subr.bf16.mxu0 %v3739
        %6592 = vmatpush2.bf16.msra.mxu0 %v3738
        %6593 = vmatprep.subr.bf16.mxu0 %v3731
        %6594 = vmatpush2.bf16.msra.mxu0 %v3730
        %6595 = vmatprep.subr.bf16.mxu0 %v3723
        %6596 = vmatpush2.bf16.msra.mxu0 %v3722
        %6597 = vmatprep.subr.bf16.mxu0 %v3715
        %6598 = vmatpush2.bf16.msra.mxu0 %v3714
        %6599 = vmatprep.subr.bf16.mxu0 %v3707
        %6600 = vmatpush2.bf16.msra.mxu0 %v3706
        %6601 = vmatprep.subr.bf16.mxu0 %v3699
        %6602 = vmatpush2.bf16.msra.mxu0 %v3698
        %6603 = vmatprep.mubr.bf16.mxu0 %v309
        %6604 = vmatmul.mubr.bf16.gmra.mxu0 %v308
        %v6605 = vpop.f32.mrf.mxu0
        %v6606 = vadd.f32 %v6565, %v6605
        %v6607 = vpop.f32.mrf.mxu0
        %v6608 = vadd.f32 %v6567, %v6607
        %v6609 = vpop.f32.mrf.mxu0
        %v6610 = vpop.f32.mrf.mxu0
        %6611 = vdwg.mxu0
        %6612 = vmatprep.subr.bf16.mxu0 %v5165
        %6613 = vmatpush1.bf16.msra.mxu0 %v5164
        %6614 = vmatprep.subr.bf16.mxu0 %v5157
        %6615 = vmatpush1.bf16.msra.mxu0 %v5156
        %6616 = vmatprep.subr.bf16.mxu0 %v5149
        %6617 = vmatpush1.bf16.msra.mxu0 %v5148
        %6618 = vmatprep.subr.bf16.mxu0 %v5141
        %6619 = vmatpush1.bf16.msra.mxu0 %v5140
        %6620 = vmatprep.subr.bf16.mxu0 %v5133
        %6621 = vmatpush1.bf16.msra.mxu0 %v5132
        %6622 = vmatprep.subr.bf16.mxu0 %v5125
        %6623 = vmatpush1.bf16.msra.mxu0 %v5124
        %6624 = vmatprep.subr.bf16.mxu0 %v5117
        %6625 = vmatpush1.bf16.msra.mxu0 %v5116
        %6626 = vmatprep.subr.bf16.mxu0 %v5109
        %6627 = vmatpush1.bf16.msra.mxu0 %v5108
        %6628 = vmatprep.subr.bf16.mxu0 %v5229
        %6629 = vmatpush2.bf16.msra.mxu0 %v5228
        %6630 = vmatprep.subr.bf16.mxu0 %v5221
        %6631 = vmatpush2.bf16.msra.mxu0 %v5220
        %6632 = vmatprep.subr.bf16.mxu0 %v5213
        %6633 = vmatpush2.bf16.msra.mxu0 %v5212
        %6634 = vmatprep.subr.bf16.mxu0 %v5205
        %6635 = vmatpush2.bf16.msra.mxu0 %v5204
        %6636 = vmatprep.subr.bf16.mxu0 %v5197
        %6637 = vmatpush2.bf16.msra.mxu0 %v5196
        %6638 = vmatprep.subr.bf16.mxu0 %v5189
        %6639 = vmatpush2.bf16.msra.mxu0 %v5188
        %6640 = vmatprep.subr.bf16.mxu0 %v5181
        %6641 = vmatpush2.bf16.msra.mxu0 %v5180
        %6642 = vmatprep.subr.bf16.mxu0 %v5173
        %6643 = vmatpush2.bf16.msra.mxu0 %v5172
        %6644 = vmatprep.mubr.bf16.mxu0 %v343
        %6645 = vmatmul.mubr.bf16.gmra.mxu0 %v342
        %v6646 = vpop.f32.mrf.mxu0
        %v6647 = vadd.f32 0.0, %v6646
        %v6648 = vpop.f32.mrf.mxu0
        %v6649 = vadd.f32 0.0, %v6648
        %v6650 = vpop.f32.mrf.mxu0
        %v6651 = vpop.f32.mrf.mxu0
        %6652 = vdwg.mxu0
        %6653 = vmatprep.subr.bf16.mxu0 %v5293
        %6654 = vmatpush1.bf16.msra.mxu0 %v5292
        %6655 = vmatprep.subr.bf16.mxu0 %v5285
        %6656 = vmatpush1.bf16.msra.mxu0 %v5284
        %6657 = vmatprep.subr.bf16.mxu0 %v5277
        %6658 = vmatpush1.bf16.msra.mxu0 %v5276
        %6659 = vmatprep.subr.bf16.mxu0 %v5269
        %6660 = vmatpush1.bf16.msra.mxu0 %v5268
        %6661 = vmatprep.subr.bf16.mxu0 %v5261
        %6662 = vmatpush1.bf16.msra.mxu0 %v5260
        %6663 = vmatprep.subr.bf16.mxu0 %v5253
        %6664 = vmatpush1.bf16.msra.mxu0 %v5252
        %6665 = vmatprep.subr.bf16.mxu0 %v5245
        %6666 = vmatpush1.bf16.msra.mxu0 %v5244
        %6667 = vmatprep.subr.bf16.mxu0 %v5237
        %6668 = vmatpush1.bf16.msra.mxu0 %v5236
        %6669 = vmatprep.subr.bf16.mxu0 %v5357
        %6670 = vmatpush2.bf16.msra.mxu0 %v5356
        %6671 = vmatprep.subr.bf16.mxu0 %v5349
        %6672 = vmatpush2.bf16.msra.mxu0 %v5348
        %6673 = vmatprep.subr.bf16.mxu0 %v5341
        %6674 = vmatpush2.bf16.msra.mxu0 %v5340
        %6675 = vmatprep.subr.bf16.mxu0 %v5333
        %6676 = vmatpush2.bf16.msra.mxu0 %v5332
        %6677 = vmatprep.subr.bf16.mxu0 %v5325
        %6678 = vmatpush2.bf16.msra.mxu0 %v5324
        %6679 = vmatprep.subr.bf16.mxu0 %v5317
        %6680 = vmatpush2.bf16.msra.mxu0 %v5316
        %6681 = vmatprep.subr.bf16.mxu0 %v5309
        %6682 = vmatpush2.bf16.msra.mxu0 %v5308
        %6683 = vmatprep.subr.bf16.mxu0 %v5301
        %6684 = vmatpush2.bf16.msra.mxu0 %v5300
        %6685 = vmatprep.mubr.bf16.mxu0 %v345
        %6686 = vmatmul.mubr.bf16.gmra.mxu0 %v344
        %v6687 = vpop.f32.mrf.mxu0
        %v6688 = vadd.f32 %v6647, %v6687
        %v6689 = vpop.f32.mrf.mxu0
        %v6690 = vadd.f32 %v6649, %v6689
        %v6691 = vpop.f32.mrf.mxu0
        %v6692 = vpop.f32.mrf.mxu0
        %6693 = vdwg.mxu0
        %6694 = vmatprep.subr.bf16.mxu0 %v5167
        %6695 = vmatpush1.bf16.msra.mxu0 %v5166
        %6696 = vmatprep.subr.bf16.mxu0 %v5159
        %6697 = vmatpush1.bf16.msra.mxu0 %v5158
        %6698 = vmatprep.subr.bf16.mxu0 %v5151
        %6699 = vmatpush1.bf16.msra.mxu0 %v5150
        %6700 = vmatprep.subr.bf16.mxu0 %v5143
        %6701 = vmatpush1.bf16.msra.mxu0 %v5142
        %6702 = vmatprep.subr.bf16.mxu0 %v5135
        %6703 = vmatpush1.bf16.msra.mxu0 %v5134
        %6704 = vmatprep.subr.bf16.mxu0 %v5127
        %6705 = vmatpush1.bf16.msra.mxu0 %v5126
        %6706 = vmatprep.subr.bf16.mxu0 %v5119
        %6707 = vmatpush1.bf16.msra.mxu0 %v5118
        %6708 = vmatprep.subr.bf16.mxu0 %v5111
        %6709 = vmatpush1.bf16.msra.mxu0 %v5110
        %6710 = vmatprep.subr.bf16.mxu0 %v5231
        %6711 = vmatpush2.bf16.msra.mxu0 %v5230
        %6712 = vmatprep.subr.bf16.mxu0 %v5223
        %6713 = vmatpush2.bf16.msra.mxu0 %v5222
        %6714 = vmatprep.subr.bf16.mxu0 %v5215
        %6715 = vmatpush2.bf16.msra.mxu0 %v5214
        %6716 = vmatprep.subr.bf16.mxu0 %v5207
        %6717 = vmatpush2.bf16.msra.mxu0 %v5206
        %6718 = vmatprep.subr.bf16.mxu0 %v5199
        %6719 = vmatpush2.bf16.msra.mxu0 %v5198
        %6720 = vmatprep.subr.bf16.mxu0 %v5191
        %6721 = vmatpush2.bf16.msra.mxu0 %v5190
        %6722 = vmatprep.subr.bf16.mxu0 %v5183
        %6723 = vmatpush2.bf16.msra.mxu0 %v5182
        %6724 = vmatprep.subr.bf16.mxu0 %v5175
        %6725 = vmatpush2.bf16.msra.mxu0 %v5174
        %6726 = vmatprep.mubr.bf16.mxu0 %v343
        %6727 = vmatmul.mubr.bf16.gmra.mxu0 %v342
        %v6728 = vpop.f32.mrf.mxu0
        %v6729 = vadd.f32 0.0, %v6728
        %v6730 = vpop.f32.mrf.mxu0
        %v6731 = vadd.f32 0.0, %v6730
        %v6732 = vpop.f32.mrf.mxu0
        %v6733 = vpop.f32.mrf.mxu0
        %6734 = vdwg.mxu0
        %6735 = vmatprep.subr.bf16.mxu0 %v5295
        %6736 = vmatpush1.bf16.msra.mxu0 %v5294
        %6737 = vmatprep.subr.bf16.mxu0 %v5287
        %6738 = vmatpush1.bf16.msra.mxu0 %v5286
        %6739 = vmatprep.subr.bf16.mxu0 %v5279
        %6740 = vmatpush1.bf16.msra.mxu0 %v5278
        %6741 = vmatprep.subr.bf16.mxu0 %v5271
        %6742 = vmatpush1.bf16.msra.mxu0 %v5270
        %6743 = vmatprep.subr.bf16.mxu0 %v5263
        %6744 = vmatpush1.bf16.msra.mxu0 %v5262
        %6745 = vmatprep.subr.bf16.mxu0 %v5255
        %6746 = vmatpush1.bf16.msra.mxu0 %v5254
        %6747 = vmatprep.subr.bf16.mxu0 %v5247
        %6748 = vmatpush1.bf16.msra.mxu0 %v5246
        %6749 = vmatprep.subr.bf16.mxu0 %v5239
        %6750 = vmatpush1.bf16.msra.mxu0 %v5238
        %6751 = vmatprep.subr.bf16.mxu0 %v5359
        %6752 = vmatpush2.bf16.msra.mxu0 %v5358
        %6753 = vmatprep.subr.bf16.mxu0 %v5351
        %6754 = vmatpush2.bf16.msra.mxu0 %v5350
        %6755 = vmatprep.subr.bf16.mxu0 %v5343
        %6756 = vmatpush2.bf16.msra.mxu0 %v5342
        %6757 = vmatprep.subr.bf16.mxu0 %v5335
        %6758 = vmatpush2.bf16.msra.mxu0 %v5334
        %6759 = vmatprep.subr.bf16.mxu0 %v5327
        %6760 = vmatpush2.bf16.msra.mxu0 %v5326
        %6761 = vmatprep.subr.bf16.mxu0 %v5319
        %6762 = vmatpush2.bf16.msra.mxu0 %v5318
        %6763 = vmatprep.subr.bf16.mxu0 %v5311
        %6764 = vmatpush2.bf16.msra.mxu0 %v5310
        %6765 = vmatprep.subr.bf16.mxu0 %v5303
        %6766 = vmatpush2.bf16.msra.mxu0 %v5302
        %6767 = vmatprep.mubr.bf16.mxu0 %v345
        %6768 = vmatmul.mubr.bf16.gmra.mxu0 %v344
        %v6769 = vpop.f32.mrf.mxu0
        %v6770 = vadd.f32 %v6729, %v6769
        %v6771 = vpop.f32.mrf.mxu0
        %v6772 = vadd.f32 %v6731, %v6771
        %v6773 = vpop.f32.mrf.mxu0
        %v6774 = vpop.f32.mrf.mxu0
        %6775 = vdwg.mxu0
        %6776 = vmatprep.subr.bf16.mxu0 %v5169
        %6777 = vmatpush1.bf16.msra.mxu0 %v5168
        %6778 = vmatprep.subr.bf16.mxu0 %v5161
        %6779 = vmatpush1.bf16.msra.mxu0 %v5160
        %6780 = vmatprep.subr.bf16.mxu0 %v5153
        %6781 = vmatpush1.bf16.msra.mxu0 %v5152
        %6782 = vmatprep.subr.bf16.mxu0 %v5145
        %6783 = vmatpush1.bf16.msra.mxu0 %v5144
        %6784 = vmatprep.subr.bf16.mxu0 %v5137
        %6785 = vmatpush1.bf16.msra.mxu0 %v5136
        %6786 = vmatprep.subr.bf16.mxu0 %v5129
        %6787 = vmatpush1.bf16.msra.mxu0 %v5128
        %6788 = vmatprep.subr.bf16.mxu0 %v5121
        %6789 = vmatpush1.bf16.msra.mxu0 %v5120
        %6790 = vmatprep.subr.bf16.mxu0 %v5113
        %6791 = vmatpush1.bf16.msra.mxu0 %v5112
        %6792 = vmatprep.subr.bf16.mxu0 %v5233
        %6793 = vmatpush2.bf16.msra.mxu0 %v5232
        %6794 = vmatprep.subr.bf16.mxu0 %v5225
        %6795 = vmatpush2.bf16.msra.mxu0 %v5224
        %6796 = vmatprep.subr.bf16.mxu0 %v5217
        %6797 = vmatpush2.bf16.msra.mxu0 %v5216
        %6798 = vmatprep.subr.bf16.mxu0 %v5209
        %6799 = vmatpush2.bf16.msra.mxu0 %v5208
        %6800 = vmatprep.subr.bf16.mxu0 %v5201
        %6801 = vmatpush2.bf16.msra.mxu0 %v5200
        %6802 = vmatprep.subr.bf16.mxu0 %v5193
        %6803 = vmatpush2.bf16.msra.mxu0 %v5192
        %6804 = vmatprep.subr.bf16.mxu0 %v5185
        %6805 = vmatpush2.bf16.msra.mxu0 %v5184
        %6806 = vmatprep.subr.bf16.mxu0 %v5177
        %6807 = vmatpush2.bf16.msra.mxu0 %v5176
        %6808 = vmatprep.mubr.bf16.mxu0 %v343
        %6809 = vmatmul.mubr.bf16.gmra.mxu0 %v342
        %v6810 = vpop.f32.mrf.mxu0
        %v6811 = vadd.f32 0.0, %v6810
        %v6812 = vpop.f32.mrf.mxu0
        %v6813 = vadd.f32 0.0, %v6812
        %v6814 = vpop.f32.mrf.mxu0
        %v6815 = vpop.f32.mrf.mxu0
        %6816 = vdwg.mxu0
        %6817 = vmatprep.subr.bf16.mxu0 %v5297
        %6818 = vmatpush1.bf16.msra.mxu0 %v5296
        %6819 = vmatprep.subr.bf16.mxu0 %v5289
        %6820 = vmatpush1.bf16.msra.mxu0 %v5288
        %6821 = vmatprep.subr.bf16.mxu0 %v5281
        %6822 = vmatpush1.bf16.msra.mxu0 %v5280
        %6823 = vmatprep.subr.bf16.mxu0 %v5273
        %6824 = vmatpush1.bf16.msra.mxu0 %v5272
        %6825 = vmatprep.subr.bf16.mxu0 %v5265
        %6826 = vmatpush1.bf16.msra.mxu0 %v5264
        %6827 = vmatprep.subr.bf16.mxu0 %v5257
        %6828 = vmatpush1.bf16.msra.mxu0 %v5256
        %6829 = vmatprep.subr.bf16.mxu0 %v5249
        %6830 = vmatpush1.bf16.msra.mxu0 %v5248
        %6831 = vmatprep.subr.bf16.mxu0 %v5241
        %6832 = vmatpush1.bf16.msra.mxu0 %v5240
        %6833 = vmatprep.subr.bf16.mxu0 %v5361
        %6834 = vmatpush2.bf16.msra.mxu0 %v5360
        %6835 = vmatprep.subr.bf16.mxu0 %v5353
        %6836 = vmatpush2.bf16.msra.mxu0 %v5352
        %6837 = vmatprep.subr.bf16.mxu0 %v5345
        %6838 = vmatpush2.bf16.msra.mxu0 %v5344
        %6839 = vmatprep.subr.bf16.mxu0 %v5337
        %6840 = vmatpush2.bf16.msra.mxu0 %v5336
        %6841 = vmatprep.subr.bf16.mxu0 %v5329
        %6842 = vmatpush2.bf16.msra.mxu0 %v5328
        %6843 = vmatprep.subr.bf16.mxu0 %v5321
        %6844 = vmatpush2.bf16.msra.mxu0 %v5320
        %6845 = vmatprep.subr.bf16.mxu0 %v5313
        %6846 = vmatpush2.bf16.msra.mxu0 %v5312
        %6847 = vmatprep.subr.bf16.mxu0 %v5305
        %6848 = vmatpush2.bf16.msra.mxu0 %v5304
        %6849 = vmatprep.mubr.bf16.mxu0 %v345
        %6850 = vmatmul.mubr.bf16.gmra.mxu0 %v344
        %v6851 = vpop.f32.mrf.mxu0
        %v6852 = vadd.f32 %v6811, %v6851
        %v6853 = vpop.f32.mrf.mxu0
        %v6854 = vadd.f32 %v6813, %v6853
        %v6855 = vpop.f32.mrf.mxu0
        %v6856 = vpop.f32.mrf.mxu0
        %6857 = vdwg.mxu0
        %6858 = vmatprep.subr.bf16.mxu0 %v5171
        %6859 = vmatpush1.bf16.msra.mxu0 %v5170
        %6860 = vmatprep.subr.bf16.mxu0 %v5163
        %6861 = vmatpush1.bf16.msra.mxu0 %v5162
        %6862 = vmatprep.subr.bf16.mxu0 %v5155
        %6863 = vmatpush1.bf16.msra.mxu0 %v5154
        %6864 = vmatprep.subr.bf16.mxu0 %v5147
        %6865 = vmatpush1.bf16.msra.mxu0 %v5146
        %6866 = vmatprep.subr.bf16.mxu0 %v5139
        %6867 = vmatpush1.bf16.msra.mxu0 %v5138
        %6868 = vmatprep.subr.bf16.mxu0 %v5131
        %6869 = vmatpush1.bf16.msra.mxu0 %v5130
        %6870 = vmatprep.subr.bf16.mxu0 %v5123
        %6871 = vmatpush1.bf16.msra.mxu0 %v5122
        %6872 = vmatprep.subr.bf16.mxu0 %v5115
        %6873 = vmatpush1.bf16.msra.mxu0 %v5114
        %6874 = vmatprep.subr.bf16.mxu0 %v5235
        %6875 = vmatpush2.bf16.msra.mxu0 %v5234
        %6876 = vmatprep.subr.bf16.mxu0 %v5227
        %6877 = vmatpush2.bf16.msra.mxu0 %v5226
        %6878 = vmatprep.subr.bf16.mxu0 %v5219
        %6879 = vmatpush2.bf16.msra.mxu0 %v5218
        %6880 = vmatprep.subr.bf16.mxu0 %v5211
        %6881 = vmatpush2.bf16.msra.mxu0 %v5210
        %6882 = vmatprep.subr.bf16.mxu0 %v5203
        %6883 = vmatpush2.bf16.msra.mxu0 %v5202
        %6884 = vmatprep.subr.bf16.mxu0 %v5195
        %6885 = vmatpush2.bf16.msra.mxu0 %v5194
        %6886 = vmatprep.subr.bf16.mxu0 %v5187
        %6887 = vmatpush2.bf16.msra.mxu0 %v5186
        %6888 = vmatprep.subr.bf16.mxu0 %v5179
        %6889 = vmatpush2.bf16.msra.mxu0 %v5178
        %6890 = vmatprep.mubr.bf16.mxu0 %v343
        %6891 = vmatmul.mubr.bf16.gmra.mxu0 %v342
        %v6892 = vpop.f32.mrf.mxu0
        %v6893 = vadd.f32 0.0, %v6892
        %v6894 = vpop.f32.mrf.mxu0
        %v6895 = vadd.f32 0.0, %v6894
        %v6896 = vpop.f32.mrf.mxu0
        %v6897 = vpop.f32.mrf.mxu0
        %6898 = vdwg.mxu0
        %6899 = vmatprep.subr.bf16.mxu0 %v5299
        %6900 = vmatpush1.bf16.msra.mxu0 %v5298
        %6901 = vmatprep.subr.bf16.mxu0 %v5291
        %6902 = vmatpush1.bf16.msra.mxu0 %v5290
        %6903 = vmatprep.subr.bf16.mxu0 %v5283
        %6904 = vmatpush1.bf16.msra.mxu0 %v5282
        %6905 = vmatprep.subr.bf16.mxu0 %v5275
        %6906 = vmatpush1.bf16.msra.mxu0 %v5274
        %6907 = vmatprep.subr.bf16.mxu0 %v5267
        %6908 = vmatpush1.bf16.msra.mxu0 %v5266
        %6909 = vmatprep.subr.bf16.mxu0 %v5259
        %6910 = vmatpush1.bf16.msra.mxu0 %v5258
        %6911 = vmatprep.subr.bf16.mxu0 %v5251
        %6912 = vmatpush1.bf16.msra.mxu0 %v5250
        %6913 = vmatprep.subr.bf16.mxu0 %v5243
        %6914 = vmatpush1.bf16.msra.mxu0 %v5242
        %6915 = vmatprep.subr.bf16.mxu0 %v5363
        %6916 = vmatpush2.bf16.msra.mxu0 %v5362
        %6917 = vmatprep.subr.bf16.mxu0 %v5355
        %6918 = vmatpush2.bf16.msra.mxu0 %v5354
        %6919 = vmatprep.subr.bf16.mxu0 %v5347
        %6920 = vmatpush2.bf16.msra.mxu0 %v5346
        %6921 = vmatprep.subr.bf16.mxu0 %v5339
        %6922 = vmatpush2.bf16.msra.mxu0 %v5338
        %6923 = vmatprep.subr.bf16.mxu0 %v5331
        %6924 = vmatpush2.bf16.msra.mxu0 %v5330
        %6925 = vmatprep.subr.bf16.mxu0 %v5323
        %6926 = vmatpush2.bf16.msra.mxu0 %v5322
        %6927 = vmatprep.subr.bf16.mxu0 %v5315
        %6928 = vmatpush2.bf16.msra.mxu0 %v5314
        %6929 = vmatprep.subr.bf16.mxu0 %v5307
        %6930 = vmatpush2.bf16.msra.mxu0 %v5306
        %6931 = vmatprep.mubr.bf16.mxu0 %v345
        %6932 = vmatmul.mubr.bf16.gmra.mxu0 %v344
        %v6933 = vpop.f32.mrf.mxu0
        %v6934 = vadd.f32 %v6893, %v6933
        %v6935 = vpop.f32.mrf.mxu0
        %v6936 = vadd.f32 %v6895, %v6935
        %v6937 = vpop.f32.mrf.mxu0
        %v6938 = vpop.f32.mrf.mxu0
        %6939 = vdwg.mxu0
        %v6940 = vadd.f32 %v6360, %v6688
        %v6941 = vadd.f32 %v6362, %v6690
        %v6942 = vadd.f32 %v6442, %v6770
        %v6943 = vadd.f32 %v6444, %v6772
        %v6944 = vadd.f32 %v6524, %v6852
        %v6945 = vadd.f32 %v6526, %v6854
        %v6946 = vadd.f32 %v6606, %v6934
        %v6947 = vadd.f32 %v6608, %v6936
        %v6948 = vmax.f32 %v5948, %v6940
        %v6949 = vmax.f32 %v5949, %v6941
        %v6950 = vmax.f32 %v5950, %v6942
        %v6951 = vmax.f32 %v5951, %v6943
        %v6952 = vmax.f32 %v5952, %v6944
        %v6953 = vmax.f32 %v5953, %v6945
        %v6954 = vmax.f32 %v5954, %v6946
        %v6955 = vmax.f32 %v5955, %v6947
        %v6956 = vmax.f32 %v6948, %v6952
        %v6957 = vmax.f32 %v6949, %v6953
        %v6958 = vmax.f32 %v6950, %v6954
        %v6959 = vmax.f32 %v6951, %v6955
        %v6960 = vld [vmem:[#allocation4] sm:$0xf]
        %v6962 = vlaneseq
        %v6963 = vshrl.u32 %v6962, 7
        %v6964 = vsub.s32 0, %v6963
        %v6965 = vrot.slane %v6960, %v6964
        %v6966 = vlaneseq
        %v6967 = vshrl.u32 %v6966, 7
        %v6968 = vsub.s32 1, %v6967
        %v6969 = vrot.slane %v6960, %v6968
        %v6970 = vlaneseq
        %v6971 = vshrl.u32 %v6970, 7
        %v6972 = vsub.s32 2, %v6971
        %v6973 = vrot.slane %v6960, %v6972
        %v6974 = vlaneseq
        %v6975 = vshrl.u32 %v6974, 7
        %v6976 = vsub.s32 3, %v6975
        %v6977 = vrot.slane %v6960, %v6976
        %v6982 = vadd.f32 %v6956, %v6965
        %v6983 = vadd.f32 %v6957, %v6969
        %v6984 = vadd.f32 %v6958, %v6973
        %v6985 = vadd.f32 %v6959, %v6977
        %v6986 = vmax.f32 %v6982, 0.0
        %v6987 = vmax.f32 %v6983, 0.0
        %v6988 = vmax.f32 %v6984, 0.0
        %v6989 = vmax.f32 %v6985, 0.0
        %v6990 = vpack.c.bf16 %v6986, %v6986
        %v6991 = vpack.c.bf16 %v6987, %v6987
        %v6992 = vpack.c.bf16 %v6988, %v6988
        %v6993 = vpack.c.bf16 %v6989, %v6989
        %v6998 = vunpack.c.l.b16 %v6990
        %v6999 = vunpack.c.l.b16 %v6991
        %v7000 = vunpack.c.l.b16 %v6992
        %v7001 = vunpack.c.l.b16 %v6993
        %v7002 = vpack.c.b16 %v6999, %v6998
        %v7003 = vpack.c.b16 %v7001, %v7000
        %7006 = vst [vmem:[%s245] sm:$0xff] %v7002
        %7007 = vst [vmem:[%s245 + $0x8] sm:$0xff] %v7003
        %p7008 = scmp.lt.s32.totalorder %s17, 1
        %s7009 = scalar_select %p7008, %s17, 1
        %s7010 = smul.addr %s7009, 4
        %s7011 = smul.addr %s7010, 4
        %s7012 = scalar_lea.vmem %s4, %s7011
        // Predicated region
        $region45: #{cnn_forward.4} parent=35 // pred_check
          %p7013 = pneg %p129
        $region46: #{cnn_forward.4} parent=35 // pred_check_branch
          %7015 = sbr.rel (%p7013) target = $region48
        $region47: #{cnn_forward.4} parent=35 // pred_region
          _
        $region48: #{cnn_forward.4} parent=35 // pred_fallthru
          _
      $region36: #{cnn_forward.4} parent=5 // pred_fallthru
        _
      %p7016 = scmp.le.s32.totalorder 2, %s12
      // Predicated region
      $region49: #{cnn_forward.4} parent=5 // pred_check
        %p7017 = pneg %p7016
      $region50: #{cnn_forward.4} parent=5 // pred_check_branch
        %7019 = sbr.rel (%p7017) target = $region52
      $region51: #{cnn_forward.4} parent=5 // pred_region
        %s7020 = ssub.s32 %s12, 2
        // Predicated region
        $region53: #{cnn_forward.4} parent=51 // pred_check
          %p7021 = pneg %p135
        $region54: #{cnn_forward.4} parent=51 // pred_check_branch
          %7023 = sbr.rel (%p7021) target = $region56
        $region55: #{cnn_forward.4} parent=51 // pred_region
          %p7024 = scmp.lt.s32.totalorder %s18, 1
          %s7025 = scalar_select %p7024, %s18, 1
          %s7026 = smul.addr %s7025, 4
          %s7027 = smul.addr %s7026, 4
          %s7028 = scalar_lea.vmem %s4, %s7027
        $region56: #{cnn_forward.4} parent=51 // pred_fallthru
          _
      $region52: #{cnn_forward.4} parent=5 // pred_fallthru
        _
    $region6: #{cnn_forward.4} parent=1 // loop_footer
      %s16 = sadd.s32 1, %s12
    $region7: #{cnn_forward.4} parent=1 // loop_footer_branch
      %11 = sbr.rel target = $region3
    $region8: #{cnn_forward.4} parent=1 // loop_exit
      _
    %7029 = vsyncpa [#allocation3], 1
    %s7030 = scalar_lea.sflag [#allocation3], 1
    %7031 = vsyncpa %s7030, 1
    %7032 = vsyncpa [#allocation5], 1

</llo_original>
